<compile_context>
chip_gen: v6e
topology: v6e:2x2x1
jax: 0.10.0
libtpu: 0.0.40
codegen_flags: <defaults>
</compile_context>

<pallas_src>
import functools
import numpy as np

import jax
import jax.numpy as jnp
from jax import lax
from jax.experimental import pallas as pl
from jax.experimental.pallas import tpu as pltpu


# ----------------------------------------------------------------------------
# Synthetic inner-network dimensions (the net_cls instance) and inner-loop lr.
# ----------------------------------------------------------------------------
ATOM_DIM = 8
N_ATOMS = 16
IMG_C, IMG_H, IMG_W = 4, 16, 16
IMG_DIM = IMG_C * IMG_H * IMG_W
HIDDEN = 32
N_CLASSES = 2
INNER_LR = 0.001  # optim.SGD(..., lr=0.001) on theta_pi


def init_params(key):
    ks = jax.random.split(key, 3)
    return {
        "Wg": 0.1 * jax.random.normal(ks[0], (ATOM_DIM, HIDDEN), jnp.float32),
        "bg": jnp.zeros((HIDDEN,), jnp.float32),
        "Wi": 0.02 * jax.random.normal(ks[1], (IMG_DIM, HIDDEN), jnp.float32),
        "bi": jnp.zeros((HIDDEN,), jnp.float32),
        "Wc": 0.1 * jax.random.normal(ks[2], (2 * HIDDEN, N_CLASSES),
                                      jnp.float32),
        "bc": jnp.zeros((N_CLASSES,), jnp.float32),
    }


# ----------------------------------------------------------------------------
# In-kernel matmul helpers: all transpose variants via dot_general dimension
# numbers (no physical transposes anywhere inside the kernel).
# ----------------------------------------------------------------------------
def _dot(a, b):          # a @ b
    return lax.dot_general(a, b, (((1,), (0,)), ((), ())),
                           preferred_element_type=jnp.float32)


def _dot_at_b(a, b):     # a^T @ b   (contract the row axis of both)
    return lax.dot_general(a, b, (((0,), (0,)), ((), ())),
                           preferred_element_type=jnp.float32)


def _dot_a_bt(a, b):     # a @ b^T   (contract the column axis of both)
    return lax.dot_general(a, b, (((1,), (1,)), ((), ())),
                           preferred_element_type=jnp.float32)


# ----------------------------------------------------------------------------
# Layout of the packed (rows, 128) f32 output slab (per episode).
# ----------------------------------------------------------------------------
def _slab_layout(q):
    d = ATOM_DIM
    r_dbg, r_dbi, r_dbc = d, d + 1, d + 2
    r_loss, r_pred = d + 3, d + 4
    r_dwc = r_pred + q
    rows = -(-(r_dwc + 2 * HIDDEN) // 8) * 8      # round up to sublane multiple
    return r_dbg, r_dbi, r_dbc, r_loss, r_pred, r_dwc, rows


# ----------------------------------------------------------------------------
# Fused episode kernel: theta_pi in VMEM scratch, unrolled inner SGD loop +
# query forward/backward.  One grid step == one episode.
# ----------------------------------------------------------------------------
def _make_episode_kernel(num_updates, lr, hidden, n_classes):
    H, C = hidden, n_classes

    def fwd_bwd(params, M, Psc, img, yoh):
        """Forward + analytic backward (grads w.r.t. params only).

        M    [R, D]   : message-passed atom features (R = n*N_atoms), hoisted
        Psc  [n, R]   : masked-mean pooling selector with 1/deg folded in
        img  [n, Pd]  : flattened NCHW image
        yoh  [n, C]   : one-hot labels
        """
        Wg, bg, WiT, bi, Wc, bc = params
        n = img.shape[0]
        inv_n = 1.0 / n

        # -------- forward --------
        g_pre = _dot(M, Wg) + bg                      # [R, H]
        g_act = jnp.maximum(g_pre, 0.0)
        pool = _dot(Psc, g_act)                       # [n, H] masked mean pool
        i_pre = _dot_a_bt(img, WiT) + bi              # [n, H]  (Wi kept as Wi^T)
        h_img = jnp.maximum(i_pre, 0.0)
        cat = jnp.concatenate([pool, h_img], axis=1)  # [n, 2H]
        logits = _dot(cat, Wc) + bc                   # [n, C]
        zmax = jnp.max(logits, axis=-1, keepdims=True)
        z = logits - zmax
        ez = jnp.exp(z)
        sez = jnp.sum(ez, axis=-1, keepdims=True)
        probs = ez * pl.reciprocal(sez, approx=True)  # EUP slot
        logp = z - jnp.log(sez)                       # log_softmax
        loss = jnp.sum(-inv_n * jnp.sum(yoh * logp, axis=-1, keepdims=True),
                       axis=0, keepdims=True)         # [1, 1]

        # -------- backward (w.r.t. params only; inputs are constants) -------
        dlogits = (probs - yoh) * inv_n               # [n, C]
        dWc = _dot_at_b(cat, dlogits)                 # [2H, C]
        dbc = jnp.sum(dlogits, axis=0, keepdims=True)
        dcat = _dot_a_bt(dlogits, Wc)                 # [n, 2H]
        dpool = dcat[:, 0:H]
        dh_img = dcat[:, H:2 * H]
        # image branch (gradient produced directly in transposed, lane-dense form)
        di_pre = jnp.where(i_pre > 0.0, dh_img, 0.0)
        dWiT = _dot_at_b(di_pre, img)                 # [H, Pd]
        dbi = jnp.sum(di_pre, axis=0, keepdims=True)
        # graph branch
        dg_act = _dot_at_b(Psc, dpool)                # [R, H]
        dg_pre = jnp.where(g_pre > 0.0, dg_act, 0.0)
        dWg = _dot_at_b(M, dg_pre)                    # [D, H]
        dbg = jnp.sum(dg_pre, axis=0, keepdims=True)
        return loss, probs, (dWg, dbg, dWiT, dbi, dWc, dbc)

    def kernel(sM_ref, sP_ref, sI_ref, sY_ref,
               qM_ref, qP_ref, qI_ref, qY_ref,
               Wg_ref, bg_ref, WiT_ref, bi_ref, Wc_ref, bc_ref,
               small_ref, dWiT_ref,
               Wg_s, bg_s, WiT_s, bi_s, Wc_s, bc_s):
        # update_pi(): theta -> theta_pi (VMEM-resident for the whole episode;
        # re-initialized at every grid step, so episodes are independent and
        # the grid axis can be "parallel").
        Wg_s[...] = Wg_ref[...]
        bg_s[...] = bg_ref[...]
        WiT_s[...] = WiT_ref[...]
        bi_s[...] = bi_ref[...]
        Wc_s[...] = Wc_ref[...]
        bc_s[...] = bc_ref[...]

        sM = sM_ref[...]; sP = sP_ref[...]; sI = sI_ref[...]; sY = sY_ref[...]
        qM = qM_ref[...]; qP = qP_ref[...]; qI = qI_ref[...]; qY = qY_ref[...]

        def read_pi():
            return (Wg_s[...], bg_s[...], WiT_s[...], bi_s[...],
                    Wc_s[...], bc_s[...])

        def inner_step(_, carry):
            p = read_pi()
            _, _, g = fwd_bwd(p, sM, sP, sI, sY)
            Wg_s[...] = p[0] - lr * g[0]
            bg_s[...] = p[1] - lr * g[1]
            WiT_s[...] = p[2] - lr * g[2]
            bi_s[...] = p[3] - lr * g[3]
            Wc_s[...] = p[4] - lr * g[4]
            bc_s[...] = p[5] - lr * g[5]
            return carry

        if num_updates > 0:
            # Static trip count; fully unrolled so the LLO scheduler can
            # overlap the tiny MXU pushes of adjacent gradient dots.
            lax.fori_loop(0, num_updates, inner_step, 0, unroll=True)

        # Query (meta-test) pass: loss, P(class 1), grads w.r.t. theta_pi.
        loss_q, probs_q, g = fwd_bwd(read_pi(), qM, qP, qI, qY)
        dWg, dbg, dWiT, dbi, dWc, dbc = g

        Q = qY_ref.shape[0]
        D = Wg_ref.shape[0]
        r_dbg, r_dbi, r_dbc, r_loss, r_pred, r_dwc, _ = _slab_layout(Q)

        # Packed lane-dense output slab (one dense HBM writeback per episode).
        small_ref[...] = jnp.zeros_like(small_ref)
        small_ref[0:D, 0:H] = dWg
        small_ref[r_dbg:r_dbg + 1, 0:H] = dbg
        small_ref[r_dbi:r_dbi + 1, 0:H] = dbi
        small_ref[r_dbc:r_dbc + 1, 0:C] = dbc
        small_ref[r_loss:r_loss + 1, 0:1] = loss_q
        small_ref[r_pred:r_pred + Q, 0:1] = probs_q[:, 1:2]
        small_ref[r_dwc:r_dwc + 2 * H, 0:C] = dWc
        dWiT_ref[...] = dWiT                          # lane-dense (H, IMG_DIM)

    return kernel


# ----------------------------------------------------------------------------
# JAX wrapper: episode-constant data massaging (pure layout work, once per
# episode, outside the kernel) + ONE pallas_call over a grid of E episodes.
# ----------------------------------------------------------------------------
def _prep_set(atom, bond, mask, img, y):
    """Batched (leading E axis) episode-set preprocessing."""
    f32 = jnp.float32
    atom = atom.astype(f32)
    bond = bond.astype(f32)
    mask = mask.astype(f32)
    E, S, N, D = atom.shape
    # Param-independent message passing hoisted out of the kernel.
    M = jnp.einsum("esij,esjd->esid", bond, atom).reshape(E, S * N, D)
    # Masked-mean pooling selector with 1/deg folded in:  pool = Psc @ g_act.
    deg = jnp.maximum(jnp.sum(mask, axis=2, keepdims=True), 1.0)     # (E,S,1)
    eye = jnp.eye(S, dtype=f32)
    Psc = (eye[None, :, :, None] * (mask / deg)[:, None, :, :]
           ).reshape(E, S, S * N)
    I2 = img.astype(f32).reshape(E, S, -1)
    Y = jax.nn.one_hot(y.astype(jnp.int32), N_CLASSES, dtype=f32)
    return M, Psc, I2, Y


def _fwd_bwd_flops(n, rows):
    h, c = HIDDEN, N_CLASSES
    return 2 * (2 * rows * ATOM_DIM * h + 2 * n * rows * h
                + 2 * n * IMG_DIM * h + 3 * n * 2 * h * c)


@functools.partial(jax.jit, static_argnums=(11,))
def _episodes(theta, sa, sb, sm, si, sy, qa, qb, qm, qi, qy, num_updates):
    f32 = jnp.float32
    sM, sP, sI, sY = _prep_set(sa, sb, sm, si, sy)
    qM, qP, qI, qY = _prep_set(qa, qb, qm, qi, qy)
    E = sM.shape[0]
    S, Q = sI.shape[1], qI.shape[1]
    Rs, Rq = sM.shape[1], qM.shape[1]

    Wg = theta["Wg"].astype(f32)                                # (D, H)
    bg = theta["bg"].astype(f32).reshape(1, HIDDEN)
    WiT = jnp.transpose(theta["Wi"].astype(f32))                # (H, IMG_DIM)
    bi = theta["bi"].astype(f32).reshape(1, HIDDEN)
    Wc = theta["Wc"].astype(f32)                                # (2H, C)
    bc = theta["bc"].astype(f32).reshape(1, N_CLASSES)

    r_dbg, r_dbi, r_dbc, r_loss, r_pred, r_dwc, slab_rows = _slab_layout(Q)

    inputs = (sM, sP, sI, sY, qM, qP, qI, qY, Wg, bg, WiT, bi, Wc, bc)
    out_shapes = (
        jax.ShapeDtypeStruct((E, slab_rows, 128), f32),   # packed small grads/loss/pred
        jax.ShapeDtypeStruct((E, HIDDEN, IMG_DIM), f32),  # dWi^T (lane-dense)
    )

    def ep_spec(shape):       # per-episode 3-D array -> 2-D block in kernel
        return pl.BlockSpec((None,) + tuple(shape[1:]), lambda e: (e, 0, 0))

    def fixed_spec(shape):    # episode-invariant theta parameter
        return pl.BlockSpec(tuple(shape), lambda e: (0, 0))

    in_specs = ([ep_spec(x.shape) for x in inputs[:8]]
                + [fixed_spec(x.shape) for x in inputs[8:]])
    out_specs = [ep_spec(s.shape) for s in out_shapes]

    flops = E * (num_updates * _fwd_bwd_flops(S, Rs) + _fwd_bwd_flops(Q, Rq))
    transc = E * (num_updates + 1) * 4 * max(S, Q) * N_CLASSES
    bytes_acc = 4 * (sum(int(np.prod(x.shape)) for x in inputs)
                     + sum(int(np.prod(s.shape)) for s in out_shapes))
    ce = pl.CostEstimate(flops=int(flops), transcendentals=int(transc),
                         bytes_accessed=int(bytes_acc))

    kernel = _make_episode_kernel(num_updates, INNER_LR, HIDDEN, N_CLASSES)
    small, dWiT = pl.pallas_call(
        kernel,
        out_shape=out_shapes,
        grid=(E,),
        in_specs=in_specs,
        out_specs=out_specs,
        scratch_shapes=[
            pltpu.VMEM(Wg.shape, f32),
            pltpu.VMEM(bg.shape, f32),
            pltpu.VMEM(WiT.shape, f32),
            pltpu.VMEM(bi.shape, f32),
            pltpu.VMEM(Wc.shape, f32),
            pltpu.VMEM(bc.shape, f32),
        ],
        compiler_params=pltpu.CompilerParams(
            dimension_semantics=("parallel",)),   # episodes -> both v7x cores
        cost_estimate=ce,
    )(*inputs)

    loss = small[:, r_loss, 0]                          # (E,)
    pred = small[:, r_pred:r_pred + Q, 0]               # (E, Q)  P(class 1)
    grads_pi = {
        "Wg": small[:, 0:ATOM_DIM, 0:HIDDEN],
        "bg": small[:, r_dbg, 0:HIDDEN],
        "Wi": jnp.transpose(dWiT, (0, 2, 1)),           # back to (IMG_DIM, H)
        "bi": small[:, r_dbi, 0:HIDDEN],
        "Wc": small[:, r_dwc:r_dwc + 2 * HIDDEN, 0:N_CLASSES],
        "bc": small[:, r_dbc, 0:N_CLASSES],
    }
    return loss, pred, grads_pi


# ----------------------------------------------------------------------------
# Metrics (host-side numpy — same role as accuracy/precision/... in meta.py).
# TODO(synk): the original metrics come from an external module in the PyTorch
# repo; simple numpy equivalents are used here.
# ----------------------------------------------------------------------------
def _confusion(y_true, scores, thr=0.5):
    y_true = np.asarray(y_true).astype(np.int64)
    y_pred = (np.asarray(scores) >= thr).astype(np.int64)
    tp = int(np.sum((y_pred == 1) & (y_true == 1)))
    tn = int(np.sum((y_pred == 0) & (y_true == 0)))
    fp = int(np.sum((y_pred == 1) & (y_true == 0)))
    fn = int(np.sum((y_pred == 0) & (y_true == 1)))
    return tp, tn, fp, fn


def accuracy(y, s):
    tp, tn, fp, fn = _confusion(y, s)
    return (tp + tn) / max(tp + tn + fp + fn, 1)


def precision(y, s):
    tp, tn, fp, fn = _confusion(y, s)
    return tp / max(tp + fp, 1)


def recall(y, s):
    tp, tn, fp, fn = _confusion(y, s)
    return tp / max(tp + fn, 1)


def f1(y, s):
    p, r = precision(y, s), recall(y, s)
    return 2 * p * r / max(p + r, 1e-12)


def mcc(y, s):
    tp, tn, fp, fn = _confusion(y, s)
    denom = np.sqrt(float((tp + fp) * (tp + fn) * (tn + fp) * (tn + fn)))
    return (tp * tn - fp * fn) / denom if denom > 0 else 0.0


def roc(y, s):
    y = np.asarray(y).astype(np.int64)
    s = np.asarray(s, dtype=np.float64)
    pos, neg = s[y == 1], s[y == 0]
    if len(pos) == 0 or len(neg) == 0:
        return 0.5
    total = sum(float(np.sum(p > neg) + 0.5 * np.sum(p == neg)) for p in pos)
    return total / (len(pos) * len(neg))


# ----------------------------------------------------------------------------
# Learner: theta / theta_pi, inner SGD loop, query loss + grads_pi + metrics.
# ----------------------------------------------------------------------------
class Learner:
    def __init__(self, key):
        self.theta = init_params(key)
        self.lr = INNER_LR

    def parameters(self):
        return self.theta

    def forward(self, support_x_atom, support_x_bond, support_x_mask,
                support_x_img, support_y, query_x_atom, query_x_bond,
                query_x_mask, query_x_img, query_y, num_updates):
        ex = lambda x: jnp.asarray(x)[None]     # single episode -> E = 1
        loss, pred, grads = _episodes(
            self.theta, ex(support_x_atom), ex(support_x_bond),
            ex(support_x_mask), ex(support_x_img), ex(support_y),
            ex(query_x_atom), ex(query_x_bond), ex(query_x_mask),
            ex(query_x_img), ex(query_y), int(num_updates))
        grads_pi = {k: v[0] for k, v in grads.items()}
        pred_np = np.asarray(jax.device_get(pred[0]))
        y_np = [int(v) for v in np.asarray(jax.device_get(query_y))]
        metrics = (accuracy(y_np, pred_np), precision(y_np, pred_np),
                   recall(y_np, pred_np), mcc(y_np, pred_np),
                   roc(y_np, pred_np), f1(y_np, pred_np))
        return loss[0], grads_pi, metrics

    def net_forward(self, x_atom, x_bond, x_mask, x_img, y):
        # Forward on theta (no inner updates): reuse the fused episode kernel
        # with num_updates=0 and the same set as support & query.
        ex = lambda x: jnp.asarray(x)[None]
        loss, pred, _ = _episodes(self.theta, ex(x_atom), ex(x_bond),
                                  ex(x_mask), ex(x_img), ex(y), ex(x_atom),
                                  ex(x_bond), ex(x_mask), ex(x_img), ex(y), 0)
        return loss[0], pred[0]


# ----------------------------------------------------------------------------
# Demo
# ----------------------------------------------------------------------------
if __name__ == "__main__":
    key = jax.random.PRNGKey(0)
    k_param, k_data = jax.random.split(key)
    learner = Learner(k_param)

    S, Q = 4, 4
    ks = jax.random.split(k_data, 10)
    sa = jax.random.normal(ks[0], (S, N_ATOMS, ATOM_DIM), jnp.float32)
    sb = (jax.random.uniform(ks[1], (S, N_ATOMS, N_ATOMS)) > 0.7
          ).astype(jnp.float32)
    sm = (jax.random.uniform(ks[2], (S, N_ATOMS)) > 0.3).astype(jnp.float32)
    si = jax.random.normal(ks[3], (S, IMG_C, IMG_H, IMG_W), jnp.float32)
    sy = jax.random.randint(ks[4], (S,), 0, 2, jnp.int32)
    qa = jax.random.normal(ks[5], (Q, N_ATOMS, ATOM_DIM), jnp.float32)
    qb = (jax.random.uniform(ks[6], (Q, N_ATOMS, N_ATOMS)) > 0.7
          ).astype(jnp.float32)
    qm = (jax.random.uniform(ks[7], (Q, N_ATOMS)) > 0.3).astype(jnp.float32)
    qi = jax.random.normal(ks[8], (Q, IMG_C, IMG_H, IMG_W), jnp.float32)
    qy = jax.random.randint(ks[9], (Q,), 0, 2, jnp.int32)

    # Single-episode Learner.forward (spec semantics: 5 inner updates + query).
    loss_q, grads_pi, metrics = learner.forward(
        sa, sb, sm, si, sy, qa, qb, qm, qi, qy, num_updates=5)
    jax.block_until_ready(loss_q)
    jax.block_until_ready(grads_pi)

    # No-update path (net_forward on theta).
    loss0, pred0 = learner.net_forward(sa, sb, sm, si, sy)
    jax.block_until_ready(loss0)
    jax.block_until_ready(pred0)

    # Episode-batched path: E=2 independent episodes on one parallel grid.
    st = lambda a, b: jnp.stack([a, b], axis=0)
    bl, bp, bgrads = _episodes(
        learner.theta,
        st(sa, qa), st(sb, qb), st(sm, qm), st(si, qi), st(sy, qy),
        st(qa, sa), st(qb, sb), st(qm, sm), st(qi, si), st(qy, sy), 5)
    jax.block_until_ready(bl)
    jax.block_until_ready(bgrads)

    print("KERNEL_OK")
</pallas_src>

<mosaic_0001>
module attributes {stable_mosaic.version = 11 : i64} {
  func.func @kernel(%arg0: i32, %arg1: memref<1x64x8xf32, #tpu.memory_space<vmem>>, %arg2: memref<1x4x64xf32, #tpu.memory_space<vmem>>, %arg3: memref<1x4x1024xf32, #tpu.memory_space<vmem>>, %arg4: memref<1x4x2xf32, #tpu.memory_space<vmem>>, %arg5: memref<1x64x8xf32, #tpu.memory_space<vmem>>, %arg6: memref<1x4x64xf32, #tpu.memory_space<vmem>>, %arg7: memref<1x4x1024xf32, #tpu.memory_space<vmem>>, %arg8: memref<1x4x2xf32, #tpu.memory_space<vmem>>, %arg9: memref<8x32xf32, #tpu.memory_space<vmem>>, %arg10: memref<1x32xf32, #tpu.memory_space<vmem>>, %arg11: memref<32x1024xf32, #tpu.memory_space<vmem>>, %arg12: memref<1x32xf32, #tpu.memory_space<vmem>>, %arg13: memref<64x2xf32, #tpu.memory_space<vmem>>, %arg14: memref<1x2xf32, #tpu.memory_space<vmem>>, %arg15: memref<1x80x128xf32, #tpu.memory_space<vmem>>, %arg16: memref<1x32x1024xf32, #tpu.memory_space<vmem>>, %arg17: memref<8x32xf32, #tpu.memory_space<vmem>>, %arg18: memref<1x32xf32, #tpu.memory_space<vmem>>, %arg19: memref<32x1024xf32, #tpu.memory_space<vmem>>, %arg20: memref<1x32xf32, #tpu.memory_space<vmem>>, %arg21: memref<64x2xf32, #tpu.memory_space<vmem>>, %arg22: memref<1x2xf32, #tpu.memory_space<vmem>>) attributes {dimension_semantics = [#tpu.dimension_semantics<parallel>], iteration_bounds = array<i64: 1>, scalar_prefetch = 0 : i64, scratch_operands = 6 : i64, tpu.core_type = #tpu.core_type<tc>, window_params = [{transform_indices = @transform_0, window_bounds = array<i64: 1, 64, 8>}, {transform_indices = @transform_1, window_bounds = array<i64: 1, 4, 64>}, {transform_indices = @transform_2, window_bounds = array<i64: 1, 4, 1024>}, {transform_indices = @transform_3, window_bounds = array<i64: 1, 4, 2>}, {transform_indices = @transform_4, window_bounds = array<i64: 1, 64, 8>}, {transform_indices = @transform_5, window_bounds = array<i64: 1, 4, 64>}, {transform_indices = @transform_6, window_bounds = array<i64: 1, 4, 1024>}, {transform_indices = @transform_7, window_bounds = array<i64: 1, 4, 2>}, {pipeline_mode = #tpu.pipeline_mode<synchronous>, transform_indices = @transform_8, window_bounds = array<i64: 8, 32>}, {pipeline_mode = #tpu.pipeline_mode<synchronous>, transform_indices = @transform_9, window_bounds = array<i64: 1, 32>}, {pipeline_mode = #tpu.pipeline_mode<synchronous>, transform_indices = @transform_10, window_bounds = array<i64: 32, 1024>}, {pipeline_mode = #tpu.pipeline_mode<synchronous>, transform_indices = @transform_11, window_bounds = array<i64: 1, 32>}, {pipeline_mode = #tpu.pipeline_mode<synchronous>, transform_indices = @transform_12, window_bounds = array<i64: 64, 2>}, {pipeline_mode = #tpu.pipeline_mode<synchronous>, transform_indices = @transform_13, window_bounds = array<i64: 1, 2>}, {transform_indices = @transform_14, window_bounds = array<i64: 1, 80, 128>}, {transform_indices = @transform_15, window_bounds = array<i64: 1, 32, 1024>}]} {
    %c0 = arith.constant 0 : index
    %c0_0 = arith.constant 0 : index
    %0 = vector.load %arg9[%c0, %c0_0] : memref<8x32xf32, #tpu.memory_space<vmem>>, vector<8x32xf32>
    %c0_1 = arith.constant 0 : index
    %c0_2 = arith.constant 0 : index
    %1 = vector.load %arg17[%c0_1, %c0_2] : memref<8x32xf32, #tpu.memory_space<vmem>>, vector<8x32xf32>
    tpu.vector_store %arg17[%c0_1, %c0_2], %0 {strides = array<i32>} : memref<8x32xf32, #tpu.memory_space<vmem>>, vector<8x32xf32>,
    %c0_3 = arith.constant 0 : index
    %c0_4 = arith.constant 0 : index
    %2 = vector.load %arg10[%c0_3, %c0_4] : memref<1x32xf32, #tpu.memory_space<vmem>>, vector<1x32xf32>
    %c0_5 = arith.constant 0 : index
    %c0_6 = arith.constant 0 : index
    %3 = vector.load %arg18[%c0_5, %c0_6] : memref<1x32xf32, #tpu.memory_space<vmem>>, vector<1x32xf32>
    tpu.vector_store %arg18[%c0_5, %c0_6], %2 {strides = array<i32>} : memref<1x32xf32, #tpu.memory_space<vmem>>, vector<1x32xf32>,
    %c0_7 = arith.constant 0 : index
    %c0_8 = arith.constant 0 : index
    %4 = vector.load %arg11[%c0_7, %c0_8] : memref<32x1024xf32, #tpu.memory_space<vmem>>, vector<32x1024xf32>
    %c0_9 = arith.constant 0 : index
    %c0_10 = arith.constant 0 : index
    %5 = vector.load %arg19[%c0_9, %c0_10] : memref<32x1024xf32, #tpu.memory_space<vmem>>, vector<32x1024xf32>
    tpu.vector_store %arg19[%c0_9, %c0_10], %4 {strides = array<i32>} : memref<32x1024xf32, #tpu.memory_space<vmem>>, vector<32x1024xf32>,
    %c0_11 = arith.constant 0 : index
    %c0_12 = arith.constant 0 : index
    %6 = vector.load %arg12[%c0_11, %c0_12] : memref<1x32xf32, #tpu.memory_space<vmem>>, vector<1x32xf32>
    %c0_13 = arith.constant 0 : index
    %c0_14 = arith.constant 0 : index
    %7 = vector.load %arg20[%c0_13, %c0_14] : memref<1x32xf32, #tpu.memory_space<vmem>>, vector<1x32xf32>
    tpu.vector_store %arg20[%c0_13, %c0_14], %6 {strides = array<i32>} : memref<1x32xf32, #tpu.memory_space<vmem>>, vector<1x32xf32>,
    %c0_15 = arith.constant 0 : index
    %c0_16 = arith.constant 0 : index
    %8 = vector.load %arg13[%c0_15, %c0_16] : memref<64x2xf32, #tpu.memory_space<vmem>>, vector<64x2xf32>
    %c0_17 = arith.constant 0 : index
    %c0_18 = arith.constant 0 : index
    %9 = vector.load %arg21[%c0_17, %c0_18] : memref<64x2xf32, #tpu.memory_space<vmem>>, vector<64x2xf32>
    tpu.vector_store %arg21[%c0_17, %c0_18], %8 {strides = array<i32>} : memref<64x2xf32, #tpu.memory_space<vmem>>, vector<64x2xf32>,
    %c0_19 = arith.constant 0 : index
    %c0_20 = arith.constant 0 : index
    %10 = vector.load %arg14[%c0_19, %c0_20] : memref<1x2xf32, #tpu.memory_space<vmem>>, vector<1x2xf32>
    %c0_21 = arith.constant 0 : index
    %c0_22 = arith.constant 0 : index
    %11 = vector.load %arg22[%c0_21, %c0_22] : memref<1x2xf32, #tpu.memory_space<vmem>>, vector<1x2xf32>
    tpu.vector_store %arg22[%c0_21, %c0_22], %10 {strides = array<i32>} : memref<1x2xf32, #tpu.memory_space<vmem>>, vector<1x2xf32>,
    %c0_23 = arith.constant 0 : index
    %c0_24 = arith.constant 0 : index
    %c0_25 = arith.constant 0 : index
    %12 = vector.load %arg1[%c0_23, %c0_24, %c0_25] : memref<1x64x8xf32, #tpu.memory_space<vmem>>, vector<1x64x8xf32>
    %13 = vector.shape_cast %12 : vector<1x64x8xf32> to vector<64x8xf32>
    %c0_26 = arith.constant 0 : index
    %c0_27 = arith.constant 0 : index
    %c0_28 = arith.constant 0 : index
    %14 = vector.load %arg2[%c0_26, %c0_27, %c0_28] : memref<1x4x64xf32, #tpu.memory_space<vmem>>, vector<1x4x64xf32>
    %15 = vector.shape_cast %14 : vector<1x4x64xf32> to vector<4x64xf32>
    %c0_29 = arith.constant 0 : index
    %c0_30 = arith.constant 0 : index
    %c0_31 = arith.constant 0 : index
    %16 = vector.load %arg3[%c0_29, %c0_30, %c0_31] : memref<1x4x1024xf32, #tpu.memory_space<vmem>>, vector<1x4x1024xf32>
    %17 = vector.shape_cast %16 : vector<1x4x1024xf32> to vector<4x1024xf32>
    %c0_32 = arith.constant 0 : index
    %c0_33 = arith.constant 0 : index
    %c0_34 = arith.constant 0 : index
    %18 = vector.load %arg4[%c0_32, %c0_33, %c0_34] : memref<1x4x2xf32, #tpu.memory_space<vmem>>, vector<1x4x2xf32>
    %19 = vector.shape_cast %18 : vector<1x4x2xf32> to vector<4x2xf32>
    %c0_35 = arith.constant 0 : index
    %c0_36 = arith.constant 0 : index
    %c0_37 = arith.constant 0 : index
    %20 = vector.load %arg5[%c0_35, %c0_36, %c0_37] : memref<1x64x8xf32, #tpu.memory_space<vmem>>, vector<1x64x8xf32>
    %21 = vector.shape_cast %20 : vector<1x64x8xf32> to vector<64x8xf32>
    %c0_38 = arith.constant 0 : index
    %c0_39 = arith.constant 0 : index
    %c0_40 = arith.constant 0 : index
    %22 = vector.load %arg6[%c0_38, %c0_39, %c0_40] : memref<1x4x64xf32, #tpu.memory_space<vmem>>, vector<1x4x64xf32>
    %23 = vector.shape_cast %22 : vector<1x4x64xf32> to vector<4x64xf32>
    %c0_41 = arith.constant 0 : index
    %c0_42 = arith.constant 0 : index
    %c0_43 = arith.constant 0 : index
    %24 = vector.load %arg7[%c0_41, %c0_42, %c0_43] : memref<1x4x1024xf32, #tpu.memory_space<vmem>>, vector<1x4x1024xf32>
    %25 = vector.shape_cast %24 : vector<1x4x1024xf32> to vector<4x1024xf32>
    %c0_44 = arith.constant 0 : index
    %c0_45 = arith.constant 0 : index
    %c0_46 = arith.constant 0 : index
    %26 = vector.load %arg8[%c0_44, %c0_45, %c0_46] : memref<1x4x2xf32, #tpu.memory_space<vmem>>, vector<1x4x2xf32>
    %27 = vector.shape_cast %26 : vector<1x4x2xf32> to vector<4x2xf32>
    %c0_i32 = arith.constant 0 : i32
    %c0_47 = arith.constant 0 : index
    %c0_48 = arith.constant 0 : index
    %28 = vector.load %arg17[%c0_47, %c0_48] : memref<8x32xf32, #tpu.memory_space<vmem>>, vector<8x32xf32>
    %c0_49 = arith.constant 0 : index
    %c0_50 = arith.constant 0 : index
    %29 = vector.load %arg18[%c0_49, %c0_50] : memref<1x32xf32, #tpu.memory_space<vmem>>, vector<1x32xf32>
    %c0_51 = arith.constant 0 : index
    %c0_52 = arith.constant 0 : index
    %30 = vector.load %arg19[%c0_51, %c0_52] : memref<32x1024xf32, #tpu.memory_space<vmem>>, vector<32x1024xf32>
    %c0_53 = arith.constant 0 : index
    %c0_54 = arith.constant 0 : index
    %31 = vector.load %arg20[%c0_53, %c0_54] : memref<1x32xf32, #tpu.memory_space<vmem>>, vector<1x32xf32>
    %c0_55 = arith.constant 0 : index
    %c0_56 = arith.constant 0 : index
    %32 = vector.load %arg21[%c0_55, %c0_56] : memref<64x2xf32, #tpu.memory_space<vmem>>, vector<64x2xf32>
    %c0_57 = arith.constant 0 : index
    %c0_58 = arith.constant 0 : index
    %33 = vector.load %arg22[%c0_57, %c0_58] : memref<1x2xf32, #tpu.memory_space<vmem>>, vector<1x2xf32>
    %cst = arith.constant dense<0.000000e+00> : vector<64x32xf32>
    %34 = tpu.matmul %13, %28, %cst {dimension_numbers = #tpu.dot_dimension_numbers<[1], [0], [0], [1], [0, 0, 1, 1], [], []>} : vector<64x8xf32>, vector<8x32xf32>, vector<64x32xf32> -> vector<64x32xf32>
    %35 = vector.broadcast %29 : vector<1x32xf32> to vector<64x32xf32>
    %36 = arith.addf %34, %35 : vector<64x32xf32>
    %cst_59 = arith.constant 0.000000e+00 : f32
    %37 = vector.broadcast %cst_59 : f32 to vector<64x32xf32>
    %38 = arith.maximumf %36, %37 : vector<64x32xf32>
    %cst_60 = arith.constant dense<0.000000e+00> : vector<4x32xf32>
    %39 = tpu.matmul %15, %38, %cst_60 {dimension_numbers = #tpu.dot_dimension_numbers<[1], [0], [0], [1], [0, 0, 1, 1], [], []>} : vector<4x64xf32>, vector<64x32xf32>, vector<4x32xf32> -> vector<4x32xf32>
    %cst_61 = arith.constant dense<0.000000e+00> : vector<4x32xf32>
    %40 = tpu.matmul %17, %30, %cst_61 {dimension_numbers = #tpu.dot_dimension_numbers<[1], [1], [0], [0], [0, 0, 1, 0], [], []>} : vector<4x1024xf32>, vector<32x1024xf32>, vector<4x32xf32> -> vector<4x32xf32>
    %41 = vector.broadcast %31 : vector<1x32xf32> to vector<4x32xf32>
    %42 = arith.addf %40, %41 : vector<4x32xf32>
    %cst_62 = arith.constant 0.000000e+00 : f32
    %43 = vector.broadcast %cst_62 : f32 to vector<4x32xf32>
    %44 = arith.maximumf %42, %43 : vector<4x32xf32>
    %45 = tpu.concatenate %39, %44 in 1 : vector<4x32xf32>, vector<4x32xf32> -> vector<4x64xf32>
    %cst_63 = arith.constant dense<0.000000e+00> : vector<4x2xf32>
    %46 = tpu.matmul %45, %32, %cst_63 {dimension_numbers = #tpu.dot_dimension_numbers<[1], [0], [0], [1], [0, 0, 1, 1], [], []>} : vector<4x64xf32>, vector<64x2xf32>, vector<4x2xf32> -> vector<4x2xf32>
    %47 = vector.broadcast %33 : vector<1x2xf32> to vector<4x2xf32>
    %48 = arith.addf %46, %47 : vector<4x2xf32>
    %cst_64 = arith.constant dense<0xFF800000> : vector<4xf32>
    %49 = vector.multi_reduction <maximumf>, %48, %cst_64 [1] : vector<4x2xf32> to vector<4xf32>
    %50 = vector.shape_cast %49 : vector<4xf32> to vector<4x1xf32>
    %51 = vector.broadcast %50 : vector<4x1xf32> to vector<4x2xf32>
    %52 = arith.subf %48, %51 : vector<4x2xf32>
    %53 = math.exp %52 : vector<4x2xf32>
    %cst_65 = arith.constant dense<0.000000e+00> : vector<4xf32>
    %54 = vector.multi_reduction <add>, %53, %cst_65 [1] : vector<4x2xf32> to vector<4xf32>
    %55 = vector.shape_cast %54 : vector<4xf32> to vector<4x1xf32>
    %56 = tpu.reciprocal %55 {approx = true} : vector<4x1xf32> -> vector<4x1xf32>
    %57 = vector.broadcast %56 : vector<4x1xf32> to vector<4x2xf32>
    %58 = arith.mulf %53, %57 : vector<4x2xf32>
    %59 = arith.subf %58, %19 : vector<4x2xf32>
    %cst_66 = arith.constant 2.500000e-01 : f32
    %60 = vector.broadcast %cst_66 : f32 to vector<4x2xf32>
    %61 = arith.mulf %59, %60 : vector<4x2xf32>
    %cst_67 = arith.constant dense<0.000000e+00> : vector<64x2xf32>
    %62 = tpu.matmul %45, %61, %cst_67 {dimension_numbers = #tpu.dot_dimension_numbers<[0], [0], [1], [1], [0, 1, 1, 1], [], []>} : vector<4x64xf32>, vector<4x2xf32>, vector<64x2xf32> -> vector<64x2xf32>
    %cst_68 = arith.constant dense<0.000000e+00> : vector<2xf32>
    %63 = vector.multi_reduction <add>, %61, %cst_68 [0] : vector<4x2xf32> to vector<2xf32>
    %64 = vector.shape_cast %63 : vector<2xf32> to vector<1x2xf32>
    %cst_69 = arith.constant dense<0.000000e+00> : vector<4x64xf32>
    %65 = tpu.matmul %61, %32, %cst_69 {dimension_numbers = #tpu.dot_dimension_numbers<[1], [1], [0], [0], [0, 0, 1, 0], [], []>} : vector<4x2xf32>, vector<64x2xf32>, vector<4x64xf32> -> vector<4x64xf32>
    %66 = vector.extract_strided_slice %65 {offsets = [0, 0], sizes = [4, 32], strides = [1, 1]} : vector<4x64xf32> to vector<4x32xf32>
    %67 = vector.extract_strided_slice %65 {offsets = [0, 32], sizes = [4, 32], strides = [1, 1]} : vector<4x64xf32> to vector<4x32xf32>
    %cst_70 = arith.constant 0.000000e+00 : f32
    %68 = vector.broadcast %cst_70 : f32 to vector<4x32xf32>
    %69 = arith.cmpf ogt, %42, %68 : vector<4x32xf32>
    %cst_71 = arith.constant 0.000000e+00 : f32
    %70 = vector.broadcast %cst_71 : f32 to vector<4x32xf32>
    %71 = arith.select %69, %67, %70 : vector<4x32xi1>, vector<4x32xf32>
    %cst_72 = arith.constant dense<0.000000e+00> : vector<32x1024xf32>
    %72 = tpu.matmul %71, %17, %cst_72 {dimension_numbers = #tpu.dot_dimension_numbers<[0], [0], [1], [1], [0, 1, 1, 1], [], []>} : vector<4x32xf32>, vector<4x1024xf32>, vector<32x1024xf32> -> vector<32x1024xf32>
    %cst_73 = arith.constant dense<0.000000e+00> : vector<32xf32>
    %73 = vector.multi_reduction <add>, %71, %cst_73 [0] : vector<4x32xf32> to vector<32xf32>
    %74 = vector.shape_cast %73 : vector<32xf32> to vector<1x32xf32>
    %cst_74 = arith.constant dense<0.000000e+00> : vector<64x32xf32>
    %75 = tpu.matmul %15, %66, %cst_74 {dimension_numbers = #tpu.dot_dimension_numbers<[0], [0], [1], [1], [0, 1, 1, 1], [], []>} : vector<4x64xf32>, vector<4x32xf32>, vector<64x32xf32> -> vector<64x32xf32>
    %cst_75 = arith.constant 0.000000e+00 : f32
    %76 = vector.broadcast %cst_75 : f32 to vector<64x32xf32>
    %77 = arith.cmpf ogt, %36, %76 : vector<64x32xf32>
    %cst_76 = arith.constant 0.000000e+00 : f32
    %78 = vector.broadcast %cst_76 : f32 to vector<64x32xf32>
    %79 = arith.select %77, %75, %78 : vector<64x32xi1>, vector<64x32xf32>
    %cst_77 = arith.constant dense<0.000000e+00> : vector<8x32xf32>
    %80 = tpu.matmul %13, %79, %cst_77 {dimension_numbers = #tpu.dot_dimension_numbers<[0], [0], [1], [1], [0, 1, 1, 1], [], []>} : vector<64x8xf32>, vector<64x32xf32>, vector<8x32xf32> -> vector<8x32xf32>
    %cst_78 = arith.constant dense<0.000000e+00> : vector<32xf32>
    %81 = vector.multi_reduction <add>, %79, %cst_78 [0] : vector<64x32xf32> to vector<32xf32>
    %82 = vector.shape_cast %81 : vector<32xf32> to vector<1x32xf32>
    %cst_79 = arith.constant 1.000000e-03 : f32
    %83 = vector.broadcast %cst_79 : f32 to vector<8x32xf32>
    %84 = arith.mulf %83, %80 : vector<8x32xf32>
    %85 = arith.subf %28, %84 : vector<8x32xf32>
    %c0_80 = arith.constant 0 : index
    %c0_81 = arith.constant 0 : index
    %86 = vector.load %arg17[%c0_80, %c0_81] : memref<8x32xf32, #tpu.memory_space<vmem>>, vector<8x32xf32>
    tpu.vector_store %arg17[%c0_80, %c0_81], %85 {strides = array<i32>} : memref<8x32xf32, #tpu.memory_space<vmem>>, vector<8x32xf32>,
    %cst_82 = arith.constant 1.000000e-03 : f32
    %87 = vector.broadcast %cst_82 : f32 to vector<1x32xf32>
    %88 = arith.mulf %87, %82 : vector<1x32xf32>
    %89 = arith.subf %29, %88 : vector<1x32xf32>
    %c0_83 = arith.constant 0 : index
    %c0_84 = arith.constant 0 : index
    %90 = vector.load %arg18[%c0_83, %c0_84] : memref<1x32xf32, #tpu.memory_space<vmem>>, vector<1x32xf32>
    tpu.vector_store %arg18[%c0_83, %c0_84], %89 {strides = array<i32>} : memref<1x32xf32, #tpu.memory_space<vmem>>, vector<1x32xf32>,
    %cst_85 = arith.constant 1.000000e-03 : f32
    %91 = vector.broadcast %cst_85 : f32 to vector<32x1024xf32>
    %92 = arith.mulf %91, %72 : vector<32x1024xf32>
    %93 = arith.subf %30, %92 : vector<32x1024xf32>
    %c0_86 = arith.constant 0 : index
    %c0_87 = arith.constant 0 : index
    %94 = vector.load %arg19[%c0_86, %c0_87] : memref<32x1024xf32, #tpu.memory_space<vmem>>, vector<32x1024xf32>
    tpu.vector_store %arg19[%c0_86, %c0_87], %93 {strides = array<i32>} : memref<32x1024xf32, #tpu.memory_space<vmem>>, vector<32x1024xf32>,
    %cst_88 = arith.constant 1.000000e-03 : f32
    %95 = vector.broadcast %cst_88 : f32 to vector<1x32xf32>
    %96 = arith.mulf %95, %74 : vector<1x32xf32>
    %97 = arith.subf %31, %96 : vector<1x32xf32>
    %c0_89 = arith.constant 0 : index
    %c0_90 = arith.constant 0 : index
    %98 = vector.load %arg20[%c0_89, %c0_90] : memref<1x32xf32, #tpu.memory_space<vmem>>, vector<1x32xf32>
    tpu.vector_store %arg20[%c0_89, %c0_90], %97 {strides = array<i32>} : memref<1x32xf32, #tpu.memory_space<vmem>>, vector<1x32xf32>,
    %cst_91 = arith.constant 1.000000e-03 : f32
    %99 = vector.broadcast %cst_91 : f32 to vector<64x2xf32>
    %100 = arith.mulf %99, %62 : vector<64x2xf32>
    %101 = arith.subf %32, %100 : vector<64x2xf32>
    %c0_92 = arith.constant 0 : index
    %c0_93 = arith.constant 0 : index
    %102 = vector.load %arg21[%c0_92, %c0_93] : memref<64x2xf32, #tpu.memory_space<vmem>>, vector<64x2xf32>
    tpu.vector_store %arg21[%c0_92, %c0_93], %101 {strides = array<i32>} : memref<64x2xf32, #tpu.memory_space<vmem>>, vector<64x2xf32>,
    %cst_94 = arith.constant 1.000000e-03 : f32
    %103 = vector.broadcast %cst_94 : f32 to vector<1x2xf32>
    %104 = arith.mulf %103, %64 : vector<1x2xf32>
    %105 = arith.subf %33, %104 : vector<1x2xf32>
    %c0_95 = arith.constant 0 : index
    %c0_96 = arith.constant 0 : index
    %106 = vector.load %arg22[%c0_95, %c0_96] : memref<1x2xf32, #tpu.memory_space<vmem>>, vector<1x2xf32>
    tpu.vector_store %arg22[%c0_95, %c0_96], %105 {strides = array<i32>} : memref<1x2xf32, #tpu.memory_space<vmem>>, vector<1x2xf32>,
    %c1_i32 = arith.constant 1 : i32
    %c0_97 = arith.constant 0 : index
    %c0_98 = arith.constant 0 : index
    %107 = vector.load %arg17[%c0_97, %c0_98] : memref<8x32xf32, #tpu.memory_space<vmem>>, vector<8x32xf32>
    %c0_99 = arith.constant 0 : index
    %c0_100 = arith.constant 0 : index
    %108 = vector.load %arg18[%c0_99, %c0_100] : memref<1x32xf32, #tpu.memory_space<vmem>>, vector<1x32xf32>
    %c0_101 = arith.constant 0 : index
    %c0_102 = arith.constant 0 : index
    %109 = vector.load %arg19[%c0_101, %c0_102] : memref<32x1024xf32, #tpu.memory_space<vmem>>, vector<32x1024xf32>
    %c0_103 = arith.constant 0 : index
    %c0_104 = arith.constant 0 : index
    %110 = vector.load %arg20[%c0_103, %c0_104] : memref<1x32xf32, #tpu.memory_space<vmem>>, vector<1x32xf32>
    %c0_105 = arith.constant 0 : index
    %c0_106 = arith.constant 0 : index
    %111 = vector.load %arg21[%c0_105, %c0_106] : memref<64x2xf32, #tpu.memory_space<vmem>>, vector<64x2xf32>
    %c0_107 = arith.constant 0 : index
    %c0_108 = arith.constant 0 : index
    %112 = vector.load %arg22[%c0_107, %c0_108] : memref<1x2xf32, #tpu.memory_space<vmem>>, vector<1x2xf32>
    %cst_109 = arith.constant dense<0.000000e+00> : vector<64x32xf32>
    %113 = tpu.matmul %13, %107, %cst_109 {dimension_numbers = #tpu.dot_dimension_numbers<[1], [0], [0], [1], [0, 0, 1, 1], [], []>} : vector<64x8xf32>, vector<8x32xf32>, vector<64x32xf32> -> vector<64x32xf32>
    %114 = vector.broadcast %108 : vector<1x32xf32> to vector<64x32xf32>
    %115 = arith.addf %113, %114 : vector<64x32xf32>
    %cst_110 = arith.constant 0.000000e+00 : f32
    %116 = vector.broadcast %cst_110 : f32 to vector<64x32xf32>
    %117 = arith.maximumf %115, %116 : vector<64x32xf32>
    %cst_111 = arith.constant dense<0.000000e+00> : vector<4x32xf32>
    %118 = tpu.matmul %15, %117, %cst_111 {dimension_numbers = #tpu.dot_dimension_numbers<[1], [0], [0], [1], [0, 0, 1, 1], [], []>} : vector<4x64xf32>, vector<64x32xf32>, vector<4x32xf32> -> vector<4x32xf32>
    %cst_112 = arith.constant dense<0.000000e+00> : vector<4x32xf32>
    %119 = tpu.matmul %17, %109, %cst_112 {dimension_numbers = #tpu.dot_dimension_numbers<[1], [1], [0], [0], [0, 0, 1, 0], [], []>} : vector<4x1024xf32>, vector<32x1024xf32>, vector<4x32xf32> -> vector<4x32xf32>
    %120 = vector.broadcast %110 : vector<1x32xf32> to vector<4x32xf32>
    %121 = arith.addf %119, %120 : vector<4x32xf32>
    %cst_113 = arith.constant 0.000000e+00 : f32
    %122 = vector.broadcast %cst_113 : f32 to vector<4x32xf32>
    %123 = arith.maximumf %121, %122 : vector<4x32xf32>
    %124 = tpu.concatenate %118, %123 in 1 : vector<4x32xf32>, vector<4x32xf32> -> vector<4x64xf32>
    %cst_114 = arith.constant dense<0.000000e+00> : vector<4x2xf32>
    %125 = tpu.matmul %124, %111, %cst_114 {dimension_numbers = #tpu.dot_dimension_numbers<[1], [0], [0], [1], [0, 0, 1, 1], [], []>} : vector<4x64xf32>, vector<64x2xf32>, vector<4x2xf32> -> vector<4x2xf32>
    %126 = vector.broadcast %112 : vector<1x2xf32> to vector<4x2xf32>
    %127 = arith.addf %125, %126 : vector<4x2xf32>
    %cst_115 = arith.constant dense<0xFF800000> : vector<4xf32>
    %128 = vector.multi_reduction <maximumf>, %127, %cst_115 [1] : vector<4x2xf32> to vector<4xf32>
    %129 = vector.shape_cast %128 : vector<4xf32> to vector<4x1xf32>
    %130 = vector.broadcast %129 : vector<4x1xf32> to vector<4x2xf32>
    %131 = arith.subf %127, %130 : vector<4x2xf32>
    %132 = math.exp %131 : vector<4x2xf32>
    %cst_116 = arith.constant dense<0.000000e+00> : vector<4xf32>
    %133 = vector.multi_reduction <add>, %132, %cst_116 [1] : vector<4x2xf32> to vector<4xf32>
    %134 = vector.shape_cast %133 : vector<4xf32> to vector<4x1xf32>
    %135 = tpu.reciprocal %134 {approx = true} : vector<4x1xf32> -> vector<4x1xf32>
    %136 = vector.broadcast %135 : vector<4x1xf32> to vector<4x2xf32>
    %137 = arith.mulf %132, %136 : vector<4x2xf32>
    %138 = arith.subf %137, %19 : vector<4x2xf32>
    %cst_117 = arith.constant 2.500000e-01 : f32
    %139 = vector.broadcast %cst_117 : f32 to vector<4x2xf32>
    %140 = arith.mulf %138, %139 : vector<4x2xf32>
    %cst_118 = arith.constant dense<0.000000e+00> : vector<64x2xf32>
    %141 = tpu.matmul %124, %140, %cst_118 {dimension_numbers = #tpu.dot_dimension_numbers<[0], [0], [1], [1], [0, 1, 1, 1], [], []>} : vector<4x64xf32>, vector<4x2xf32>, vector<64x2xf32> -> vector<64x2xf32>
    %cst_119 = arith.constant dense<0.000000e+00> : vector<2xf32>
    %142 = vector.multi_reduction <add>, %140, %cst_119 [0] : vector<4x2xf32> to vector<2xf32>
    %143 = vector.shape_cast %142 : vector<2xf32> to vector<1x2xf32>
    %cst_120 = arith.constant dense<0.000000e+00> : vector<4x64xf32>
    %144 = tpu.matmul %140, %111, %cst_120 {dimension_numbers = #tpu.dot_dimension_numbers<[1], [1], [0], [0], [0, 0, 1, 0], [], []>} : vector<4x2xf32>, vector<64x2xf32>, vector<4x64xf32> -> vector<4x64xf32>
    %145 = vector.extract_strided_slice %144 {offsets = [0, 0], sizes = [4, 32], strides = [1, 1]} : vector<4x64xf32> to vector<4x32xf32>
    %146 = vector.extract_strided_slice %144 {offsets = [0, 32], sizes = [4, 32], strides = [1, 1]} : vector<4x64xf32> to vector<4x32xf32>
    %cst_121 = arith.constant 0.000000e+00 : f32
    %147 = vector.broadcast %cst_121 : f32 to vector<4x32xf32>
    %148 = arith.cmpf ogt, %121, %147 : vector<4x32xf32>
    %cst_122 = arith.constant 0.000000e+00 : f32
    %149 = vector.broadcast %cst_122 : f32 to vector<4x32xf32>
    %150 = arith.select %148, %146, %149 : vector<4x32xi1>, vector<4x32xf32>
    %cst_123 = arith.constant dense<0.000000e+00> : vector<32x1024xf32>
    %151 = tpu.matmul %150, %17, %cst_123 {dimension_numbers = #tpu.dot_dimension_numbers<[0], [0], [1], [1], [0, 1, 1, 1], [], []>} : vector<4x32xf32>, vector<4x1024xf32>, vector<32x1024xf32> -> vector<32x1024xf32>
    %cst_124 = arith.constant dense<0.000000e+00> : vector<32xf32>
    %152 = vector.multi_reduction <add>, %150, %cst_124 [0] : vector<4x32xf32> to vector<32xf32>
    %153 = vector.shape_cast %152 : vector<32xf32> to vector<1x32xf32>
    %cst_125 = arith.constant dense<0.000000e+00> : vector<64x32xf32>
    %154 = tpu.matmul %15, %145, %cst_125 {dimension_numbers = #tpu.dot_dimension_numbers<[0], [0], [1], [1], [0, 1, 1, 1], [], []>} : vector<4x64xf32>, vector<4x32xf32>, vector<64x32xf32> -> vector<64x32xf32>
    %cst_126 = arith.constant 0.000000e+00 : f32
    %155 = vector.broadcast %cst_126 : f32 to vector<64x32xf32>
    %156 = arith.cmpf ogt, %115, %155 : vector<64x32xf32>
    %cst_127 = arith.constant 0.000000e+00 : f32
    %157 = vector.broadcast %cst_127 : f32 to vector<64x32xf32>
    %158 = arith.select %156, %154, %157 : vector<64x32xi1>, vector<64x32xf32>
    %cst_128 = arith.constant dense<0.000000e+00> : vector<8x32xf32>
    %159 = tpu.matmul %13, %158, %cst_128 {dimension_numbers = #tpu.dot_dimension_numbers<[0], [0], [1], [1], [0, 1, 1, 1], [], []>} : vector<64x8xf32>, vector<64x32xf32>, vector<8x32xf32> -> vector<8x32xf32>
    %cst_129 = arith.constant dense<0.000000e+00> : vector<32xf32>
    %160 = vector.multi_reduction <add>, %158, %cst_129 [0] : vector<64x32xf32> to vector<32xf32>
    %161 = vector.shape_cast %160 : vector<32xf32> to vector<1x32xf32>
    %cst_130 = arith.constant 1.000000e-03 : f32
    %162 = vector.broadcast %cst_130 : f32 to vector<8x32xf32>
    %163 = arith.mulf %162, %159 : vector<8x32xf32>
    %164 = arith.subf %107, %163 : vector<8x32xf32>
    %c0_131 = arith.constant 0 : index
    %c0_132 = arith.constant 0 : index
    %165 = vector.load %arg17[%c0_131, %c0_132] : memref<8x32xf32, #tpu.memory_space<vmem>>, vector<8x32xf32>
    tpu.vector_store %arg17[%c0_131, %c0_132], %164 {strides = array<i32>} : memref<8x32xf32, #tpu.memory_space<vmem>>, vector<8x32xf32>,
    %cst_133 = arith.constant 1.000000e-03 : f32
    %166 = vector.broadcast %cst_133 : f32 to vector<1x32xf32>
    %167 = arith.mulf %166, %161 : vector<1x32xf32>
    %168 = arith.subf %108, %167 : vector<1x32xf32>
    %c0_134 = arith.constant 0 : index
    %c0_135 = arith.constant 0 : index
    %169 = vector.load %arg18[%c0_134, %c0_135] : memref<1x32xf32, #tpu.memory_space<vmem>>, vector<1x32xf32>
    tpu.vector_store %arg18[%c0_134, %c0_135], %168 {strides = array<i32>} : memref<1x32xf32, #tpu.memory_space<vmem>>, vector<1x32xf32>,
    %cst_136 = arith.constant 1.000000e-03 : f32
    %170 = vector.broadcast %cst_136 : f32 to vector<32x1024xf32>
    %171 = arith.mulf %170, %151 : vector<32x1024xf32>
    %172 = arith.subf %109, %171 : vector<32x1024xf32>
    %c0_137 = arith.constant 0 : index
    %c0_138 = arith.constant 0 : index
    %173 = vector.load %arg19[%c0_137, %c0_138] : memref<32x1024xf32, #tpu.memory_space<vmem>>, vector<32x1024xf32>
    tpu.vector_store %arg19[%c0_137, %c0_138], %172 {strides = array<i32>} : memref<32x1024xf32, #tpu.memory_space<vmem>>, vector<32x1024xf32>,
    %cst_139 = arith.constant 1.000000e-03 : f32
    %174 = vector.broadcast %cst_139 : f32 to vector<1x32xf32>
    %175 = arith.mulf %174, %153 : vector<1x32xf32>
    %176 = arith.subf %110, %175 : vector<1x32xf32>
    %c0_140 = arith.constant 0 : index
    %c0_141 = arith.constant 0 : index
    %177 = vector.load %arg20[%c0_140, %c0_141] : memref<1x32xf32, #tpu.memory_space<vmem>>, vector<1x32xf32>
    tpu.vector_store %arg20[%c0_140, %c0_141], %176 {strides = array<i32>} : memref<1x32xf32, #tpu.memory_space<vmem>>, vector<1x32xf32>,
    %cst_142 = arith.constant 1.000000e-03 : f32
    %178 = vector.broadcast %cst_142 : f32 to vector<64x2xf32>
    %179 = arith.mulf %178, %141 : vector<64x2xf32>
    %180 = arith.subf %111, %179 : vector<64x2xf32>
    %c0_143 = arith.constant 0 : index
    %c0_144 = arith.constant 0 : index
    %181 = vector.load %arg21[%c0_143, %c0_144] : memref<64x2xf32, #tpu.memory_space<vmem>>, vector<64x2xf32>
    tpu.vector_store %arg21[%c0_143, %c0_144], %180 {strides = array<i32>} : memref<64x2xf32, #tpu.memory_space<vmem>>, vector<64x2xf32>,
    %cst_145 = arith.constant 1.000000e-03 : f32
    %182 = vector.broadcast %cst_145 : f32 to vector<1x2xf32>
    %183 = arith.mulf %182, %143 : vector<1x2xf32>
    %184 = arith.subf %112, %183 : vector<1x2xf32>
    %c0_146 = arith.constant 0 : index
    %c0_147 = arith.constant 0 : index
    %185 = vector.load %arg22[%c0_146, %c0_147] : memref<1x2xf32, #tpu.memory_space<vmem>>, vector<1x2xf32>
    tpu.vector_store %arg22[%c0_146, %c0_147], %184 {strides = array<i32>} : memref<1x2xf32, #tpu.memory_space<vmem>>, vector<1x2xf32>,
    %c2_i32 = arith.constant 2 : i32
    %c0_148 = arith.constant 0 : index
    %c0_149 = arith.constant 0 : index
    %186 = vector.load %arg17[%c0_148, %c0_149] : memref<8x32xf32, #tpu.memory_space<vmem>>, vector<8x32xf32>
    %c0_150 = arith.constant 0 : index
    %c0_151 = arith.constant 0 : index
    %187 = vector.load %arg18[%c0_150, %c0_151] : memref<1x32xf32, #tpu.memory_space<vmem>>, vector<1x32xf32>
    %c0_152 = arith.constant 0 : index
    %c0_153 = arith.constant 0 : index
    %188 = vector.load %arg19[%c0_152, %c0_153] : memref<32x1024xf32, #tpu.memory_space<vmem>>, vector<32x1024xf32>
    %c0_154 = arith.constant 0 : index
    %c0_155 = arith.constant 0 : index
    %189 = vector.load %arg20[%c0_154, %c0_155] : memref<1x32xf32, #tpu.memory_space<vmem>>, vector<1x32xf32>
    %c0_156 = arith.constant 0 : index
    %c0_157 = arith.constant 0 : index
    %190 = vector.load %arg21[%c0_156, %c0_157] : memref<64x2xf32, #tpu.memory_space<vmem>>, vector<64x2xf32>
    %c0_158 = arith.constant 0 : index
    %c0_159 = arith.constant 0 : index
    %191 = vector.load %arg22[%c0_158, %c0_159] : memref<1x2xf32, #tpu.memory_space<vmem>>, vector<1x2xf32>
    %cst_160 = arith.constant dense<0.000000e+00> : vector<64x32xf32>
    %192 = tpu.matmul %13, %186, %cst_160 {dimension_numbers = #tpu.dot_dimension_numbers<[1], [0], [0], [1], [0, 0, 1, 1], [], []>} : vector<64x8xf32>, vector<8x32xf32>, vector<64x32xf32> -> vector<64x32xf32>
    %193 = vector.broadcast %187 : vector<1x32xf32> to vector<64x32xf32>
    %194 = arith.addf %192, %193 : vector<64x32xf32>
    %cst_161 = arith.constant 0.000000e+00 : f32
    %195 = vector.broadcast %cst_161 : f32 to vector<64x32xf32>
    %196 = arith.maximumf %194, %195 : vector<64x32xf32>
    %cst_162 = arith.constant dense<0.000000e+00> : vector<4x32xf32>
    %197 = tpu.matmul %15, %196, %cst_162 {dimension_numbers = #tpu.dot_dimension_numbers<[1], [0], [0], [1], [0, 0, 1, 1], [], []>} : vector<4x64xf32>, vector<64x32xf32>, vector<4x32xf32> -> vector<4x32xf32>
    %cst_163 = arith.constant dense<0.000000e+00> : vector<4x32xf32>
    %198 = tpu.matmul %17, %188, %cst_163 {dimension_numbers = #tpu.dot_dimension_numbers<[1], [1], [0], [0], [0, 0, 1, 0], [], []>} : vector<4x1024xf32>, vector<32x1024xf32>, vector<4x32xf32> -> vector<4x32xf32>
    %199 = vector.broadcast %189 : vector<1x32xf32> to vector<4x32xf32>
    %200 = arith.addf %198, %199 : vector<4x32xf32>
    %cst_164 = arith.constant 0.000000e+00 : f32
    %201 = vector.broadcast %cst_164 : f32 to vector<4x32xf32>
    %202 = arith.maximumf %200, %201 : vector<4x32xf32>
    %203 = tpu.concatenate %197, %202 in 1 : vector<4x32xf32>, vector<4x32xf32> -> vector<4x64xf32>
    %cst_165 = arith.constant dense<0.000000e+00> : vector<4x2xf32>
    %204 = tpu.matmul %203, %190, %cst_165 {dimension_numbers = #tpu.dot_dimension_numbers<[1], [0], [0], [1], [0, 0, 1, 1], [], []>} : vector<4x64xf32>, vector<64x2xf32>, vector<4x2xf32> -> vector<4x2xf32>
    %205 = vector.broadcast %191 : vector<1x2xf32> to vector<4x2xf32>
    %206 = arith.addf %204, %205 : vector<4x2xf32>
    %cst_166 = arith.constant dense<0xFF800000> : vector<4xf32>
    %207 = vector.multi_reduction <maximumf>, %206, %cst_166 [1] : vector<4x2xf32> to vector<4xf32>
    %208 = vector.shape_cast %207 : vector<4xf32> to vector<4x1xf32>
    %209 = vector.broadcast %208 : vector<4x1xf32> to vector<4x2xf32>
    %210 = arith.subf %206, %209 : vector<4x2xf32>
    %211 = math.exp %210 : vector<4x2xf32>
    %cst_167 = arith.constant dense<0.000000e+00> : vector<4xf32>
    %212 = vector.multi_reduction <add>, %211, %cst_167 [1] : vector<4x2xf32> to vector<4xf32>
    %213 = vector.shape_cast %212 : vector<4xf32> to vector<4x1xf32>
    %214 = tpu.reciprocal %213 {approx = true} : vector<4x1xf32> -> vector<4x1xf32>
    %215 = vector.broadcast %214 : vector<4x1xf32> to vector<4x2xf32>
    %216 = arith.mulf %211, %215 : vector<4x2xf32>
    %217 = arith.subf %216, %19 : vector<4x2xf32>
    %cst_168 = arith.constant 2.500000e-01 : f32
    %218 = vector.broadcast %cst_168 : f32 to vector<4x2xf32>
    %219 = arith.mulf %217, %218 : vector<4x2xf32>
    %cst_169 = arith.constant dense<0.000000e+00> : vector<64x2xf32>
    %220 = tpu.matmul %203, %219, %cst_169 {dimension_numbers = #tpu.dot_dimension_numbers<[0], [0], [1], [1], [0, 1, 1, 1], [], []>} : vector<4x64xf32>, vector<4x2xf32>, vector<64x2xf32> -> vector<64x2xf32>
    %cst_170 = arith.constant dense<0.000000e+00> : vector<2xf32>
    %221 = vector.multi_reduction <add>, %219, %cst_170 [0] : vector<4x2xf32> to vector<2xf32>
    %222 = vector.shape_cast %221 : vector<2xf32> to vector<1x2xf32>
    %cst_171 = arith.constant dense<0.000000e+00> : vector<4x64xf32>
    %223 = tpu.matmul %219, %190, %cst_171 {dimension_numbers = #tpu.dot_dimension_numbers<[1], [1], [0], [0], [0, 0, 1, 0], [], []>} : vector<4x2xf32>, vector<64x2xf32>, vector<4x64xf32> -> vector<4x64xf32>
    %224 = vector.extract_strided_slice %223 {offsets = [0, 0], sizes = [4, 32], strides = [1, 1]} : vector<4x64xf32> to vector<4x32xf32>
    %225 = vector.extract_strided_slice %223 {offsets = [0, 32], sizes = [4, 32], strides = [1, 1]} : vector<4x64xf32> to vector<4x32xf32>
    %cst_172 = arith.constant 0.000000e+00 : f32
    %226 = vector.broadcast %cst_172 : f32 to vector<4x32xf32>
    %227 = arith.cmpf ogt, %200, %226 : vector<4x32xf32>
    %cst_173 = arith.constant 0.000000e+00 : f32
    %228 = vector.broadcast %cst_173 : f32 to vector<4x32xf32>
    %229 = arith.select %227, %225, %228 : vector<4x32xi1>, vector<4x32xf32>
    %cst_174 = arith.constant dense<0.000000e+00> : vector<32x1024xf32>
    %230 = tpu.matmul %229, %17, %cst_174 {dimension_numbers = #tpu.dot_dimension_numbers<[0], [0], [1], [1], [0, 1, 1, 1], [], []>} : vector<4x32xf32>, vector<4x1024xf32>, vector<32x1024xf32> -> vector<32x1024xf32>
    %cst_175 = arith.constant dense<0.000000e+00> : vector<32xf32>
    %231 = vector.multi_reduction <add>, %229, %cst_175 [0] : vector<4x32xf32> to vector<32xf32>
    %232 = vector.shape_cast %231 : vector<32xf32> to vector<1x32xf32>
    %cst_176 = arith.constant dense<0.000000e+00> : vector<64x32xf32>
    %233 = tpu.matmul %15, %224, %cst_176 {dimension_numbers = #tpu.dot_dimension_numbers<[0], [0], [1], [1], [0, 1, 1, 1], [], []>} : vector<4x64xf32>, vector<4x32xf32>, vector<64x32xf32> -> vector<64x32xf32>
    %cst_177 = arith.constant 0.000000e+00 : f32
    %234 = vector.broadcast %cst_177 : f32 to vector<64x32xf32>
    %235 = arith.cmpf ogt, %194, %234 : vector<64x32xf32>
    %cst_178 = arith.constant 0.000000e+00 : f32
    %236 = vector.broadcast %cst_178 : f32 to vector<64x32xf32>
    %237 = arith.select %235, %233, %236 : vector<64x32xi1>, vector<64x32xf32>
    %cst_179 = arith.constant dense<0.000000e+00> : vector<8x32xf32>
    %238 = tpu.matmul %13, %237, %cst_179 {dimension_numbers = #tpu.dot_dimension_numbers<[0], [0], [1], [1], [0, 1, 1, 1], [], []>} : vector<64x8xf32>, vector<64x32xf32>, vector<8x32xf32> -> vector<8x32xf32>
    %cst_180 = arith.constant dense<0.000000e+00> : vector<32xf32>
    %239 = vector.multi_reduction <add>, %237, %cst_180 [0] : vector<64x32xf32> to vector<32xf32>
    %240 = vector.shape_cast %239 : vector<32xf32> to vector<1x32xf32>
    %cst_181 = arith.constant 1.000000e-03 : f32
    %241 = vector.broadcast %cst_181 : f32 to vector<8x32xf32>
    %242 = arith.mulf %241, %238 : vector<8x32xf32>
    %243 = arith.subf %186, %242 : vector<8x32xf32>
    %c0_182 = arith.constant 0 : index
    %c0_183 = arith.constant 0 : index
    %244 = vector.load %arg17[%c0_182, %c0_183] : memref<8x32xf32, #tpu.memory_space<vmem>>, vector<8x32xf32>
    tpu.vector_store %arg17[%c0_182, %c0_183], %243 {strides = array<i32>} : memref<8x32xf32, #tpu.memory_space<vmem>>, vector<8x32xf32>,
    %cst_184 = arith.constant 1.000000e-03 : f32
    %245 = vector.broadcast %cst_184 : f32 to vector<1x32xf32>
    %246 = arith.mulf %245, %240 : vector<1x32xf32>
    %247 = arith.subf %187, %246 : vector<1x32xf32>
    %c0_185 = arith.constant 0 : index
    %c0_186 = arith.constant 0 : index
    %248 = vector.load %arg18[%c0_185, %c0_186] : memref<1x32xf32, #tpu.memory_space<vmem>>, vector<1x32xf32>
    tpu.vector_store %arg18[%c0_185, %c0_186], %247 {strides = array<i32>} : memref<1x32xf32, #tpu.memory_space<vmem>>, vector<1x32xf32>,
    %cst_187 = arith.constant 1.000000e-03 : f32
    %249 = vector.broadcast %cst_187 : f32 to vector<32x1024xf32>
    %250 = arith.mulf %249, %230 : vector<32x1024xf32>
    %251 = arith.subf %188, %250 : vector<32x1024xf32>
    %c0_188 = arith.constant 0 : index
    %c0_189 = arith.constant 0 : index
    %252 = vector.load %arg19[%c0_188, %c0_189] : memref<32x1024xf32, #tpu.memory_space<vmem>>, vector<32x1024xf32>
    tpu.vector_store %arg19[%c0_188, %c0_189], %251 {strides = array<i32>} : memref<32x1024xf32, #tpu.memory_space<vmem>>, vector<32x1024xf32>,
    %cst_190 = arith.constant 1.000000e-03 : f32
    %253 = vector.broadcast %cst_190 : f32 to vector<1x32xf32>
    %254 = arith.mulf %253, %232 : vector<1x32xf32>
    %255 = arith.subf %189, %254 : vector<1x32xf32>
    %c0_191 = arith.constant 0 : index
    %c0_192 = arith.constant 0 : index
    %256 = vector.load %arg20[%c0_191, %c0_192] : memref<1x32xf32, #tpu.memory_space<vmem>>, vector<1x32xf32>
    tpu.vector_store %arg20[%c0_191, %c0_192], %255 {strides = array<i32>} : memref<1x32xf32, #tpu.memory_space<vmem>>, vector<1x32xf32>,
    %cst_193 = arith.constant 1.000000e-03 : f32
    %257 = vector.broadcast %cst_193 : f32 to vector<64x2xf32>
    %258 = arith.mulf %257, %220 : vector<64x2xf32>
    %259 = arith.subf %190, %258 : vector<64x2xf32>
    %c0_194 = arith.constant 0 : index
    %c0_195 = arith.constant 0 : index
    %260 = vector.load %arg21[%c0_194, %c0_195] : memref<64x2xf32, #tpu.memory_space<vmem>>, vector<64x2xf32>
    tpu.vector_store %arg21[%c0_194, %c0_195], %259 {strides = array<i32>} : memref<64x2xf32, #tpu.memory_space<vmem>>, vector<64x2xf32>,
    %cst_196 = arith.constant 1.000000e-03 : f32
    %261 = vector.broadcast %cst_196 : f32 to vector<1x2xf32>
    %262 = arith.mulf %261, %222 : vector<1x2xf32>
    %263 = arith.subf %191, %262 : vector<1x2xf32>
    %c0_197 = arith.constant 0 : index
    %c0_198 = arith.constant 0 : index
    %264 = vector.load %arg22[%c0_197, %c0_198] : memref<1x2xf32, #tpu.memory_space<vmem>>, vector<1x2xf32>
    tpu.vector_store %arg22[%c0_197, %c0_198], %263 {strides = array<i32>} : memref<1x2xf32, #tpu.memory_space<vmem>>, vector<1x2xf32>,
    %c3_i32 = arith.constant 3 : i32
    %c0_199 = arith.constant 0 : index
    %c0_200 = arith.constant 0 : index
    %265 = vector.load %arg17[%c0_199, %c0_200] : memref<8x32xf32, #tpu.memory_space<vmem>>, vector<8x32xf32>
    %c0_201 = arith.constant 0 : index
    %c0_202 = arith.constant 0 : index
    %266 = vector.load %arg18[%c0_201, %c0_202] : memref<1x32xf32, #tpu.memory_space<vmem>>, vector<1x32xf32>
    %c0_203 = arith.constant 0 : index
    %c0_204 = arith.constant 0 : index
    %267 = vector.load %arg19[%c0_203, %c0_204] : memref<32x1024xf32, #tpu.memory_space<vmem>>, vector<32x1024xf32>
    %c0_205 = arith.constant 0 : index
    %c0_206 = arith.constant 0 : index
    %268 = vector.load %arg20[%c0_205, %c0_206] : memref<1x32xf32, #tpu.memory_space<vmem>>, vector<1x32xf32>
    %c0_207 = arith.constant 0 : index
    %c0_208 = arith.constant 0 : index
    %269 = vector.load %arg21[%c0_207, %c0_208] : memref<64x2xf32, #tpu.memory_space<vmem>>, vector<64x2xf32>
    %c0_209 = arith.constant 0 : index
    %c0_210 = arith.constant 0 : index
    %270 = vector.load %arg22[%c0_209, %c0_210] : memref<1x2xf32, #tpu.memory_space<vmem>>, vector<1x2xf32>
    %cst_211 = arith.constant dense<0.000000e+00> : vector<64x32xf32>
    %271 = tpu.matmul %13, %265, %cst_211 {dimension_numbers = #tpu.dot_dimension_numbers<[1], [0], [0], [1], [0, 0, 1, 1], [], []>} : vector<64x8xf32>, vector<8x32xf32>, vector<64x32xf32> -> vector<64x32xf32>
    %272 = vector.broadcast %266 : vector<1x32xf32> to vector<64x32xf32>
    %273 = arith.addf %271, %272 : vector<64x32xf32>
    %cst_212 = arith.constant 0.000000e+00 : f32
    %274 = vector.broadcast %cst_212 : f32 to vector<64x32xf32>
    %275 = arith.maximumf %273, %274 : vector<64x32xf32>
    %cst_213 = arith.constant dense<0.000000e+00> : vector<4x32xf32>
    %276 = tpu.matmul %15, %275, %cst_213 {dimension_numbers = #tpu.dot_dimension_numbers<[1], [0], [0], [1], [0, 0, 1, 1], [], []>} : vector<4x64xf32>, vector<64x32xf32>, vector<4x32xf32> -> vector<4x32xf32>
    %cst_214 = arith.constant dense<0.000000e+00> : vector<4x32xf32>
    %277 = tpu.matmul %17, %267, %cst_214 {dimension_numbers = #tpu.dot_dimension_numbers<[1], [1], [0], [0], [0, 0, 1, 0], [], []>} : vector<4x1024xf32>, vector<32x1024xf32>, vector<4x32xf32> -> vector<4x32xf32>
    %278 = vector.broadcast %268 : vector<1x32xf32> to vector<4x32xf32>
    %279 = arith.addf %277, %278 : vector<4x32xf32>
    %cst_215 = arith.constant 0.000000e+00 : f32
    %280 = vector.broadcast %cst_215 : f32 to vector<4x32xf32>
    %281 = arith.maximumf %279, %280 : vector<4x32xf32>
    %282 = tpu.concatenate %276, %281 in 1 : vector<4x32xf32>, vector<4x32xf32> -> vector<4x64xf32>
    %cst_216 = arith.constant dense<0.000000e+00> : vector<4x2xf32>
    %283 = tpu.matmul %282, %269, %cst_216 {dimension_numbers = #tpu.dot_dimension_numbers<[1], [0], [0], [1], [0, 0, 1, 1], [], []>} : vector<4x64xf32>, vector<64x2xf32>, vector<4x2xf32> -> vector<4x2xf32>
    %284 = vector.broadcast %270 : vector<1x2xf32> to vector<4x2xf32>
    %285 = arith.addf %283, %284 : vector<4x2xf32>
    %cst_217 = arith.constant dense<0xFF800000> : vector<4xf32>
    %286 = vector.multi_reduction <maximumf>, %285, %cst_217 [1] : vector<4x2xf32> to vector<4xf32>
    %287 = vector.shape_cast %286 : vector<4xf32> to vector<4x1xf32>
    %288 = vector.broadcast %287 : vector<4x1xf32> to vector<4x2xf32>
    %289 = arith.subf %285, %288 : vector<4x2xf32>
    %290 = math.exp %289 : vector<4x2xf32>
    %cst_218 = arith.constant dense<0.000000e+00> : vector<4xf32>
    %291 = vector.multi_reduction <add>, %290, %cst_218 [1] : vector<4x2xf32> to vector<4xf32>
    %292 = vector.shape_cast %291 : vector<4xf32> to vector<4x1xf32>
    %293 = tpu.reciprocal %292 {approx = true} : vector<4x1xf32> -> vector<4x1xf32>
    %294 = vector.broadcast %293 : vector<4x1xf32> to vector<4x2xf32>
    %295 = arith.mulf %290, %294 : vector<4x2xf32>
    %296 = arith.subf %295, %19 : vector<4x2xf32>
    %cst_219 = arith.constant 2.500000e-01 : f32
    %297 = vector.broadcast %cst_219 : f32 to vector<4x2xf32>
    %298 = arith.mulf %296, %297 : vector<4x2xf32>
    %cst_220 = arith.constant dense<0.000000e+00> : vector<64x2xf32>
    %299 = tpu.matmul %282, %298, %cst_220 {dimension_numbers = #tpu.dot_dimension_numbers<[0], [0], [1], [1], [0, 1, 1, 1], [], []>} : vector<4x64xf32>, vector<4x2xf32>, vector<64x2xf32> -> vector<64x2xf32>
    %cst_221 = arith.constant dense<0.000000e+00> : vector<2xf32>
    %300 = vector.multi_reduction <add>, %298, %cst_221 [0] : vector<4x2xf32> to vector<2xf32>
    %301 = vector.shape_cast %300 : vector<2xf32> to vector<1x2xf32>
    %cst_222 = arith.constant dense<0.000000e+00> : vector<4x64xf32>
    %302 = tpu.matmul %298, %269, %cst_222 {dimension_numbers = #tpu.dot_dimension_numbers<[1], [1], [0], [0], [0, 0, 1, 0], [], []>} : vector<4x2xf32>, vector<64x2xf32>, vector<4x64xf32> -> vector<4x64xf32>
    %303 = vector.extract_strided_slice %302 {offsets = [0, 0], sizes = [4, 32], strides = [1, 1]} : vector<4x64xf32> to vector<4x32xf32>
    %304 = vector.extract_strided_slice %302 {offsets = [0, 32], sizes = [4, 32], strides = [1, 1]} : vector<4x64xf32> to vector<4x32xf32>
    %cst_223 = arith.constant 0.000000e+00 : f32
    %305 = vector.broadcast %cst_223 : f32 to vector<4x32xf32>
    %306 = arith.cmpf ogt, %279, %305 : vector<4x32xf32>
    %cst_224 = arith.constant 0.000000e+00 : f32
    %307 = vector.broadcast %cst_224 : f32 to vector<4x32xf32>
    %308 = arith.select %306, %304, %307 : vector<4x32xi1>, vector<4x32xf32>
    %cst_225 = arith.constant dense<0.000000e+00> : vector<32x1024xf32>
    %309 = tpu.matmul %308, %17, %cst_225 {dimension_numbers = #tpu.dot_dimension_numbers<[0], [0], [1], [1], [0, 1, 1, 1], [], []>} : vector<4x32xf32>, vector<4x1024xf32>, vector<32x1024xf32> -> vector<32x1024xf32>
    %cst_226 = arith.constant dense<0.000000e+00> : vector<32xf32>
    %310 = vector.multi_reduction <add>, %308, %cst_226 [0] : vector<4x32xf32> to vector<32xf32>
    %311 = vector.shape_cast %310 : vector<32xf32> to vector<1x32xf32>
    %cst_227 = arith.constant dense<0.000000e+00> : vector<64x32xf32>
    %312 = tpu.matmul %15, %303, %cst_227 {dimension_numbers = #tpu.dot_dimension_numbers<[0], [0], [1], [1], [0, 1, 1, 1], [], []>} : vector<4x64xf32>, vector<4x32xf32>, vector<64x32xf32> -> vector<64x32xf32>
    %cst_228 = arith.constant 0.000000e+00 : f32
    %313 = vector.broadcast %cst_228 : f32 to vector<64x32xf32>
    %314 = arith.cmpf ogt, %273, %313 : vector<64x32xf32>
    %cst_229 = arith.constant 0.000000e+00 : f32
    %315 = vector.broadcast %cst_229 : f32 to vector<64x32xf32>
    %316 = arith.select %314, %312, %315 : vector<64x32xi1>, vector<64x32xf32>
    %cst_230 = arith.constant dense<0.000000e+00> : vector<8x32xf32>
    %317 = tpu.matmul %13, %316, %cst_230 {dimension_numbers = #tpu.dot_dimension_numbers<[0], [0], [1], [1], [0, 1, 1, 1], [], []>} : vector<64x8xf32>, vector<64x32xf32>, vector<8x32xf32> -> vector<8x32xf32>
    %cst_231 = arith.constant dense<0.000000e+00> : vector<32xf32>
    %318 = vector.multi_reduction <add>, %316, %cst_231 [0] : vector<64x32xf32> to vector<32xf32>
    %319 = vector.shape_cast %318 : vector<32xf32> to vector<1x32xf32>
    %cst_232 = arith.constant 1.000000e-03 : f32
    %320 = vector.broadcast %cst_232 : f32 to vector<8x32xf32>
    %321 = arith.mulf %320, %317 : vector<8x32xf32>
    %322 = arith.subf %265, %321 : vector<8x32xf32>
    %c0_233 = arith.constant 0 : index
    %c0_234 = arith.constant 0 : index
    %323 = vector.load %arg17[%c0_233, %c0_234] : memref<8x32xf32, #tpu.memory_space<vmem>>, vector<8x32xf32>
    tpu.vector_store %arg17[%c0_233, %c0_234], %322 {strides = array<i32>} : memref<8x32xf32, #tpu.memory_space<vmem>>, vector<8x32xf32>,
    %cst_235 = arith.constant 1.000000e-03 : f32
    %324 = vector.broadcast %cst_235 : f32 to vector<1x32xf32>
    %325 = arith.mulf %324, %319 : vector<1x32xf32>
    %326 = arith.subf %266, %325 : vector<1x32xf32>
    %c0_236 = arith.constant 0 : index
    %c0_237 = arith.constant 0 : index
    %327 = vector.load %arg18[%c0_236, %c0_237] : memref<1x32xf32, #tpu.memory_space<vmem>>, vector<1x32xf32>
    tpu.vector_store %arg18[%c0_236, %c0_237], %326 {strides = array<i32>} : memref<1x32xf32, #tpu.memory_space<vmem>>, vector<1x32xf32>,
    %cst_238 = arith.constant 1.000000e-03 : f32
    %328 = vector.broadcast %cst_238 : f32 to vector<32x1024xf32>
    %329 = arith.mulf %328, %309 : vector<32x1024xf32>
    %330 = arith.subf %267, %329 : vector<32x1024xf32>
    %c0_239 = arith.constant 0 : index
    %c0_240 = arith.constant 0 : index
    %331 = vector.load %arg19[%c0_239, %c0_240] : memref<32x1024xf32, #tpu.memory_space<vmem>>, vector<32x1024xf32>
    tpu.vector_store %arg19[%c0_239, %c0_240], %330 {strides = array<i32>} : memref<32x1024xf32, #tpu.memory_space<vmem>>, vector<32x1024xf32>,
    %cst_241 = arith.constant 1.000000e-03 : f32
    %332 = vector.broadcast %cst_241 : f32 to vector<1x32xf32>
    %333 = arith.mulf %332, %311 : vector<1x32xf32>
    %334 = arith.subf %268, %333 : vector<1x32xf32>
    %c0_242 = arith.constant 0 : index
    %c0_243 = arith.constant 0 : index
    %335 = vector.load %arg20[%c0_242, %c0_243] : memref<1x32xf32, #tpu.memory_space<vmem>>, vector<1x32xf32>
    tpu.vector_store %arg20[%c0_242, %c0_243], %334 {strides = array<i32>} : memref<1x32xf32, #tpu.memory_space<vmem>>, vector<1x32xf32>,
    %cst_244 = arith.constant 1.000000e-03 : f32
    %336 = vector.broadcast %cst_244 : f32 to vector<64x2xf32>
    %337 = arith.mulf %336, %299 : vector<64x2xf32>
    %338 = arith.subf %269, %337 : vector<64x2xf32>
    %c0_245 = arith.constant 0 : index
    %c0_246 = arith.constant 0 : index
    %339 = vector.load %arg21[%c0_245, %c0_246] : memref<64x2xf32, #tpu.memory_space<vmem>>, vector<64x2xf32>
    tpu.vector_store %arg21[%c0_245, %c0_246], %338 {strides = array<i32>} : memref<64x2xf32, #tpu.memory_space<vmem>>, vector<64x2xf32>,
    %cst_247 = arith.constant 1.000000e-03 : f32
    %340 = vector.broadcast %cst_247 : f32 to vector<1x2xf32>
    %341 = arith.mulf %340, %301 : vector<1x2xf32>
    %342 = arith.subf %270, %341 : vector<1x2xf32>
    %c0_248 = arith.constant 0 : index
    %c0_249 = arith.constant 0 : index
    %343 = vector.load %arg22[%c0_248, %c0_249] : memref<1x2xf32, #tpu.memory_space<vmem>>, vector<1x2xf32>
    tpu.vector_store %arg22[%c0_248, %c0_249], %342 {strides = array<i32>} : memref<1x2xf32, #tpu.memory_space<vmem>>, vector<1x2xf32>,
    %c4_i32 = arith.constant 4 : i32
    %c0_250 = arith.constant 0 : index
    %c0_251 = arith.constant 0 : index
    %344 = vector.load %arg17[%c0_250, %c0_251] : memref<8x32xf32, #tpu.memory_space<vmem>>, vector<8x32xf32>
    %c0_252 = arith.constant 0 : index
    %c0_253 = arith.constant 0 : index
    %345 = vector.load %arg18[%c0_252, %c0_253] : memref<1x32xf32, #tpu.memory_space<vmem>>, vector<1x32xf32>
    %c0_254 = arith.constant 0 : index
    %c0_255 = arith.constant 0 : index
    %346 = vector.load %arg19[%c0_254, %c0_255] : memref<32x1024xf32, #tpu.memory_space<vmem>>, vector<32x1024xf32>
    %c0_256 = arith.constant 0 : index
    %c0_257 = arith.constant 0 : index
    %347 = vector.load %arg20[%c0_256, %c0_257] : memref<1x32xf32, #tpu.memory_space<vmem>>, vector<1x32xf32>
    %c0_258 = arith.constant 0 : index
    %c0_259 = arith.constant 0 : index
    %348 = vector.load %arg21[%c0_258, %c0_259] : memref<64x2xf32, #tpu.memory_space<vmem>>, vector<64x2xf32>
    %c0_260 = arith.constant 0 : index
    %c0_261 = arith.constant 0 : index
    %349 = vector.load %arg22[%c0_260, %c0_261] : memref<1x2xf32, #tpu.memory_space<vmem>>, vector<1x2xf32>
    %cst_262 = arith.constant dense<0.000000e+00> : vector<64x32xf32>
    %350 = tpu.matmul %13, %344, %cst_262 {dimension_numbers = #tpu.dot_dimension_numbers<[1], [0], [0], [1], [0, 0, 1, 1], [], []>} : vector<64x8xf32>, vector<8x32xf32>, vector<64x32xf32> -> vector<64x32xf32>
    %351 = vector.broadcast %345 : vector<1x32xf32> to vector<64x32xf32>
    %352 = arith.addf %350, %351 : vector<64x32xf32>
    %cst_263 = arith.constant 0.000000e+00 : f32
    %353 = vector.broadcast %cst_263 : f32 to vector<64x32xf32>
    %354 = arith.maximumf %352, %353 : vector<64x32xf32>
    %cst_264 = arith.constant dense<0.000000e+00> : vector<4x32xf32>
    %355 = tpu.matmul %15, %354, %cst_264 {dimension_numbers = #tpu.dot_dimension_numbers<[1], [0], [0], [1], [0, 0, 1, 1], [], []>} : vector<4x64xf32>, vector<64x32xf32>, vector<4x32xf32> -> vector<4x32xf32>
    %cst_265 = arith.constant dense<0.000000e+00> : vector<4x32xf32>
    %356 = tpu.matmul %17, %346, %cst_265 {dimension_numbers = #tpu.dot_dimension_numbers<[1], [1], [0], [0], [0, 0, 1, 0], [], []>} : vector<4x1024xf32>, vector<32x1024xf32>, vector<4x32xf32> -> vector<4x32xf32>
    %357 = vector.broadcast %347 : vector<1x32xf32> to vector<4x32xf32>
    %358 = arith.addf %356, %357 : vector<4x32xf32>
    %cst_266 = arith.constant 0.000000e+00 : f32
    %359 = vector.broadcast %cst_266 : f32 to vector<4x32xf32>
    %360 = arith.maximumf %358, %359 : vector<4x32xf32>
    %361 = tpu.concatenate %355, %360 in 1 : vector<4x32xf32>, vector<4x32xf32> -> vector<4x64xf32>
    %cst_267 = arith.constant dense<0.000000e+00> : vector<4x2xf32>
    %362 = tpu.matmul %361, %348, %cst_267 {dimension_numbers = #tpu.dot_dimension_numbers<[1], [0], [0], [1], [0, 0, 1, 1], [], []>} : vector<4x64xf32>, vector<64x2xf32>, vector<4x2xf32> -> vector<4x2xf32>
    %363 = vector.broadcast %349 : vector<1x2xf32> to vector<4x2xf32>
    %364 = arith.addf %362, %363 : vector<4x2xf32>
    %cst_268 = arith.constant dense<0xFF800000> : vector<4xf32>
    %365 = vector.multi_reduction <maximumf>, %364, %cst_268 [1] : vector<4x2xf32> to vector<4xf32>
    %366 = vector.shape_cast %365 : vector<4xf32> to vector<4x1xf32>
    %367 = vector.broadcast %366 : vector<4x1xf32> to vector<4x2xf32>
    %368 = arith.subf %364, %367 : vector<4x2xf32>
    %369 = math.exp %368 : vector<4x2xf32>
    %cst_269 = arith.constant dense<0.000000e+00> : vector<4xf32>
    %370 = vector.multi_reduction <add>, %369, %cst_269 [1] : vector<4x2xf32> to vector<4xf32>
    %371 = vector.shape_cast %370 : vector<4xf32> to vector<4x1xf32>
    %372 = tpu.reciprocal %371 {approx = true} : vector<4x1xf32> -> vector<4x1xf32>
    %373 = vector.broadcast %372 : vector<4x1xf32> to vector<4x2xf32>
    %374 = arith.mulf %369, %373 : vector<4x2xf32>
    %375 = arith.subf %374, %19 : vector<4x2xf32>
    %cst_270 = arith.constant 2.500000e-01 : f32
    %376 = vector.broadcast %cst_270 : f32 to vector<4x2xf32>
    %377 = arith.mulf %375, %376 : vector<4x2xf32>
    %cst_271 = arith.constant dense<0.000000e+00> : vector<64x2xf32>
    %378 = tpu.matmul %361, %377, %cst_271 {dimension_numbers = #tpu.dot_dimension_numbers<[0], [0], [1], [1], [0, 1, 1, 1], [], []>} : vector<4x64xf32>, vector<4x2xf32>, vector<64x2xf32> -> vector<64x2xf32>
    %cst_272 = arith.constant dense<0.000000e+00> : vector<2xf32>
    %379 = vector.multi_reduction <add>, %377, %cst_272 [0] : vector<4x2xf32> to vector<2xf32>
    %380 = vector.shape_cast %379 : vector<2xf32> to vector<1x2xf32>
    %cst_273 = arith.constant dense<0.000000e+00> : vector<4x64xf32>
    %381 = tpu.matmul %377, %348, %cst_273 {dimension_numbers = #tpu.dot_dimension_numbers<[1], [1], [0], [0], [0, 0, 1, 0], [], []>} : vector<4x2xf32>, vector<64x2xf32>, vector<4x64xf32> -> vector<4x64xf32>
    %382 = vector.extract_strided_slice %381 {offsets = [0, 0], sizes = [4, 32], strides = [1, 1]} : vector<4x64xf32> to vector<4x32xf32>
    %383 = vector.extract_strided_slice %381 {offsets = [0, 32], sizes = [4, 32], strides = [1, 1]} : vector<4x64xf32> to vector<4x32xf32>
    %cst_274 = arith.constant 0.000000e+00 : f32
    %384 = vector.broadcast %cst_274 : f32 to vector<4x32xf32>
    %385 = arith.cmpf ogt, %358, %384 : vector<4x32xf32>
    %cst_275 = arith.constant 0.000000e+00 : f32
    %386 = vector.broadcast %cst_275 : f32 to vector<4x32xf32>
    %387 = arith.select %385, %383, %386 : vector<4x32xi1>, vector<4x32xf32>
    %cst_276 = arith.constant dense<0.000000e+00> : vector<32x1024xf32>
    %388 = tpu.matmul %387, %17, %cst_276 {dimension_numbers = #tpu.dot_dimension_numbers<[0], [0], [1], [1], [0, 1, 1, 1], [], []>} : vector<4x32xf32>, vector<4x1024xf32>, vector<32x1024xf32> -> vector<32x1024xf32>
    %cst_277 = arith.constant dense<0.000000e+00> : vector<32xf32>
    %389 = vector.multi_reduction <add>, %387, %cst_277 [0] : vector<4x32xf32> to vector<32xf32>
    %390 = vector.shape_cast %389 : vector<32xf32> to vector<1x32xf32>
    %cst_278 = arith.constant dense<0.000000e+00> : vector<64x32xf32>
    %391 = tpu.matmul %15, %382, %cst_278 {dimension_numbers = #tpu.dot_dimension_numbers<[0], [0], [1], [1], [0, 1, 1, 1], [], []>} : vector<4x64xf32>, vector<4x32xf32>, vector<64x32xf32> -> vector<64x32xf32>
    %cst_279 = arith.constant 0.000000e+00 : f32
    %392 = vector.broadcast %cst_279 : f32 to vector<64x32xf32>
    %393 = arith.cmpf ogt, %352, %392 : vector<64x32xf32>
    %cst_280 = arith.constant 0.000000e+00 : f32
    %394 = vector.broadcast %cst_280 : f32 to vector<64x32xf32>
    %395 = arith.select %393, %391, %394 : vector<64x32xi1>, vector<64x32xf32>
    %cst_281 = arith.constant dense<0.000000e+00> : vector<8x32xf32>
    %396 = tpu.matmul %13, %395, %cst_281 {dimension_numbers = #tpu.dot_dimension_numbers<[0], [0], [1], [1], [0, 1, 1, 1], [], []>} : vector<64x8xf32>, vector<64x32xf32>, vector<8x32xf32> -> vector<8x32xf32>
    %cst_282 = arith.constant dense<0.000000e+00> : vector<32xf32>
    %397 = vector.multi_reduction <add>, %395, %cst_282 [0] : vector<64x32xf32> to vector<32xf32>
    %398 = vector.shape_cast %397 : vector<32xf32> to vector<1x32xf32>
    %cst_283 = arith.constant 1.000000e-03 : f32
    %399 = vector.broadcast %cst_283 : f32 to vector<8x32xf32>
    %400 = arith.mulf %399, %396 : vector<8x32xf32>
    %401 = arith.subf %344, %400 : vector<8x32xf32>
    %c0_284 = arith.constant 0 : index
    %c0_285 = arith.constant 0 : index
    %402 = vector.load %arg17[%c0_284, %c0_285] : memref<8x32xf32, #tpu.memory_space<vmem>>, vector<8x32xf32>
    tpu.vector_store %arg17[%c0_284, %c0_285], %401 {strides = array<i32>} : memref<8x32xf32, #tpu.memory_space<vmem>>, vector<8x32xf32>,
    %cst_286 = arith.constant 1.000000e-03 : f32
    %403 = vector.broadcast %cst_286 : f32 to vector<1x32xf32>
    %404 = arith.mulf %403, %398 : vector<1x32xf32>
    %405 = arith.subf %345, %404 : vector<1x32xf32>
    %c0_287 = arith.constant 0 : index
    %c0_288 = arith.constant 0 : index
    %406 = vector.load %arg18[%c0_287, %c0_288] : memref<1x32xf32, #tpu.memory_space<vmem>>, vector<1x32xf32>
    tpu.vector_store %arg18[%c0_287, %c0_288], %405 {strides = array<i32>} : memref<1x32xf32, #tpu.memory_space<vmem>>, vector<1x32xf32>,
    %cst_289 = arith.constant 1.000000e-03 : f32
    %407 = vector.broadcast %cst_289 : f32 to vector<32x1024xf32>
    %408 = arith.mulf %407, %388 : vector<32x1024xf32>
    %409 = arith.subf %346, %408 : vector<32x1024xf32>
    %c0_290 = arith.constant 0 : index
    %c0_291 = arith.constant 0 : index
    %410 = vector.load %arg19[%c0_290, %c0_291] : memref<32x1024xf32, #tpu.memory_space<vmem>>, vector<32x1024xf32>
    tpu.vector_store %arg19[%c0_290, %c0_291], %409 {strides = array<i32>} : memref<32x1024xf32, #tpu.memory_space<vmem>>, vector<32x1024xf32>,
    %cst_292 = arith.constant 1.000000e-03 : f32
    %411 = vector.broadcast %cst_292 : f32 to vector<1x32xf32>
    %412 = arith.mulf %411, %390 : vector<1x32xf32>
    %413 = arith.subf %347, %412 : vector<1x32xf32>
    %c0_293 = arith.constant 0 : index
    %c0_294 = arith.constant 0 : index
    %414 = vector.load %arg20[%c0_293, %c0_294] : memref<1x32xf32, #tpu.memory_space<vmem>>, vector<1x32xf32>
    tpu.vector_store %arg20[%c0_293, %c0_294], %413 {strides = array<i32>} : memref<1x32xf32, #tpu.memory_space<vmem>>, vector<1x32xf32>,
    %cst_295 = arith.constant 1.000000e-03 : f32
    %415 = vector.broadcast %cst_295 : f32 to vector<64x2xf32>
    %416 = arith.mulf %415, %378 : vector<64x2xf32>
    %417 = arith.subf %348, %416 : vector<64x2xf32>
    %c0_296 = arith.constant 0 : index
    %c0_297 = arith.constant 0 : index
    %418 = vector.load %arg21[%c0_296, %c0_297] : memref<64x2xf32, #tpu.memory_space<vmem>>, vector<64x2xf32>
    tpu.vector_store %arg21[%c0_296, %c0_297], %417 {strides = array<i32>} : memref<64x2xf32, #tpu.memory_space<vmem>>, vector<64x2xf32>,
    %cst_298 = arith.constant 1.000000e-03 : f32
    %419 = vector.broadcast %cst_298 : f32 to vector<1x2xf32>
    %420 = arith.mulf %419, %380 : vector<1x2xf32>
    %421 = arith.subf %349, %420 : vector<1x2xf32>
    %c0_299 = arith.constant 0 : index
    %c0_300 = arith.constant 0 : index
    %422 = vector.load %arg22[%c0_299, %c0_300] : memref<1x2xf32, #tpu.memory_space<vmem>>, vector<1x2xf32>
    tpu.vector_store %arg22[%c0_299, %c0_300], %421 {strides = array<i32>} : memref<1x2xf32, #tpu.memory_space<vmem>>, vector<1x2xf32>,
    %c0_301 = arith.constant 0 : index
    %c0_302 = arith.constant 0 : index
    %423 = vector.load %arg17[%c0_301, %c0_302] : memref<8x32xf32, #tpu.memory_space<vmem>>, vector<8x32xf32>
    %c0_303 = arith.constant 0 : index
    %c0_304 = arith.constant 0 : index
    %424 = vector.load %arg18[%c0_303, %c0_304] : memref<1x32xf32, #tpu.memory_space<vmem>>, vector<1x32xf32>
    %c0_305 = arith.constant 0 : index
    %c0_306 = arith.constant 0 : index
    %425 = vector.load %arg19[%c0_305, %c0_306] : memref<32x1024xf32, #tpu.memory_space<vmem>>, vector<32x1024xf32>
    %c0_307 = arith.constant 0 : index
    %c0_308 = arith.constant 0 : index
    %426 = vector.load %arg20[%c0_307, %c0_308] : memref<1x32xf32, #tpu.memory_space<vmem>>, vector<1x32xf32>
    %c0_309 = arith.constant 0 : index
    %c0_310 = arith.constant 0 : index
    %427 = vector.load %arg21[%c0_309, %c0_310] : memref<64x2xf32, #tpu.memory_space<vmem>>, vector<64x2xf32>
    %c0_311 = arith.constant 0 : index
    %c0_312 = arith.constant 0 : index
    %428 = vector.load %arg22[%c0_311, %c0_312] : memref<1x2xf32, #tpu.memory_space<vmem>>, vector<1x2xf32>
    %cst_313 = arith.constant dense<0.000000e+00> : vector<64x32xf32>
    %429 = tpu.matmul %21, %423, %cst_313 {dimension_numbers = #tpu.dot_dimension_numbers<[1], [0], [0], [1], [0, 0, 1, 1], [], []>} : vector<64x8xf32>, vector<8x32xf32>, vector<64x32xf32> -> vector<64x32xf32>
    %430 = vector.broadcast %424 : vector<1x32xf32> to vector<64x32xf32>
    %431 = arith.addf %429, %430 : vector<64x32xf32>
    %cst_314 = arith.constant 0.000000e+00 : f32
    %432 = vector.broadcast %cst_314 : f32 to vector<64x32xf32>
    %433 = arith.maximumf %431, %432 : vector<64x32xf32>
    %cst_315 = arith.constant dense<0.000000e+00> : vector<4x32xf32>
    %434 = tpu.matmul %23, %433, %cst_315 {dimension_numbers = #tpu.dot_dimension_numbers<[1], [0], [0], [1], [0, 0, 1, 1], [], []>} : vector<4x64xf32>, vector<64x32xf32>, vector<4x32xf32> -> vector<4x32xf32>
    %cst_316 = arith.constant dense<0.000000e+00> : vector<4x32xf32>
    %435 = tpu.matmul %25, %425, %cst_316 {dimension_numbers = #tpu.dot_dimension_numbers<[1], [1], [0], [0], [0, 0, 1, 0], [], []>} : vector<4x1024xf32>, vector<32x1024xf32>, vector<4x32xf32> -> vector<4x32xf32>
    %436 = vector.broadcast %426 : vector<1x32xf32> to vector<4x32xf32>
    %437 = arith.addf %435, %436 : vector<4x32xf32>
    %cst_317 = arith.constant 0.000000e+00 : f32
    %438 = vector.broadcast %cst_317 : f32 to vector<4x32xf32>
    %439 = arith.maximumf %437, %438 : vector<4x32xf32>
    %440 = tpu.concatenate %434, %439 in 1 : vector<4x32xf32>, vector<4x32xf32> -> vector<4x64xf32>
    %cst_318 = arith.constant dense<0.000000e+00> : vector<4x2xf32>
    %441 = tpu.matmul %440, %427, %cst_318 {dimension_numbers = #tpu.dot_dimension_numbers<[1], [0], [0], [1], [0, 0, 1, 1], [], []>} : vector<4x64xf32>, vector<64x2xf32>, vector<4x2xf32> -> vector<4x2xf32>
    %442 = vector.broadcast %428 : vector<1x2xf32> to vector<4x2xf32>
    %443 = arith.addf %441, %442 : vector<4x2xf32>
    %cst_319 = arith.constant dense<0xFF800000> : vector<4xf32>
    %444 = vector.multi_reduction <maximumf>, %443, %cst_319 [1] : vector<4x2xf32> to vector<4xf32>
    %445 = vector.shape_cast %444 : vector<4xf32> to vector<4x1xf32>
    %446 = vector.broadcast %445 : vector<4x1xf32> to vector<4x2xf32>
    %447 = arith.subf %443, %446 : vector<4x2xf32>
    %448 = math.exp %447 : vector<4x2xf32>
    %cst_320 = arith.constant dense<0.000000e+00> : vector<4xf32>
    %449 = vector.multi_reduction <add>, %448, %cst_320 [1] : vector<4x2xf32> to vector<4xf32>
    %450 = vector.shape_cast %449 : vector<4xf32> to vector<4x1xf32>
    %451 = tpu.reciprocal %450 {approx = true} : vector<4x1xf32> -> vector<4x1xf32>
    %452 = vector.broadcast %451 : vector<4x1xf32> to vector<4x2xf32>
    %453 = arith.mulf %448, %452 : vector<4x2xf32>
    %454 = math.log %450 : vector<4x1xf32>
    %455 = vector.broadcast %454 : vector<4x1xf32> to vector<4x2xf32>
    %456 = arith.subf %447, %455 : vector<4x2xf32>
    %457 = arith.mulf %27, %456 : vector<4x2xf32>
    %cst_321 = arith.constant dense<0.000000e+00> : vector<4xf32>
    %458 = vector.multi_reduction <add>, %457, %cst_321 [1] : vector<4x2xf32> to vector<4xf32>
    %459 = vector.shape_cast %458 : vector<4xf32> to vector<4x1xf32>
    %cst_322 = arith.constant -2.500000e-01 : f32
    %460 = vector.broadcast %cst_322 : f32 to vector<4x1xf32>
    %461 = arith.mulf %460, %459 : vector<4x1xf32>
    %cst_323 = arith.constant dense<0.000000e+00> : vector<1xf32>
    %462 = vector.multi_reduction <add>, %461, %cst_323 [0] : vector<4x1xf32> to vector<1xf32>
    %463 = vector.shape_cast %462 : vector<1xf32> to vector<1x1xf32>
    %464 = arith.subf %453, %27 : vector<4x2xf32>
    %cst_324 = arith.constant 2.500000e-01 : f32
    %465 = vector.broadcast %cst_324 : f32 to vector<4x2xf32>
    %466 = arith.mulf %464, %465 : vector<4x2xf32>
    %cst_325 = arith.constant dense<0.000000e+00> : vector<64x2xf32>
    %467 = tpu.matmul %440, %466, %cst_325 {dimension_numbers = #tpu.dot_dimension_numbers<[0], [0], [1], [1], [0, 1, 1, 1], [], []>} : vector<4x64xf32>, vector<4x2xf32>, vector<64x2xf32> -> vector<64x2xf32>
    %cst_326 = arith.constant dense<0.000000e+00> : vector<2xf32>
    %468 = vector.multi_reduction <add>, %466, %cst_326 [0] : vector<4x2xf32> to vector<2xf32>
    %469 = vector.shape_cast %468 : vector<2xf32> to vector<1x2xf32>
    %cst_327 = arith.constant dense<0.000000e+00> : vector<4x64xf32>
    %470 = tpu.matmul %466, %427, %cst_327 {dimension_numbers = #tpu.dot_dimension_numbers<[1], [1], [0], [0], [0, 0, 1, 0], [], []>} : vector<4x2xf32>, vector<64x2xf32>, vector<4x64xf32> -> vector<4x64xf32>
    %471 = vector.extract_strided_slice %470 {offsets = [0, 0], sizes = [4, 32], strides = [1, 1]} : vector<4x64xf32> to vector<4x32xf32>
    %472 = vector.extract_strided_slice %470 {offsets = [0, 32], sizes = [4, 32], strides = [1, 1]} : vector<4x64xf32> to vector<4x32xf32>
    %cst_328 = arith.constant 0.000000e+00 : f32
    %473 = vector.broadcast %cst_328 : f32 to vector<4x32xf32>
    %474 = arith.cmpf ogt, %437, %473 : vector<4x32xf32>
    %cst_329 = arith.constant 0.000000e+00 : f32
    %475 = vector.broadcast %cst_329 : f32 to vector<4x32xf32>
    %476 = arith.select %474, %472, %475 : vector<4x32xi1>, vector<4x32xf32>
    %cst_330 = arith.constant dense<0.000000e+00> : vector<32x1024xf32>
    %477 = tpu.matmul %476, %25, %cst_330 {dimension_numbers = #tpu.dot_dimension_numbers<[0], [0], [1], [1], [0, 1, 1, 1], [], []>} : vector<4x32xf32>, vector<4x1024xf32>, vector<32x1024xf32> -> vector<32x1024xf32>
    %cst_331 = arith.constant dense<0.000000e+00> : vector<32xf32>
    %478 = vector.multi_reduction <add>, %476, %cst_331 [0] : vector<4x32xf32> to vector<32xf32>
    %479 = vector.shape_cast %478 : vector<32xf32> to vector<1x32xf32>
    %cst_332 = arith.constant dense<0.000000e+00> : vector<64x32xf32>
    %480 = tpu.matmul %23, %471, %cst_332 {dimension_numbers = #tpu.dot_dimension_numbers<[0], [0], [1], [1], [0, 1, 1, 1], [], []>} : vector<4x64xf32>, vector<4x32xf32>, vector<64x32xf32> -> vector<64x32xf32>
    %cst_333 = arith.constant 0.000000e+00 : f32
    %481 = vector.broadcast %cst_333 : f32 to vector<64x32xf32>
    %482 = arith.cmpf ogt, %431, %481 : vector<64x32xf32>
    %cst_334 = arith.constant 0.000000e+00 : f32
    %483 = vector.broadcast %cst_334 : f32 to vector<64x32xf32>
    %484 = arith.select %482, %480, %483 : vector<64x32xi1>, vector<64x32xf32>
    %cst_335 = arith.constant dense<0.000000e+00> : vector<8x32xf32>
    %485 = tpu.matmul %21, %484, %cst_335 {dimension_numbers = #tpu.dot_dimension_numbers<[0], [0], [1], [1], [0, 1, 1, 1], [], []>} : vector<64x8xf32>, vector<64x32xf32>, vector<8x32xf32> -> vector<8x32xf32>
    %cst_336 = arith.constant dense<0.000000e+00> : vector<32xf32>
    %486 = vector.multi_reduction <add>, %484, %cst_336 [0] : vector<64x32xf32> to vector<32xf32>
    %487 = vector.shape_cast %486 : vector<32xf32> to vector<1x32xf32>
    %cst_337 = arith.constant 0.000000e+00 : f32
    %488 = vector.broadcast %cst_337 : f32 to vector<80x128xf32>
    %c0_338 = arith.constant 0 : index
    %c0_339 = arith.constant 0 : index
    %c0_340 = arith.constant 0 : index
    %489 = vector.load %arg15[%c0_338, %c0_339, %c0_340] : memref<1x80x128xf32, #tpu.memory_space<vmem>>, vector<1x80x128xf32>
    %490 = vector.shape_cast %489 : vector<1x80x128xf32> to vector<80x128xf32>
    %491 = vector.shape_cast %488 : vector<80x128xf32> to vector<1x80x128xf32>
    tpu.vector_store %arg15[%c0_338, %c0_339, %c0_340], %491 {strides = array<i32>} : memref<1x80x128xf32, #tpu.memory_space<vmem>>, vector<1x80x128xf32>,
    %c0_341 = arith.constant 0 : index
    %c0_342 = arith.constant 0 : index
    %c0_343 = arith.constant 0 : index
    %492 = vector.load %arg15[%c0_341, %c0_342, %c0_343] : memref<1x80x128xf32, #tpu.memory_space<vmem>>, vector<1x8x32xf32>
    %493 = vector.shape_cast %492 : vector<1x8x32xf32> to vector<8x32xf32>
    %494 = vector.shape_cast %485 : vector<8x32xf32> to vector<1x8x32xf32>
    tpu.vector_store %arg15[%c0_341, %c0_342, %c0_343], %494 {strides = array<i32>} : memref<1x80x128xf32, #tpu.memory_space<vmem>>, vector<1x8x32xf32>,
    %c0_344 = arith.constant 0 : index
    %c8 = arith.constant 8 : index
    %c0_345 = arith.constant 0 : index
    %495 = vector.load %arg15[%c0_344, %c8, %c0_345] : memref<1x80x128xf32, #tpu.memory_space<vmem>>, vector<1x1x32xf32>
    %496 = vector.shape_cast %495 : vector<1x1x32xf32> to vector<1x32xf32>
    %497 = vector.shape_cast %487 : vector<1x32xf32> to vector<1x1x32xf32>
    tpu.vector_store %arg15[%c0_344, %c8, %c0_345], %497 {strides = array<i32>} : memref<1x80x128xf32, #tpu.memory_space<vmem>>, vector<1x1x32xf32>,
    %c0_346 = arith.constant 0 : index
    %c9 = arith.constant 9 : index
    %c0_347 = arith.constant 0 : index
    %498 = vector.load %arg15[%c0_346, %c9, %c0_347] : memref<1x80x128xf32, #tpu.memory_space<vmem>>, vector<1x1x32xf32>
    %499 = vector.shape_cast %498 : vector<1x1x32xf32> to vector<1x32xf32>
    %500 = vector.shape_cast %479 : vector<1x32xf32> to vector<1x1x32xf32>
    tpu.vector_store %arg15[%c0_346, %c9, %c0_347], %500 {strides = array<i32>} : memref<1x80x128xf32, #tpu.memory_space<vmem>>, vector<1x1x32xf32>,
    %c0_348 = arith.constant 0 : index
    %c10 = arith.constant 10 : index
    %c0_349 = arith.constant 0 : index
    %501 = vector.load %arg15[%c0_348, %c10, %c0_349] : memref<1x80x128xf32, #tpu.memory_space<vmem>>, vector<1x1x2xf32>
    %502 = vector.shape_cast %501 : vector<1x1x2xf32> to vector<1x2xf32>
    %503 = vector.shape_cast %469 : vector<1x2xf32> to vector<1x1x2xf32>
    tpu.vector_store %arg15[%c0_348, %c10, %c0_349], %503 {strides = array<i32>} : memref<1x80x128xf32, #tpu.memory_space<vmem>>, vector<1x1x2xf32>,
    %c0_350 = arith.constant 0 : index
    %c11 = arith.constant 11 : index
    %c0_351 = arith.constant 0 : index
    %504 = vector.load %arg15[%c0_350, %c11, %c0_351] : memref<1x80x128xf32, #tpu.memory_space<vmem>>, vector<1x1x1xf32>
    %505 = vector.shape_cast %504 : vector<1x1x1xf32> to vector<1x1xf32>
    %506 = vector.shape_cast %463 : vector<1x1xf32> to vector<1x1x1xf32>
    tpu.vector_store %arg15[%c0_350, %c11, %c0_351], %506 {strides = array<i32>} : memref<1x80x128xf32, #tpu.memory_space<vmem>>, vector<1x1x1xf32>,
    %507 = vector.extract_strided_slice %453 {offsets = [0, 1], sizes = [4, 1], strides = [1, 1]} : vector<4x2xf32> to vector<4x1xf32>
    %c0_352 = arith.constant 0 : index
    %c12 = arith.constant 12 : index
    %c0_353 = arith.constant 0 : index
    %508 = vector.load %arg15[%c0_352, %c12, %c0_353] : memref<1x80x128xf32, #tpu.memory_space<vmem>>, vector<1x4x1xf32>
    %509 = vector.shape_cast %508 : vector<1x4x1xf32> to vector<4x1xf32>
    %510 = vector.shape_cast %507 : vector<4x1xf32> to vector<1x4x1xf32>
    tpu.vector_store %arg15[%c0_352, %c12, %c0_353], %510 {strides = array<i32>} : memref<1x80x128xf32, #tpu.memory_space<vmem>>, vector<1x4x1xf32>,
    %c0_354 = arith.constant 0 : index
    %c16 = arith.constant 16 : index
    %c0_355 = arith.constant 0 : index
    %511 = vector.load %arg15[%c0_354, %c16, %c0_355] : memref<1x80x128xf32, #tpu.memory_space<vmem>>, vector<1x64x2xf32>
    %512 = vector.shape_cast %511 : vector<1x64x2xf32> to vector<64x2xf32>
    %513 = vector.shape_cast %467 : vector<64x2xf32> to vector<1x64x2xf32>
    tpu.vector_store %arg15[%c0_354, %c16, %c0_355], %513 {strides = array<i32>} : memref<1x80x128xf32, #tpu.memory_space<vmem>>, vector<1x64x2xf32>,
    %c0_356 = arith.constant 0 : index
    %c0_357 = arith.constant 0 : index
    %c0_358 = arith.constant 0 : index
    %514 = vector.load %arg16[%c0_356, %c0_357, %c0_358] : memref<1x32x1024xf32, #tpu.memory_space<vmem>>, vector<1x32x1024xf32>
    %515 = vector.shape_cast %514 : vector<1x32x1024xf32> to vector<32x1024xf32>
    %516 = vector.shape_cast %477 : vector<32x1024xf32> to vector<1x32x1024xf32>
    tpu.vector_store %arg16[%c0_356, %c0_357, %c0_358], %516 {strides = array<i32>} : memref<1x32x1024xf32, #tpu.memory_space<vmem>>, vector<1x32x1024xf32>,
    return
  }
  func.func @transform_0(%arg0: i32) -> (i32, i32, i32) {
    %c0_i32 = arith.constant 0 : i32
    %c0_i32_0 = arith.constant 0 : i32
    %c0_i32_1 = arith.constant 0 : i32
    return %arg0, %c0_i32, %c0_i32_0 : i32, i32, i32
  }
  func.func @transform_1(%arg0: i32) -> (i32, i32, i32) {
    %c0_i32 = arith.constant 0 : i32
    %c0_i32_0 = arith.constant 0 : i32
    %c0_i32_1 = arith.constant 0 : i32
    return %arg0, %c0_i32, %c0_i32_0 : i32, i32, i32
  }
  func.func @transform_2(%arg0: i32) -> (i32, i32, i32) {
    %c0_i32 = arith.constant 0 : i32
    %c0_i32_0 = arith.constant 0 : i32
    %c0_i32_1 = arith.constant 0 : i32
    return %arg0, %c0_i32, %c0_i32_0 : i32, i32, i32
  }
  func.func @transform_3(%arg0: i32) -> (i32, i32, i32) {
    %c0_i32 = arith.constant 0 : i32
    %c0_i32_0 = arith.constant 0 : i32
    %c0_i32_1 = arith.constant 0 : i32
    return %arg0, %c0_i32, %c0_i32_0 : i32, i32, i32
  }
  func.func @transform_4(%arg0: i32) -> (i32, i32, i32) {
    %c0_i32 = arith.constant 0 : i32
    %c0_i32_0 = arith.constant 0 : i32
    %c0_i32_1 = arith.constant 0 : i32
    return %arg0, %c0_i32, %c0_i32_0 : i32, i32, i32
  }
  func.func @transform_5(%arg0: i32) -> (i32, i32, i32) {
    %c0_i32 = arith.constant 0 : i32
    %c0_i32_0 = arith.constant 0 : i32
    %c0_i32_1 = arith.constant 0 : i32
    return %arg0, %c0_i32, %c0_i32_0 : i32, i32, i32
  }
  func.func @transform_6(%arg0: i32) -> (i32, i32, i32) {
    %c0_i32 = arith.constant 0 : i32
    %c0_i32_0 = arith.constant 0 : i32
    %c0_i32_1 = arith.constant 0 : i32
    return %arg0, %c0_i32, %c0_i32_0 : i32, i32, i32
  }
  func.func @transform_7(%arg0: i32) -> (i32, i32, i32) {
    %c0_i32 = arith.constant 0 : i32
    %c0_i32_0 = arith.constant 0 : i32
    %c0_i32_1 = arith.constant 0 : i32
    return %arg0, %c0_i32, %c0_i32_0 : i32, i32, i32
  }
  func.func @transform_8(%arg0: i32) -> (i32, i32) {
    %c0_i32 = arith.constant 0 : i32
    %c0_i32_0 = arith.constant 0 : i32
    %c0_i32_1 = arith.constant 0 : i32
    return %c0_i32, %c0_i32_0 : i32, i32
  }
  func.func @transform_9(%arg0: i32) -> (i32, i32) {
    %c0_i32 = arith.constant 0 : i32
    %c0_i32_0 = arith.constant 0 : i32
    %c0_i32_1 = arith.constant 0 : i32
    return %c0_i32, %c0_i32_0 : i32, i32
  }
  func.func @transform_10(%arg0: i32) -> (i32, i32) {
    %c0_i32 = arith.constant 0 : i32
    %c0_i32_0 = arith.constant 0 : i32
    %c0_i32_1 = arith.constant 0 : i32
    return %c0_i32, %c0_i32_0 : i32, i32
  }
  func.func @transform_11(%arg0: i32) -> (i32, i32) {
    %c0_i32 = arith.constant 0 : i32
    %c0_i32_0 = arith.constant 0 : i32
    %c0_i32_1 = arith.constant 0 : i32
    return %c0_i32, %c0_i32_0 : i32, i32
  }
  func.func @transform_12(%arg0: i32) -> (i32, i32) {
    %c0_i32 = arith.constant 0 : i32
    %c0_i32_0 = arith.constant 0 : i32
    %c0_i32_1 = arith.constant 0 : i32
    return %c0_i32, %c0_i32_0 : i32, i32
  }
  func.func @transform_13(%arg0: i32) -> (i32, i32) {
    %c0_i32 = arith.constant 0 : i32
    %c0_i32_0 = arith.constant 0 : i32
    %c0_i32_1 = arith.constant 0 : i32
    return %c0_i32, %c0_i32_0 : i32, i32
  }
  func.func @transform_14(%arg0: i32) -> (i32, i32, i32) {
    %c0_i32 = arith.constant 0 : i32
    %c0_i32_0 = arith.constant 0 : i32
    %c0_i32_1 = arith.constant 0 : i32
    return %arg0, %c0_i32, %c0_i32_0 : i32, i32, i32
  }
  func.func @transform_15(%arg0: i32) -> (i32, i32, i32) {
    %c0_i32 = arith.constant 0 : i32
    %c0_i32_0 = arith.constant 0 : i32
    %c0_i32_1 = arith.constant 0 : i32
    return %arg0, %c0_i32, %c0_i32_0 : i32, i32, i32
  }
}

</mosaic_0001>

<llo_original>
// kernel: _episodes.1
$region0: #{_episodes.1}
  #allocation0 [shape = 'u32[]', space=smem, size = 0x4, offset = 0x4, fixed_abs, tag = 'smem constant byte address 0x4 - core index']
  #allocation1 [shape = 'u32[144,128]{1,0:T(1,128)}', space=vmem, size = 0x12000, scoped, tag = 'internal scratch']
  #allocation2 [shape = 'f32[8,32]{1,0:T(8,128)}', space=vmem, size = 0x1000, scoped, tag = 'scratch operand']
  #allocation3 [shape = 'f32[1,32]{1,0:T(1,128)}', space=vmem, size = 0x200, scoped, tag = 'scratch operand']
  #allocation4 [shape = 'f32[32,1024]{1,0:T(8,128)}', space=vmem, size = 0x20000, scoped, tag = 'scratch operand']
  #allocation5 [shape = 'f32[1,32]{1,0:T(1,128)}', space=vmem, size = 0x200, scoped, tag = 'scratch operand']
  #allocation6 [shape = 'f32[64,2]{1,0:T(8,128)}', space=vmem, size = 0x8000, scoped, tag = 'scratch operand']
  #allocation7 [shape = 'f32[1,2]{1,0:T(1,128)}', space=vmem, size = 0x200, scoped, tag = 'scratch operand']
  %s0 = inlined_call_operand.vmem [shape: f32[1,64,8], index: 0, kind: input, shape index: {}]
  %s1 = inlined_call_operand.vmem [shape: f32[1,4,64], index: 1, kind: input, shape index: {}]
  %s2 = inlined_call_operand.vmem [shape: f32[1,4,1024], index: 2, kind: input, shape index: {}]
  %s3 = inlined_call_operand.vmem [shape: f32[1,4,2], index: 3, kind: input, shape index: {}]
  %s4 = inlined_call_operand.vmem [shape: f32[1,64,8], index: 4, kind: input, shape index: {}]
  %s5 = inlined_call_operand.vmem [shape: f32[1,4,64], index: 5, kind: input, shape index: {}]
  %s6 = inlined_call_operand.vmem [shape: f32[1,4,1024], index: 6, kind: input, shape index: {}]
  %s7 = inlined_call_operand.vmem [shape: f32[1,4,2], index: 7, kind: input, shape index: {}]
  %s8 = inlined_call_operand.vmem [shape: f32[8,32], index: 8, kind: input, shape index: {}]
  %s9 = inlined_call_operand.vmem [shape: f32[1,32], index: 9, kind: input, shape index: {}]
  %s10 = inlined_call_operand.vmem [shape: f32[32,1024], index: 10, kind: input, shape index: {}]
  %s11 = inlined_call_operand.vmem [shape: f32[1,32], index: 11, kind: input, shape index: {}]
  %s12 = inlined_call_operand.vmem [shape: f32[64,2], index: 12, kind: input, shape index: {}]
  %s13 = inlined_call_operand.vmem [shape: f32[1,2], index: 13, kind: input, shape index: {}]
  %s14 = inlined_call_operand.vmem [shape: f32[1,80,128], index: 14, kind: output, shape index: {0}]
  %s15 = inlined_call_operand.hbm [shape: f32[1,32,1024], index: 15, kind: output, shape index: {1}]
  %16 = xla_tuple %s14, %s15
  %s17 = sld [smem:[#allocation0]]
  $region74: #{_episodes.1} parent=0
    _
  %s19 = ssub.s32 1, %s17
  %s20 = scalar_select 0, %s19, %s17
  $region1: #{_episodes.1} parent=0
    #allocation8 [shape = 'u8[131072]{0}', space=vmem, size = 0x20000, scoped, tag = 'output window, operand 1, single buffered']
    #allocation9 [shape = 's32[1]{0}', space=sflag, size = 0x4, scoped, tag = 'scoped memory for _episodes.1']
    %21 = vsyncpa [#allocation9], 0
    // Predicated region
    $region2: #{_episodes.1} parent=1 // pred_check
      _
    $region3: #{_episodes.1} parent=1 // pred_check_branch
      %23 = sbr.rel (0) target = $region5
    $region4: #{_episodes.1} parent=1 // pred_region
      _
    $region5: #{_episodes.1} parent=1 // pred_fallthru
      _
    // Predicated region
    $region6: #{_episodes.1} parent=1 // pred_check
      _
    $region7: #{_episodes.1} parent=1 // pred_check_branch
      %25 = sbr.rel (0) target = $region9
    $region8: #{_episodes.1} parent=1 // pred_region
      _
    $region9: #{_episodes.1} parent=1 // pred_fallthru
      _
    // Predicated region
    $region10: #{_episodes.1} parent=1 // pred_check
      _
    $region11: #{_episodes.1} parent=1 // pred_check_branch
      %27 = sbr.rel (0) target = $region13
    $region12: #{_episodes.1} parent=1 // pred_region
      _
    $region13: #{_episodes.1} parent=1 // pred_fallthru
      _
    // Predicated region
    $region14: #{_episodes.1} parent=1 // pred_check
      _
    $region15: #{_episodes.1} parent=1 // pred_check_branch
      %29 = sbr.rel (0) target = $region17
    $region16: #{_episodes.1} parent=1 // pred_region
      _
    $region17: #{_episodes.1} parent=1 // pred_fallthru
      _
    // Predicated region
    $region18: #{_episodes.1} parent=1 // pred_check
      _
    $region19: #{_episodes.1} parent=1 // pred_check_branch
      %31 = sbr.rel (0) target = $region21
    $region20: #{_episodes.1} parent=1 // pred_region
      _
    $region21: #{_episodes.1} parent=1 // pred_fallthru
      _
    // Predicated region
    $region22: #{_episodes.1} parent=1 // pred_check
      _
    $region23: #{_episodes.1} parent=1 // pred_check_branch
      %33 = sbr.rel (0) target = $region25
    $region24: #{_episodes.1} parent=1 // pred_region
      _
    $region25: #{_episodes.1} parent=1 // pred_fallthru
      _
    // Predicated region
    $region26: #{_episodes.1} parent=1 // pred_check
      _
    $region27: #{_episodes.1} parent=1 // pred_check_branch
      %35 = sbr.rel (0) target = $region29
    $region28: #{_episodes.1} parent=1 // pred_region
      _
    $region29: #{_episodes.1} parent=1 // pred_fallthru
      _
    // Predicated region
    $region30: #{_episodes.1} parent=1 // pred_check
      _
    $region31: #{_episodes.1} parent=1 // pred_check_branch
      %37 = sbr.rel (0) target = $region33
    $region32: #{_episodes.1} parent=1 // pred_region
      _
    $region33: #{_episodes.1} parent=1 // pred_fallthru
      _
    // Predicated region
    $region34: #{_episodes.1} parent=1 // pred_check
      _
    $region35: #{_episodes.1} parent=1 // pred_check_branch
      %39 = sbr.rel (0) target = $region37
    $region36: #{_episodes.1} parent=1 // pred_region
      _
    $region37: #{_episodes.1} parent=1 // pred_fallthru
      _
    // Predicated region
    $region38: #{_episodes.1} parent=1 // pred_check
      _
    $region39: #{_episodes.1} parent=1 // pred_check_branch
      %41 = sbr.rel (0) target = $region41
    $region40: #{_episodes.1} parent=1 // pred_region
      _
    $region41: #{_episodes.1} parent=1 // pred_fallthru
      _
    // Predicated region
    $region42: #{_episodes.1} parent=1 // pred_check
      _
    $region43: #{_episodes.1} parent=1 // pred_check_branch
      %43 = sbr.rel (0) target = $region45
    $region44: #{_episodes.1} parent=1 // pred_region
      _
    $region45: #{_episodes.1} parent=1 // pred_fallthru
      _
    // Predicated region
    $region46: #{_episodes.1} parent=1 // pred_check
      _
    $region47: #{_episodes.1} parent=1 // pred_check_branch
      %45 = sbr.rel (0) target = $region49
    $region48: #{_episodes.1} parent=1 // pred_region
      _
    $region49: #{_episodes.1} parent=1 // pred_fallthru
      _
    // Predicated region
    $region50: #{_episodes.1} parent=1 // pred_check
      _
    $region51: #{_episodes.1} parent=1 // pred_check_branch
      %47 = sbr.rel (0) target = $region53
    $region52: #{_episodes.1} parent=1 // pred_region
      _
    $region53: #{_episodes.1} parent=1 // pred_fallthru
      _
    // Predicated region
    $region54: #{_episodes.1} parent=1 // pred_check
      _
    $region55: #{_episodes.1} parent=1 // pred_check_branch
      %49 = sbr.rel (0) target = $region57
    $region56: #{_episodes.1} parent=1 // pred_region
      _
    $region57: #{_episodes.1} parent=1 // pred_fallthru
      _
    %v50 = vld [vmem:[%s8] sm:$0xff]
    %vm51 = vcmask 261120
    %52 = vst.msk [vmem:[#allocation2] sm:$0xff] %vm51, %v50
    %v53 = vld [vmem:[%s9] sm:$0x1]
    %vm54 = vcmask 253952
    %55 = vst.msk [vmem:[#allocation3] sm:$0x1] %vm54, %v53
    %v56 = vld [vmem:[%s10] sm:$0xff]
    %v57 = vld [vmem:[%s10 + $0x8] sm:$0xff]
    %v58 = vld [vmem:[%s10 + $0x10] sm:$0xff]
    %v59 = vld [vmem:[%s10 + $0x18] sm:$0xff]
    %v60 = vld [vmem:[%s10 + $0x20] sm:$0xff]
    %v61 = vld [vmem:[%s10 + $0x28] sm:$0xff]
    %v62 = vld [vmem:[%s10 + $0x30] sm:$0xff]
    %v63 = vld [vmem:[%s10 + $0x38] sm:$0xff]
    %v64 = vld [vmem:[%s10 + $0x40] sm:$0xff]
    %v65 = vld [vmem:[%s10 + $0x48] sm:$0xff]
    %v66 = vld [vmem:[%s10 + $0x50] sm:$0xff]
    %v67 = vld [vmem:[%s10 + $0x58] sm:$0xff]
    %v68 = vld [vmem:[%s10 + $0x60] sm:$0xff]
    %v69 = vld [vmem:[%s10 + $0x68] sm:$0xff]
    %v70 = vld [vmem:[%s10 + $0x70] sm:$0xff]
    %v71 = vld [vmem:[%s10 + $0x78] sm:$0xff]
    %v72 = vld [vmem:[%s10 + $0x80] sm:$0xff]
    %v73 = vld [vmem:[%s10 + $0x88] sm:$0xff]
    %v74 = vld [vmem:[%s10 + $0x90] sm:$0xff]
    %v75 = vld [vmem:[%s10 + $0x98] sm:$0xff]
    %v76 = vld [vmem:[%s10 + $0xa0] sm:$0xff]
    %v77 = vld [vmem:[%s10 + $0xa8] sm:$0xff]
    %v78 = vld [vmem:[%s10 + $0xb0] sm:$0xff]
    %v79 = vld [vmem:[%s10 + $0xb8] sm:$0xff]
    %v80 = vld [vmem:[%s10 + $0xc0] sm:$0xff]
    %v81 = vld [vmem:[%s10 + $0xc8] sm:$0xff]
    %v82 = vld [vmem:[%s10 + $0xd0] sm:$0xff]
    %v83 = vld [vmem:[%s10 + $0xd8] sm:$0xff]
    %v84 = vld [vmem:[%s10 + $0xe0] sm:$0xff]
    %v85 = vld [vmem:[%s10 + $0xe8] sm:$0xff]
    %v86 = vld [vmem:[%s10 + $0xf0] sm:$0xff]
    %v87 = vld [vmem:[%s10 + $0xf8] sm:$0xff]
    %88 = vst [vmem:[#allocation4] sm:$0xff] %v56
    %89 = vst [vmem:[#allocation4 + $0x8] sm:$0xff] %v57
    %90 = vst [vmem:[#allocation4 + $0x10] sm:$0xff] %v58
    %91 = vst [vmem:[#allocation4 + $0x18] sm:$0xff] %v59
    %92 = vst [vmem:[#allocation4 + $0x20] sm:$0xff] %v60
    %93 = vst [vmem:[#allocation4 + $0x28] sm:$0xff] %v61
    %94 = vst [vmem:[#allocation4 + $0x30] sm:$0xff] %v62
    %95 = vst [vmem:[#allocation4 + $0x38] sm:$0xff] %v63
    %96 = vst [vmem:[#allocation4 + $0x40] sm:$0xff] %v64
    %97 = vst [vmem:[#allocation4 + $0x48] sm:$0xff] %v65
    %98 = vst [vmem:[#allocation4 + $0x50] sm:$0xff] %v66
    %99 = vst [vmem:[#allocation4 + $0x58] sm:$0xff] %v67
    %100 = vst [vmem:[#allocation4 + $0x60] sm:$0xff] %v68
    %101 = vst [vmem:[#allocation4 + $0x68] sm:$0xff] %v69
    %102 = vst [vmem:[#allocation4 + $0x70] sm:$0xff] %v70
    %103 = vst [vmem:[#allocation4 + $0x78] sm:$0xff] %v71
    %104 = vst [vmem:[#allocation4 + $0x80] sm:$0xff] %v72
    %105 = vst [vmem:[#allocation4 + $0x88] sm:$0xff] %v73
    %106 = vst [vmem:[#allocation4 + $0x90] sm:$0xff] %v74
    %107 = vst [vmem:[#allocation4 + $0x98] sm:$0xff] %v75
    %108 = vst [vmem:[#allocation4 + $0xa0] sm:$0xff] %v76
    %109 = vst [vmem:[#allocation4 + $0xa8] sm:$0xff] %v77
    %110 = vst [vmem:[#allocation4 + $0xb0] sm:$0xff] %v78
    %111 = vst [vmem:[#allocation4 + $0xb8] sm:$0xff] %v79
    %112 = vst [vmem:[#allocation4 + $0xc0] sm:$0xff] %v80
    %113 = vst [vmem:[#allocation4 + $0xc8] sm:$0xff] %v81
    %114 = vst [vmem:[#allocation4 + $0xd0] sm:$0xff] %v82
    %115 = vst [vmem:[#allocation4 + $0xd8] sm:$0xff] %v83
    %116 = vst [vmem:[#allocation4 + $0xe0] sm:$0xff] %v84
    %117 = vst [vmem:[#allocation4 + $0xe8] sm:$0xff] %v85
    %118 = vst [vmem:[#allocation4 + $0xf0] sm:$0xff] %v86
    %119 = vst [vmem:[#allocation4 + $0xf8] sm:$0xff] %v87
    %v120 = vld [vmem:[%s11] sm:$0x1]
    %121 = vst.msk [vmem:[#allocation5] sm:$0x1] %vm54, %v120
    %v122 = vld [vmem:[%s12] sm:$0xff]
    %v123 = vld [vmem:[%s12 + $0x8] sm:$0xff]
    %v124 = vld [vmem:[%s12 + $0x10] sm:$0xff]
    %v125 = vld [vmem:[%s12 + $0x18] sm:$0xff]
    %v126 = vld [vmem:[%s12 + $0x20] sm:$0xff]
    %v127 = vld [vmem:[%s12 + $0x28] sm:$0xff]
    %v128 = vld [vmem:[%s12 + $0x30] sm:$0xff]
    %v129 = vld [vmem:[%s12 + $0x38] sm:$0xff]
    %vm130 = vcmask 15360
    %131 = vst.msk [vmem:[#allocation6] sm:$0xff] %vm130, %v122
    %132 = vst.msk [vmem:[#allocation6 + $0x8] sm:$0xff] %vm130, %v123
    %133 = vst.msk [vmem:[#allocation6 + $0x10] sm:$0xff] %vm130, %v124
    %134 = vst.msk [vmem:[#allocation6 + $0x18] sm:$0xff] %vm130, %v125
    %135 = vst.msk [vmem:[#allocation6 + $0x20] sm:$0xff] %vm130, %v126
    %136 = vst.msk [vmem:[#allocation6 + $0x28] sm:$0xff] %vm130, %v127
    %137 = vst.msk [vmem:[#allocation6 + $0x30] sm:$0xff] %vm130, %v128
    %138 = vst.msk [vmem:[#allocation6 + $0x38] sm:$0xff] %vm130, %v129
    %v139 = vld [vmem:[%s13] sm:$0x1]
    %vm140 = vcmask 8192
    %141 = vst.msk [vmem:[#allocation7] sm:$0x1] %vm140, %v139
    %v142 = vld [vmem:[%s0] sm:$0xff]
    %v143 = vld [vmem:[%s0 + $0x8] sm:$0xff]
    %v144 = vld [vmem:[%s0 + $0x10] sm:$0xff]
    %v145 = vld [vmem:[%s0 + $0x18] sm:$0xff]
    %v146 = vld [vmem:[%s0 + $0x20] sm:$0xff]
    %v147 = vld [vmem:[%s0 + $0x28] sm:$0xff]
    %v148 = vld [vmem:[%s0 + $0x30] sm:$0xff]
    %v149 = vld [vmem:[%s0 + $0x38] sm:$0xff]
    %v150 = vld [vmem:[%s1] sm:$0xf]
    %v151 = vld [vmem:[%s2] sm:$0xff]
    %v152 = vld [vmem:[%s2 + $0x8] sm:$0xff]
    %v153 = vld [vmem:[%s2 + $0x10] sm:$0xff]
    %v154 = vld [vmem:[%s2 + $0x18] sm:$0xff]
    %v155 = vld [vmem:[%s3] sm:$0xf]
    %v156 = vld [vmem:[%s4] sm:$0xff]
    %v157 = vld [vmem:[%s4 + $0x8] sm:$0xff]
    %v158 = vld [vmem:[%s4 + $0x10] sm:$0xff]
    %v159 = vld [vmem:[%s4 + $0x18] sm:$0xff]
    %v160 = vld [vmem:[%s4 + $0x20] sm:$0xff]
    %v161 = vld [vmem:[%s4 + $0x28] sm:$0xff]
    %v162 = vld [vmem:[%s4 + $0x30] sm:$0xff]
    %v163 = vld [vmem:[%s4 + $0x38] sm:$0xff]
    %v164 = vld [vmem:[%s5] sm:$0xf]
    %v165 = vld [vmem:[%s6] sm:$0xff]
    %v166 = vld [vmem:[%s6 + $0x8] sm:$0xff]
    %v167 = vld [vmem:[%s6 + $0x10] sm:$0xff]
    %v168 = vld [vmem:[%s6 + $0x18] sm:$0xff]
    %v169 = vld [vmem:[%s7] sm:$0xf]
    %v170 = vld [vmem:[#allocation2] sm:$0xff]
    %v171 = vld [vmem:[#allocation3] sm:$0x1]
    %v172 = vld [vmem:[#allocation4] sm:$0xff]
    %v173 = vld [vmem:[#allocation4 + $0x8] sm:$0xff]
    %v174 = vld [vmem:[#allocation4 + $0x10] sm:$0xff]
    %v175 = vld [vmem:[#allocation4 + $0x18] sm:$0xff]
    %v176 = vld [vmem:[#allocation4 + $0x20] sm:$0xff]
    %v177 = vld [vmem:[#allocation4 + $0x28] sm:$0xff]
    %v178 = vld [vmem:[#allocation4 + $0x30] sm:$0xff]
    %v179 = vld [vmem:[#allocation4 + $0x38] sm:$0xff]
    %v180 = vld [vmem:[#allocation4 + $0x40] sm:$0xff]
    %v181 = vld [vmem:[#allocation4 + $0x48] sm:$0xff]
    %v182 = vld [vmem:[#allocation4 + $0x50] sm:$0xff]
    %v183 = vld [vmem:[#allocation4 + $0x58] sm:$0xff]
    %v184 = vld [vmem:[#allocation4 + $0x60] sm:$0xff]
    %v185 = vld [vmem:[#allocation4 + $0x68] sm:$0xff]
    %v186 = vld [vmem:[#allocation4 + $0x70] sm:$0xff]
    %v187 = vld [vmem:[#allocation4 + $0x78] sm:$0xff]
    %v188 = vld [vmem:[#allocation4 + $0x80] sm:$0xff]
    %v189 = vld [vmem:[#allocation4 + $0x88] sm:$0xff]
    %v190 = vld [vmem:[#allocation4 + $0x90] sm:$0xff]
    %v191 = vld [vmem:[#allocation4 + $0x98] sm:$0xff]
    %v192 = vld [vmem:[#allocation4 + $0xa0] sm:$0xff]
    %v193 = vld [vmem:[#allocation4 + $0xa8] sm:$0xff]
    %v194 = vld [vmem:[#allocation4 + $0xb0] sm:$0xff]
    %v195 = vld [vmem:[#allocation4 + $0xb8] sm:$0xff]
    %v196 = vld [vmem:[#allocation4 + $0xc0] sm:$0xff]
    %v197 = vld [vmem:[#allocation4 + $0xc8] sm:$0xff]
    %v198 = vld [vmem:[#allocation4 + $0xd0] sm:$0xff]
    %v199 = vld [vmem:[#allocation4 + $0xd8] sm:$0xff]
    %v200 = vld [vmem:[#allocation4 + $0xe0] sm:$0xff]
    %v201 = vld [vmem:[#allocation4 + $0xe8] sm:$0xff]
    %v202 = vld [vmem:[#allocation4 + $0xf0] sm:$0xff]
    %v203 = vld [vmem:[#allocation4 + $0xf8] sm:$0xff]
    %v204 = vld [vmem:[#allocation5] sm:$0x1]
    %v205 = vld [vmem:[#allocation6] sm:$0xff]
    %v206 = vld [vmem:[#allocation6 + $0x8] sm:$0xff]
    %v207 = vld [vmem:[#allocation6 + $0x10] sm:$0xff]
    %v208 = vld [vmem:[#allocation6 + $0x18] sm:$0xff]
    %v209 = vld [vmem:[#allocation6 + $0x20] sm:$0xff]
    %v210 = vld [vmem:[#allocation6 + $0x28] sm:$0xff]
    %v211 = vld [vmem:[#allocation6 + $0x30] sm:$0xff]
    %v212 = vld [vmem:[#allocation6 + $0x38] sm:$0xff]
    %v213 = vld [vmem:[#allocation7] sm:$0x1]
    %v215 = vlaneseq
    %v216 = vshrl.u32 %v215, 7
    %v217 = vsub.s32 0, %v216
    %v218 = vrot.slane %v171, %v217
    %vm220 = vcmask 64512
    %v222 = vsel %vm220, %v142, 0
    %v225 = vsel %vm220, %v143, 0
    %v228 = vsel %vm220, %v144, 0
    %v231 = vsel %vm220, %v145, 0
    %v234 = vsel %vm220, %v146, 0
    %v237 = vsel %vm220, %v147, 0
    %v240 = vsel %vm220, %v148, 0
    %v243 = vsel %vm220, %v149, 0
    %245 = vmatprep.subr.mxu0 0.0
    %246 = vmatpush1.msra.mxu0 0.0
    %247 = vmatprep.subr.mxu0 0.0
    %248 = vmatpush1.msra.mxu0 0.0
    %249 = vmatprep.subr.mxu0 0.0
    %250 = vmatpush1.msra.mxu0 0.0
    %251 = vmatprep.subr.mxu0 0.0
    %252 = vmatpush1.msra.mxu0 0.0
    %253 = vmatprep.subr.mxu0 0.0
    %254 = vmatpush1.msra.mxu0 0.0
    %255 = vmatprep.subr.mxu0 0.0
    %256 = vmatpush1.msra.mxu0 0.0
    %257 = vmatprep.subr.mxu0 0.0
    %258 = vmatpush1.msra.mxu0 0.0
    %259 = vmatprep.subr.mxu0 0.0
    %260 = vmatpush1.msra.mxu0 0.0
    %261 = vmatprep.subr.mxu0 0.0
    %262 = vmatpush1.msra.mxu0 0.0
    %263 = vmatprep.subr.mxu0 0.0
    %264 = vmatpush1.msra.mxu0 0.0
    %265 = vmatprep.subr.mxu0 0.0
    %266 = vmatpush1.msra.mxu0 0.0
    %267 = vmatprep.subr.mxu0 0.0
    %268 = vmatpush1.msra.mxu0 0.0
    %269 = vmatprep.subr.mxu0 0.0
    %270 = vmatpush1.msra.mxu0 0.0
    %271 = vmatprep.subr.mxu0 0.0
    %272 = vmatpush1.msra.mxu0 0.0
    %273 = vmatprep.subr.mxu0 0.0
    %274 = vmatpush1.msra.mxu0 0.0
    %275 = vmatprep.subr.mxu0 0.0
    %276 = vmatpush1.msra.mxu0 %v170
    %277 = vmatprep.subr.mxu0 0.0
    %278 = vmatpush2.msra.mxu0 0.0
    %279 = vmatprep.subr.mxu0 0.0
    %280 = vmatpush2.msra.mxu0 0.0
    %281 = vmatprep.subr.mxu0 0.0
    %282 = vmatpush2.msra.mxu0 0.0
    %283 = vmatprep.subr.mxu0 0.0
    %284 = vmatpush2.msra.mxu0 0.0
    %285 = vmatprep.subr.mxu0 0.0
    %286 = vmatpush2.msra.mxu0 0.0
    %287 = vmatprep.subr.mxu0 0.0
    %288 = vmatpush2.msra.mxu0 0.0
    %289 = vmatprep.subr.mxu0 0.0
    %290 = vmatpush2.msra.mxu0 0.0
    %291 = vmatprep.subr.mxu0 0.0
    %292 = vmatpush2.msra.mxu0 0.0
    %293 = vmatprep.subr.mxu0 0.0
    %294 = vmatpush2.msra.mxu0 0.0
    %295 = vmatprep.subr.mxu0 0.0
    %296 = vmatpush2.msra.mxu0 0.0
    %297 = vmatprep.subr.mxu0 0.0
    %298 = vmatpush2.msra.mxu0 0.0
    %299 = vmatprep.subr.mxu0 0.0
    %300 = vmatpush2.msra.mxu0 0.0
    %301 = vmatprep.subr.mxu0 0.0
    %302 = vmatpush2.msra.mxu0 0.0
    %303 = vmatprep.subr.mxu0 0.0
    %304 = vmatpush2.msra.mxu0 0.0
    %305 = vmatprep.subr.mxu0 0.0
    %306 = vmatpush2.msra.mxu0 0.0
    %307 = vmatprep.subr.mxu0 0.0
    %308 = vmatpush2.msra.mxu0 0.0
    %309 = vmatprep.mubr.f32.mxu0 0.0
    %310 = vmatmul.mubr.f32.gmra.mxu0 %v222
    %v311 = vpop.f32.mrf.mxu0
    %v312 = vadd.f32 %v218, %v311
    %v313 = vpop.f32.mrf.mxu0
    %314 = vmatprep.mubr.f32.mxu0 0.0
    %315 = vmatmul.mubr.f32.gmra.mxu0 %v225
    %v316 = vpop.f32.mrf.mxu0
    %v317 = vadd.f32 %v218, %v316
    %v318 = vpop.f32.mrf.mxu0
    %319 = vmatprep.mubr.f32.mxu0 0.0
    %320 = vmatmul.mubr.f32.gmra.mxu0 %v228
    %v321 = vpop.f32.mrf.mxu0
    %v322 = vadd.f32 %v218, %v321
    %v323 = vpop.f32.mrf.mxu0
    %324 = vmatprep.mubr.f32.mxu0 0.0
    %325 = vmatmul.mubr.f32.gmra.mxu0 %v231
    %v326 = vpop.f32.mrf.mxu0
    %v327 = vadd.f32 %v218, %v326
    %v328 = vpop.f32.mrf.mxu0
    %329 = vmatprep.mubr.f32.mxu0 0.0
    %330 = vmatmul.mubr.f32.gmra.mxu0 %v234
    %v331 = vpop.f32.mrf.mxu0
    %v332 = vadd.f32 %v218, %v331
    %v333 = vpop.f32.mrf.mxu0
    %334 = vmatprep.mubr.f32.mxu0 0.0
    %335 = vmatmul.mubr.f32.gmra.mxu0 %v237
    %v336 = vpop.f32.mrf.mxu0
    %v337 = vadd.f32 %v218, %v336
    %v338 = vpop.f32.mrf.mxu0
    %339 = vmatprep.mubr.f32.mxu0 0.0
    %340 = vmatmul.mubr.f32.gmra.mxu0 %v240
    %v341 = vpop.f32.mrf.mxu0
    %v342 = vadd.f32 %v218, %v341
    %v343 = vpop.f32.mrf.mxu0
    %344 = vmatprep.mubr.f32.mxu0 0.0
    %345 = vmatmul.mubr.f32.gmra.mxu0 %v243
    %v346 = vpop.f32.mrf.mxu0
    %v347 = vadd.f32 %v218, %v346
    %v348 = vpop.f32.mrf.mxu0
    %349 = vdwg.mxu0
    %v350 = vmax.f32 %v312, 0.0
    %v351 = vmax.f32 %v317, 0.0
    %v352 = vmax.f32 %v322, 0.0
    %v353 = vmax.f32 %v327, 0.0
    %v354 = vmax.f32 %v332, 0.0
    %v355 = vmax.f32 %v337, 0.0
    %v356 = vmax.f32 %v342, 0.0
    %v357 = vmax.f32 %v347, 0.0
    %vm358 = vcmask 523264
    %v360 = vsel %vm358, %v150, 0
    %362 = vmatprep.subr.mxu0 0.0
    %363 = vmatpush1.msra.mxu0 0.0
    %364 = vmatprep.subr.mxu0 0.0
    %365 = vmatpush1.msra.mxu0 0.0
    %366 = vmatprep.subr.mxu0 0.0
    %367 = vmatpush1.msra.mxu0 0.0
    %368 = vmatprep.subr.mxu0 0.0
    %369 = vmatpush1.msra.mxu0 0.0
    %370 = vmatprep.subr.mxu0 0.0
    %371 = vmatpush1.msra.mxu0 0.0
    %372 = vmatprep.subr.mxu0 0.0
    %373 = vmatpush1.msra.mxu0 0.0
    %374 = vmatprep.subr.mxu0 0.0
    %375 = vmatpush1.msra.mxu0 0.0
    %376 = vmatprep.subr.mxu0 0.0
    %377 = vmatpush1.msra.mxu0 0.0
    %378 = vmatprep.subr.mxu0 0.0
    %379 = vmatpush1.msra.mxu0 %v357
    %380 = vmatprep.subr.mxu0 0.0
    %381 = vmatpush1.msra.mxu0 %v356
    %382 = vmatprep.subr.mxu0 0.0
    %383 = vmatpush1.msra.mxu0 %v355
    %384 = vmatprep.subr.mxu0 0.0
    %385 = vmatpush1.msra.mxu0 %v354
    %386 = vmatprep.subr.mxu0 0.0
    %387 = vmatpush1.msra.mxu0 %v353
    %388 = vmatprep.subr.mxu0 0.0
    %389 = vmatpush1.msra.mxu0 %v352
    %390 = vmatprep.subr.mxu0 0.0
    %391 = vmatpush1.msra.mxu0 %v351
    %392 = vmatprep.subr.mxu0 0.0
    %393 = vmatpush1.msra.mxu0 %v350
    %394 = vmatprep.subr.mxu0 0.0
    %395 = vmatpush2.msra.mxu0 0.0
    %396 = vmatprep.subr.mxu0 0.0
    %397 = vmatpush2.msra.mxu0 0.0
    %398 = vmatprep.subr.mxu0 0.0
    %399 = vmatpush2.msra.mxu0 0.0
    %400 = vmatprep.subr.mxu0 0.0
    %401 = vmatpush2.msra.mxu0 0.0
    %402 = vmatprep.subr.mxu0 0.0
    %403 = vmatpush2.msra.mxu0 0.0
    %404 = vmatprep.subr.mxu0 0.0
    %405 = vmatpush2.msra.mxu0 0.0
    %406 = vmatprep.subr.mxu0 0.0
    %407 = vmatpush2.msra.mxu0 0.0
    %408 = vmatprep.subr.mxu0 0.0
    %409 = vmatpush2.msra.mxu0 0.0
    %410 = vmatprep.subr.mxu0 0.0
    %411 = vmatpush2.msra.mxu0 0.0
    %412 = vmatprep.subr.mxu0 0.0
    %413 = vmatpush2.msra.mxu0 0.0
    %414 = vmatprep.subr.mxu0 0.0
    %415 = vmatpush2.msra.mxu0 0.0
    %416 = vmatprep.subr.mxu0 0.0
    %417 = vmatpush2.msra.mxu0 0.0
    %418 = vmatprep.subr.mxu0 0.0
    %419 = vmatpush2.msra.mxu0 0.0
    %420 = vmatprep.subr.mxu0 0.0
    %421 = vmatpush2.msra.mxu0 0.0
    %422 = vmatprep.subr.mxu0 0.0
    %423 = vmatpush2.msra.mxu0 0.0
    %424 = vmatprep.subr.mxu0 0.0
    %425 = vmatpush2.msra.mxu0 0.0
    %426 = vmatprep.mubr.f32.mxu0 0.0
    %427 = vmatmul.mubr.f32.gmra.mxu0 %v360
    %v428 = vpop.f32.mrf.mxu0
    %v429 = vadd.f32 0.0, %v428
    %v430 = vpop.f32.mrf.mxu0
    %431 = vdwg.mxu0
    %v433 = vlaneseq
    %v434 = vshrl.u32 %v433, 7
    %v435 = vsub.s32 0, %v434
    %v436 = vrot.slane %v204, %v435
    %v442 = vcombine.high %v151, %v151
    %v443 = vcombine.high %v152, %v152
    %v444 = vcombine.high %v153, %v153
    %v445 = vcombine.high %v154, %v154
    %450 = vmatprep.subr.mxu0 0.0
    %451 = vmatpush1.xpose.msra.mxu0 0.0
    %452 = vmatprep.subr.mxu0 0.0
    %453 = vmatpush1.xpose.msra.mxu0 0.0
    %454 = vmatprep.subr.mxu0 0.0
    %455 = vmatpush1.xpose.msra.mxu0 0.0
    %456 = vmatprep.subr.mxu0 0.0
    %457 = vmatpush1.xpose.msra.mxu0 0.0
    %458 = vmatprep.subr.mxu0 0.0
    %459 = vmatpush1.xpose.msra.mxu0 0.0
    %460 = vmatprep.subr.mxu0 0.0
    %461 = vmatpush1.xpose.msra.mxu0 0.0
    %462 = vmatprep.subr.mxu0 0.0
    %463 = vmatpush1.xpose.msra.mxu0 0.0
    %464 = vmatprep.subr.mxu0 0.0
    %465 = vmatpush1.xpose.msra.mxu0 0.0
    %466 = vmatprep.subr.mxu0 0.0
    %467 = vmatpush1.xpose.msra.mxu0 0.0
    %468 = vmatprep.subr.mxu0 0.0
    %469 = vmatpush1.xpose.msra.mxu0 0.0
    %470 = vmatprep.subr.mxu0 0.0
    %471 = vmatpush1.xpose.msra.mxu0 0.0
    %472 = vmatprep.subr.mxu0 0.0
    %473 = vmatpush1.xpose.msra.mxu0 0.0
    %474 = vmatprep.subr.mxu0 %v197
    %475 = vmatpush1.xpose.msra.mxu0 %v196
    %476 = vmatprep.subr.mxu0 %v189
    %477 = vmatpush1.xpose.msra.mxu0 %v188
    %478 = vmatprep.subr.mxu0 %v181
    %479 = vmatpush1.xpose.msra.mxu0 %v180
    %480 = vmatprep.subr.mxu0 %v173
    %481 = vmatpush1.xpose.msra.mxu0 %v172
    %482 = vmatprep.subr.mxu0 0.0
    %483 = vmatpush2.xpose.msra.mxu0 0.0
    %484 = vmatprep.subr.mxu0 0.0
    %485 = vmatpush2.xpose.msra.mxu0 0.0
    %486 = vmatprep.subr.mxu0 0.0
    %487 = vmatpush2.xpose.msra.mxu0 0.0
    %488 = vmatprep.subr.mxu0 0.0
    %489 = vmatpush2.xpose.msra.mxu0 0.0
    %490 = vmatprep.subr.mxu0 0.0
    %491 = vmatpush2.xpose.msra.mxu0 0.0
    %492 = vmatprep.subr.mxu0 0.0
    %493 = vmatpush2.xpose.msra.mxu0 0.0
    %494 = vmatprep.subr.mxu0 0.0
    %495 = vmatpush2.xpose.msra.mxu0 0.0
    %496 = vmatprep.subr.mxu0 0.0
    %497 = vmatpush2.xpose.msra.mxu0 0.0
    %498 = vmatprep.subr.mxu0 0.0
    %499 = vmatpush2.xpose.msra.mxu0 0.0
    %500 = vmatprep.subr.mxu0 0.0
    %501 = vmatpush2.xpose.msra.mxu0 0.0
    %502 = vmatprep.subr.mxu0 0.0
    %503 = vmatpush2.xpose.msra.mxu0 0.0
    %504 = vmatprep.subr.mxu0 0.0
    %505 = vmatpush2.xpose.msra.mxu0 0.0
    %506 = vmatprep.subr.mxu0 0.0
    %507 = vmatpush2.xpose.msra.mxu0 0.0
    %508 = vmatprep.subr.mxu0 0.0
    %509 = vmatpush2.xpose.msra.mxu0 0.0
    %510 = vmatprep.subr.mxu0 0.0
    %511 = vmatpush2.xpose.msra.mxu0 0.0
    %512 = vmatprep.subr.mxu0 0.0
    %513 = vmatpush2.xpose.msra.mxu0 0.0
    %514 = vmatprep.mubr.f32.mxu0 %v442
    %515 = vmatmul.mubr.f32.gmra.mxu0 %v151
    %v516 = vpop.f32.mrf.mxu0
    %v517 = vadd.f32 %v436, %v516
    %v518 = vpop.f32.mrf.mxu0
    %519 = vdwg.mxu0
    %520 = vmatprep.subr.mxu0 0.0
    %521 = vmatpush1.xpose.msra.mxu0 0.0
    %522 = vmatprep.subr.mxu0 0.0
    %523 = vmatpush1.xpose.msra.mxu0 0.0
    %524 = vmatprep.subr.mxu0 0.0
    %525 = vmatpush1.xpose.msra.mxu0 0.0
    %526 = vmatprep.subr.mxu0 0.0
    %527 = vmatpush1.xpose.msra.mxu0 0.0
    %528 = vmatprep.subr.mxu0 0.0
    %529 = vmatpush1.xpose.msra.mxu0 0.0
    %530 = vmatprep.subr.mxu0 0.0
    %531 = vmatpush1.xpose.msra.mxu0 0.0
    %532 = vmatprep.subr.mxu0 0.0
    %533 = vmatpush1.xpose.msra.mxu0 0.0
    %534 = vmatprep.subr.mxu0 0.0
    %535 = vmatpush1.xpose.msra.mxu0 0.0
    %536 = vmatprep.subr.mxu0 0.0
    %537 = vmatpush1.xpose.msra.mxu0 0.0
    %538 = vmatprep.subr.mxu0 0.0
    %539 = vmatpush1.xpose.msra.mxu0 0.0
    %540 = vmatprep.subr.mxu0 0.0
    %541 = vmatpush1.xpose.msra.mxu0 0.0
    %542 = vmatprep.subr.mxu0 0.0
    %543 = vmatpush1.xpose.msra.mxu0 0.0
    %544 = vmatprep.subr.mxu0 %v199
    %545 = vmatpush1.xpose.msra.mxu0 %v198
    %546 = vmatprep.subr.mxu0 %v191
    %547 = vmatpush1.xpose.msra.mxu0 %v190
    %548 = vmatprep.subr.mxu0 %v183
    %549 = vmatpush1.xpose.msra.mxu0 %v182
    %550 = vmatprep.subr.mxu0 %v175
    %551 = vmatpush1.xpose.msra.mxu0 %v174
    %552 = vmatprep.subr.mxu0 0.0
    %553 = vmatpush2.xpose.msra.mxu0 0.0
    %554 = vmatprep.subr.mxu0 0.0
    %555 = vmatpush2.xpose.msra.mxu0 0.0
    %556 = vmatprep.subr.mxu0 0.0
    %557 = vmatpush2.xpose.msra.mxu0 0.0
    %558 = vmatprep.subr.mxu0 0.0
    %559 = vmatpush2.xpose.msra.mxu0 0.0
    %560 = vmatprep.subr.mxu0 0.0
    %561 = vmatpush2.xpose.msra.mxu0 0.0
    %562 = vmatprep.subr.mxu0 0.0
    %563 = vmatpush2.xpose.msra.mxu0 0.0
    %564 = vmatprep.subr.mxu0 0.0
    %565 = vmatpush2.xpose.msra.mxu0 0.0
    %566 = vmatprep.subr.mxu0 0.0
    %567 = vmatpush2.xpose.msra.mxu0 0.0
    %568 = vmatprep.subr.mxu0 0.0
    %569 = vmatpush2.xpose.msra.mxu0 0.0
    %570 = vmatprep.subr.mxu0 0.0
    %571 = vmatpush2.xpose.msra.mxu0 0.0
    %572 = vmatprep.subr.mxu0 0.0
    %573 = vmatpush2.xpose.msra.mxu0 0.0
    %574 = vmatprep.subr.mxu0 0.0
    %575 = vmatpush2.xpose.msra.mxu0 0.0
    %576 = vmatprep.subr.mxu0 0.0
    %577 = vmatpush2.xpose.msra.mxu0 0.0
    %578 = vmatprep.subr.mxu0 0.0
    %579 = vmatpush2.xpose.msra.mxu0 0.0
    %580 = vmatprep.subr.mxu0 0.0
    %581 = vmatpush2.xpose.msra.mxu0 0.0
    %582 = vmatprep.subr.mxu0 0.0
    %583 = vmatpush2.xpose.msra.mxu0 0.0
    %584 = vmatprep.mubr.f32.mxu0 %v443
    %585 = vmatmul.mubr.f32.gmra.mxu0 %v152
    %v586 = vpop.f32.mrf.mxu0
    %v587 = vadd.f32 %v517, %v586
    %v588 = vpop.f32.mrf.mxu0
    %589 = vdwg.mxu0
    %590 = vmatprep.subr.mxu0 0.0
    %591 = vmatpush1.xpose.msra.mxu0 0.0
    %592 = vmatprep.subr.mxu0 0.0
    %593 = vmatpush1.xpose.msra.mxu0 0.0
    %594 = vmatprep.subr.mxu0 0.0
    %595 = vmatpush1.xpose.msra.mxu0 0.0
    %596 = vmatprep.subr.mxu0 0.0
    %597 = vmatpush1.xpose.msra.mxu0 0.0
    %598 = vmatprep.subr.mxu0 0.0
    %599 = vmatpush1.xpose.msra.mxu0 0.0
    %600 = vmatprep.subr.mxu0 0.0
    %601 = vmatpush1.xpose.msra.mxu0 0.0
    %602 = vmatprep.subr.mxu0 0.0
    %603 = vmatpush1.xpose.msra.mxu0 0.0
    %604 = vmatprep.subr.mxu0 0.0
    %605 = vmatpush1.xpose.msra.mxu0 0.0
    %606 = vmatprep.subr.mxu0 0.0
    %607 = vmatpush1.xpose.msra.mxu0 0.0
    %608 = vmatprep.subr.mxu0 0.0
    %609 = vmatpush1.xpose.msra.mxu0 0.0
    %610 = vmatprep.subr.mxu0 0.0
    %611 = vmatpush1.xpose.msra.mxu0 0.0
    %612 = vmatprep.subr.mxu0 0.0
    %613 = vmatpush1.xpose.msra.mxu0 0.0
    %614 = vmatprep.subr.mxu0 %v201
    %615 = vmatpush1.xpose.msra.mxu0 %v200
    %616 = vmatprep.subr.mxu0 %v193
    %617 = vmatpush1.xpose.msra.mxu0 %v192
    %618 = vmatprep.subr.mxu0 %v185
    %619 = vmatpush1.xpose.msra.mxu0 %v184
    %620 = vmatprep.subr.mxu0 %v177
    %621 = vmatpush1.xpose.msra.mxu0 %v176
    %622 = vmatprep.subr.mxu0 0.0
    %623 = vmatpush2.xpose.msra.mxu0 0.0
    %624 = vmatprep.subr.mxu0 0.0
    %625 = vmatpush2.xpose.msra.mxu0 0.0
    %626 = vmatprep.subr.mxu0 0.0
    %627 = vmatpush2.xpose.msra.mxu0 0.0
    %628 = vmatprep.subr.mxu0 0.0
    %629 = vmatpush2.xpose.msra.mxu0 0.0
    %630 = vmatprep.subr.mxu0 0.0
    %631 = vmatpush2.xpose.msra.mxu0 0.0
    %632 = vmatprep.subr.mxu0 0.0
    %633 = vmatpush2.xpose.msra.mxu0 0.0
    %634 = vmatprep.subr.mxu0 0.0
    %635 = vmatpush2.xpose.msra.mxu0 0.0
    %636 = vmatprep.subr.mxu0 0.0
    %637 = vmatpush2.xpose.msra.mxu0 0.0
    %638 = vmatprep.subr.mxu0 0.0
    %639 = vmatpush2.xpose.msra.mxu0 0.0
    %640 = vmatprep.subr.mxu0 0.0
    %641 = vmatpush2.xpose.msra.mxu0 0.0
    %642 = vmatprep.subr.mxu0 0.0
    %643 = vmatpush2.xpose.msra.mxu0 0.0
    %644 = vmatprep.subr.mxu0 0.0
    %645 = vmatpush2.xpose.msra.mxu0 0.0
    %646 = vmatprep.subr.mxu0 0.0
    %647 = vmatpush2.xpose.msra.mxu0 0.0
    %648 = vmatprep.subr.mxu0 0.0
    %649 = vmatpush2.xpose.msra.mxu0 0.0
    %650 = vmatprep.subr.mxu0 0.0
    %651 = vmatpush2.xpose.msra.mxu0 0.0
    %652 = vmatprep.subr.mxu0 0.0
    %653 = vmatpush2.xpose.msra.mxu0 0.0
    %654 = vmatprep.mubr.f32.mxu0 %v444
    %655 = vmatmul.mubr.f32.gmra.mxu0 %v153
    %v656 = vpop.f32.mrf.mxu0
    %v657 = vadd.f32 %v587, %v656
    %v658 = vpop.f32.mrf.mxu0
    %659 = vdwg.mxu0
    %660 = vmatprep.subr.mxu0 0.0
    %661 = vmatpush1.xpose.msra.mxu0 0.0
    %662 = vmatprep.subr.mxu0 0.0
    %663 = vmatpush1.xpose.msra.mxu0 0.0
    %664 = vmatprep.subr.mxu0 0.0
    %665 = vmatpush1.xpose.msra.mxu0 0.0
    %666 = vmatprep.subr.mxu0 0.0
    %667 = vmatpush1.xpose.msra.mxu0 0.0
    %668 = vmatprep.subr.mxu0 0.0
    %669 = vmatpush1.xpose.msra.mxu0 0.0
    %670 = vmatprep.subr.mxu0 0.0
    %671 = vmatpush1.xpose.msra.mxu0 0.0
    %672 = vmatprep.subr.mxu0 0.0
    %673 = vmatpush1.xpose.msra.mxu0 0.0
    %674 = vmatprep.subr.mxu0 0.0
    %675 = vmatpush1.xpose.msra.mxu0 0.0
    %676 = vmatprep.subr.mxu0 0.0
    %677 = vmatpush1.xpose.msra.mxu0 0.0
    %678 = vmatprep.subr.mxu0 0.0
    %679 = vmatpush1.xpose.msra.mxu0 0.0
    %680 = vmatprep.subr.mxu0 0.0
    %681 = vmatpush1.xpose.msra.mxu0 0.0
    %682 = vmatprep.subr.mxu0 0.0
    %683 = vmatpush1.xpose.msra.mxu0 0.0
    %684 = vmatprep.subr.mxu0 %v203
    %685 = vmatpush1.xpose.msra.mxu0 %v202
    %686 = vmatprep.subr.mxu0 %v195
    %687 = vmatpush1.xpose.msra.mxu0 %v194
    %688 = vmatprep.subr.mxu0 %v187
    %689 = vmatpush1.xpose.msra.mxu0 %v186
    %690 = vmatprep.subr.mxu0 %v179
    %691 = vmatpush1.xpose.msra.mxu0 %v178
    %692 = vmatprep.subr.mxu0 0.0
    %693 = vmatpush2.xpose.msra.mxu0 0.0
    %694 = vmatprep.subr.mxu0 0.0
    %695 = vmatpush2.xpose.msra.mxu0 0.0
    %696 = vmatprep.subr.mxu0 0.0
    %697 = vmatpush2.xpose.msra.mxu0 0.0
    %698 = vmatprep.subr.mxu0 0.0
    %699 = vmatpush2.xpose.msra.mxu0 0.0
    %700 = vmatprep.subr.mxu0 0.0
    %701 = vmatpush2.xpose.msra.mxu0 0.0
    %702 = vmatprep.subr.mxu0 0.0
    %703 = vmatpush2.xpose.msra.mxu0 0.0
    %704 = vmatprep.subr.mxu0 0.0
    %705 = vmatpush2.xpose.msra.mxu0 0.0
    %706 = vmatprep.subr.mxu0 0.0
    %707 = vmatpush2.xpose.msra.mxu0 0.0
    %708 = vmatprep.subr.mxu0 0.0
    %709 = vmatpush2.xpose.msra.mxu0 0.0
    %710 = vmatprep.subr.mxu0 0.0
    %711 = vmatpush2.xpose.msra.mxu0 0.0
    %712 = vmatprep.subr.mxu0 0.0
    %713 = vmatpush2.xpose.msra.mxu0 0.0
    %714 = vmatprep.subr.mxu0 0.0
    %715 = vmatpush2.xpose.msra.mxu0 0.0
    %716 = vmatprep.subr.mxu0 0.0
    %717 = vmatpush2.xpose.msra.mxu0 0.0
    %718 = vmatprep.subr.mxu0 0.0
    %719 = vmatpush2.xpose.msra.mxu0 0.0
    %720 = vmatprep.subr.mxu0 0.0
    %721 = vmatpush2.xpose.msra.mxu0 0.0
    %722 = vmatprep.subr.mxu0 0.0
    %723 = vmatpush2.xpose.msra.mxu0 0.0
    %724 = vmatprep.mubr.f32.mxu0 %v445
    %725 = vmatmul.mubr.f32.gmra.mxu0 %v154
    %v726 = vpop.f32.mrf.mxu0
    %v727 = vadd.f32 %v657, %v726
    %v728 = vpop.f32.mrf.mxu0
    %729 = vdwg.mxu0
    %v730 = vmax.f32 %v727, 0.0
    %732 = vrot.lane.b32.xlu0 %v730, 32
    %v733 = vpop.permute.xlu0 %732
    %v735 = vsel %vm51, %v429, %v733
    %v737 = vlaneseq
    %v738 = vshrl.u32 %v737, 7
    %v739 = vsub.s32 0, %v738
    %v740 = vrot.slane %v213, %v739
    %v743 = vsel %vm358, %v735, 0
    %745 = vmatprep.subr.mxu0 0.0
    %746 = vmatpush1.msra.mxu0 0.0
    %747 = vmatprep.subr.mxu0 0.0
    %748 = vmatpush1.msra.mxu0 0.0
    %749 = vmatprep.subr.mxu0 0.0
    %750 = vmatpush1.msra.mxu0 0.0
    %751 = vmatprep.subr.mxu0 0.0
    %752 = vmatpush1.msra.mxu0 0.0
    %753 = vmatprep.subr.mxu0 0.0
    %754 = vmatpush1.msra.mxu0 0.0
    %755 = vmatprep.subr.mxu0 0.0
    %756 = vmatpush1.msra.mxu0 0.0
    %757 = vmatprep.subr.mxu0 0.0
    %758 = vmatpush1.msra.mxu0 0.0
    %759 = vmatprep.subr.mxu0 0.0
    %760 = vmatpush1.msra.mxu0 0.0
    %761 = vmatprep.subr.mxu0 0.0
    %762 = vmatpush1.msra.mxu0 %v212
    %763 = vmatprep.subr.mxu0 0.0
    %764 = vmatpush1.msra.mxu0 %v211
    %765 = vmatprep.subr.mxu0 0.0
    %766 = vmatpush1.msra.mxu0 %v210
    %767 = vmatprep.subr.mxu0 0.0
    %768 = vmatpush1.msra.mxu0 %v209
    %769 = vmatprep.subr.mxu0 0.0
    %770 = vmatpush1.msra.mxu0 %v208
    %771 = vmatprep.subr.mxu0 0.0
    %772 = vmatpush1.msra.mxu0 %v207
    %773 = vmatprep.subr.mxu0 0.0
    %774 = vmatpush1.msra.mxu0 %v206
    %775 = vmatprep.subr.mxu0 0.0
    %776 = vmatpush1.msra.mxu0 %v205
    %777 = vmatprep.subr.mxu0 0.0
    %778 = vmatpush2.msra.mxu0 0.0
    %779 = vmatprep.subr.mxu0 0.0
    %780 = vmatpush2.msra.mxu0 0.0
    %781 = vmatprep.subr.mxu0 0.0
    %782 = vmatpush2.msra.mxu0 0.0
    %783 = vmatprep.subr.mxu0 0.0
    %784 = vmatpush2.msra.mxu0 0.0
    %785 = vmatprep.subr.mxu0 0.0
    %786 = vmatpush2.msra.mxu0 0.0
    %787 = vmatprep.subr.mxu0 0.0
    %788 = vmatpush2.msra.mxu0 0.0
    %789 = vmatprep.subr.mxu0 0.0
    %790 = vmatpush2.msra.mxu0 0.0
    %791 = vmatprep.subr.mxu0 0.0
    %792 = vmatpush2.msra.mxu0 0.0
    %793 = vmatprep.subr.mxu0 0.0
    %794 = vmatpush2.msra.mxu0 0.0
    %795 = vmatprep.subr.mxu0 0.0
    %796 = vmatpush2.msra.mxu0 0.0
    %797 = vmatprep.subr.mxu0 0.0
    %798 = vmatpush2.msra.mxu0 0.0
    %799 = vmatprep.subr.mxu0 0.0
    %800 = vmatpush2.msra.mxu0 0.0
    %801 = vmatprep.subr.mxu0 0.0
    %802 = vmatpush2.msra.mxu0 0.0
    %803 = vmatprep.subr.mxu0 0.0
    %804 = vmatpush2.msra.mxu0 0.0
    %805 = vmatprep.subr.mxu0 0.0
    %806 = vmatpush2.msra.mxu0 0.0
    %807 = vmatprep.subr.mxu0 0.0
    %808 = vmatpush2.msra.mxu0 0.0
    %809 = vmatprep.mubr.f32.mxu0 0.0
    %810 = vmatmul.mubr.f32.gmra.mxu0 %v743
    %v811 = vpop.f32.mrf.mxu0
    %v812 = vadd.f32 %v740, %v811
    %v813 = vpop.f32.mrf.mxu0
    %814 = vdwg.mxu0
    %vm815 = vcmask 11264
    %v816 = vsel %vm815, %v812, -inf
    %817 = vmax.xlane.f32.xlu0 %v816
    %v818 = vpop.xlane.xlu0 %817
    %v819 = vsub.f32 %v812, %v818
    %v820 = vmul.f32 %v819, 1.442695
    %v821 = vpow.pop %v820
    %v822 = vsel %vm815, %v821, 0.0
    %823 = vadd.xlane.f32.xlu0 %v822
    %v824 = vpop.xlane.xlu0 %823
    %v825 = vrcp.pop %v824
    %v826 = vmul.f32 %v821, %v825
    %v827 = vsub.f32 %v826, %v155
    %v828 = vmul.f32 %v827, 0.25
    %829 = vxpose.xlu0.b32.start [1/16] %v735, 128
    %830 = vxpose.xlu0.b32.cont [2/16] 0.0, 128
    %831 = vxpose.xlu0.b32.cont [3/16] 0.0, 128
    %832 = vxpose.xlu0.b32.cont [4/16] 0.0, 128
    %833 = vxpose.xlu0.b32.cont [5/16] 0.0, 128
    %834 = vxpose.xlu0.b32.cont [6/16] 0.0, 128
    %835 = vxpose.xlu0.b32.cont [7/16] 0.0, 128
    %836 = vxpose.xlu0.b32.cont [8/16] 0.0, 128
    %837 = vxpose.xlu0.b32.cont [9/16] 0.0, 128
    %838 = vxpose.xlu0.b32.cont [10/16] 0.0, 128
    %839 = vxpose.xlu0.b32.cont [11/16] 0.0, 128
    %840 = vxpose.xlu0.b32.cont [12/16] 0.0, 128
    %841 = vxpose.xlu0.b32.cont [13/16] 0.0, 128
    %842 = vxpose.xlu0.b32.cont [14/16] 0.0, 128
    %843 = vxpose.xlu0.b32.cont [15/16] 0.0, 128
    %844 = vxpose.xlu0.b32.end [16/16] 0.0, 128
    %v845 = vpop.trf.xlu0
    %v846 = vpop.trf.xlu0
    %v847 = vpop.trf.xlu0
    %v848 = vpop.trf.xlu0
    %v849 = vpop.trf.xlu0
    %v850 = vpop.trf.xlu0
    %v851 = vpop.trf.xlu0
    %v852 = vpop.trf.xlu0
    %v853 = vpop.trf.xlu0
    %v854 = vpop.trf.xlu0
    %v855 = vpop.trf.xlu0
    %v856 = vpop.trf.xlu0
    %v857 = vpop.trf.xlu0
    %v858 = vpop.trf.xlu0
    %v859 = vpop.trf.xlu0
    %v860 = vpop.trf.xlu0
    %vm861 = vcmask 31744
    %v863 = vsel %vm861, %v845, 0
    %v866 = vsel %vm861, %v846, 0
    %v869 = vsel %vm861, %v847, 0
    %v872 = vsel %vm861, %v848, 0
    %v875 = vsel %vm861, %v849, 0
    %v878 = vsel %vm861, %v850, 0
    %v881 = vsel %vm861, %v851, 0
    %v884 = vsel %vm861, %v852, 0
    %vm886 = vcmask 1043456
    %v888 = vsel %vm886, %v828, 0
    %890 = vmatprep.subr.mxu0 0.0
    %891 = vmatpush1.msra.mxu0 0.0
    %892 = vmatprep.subr.mxu0 0.0
    %893 = vmatpush1.msra.mxu0 0.0
    %894 = vmatprep.subr.mxu0 0.0
    %895 = vmatpush1.msra.mxu0 0.0
    %896 = vmatprep.subr.mxu0 0.0
    %897 = vmatpush1.msra.mxu0 0.0
    %898 = vmatprep.subr.mxu0 0.0
    %899 = vmatpush1.msra.mxu0 0.0
    %900 = vmatprep.subr.mxu0 0.0
    %901 = vmatpush1.msra.mxu0 0.0
    %902 = vmatprep.subr.mxu0 0.0
    %903 = vmatpush1.msra.mxu0 0.0
    %904 = vmatprep.subr.mxu0 0.0
    %905 = vmatpush1.msra.mxu0 0.0
    %906 = vmatprep.subr.mxu0 0.0
    %907 = vmatpush1.msra.mxu0 0.0
    %908 = vmatprep.subr.mxu0 0.0
    %909 = vmatpush1.msra.mxu0 0.0
    %910 = vmatprep.subr.mxu0 0.0
    %911 = vmatpush1.msra.mxu0 0.0
    %912 = vmatprep.subr.mxu0 0.0
    %913 = vmatpush1.msra.mxu0 0.0
    %914 = vmatprep.subr.mxu0 0.0
    %915 = vmatpush1.msra.mxu0 0.0
    %916 = vmatprep.subr.mxu0 0.0
    %917 = vmatpush1.msra.mxu0 0.0
    %918 = vmatprep.subr.mxu0 0.0
    %919 = vmatpush1.msra.mxu0 0.0
    %920 = vmatprep.subr.mxu0 0.0
    %921 = vmatpush1.msra.mxu0 %v888
    %922 = vmatprep.subr.mxu0 0.0
    %923 = vmatpush2.msra.mxu0 0.0
    %924 = vmatprep.subr.mxu0 0.0
    %925 = vmatpush2.msra.mxu0 0.0
    %926 = vmatprep.subr.mxu0 0.0
    %927 = vmatpush2.msra.mxu0 0.0
    %928 = vmatprep.subr.mxu0 0.0
    %929 = vmatpush2.msra.mxu0 0.0
    %930 = vmatprep.subr.mxu0 0.0
    %931 = vmatpush2.msra.mxu0 0.0
    %932 = vmatprep.subr.mxu0 0.0
    %933 = vmatpush2.msra.mxu0 0.0
    %934 = vmatprep.subr.mxu0 0.0
    %935 = vmatpush2.msra.mxu0 0.0
    %936 = vmatprep.subr.mxu0 0.0
    %937 = vmatpush2.msra.mxu0 0.0
    %938 = vmatprep.subr.mxu0 0.0
    %939 = vmatpush2.msra.mxu0 0.0
    %940 = vmatprep.subr.mxu0 0.0
    %941 = vmatpush2.msra.mxu0 0.0
    %942 = vmatprep.subr.mxu0 0.0
    %943 = vmatpush2.msra.mxu0 0.0
    %944 = vmatprep.subr.mxu0 0.0
    %945 = vmatpush2.msra.mxu0 0.0
    %946 = vmatprep.subr.mxu0 0.0
    %947 = vmatpush2.msra.mxu0 0.0
    %948 = vmatprep.subr.mxu0 0.0
    %949 = vmatpush2.msra.mxu0 0.0
    %950 = vmatprep.subr.mxu0 0.0
    %951 = vmatpush2.msra.mxu0 0.0
    %952 = vmatprep.subr.mxu0 0.0
    %953 = vmatpush2.msra.mxu0 0.0
    %954 = vmatprep.mubr.f32.mxu0 0.0
    %955 = vmatmul.mubr.f32.gmra.mxu0 %v863
    %v956 = vpop.f32.mrf.mxu0
    %v957 = vadd.f32 0.0, %v956
    %v958 = vpop.f32.mrf.mxu0
    %959 = vmatprep.mubr.f32.mxu0 0.0
    %960 = vmatmul.mubr.f32.gmra.mxu0 %v866
    %v961 = vpop.f32.mrf.mxu0
    %v962 = vadd.f32 0.0, %v961
    %v963 = vpop.f32.mrf.mxu0
    %964 = vmatprep.mubr.f32.mxu0 0.0
    %965 = vmatmul.mubr.f32.gmra.mxu0 %v869
    %v966 = vpop.f32.mrf.mxu0
    %v967 = vadd.f32 0.0, %v966
    %v968 = vpop.f32.mrf.mxu0
    %969 = vmatprep.mubr.f32.mxu0 0.0
    %970 = vmatmul.mubr.f32.gmra.mxu0 %v872
    %v971 = vpop.f32.mrf.mxu0
    %v972 = vadd.f32 0.0, %v971
    %v973 = vpop.f32.mrf.mxu0
    %974 = vmatprep.mubr.f32.mxu0 0.0
    %975 = vmatmul.mubr.f32.gmra.mxu0 %v875
    %v976 = vpop.f32.mrf.mxu0
    %v977 = vadd.f32 0.0, %v976
    %v978 = vpop.f32.mrf.mxu0
    %979 = vmatprep.mubr.f32.mxu0 0.0
    %980 = vmatmul.mubr.f32.gmra.mxu0 %v878
    %v981 = vpop.f32.mrf.mxu0
    %v982 = vadd.f32 0.0, %v981
    %v983 = vpop.f32.mrf.mxu0
    %984 = vmatprep.mubr.f32.mxu0 0.0
    %985 = vmatmul.mubr.f32.gmra.mxu0 %v881
    %v986 = vpop.f32.mrf.mxu0
    %v987 = vadd.f32 0.0, %v986
    %v988 = vpop.f32.mrf.mxu0
    %989 = vmatprep.mubr.f32.mxu0 0.0
    %990 = vmatmul.mubr.f32.gmra.mxu0 %v884
    %v991 = vpop.f32.mrf.mxu0
    %v992 = vadd.f32 0.0, %v991
    %v993 = vpop.f32.mrf.mxu0
    %994 = vdwg.mxu0
    %v995 = vsel %vm815, %v828, 0.0
    %v996 = vrot.slane %v995, 4
    %v997 = vadd.f32 %v995, %v996
    %v998 = vrot.slane %v997, 2
    %v999 = vadd.f32 %v997, %v998
    %v1000 = vrot.slane %v999, 1
    %v1001 = vadd.f32 %v999, %v1000
    %v1002 = vsel %vm130, %v828, 0
    %v1005 = vsel %vm130, %v205, 0
    %v1008 = vsel %vm130, %v206, 0
    %v1011 = vsel %vm130, %v207, 0
    %v1014 = vsel %vm130, %v208, 0
    %v1017 = vsel %vm130, %v209, 0
    %v1020 = vsel %vm130, %v210, 0
    %v1023 = vsel %vm130, %v211, 0
    %v1026 = vsel %vm130, %v212, 0
    %1028 = vmatprep.subr.mxu0 0.0
    %1029 = vmatpush1.xpose.msra.mxu0 0.0
    %1030 = vmatprep.subr.mxu0 0.0
    %1031 = vmatpush1.xpose.msra.mxu0 0.0
    %1032 = vmatprep.subr.mxu0 0.0
    %1033 = vmatpush1.xpose.msra.mxu0 0.0
    %1034 = vmatprep.subr.mxu0 0.0
    %1035 = vmatpush1.xpose.msra.mxu0 0.0
    %1036 = vmatprep.subr.mxu0 0.0
    %1037 = vmatpush1.xpose.msra.mxu0 0.0
    %1038 = vmatprep.subr.mxu0 0.0
    %1039 = vmatpush1.xpose.msra.mxu0 0.0
    %1040 = vmatprep.subr.mxu0 0.0
    %1041 = vmatpush1.xpose.msra.mxu0 0.0
    %1042 = vmatprep.subr.mxu0 0.0
    %1043 = vmatpush1.xpose.msra.mxu0 0.0
    %1044 = vmatprep.subr.mxu0 0.0
    %1045 = vmatpush1.xpose.msra.mxu0 %v1026
    %1046 = vmatprep.subr.mxu0 0.0
    %1047 = vmatpush1.xpose.msra.mxu0 %v1023
    %1048 = vmatprep.subr.mxu0 0.0
    %1049 = vmatpush1.xpose.msra.mxu0 %v1020
    %1050 = vmatprep.subr.mxu0 0.0
    %1051 = vmatpush1.xpose.msra.mxu0 %v1017
    %1052 = vmatprep.subr.mxu0 0.0
    %1053 = vmatpush1.xpose.msra.mxu0 %v1014
    %1054 = vmatprep.subr.mxu0 0.0
    %1055 = vmatpush1.xpose.msra.mxu0 %v1011
    %1056 = vmatprep.subr.mxu0 0.0
    %1057 = vmatpush1.xpose.msra.mxu0 %v1008
    %1058 = vmatprep.subr.mxu0 0.0
    %1059 = vmatpush1.xpose.msra.mxu0 %v1005
    %1060 = vmatprep.subr.mxu0 0.0
    %1061 = vmatpush2.xpose.msra.mxu0 0.0
    %1062 = vmatprep.subr.mxu0 0.0
    %1063 = vmatpush2.xpose.msra.mxu0 0.0
    %1064 = vmatprep.subr.mxu0 0.0
    %1065 = vmatpush2.xpose.msra.mxu0 0.0
    %1066 = vmatprep.subr.mxu0 0.0
    %1067 = vmatpush2.xpose.msra.mxu0 0.0
    %1068 = vmatprep.subr.mxu0 0.0
    %1069 = vmatpush2.xpose.msra.mxu0 0.0
    %1070 = vmatprep.subr.mxu0 0.0
    %1071 = vmatpush2.xpose.msra.mxu0 0.0
    %1072 = vmatprep.subr.mxu0 0.0
    %1073 = vmatpush2.xpose.msra.mxu0 0.0
    %1074 = vmatprep.subr.mxu0 0.0
    %1075 = vmatpush2.xpose.msra.mxu0 0.0
    %1076 = vmatprep.subr.mxu0 0.0
    %1077 = vmatpush2.xpose.msra.mxu0 0.0
    %1078 = vmatprep.subr.mxu0 0.0
    %1079 = vmatpush2.xpose.msra.mxu0 0.0
    %1080 = vmatprep.subr.mxu0 0.0
    %1081 = vmatpush2.xpose.msra.mxu0 0.0
    %1082 = vmatprep.subr.mxu0 0.0
    %1083 = vmatpush2.xpose.msra.mxu0 0.0
    %1084 = vmatprep.subr.mxu0 0.0
    %1085 = vmatpush2.xpose.msra.mxu0 0.0
    %1086 = vmatprep.subr.mxu0 0.0
    %1087 = vmatpush2.xpose.msra.mxu0 0.0
    %1088 = vmatprep.subr.mxu0 0.0
    %1089 = vmatpush2.xpose.msra.mxu0 0.0
    %1090 = vmatprep.subr.mxu0 0.0
    %1091 = vmatpush2.xpose.msra.mxu0 0.0
    %1092 = vmatprep.mubr.f32.mxu0 0.0
    %1093 = vmatmul.mubr.f32.gmra.mxu0 %v1002
    %v1094 = vpop.f32.mrf.mxu0
    %v1095 = vadd.f32 0.0, %v1094
    %v1096 = vpop.f32.mrf.mxu0
    %1097 = vdwg.mxu0
    %vm1098 = vcmp.gt.f32.partialorder %v727, 0.0
    %1100 = vrot.lane.b32.xlu0 %v1095, 96
    %v1101 = vpop.permute.xlu0 %1100
    %v1103 = vsel %vm1098, %v1101, 0.0
    %1104 = vxpose.xlu0.b32.start [1/16] %v1103, 128
    %1105 = vxpose.xlu0.b32.cont [2/16] 0.0, 128
    %1106 = vxpose.xlu0.b32.cont [3/16] 0.0, 128
    %1107 = vxpose.xlu0.b32.cont [4/16] 0.0, 128
    %1108 = vxpose.xlu0.b32.cont [5/16] 0.0, 128
    %1109 = vxpose.xlu0.b32.cont [6/16] 0.0, 128
    %1110 = vxpose.xlu0.b32.cont [7/16] 0.0, 128
    %1111 = vxpose.xlu0.b32.cont [8/16] 0.0, 128
    %1112 = vxpose.xlu0.b32.cont [9/16] 0.0, 128
    %1113 = vxpose.xlu0.b32.cont [10/16] 0.0, 128
    %1114 = vxpose.xlu0.b32.cont [11/16] 0.0, 128
    %1115 = vxpose.xlu0.b32.cont [12/16] 0.0, 128
    %1116 = vxpose.xlu0.b32.cont [13/16] 0.0, 128
    %1117 = vxpose.xlu0.b32.cont [14/16] 0.0, 128
    %1118 = vxpose.xlu0.b32.cont [15/16] 0.0, 128
    %1119 = vxpose.xlu0.b32.end [16/16] 0.0, 128
    %v1120 = vpop.trf.xlu0
    %v1121 = vpop.trf.xlu0
    %v1122 = vpop.trf.xlu0
    %v1123 = vpop.trf.xlu0
    %v1124 = vpop.trf.xlu0
    %v1125 = vpop.trf.xlu0
    %v1126 = vpop.trf.xlu0
    %v1127 = vpop.trf.xlu0
    %v1128 = vpop.trf.xlu0
    %v1129 = vpop.trf.xlu0
    %v1130 = vpop.trf.xlu0
    %v1131 = vpop.trf.xlu0
    %v1132 = vpop.trf.xlu0
    %v1133 = vpop.trf.xlu0
    %v1134 = vpop.trf.xlu0
    %v1135 = vpop.trf.xlu0
    %v1137 = vsel %vm861, %v1120, 0
    %v1140 = vsel %vm861, %v1121, 0
    %v1143 = vsel %vm861, %v1122, 0
    %v1146 = vsel %vm861, %v1123, 0
    %v1148 = vsel %vm886, %v151, 0
    %v1150 = vsel %vm886, %v442, 0
    %v1152 = vsel %vm886, %v152, 0
    %v1154 = vsel %vm886, %v443, 0
    %v1156 = vsel %vm886, %v153, 0
    %v1158 = vsel %vm886, %v444, 0
    %v1160 = vsel %vm886, %v154, 0
    %v1162 = vsel %vm886, %v445, 0
    %1164 = vmatprep.subr.mxu0 0.0
    %1165 = vmatpush1.msra.mxu0 0.0
    %1166 = vmatprep.subr.mxu0 0.0
    %1167 = vmatpush1.msra.mxu0 0.0
    %1168 = vmatprep.subr.mxu0 0.0
    %1169 = vmatpush1.msra.mxu0 0.0
    %1170 = vmatprep.subr.mxu0 0.0
    %1171 = vmatpush1.msra.mxu0 0.0
    %1172 = vmatprep.subr.mxu0 0.0
    %1173 = vmatpush1.msra.mxu0 0.0
    %1174 = vmatprep.subr.mxu0 0.0
    %1175 = vmatpush1.msra.mxu0 0.0
    %1176 = vmatprep.subr.mxu0 0.0
    %1177 = vmatpush1.msra.mxu0 0.0
    %1178 = vmatprep.subr.mxu0 0.0
    %1179 = vmatpush1.msra.mxu0 0.0
    %1180 = vmatprep.subr.mxu0 0.0
    %1181 = vmatpush1.msra.mxu0 0.0
    %1182 = vmatprep.subr.mxu0 0.0
    %1183 = vmatpush1.msra.mxu0 0.0
    %1184 = vmatprep.subr.mxu0 0.0
    %1185 = vmatpush1.msra.mxu0 0.0
    %1186 = vmatprep.subr.mxu0 0.0
    %1187 = vmatpush1.msra.mxu0 0.0
    %1188 = vmatprep.subr.mxu0 0.0
    %1189 = vmatpush1.msra.mxu0 0.0
    %1190 = vmatprep.subr.mxu0 0.0
    %1191 = vmatpush1.msra.mxu0 0.0
    %1192 = vmatprep.subr.mxu0 0.0
    %1193 = vmatpush1.msra.mxu0 0.0
    %1194 = vmatprep.subr.mxu0 %v1150
    %1195 = vmatpush1.msra.mxu0 %v1148
    %1196 = vmatprep.subr.mxu0 0.0
    %1197 = vmatpush2.msra.mxu0 0.0
    %1198 = vmatprep.subr.mxu0 0.0
    %1199 = vmatpush2.msra.mxu0 0.0
    %1200 = vmatprep.subr.mxu0 0.0
    %1201 = vmatpush2.msra.mxu0 0.0
    %1202 = vmatprep.subr.mxu0 0.0
    %1203 = vmatpush2.msra.mxu0 0.0
    %1204 = vmatprep.subr.mxu0 0.0
    %1205 = vmatpush2.msra.mxu0 0.0
    %1206 = vmatprep.subr.mxu0 0.0
    %1207 = vmatpush2.msra.mxu0 0.0
    %1208 = vmatprep.subr.mxu0 0.0
    %1209 = vmatpush2.msra.mxu0 0.0
    %1210 = vmatprep.subr.mxu0 0.0
    %1211 = vmatpush2.msra.mxu0 0.0
    %1212 = vmatprep.subr.mxu0 0.0
    %1213 = vmatpush2.msra.mxu0 0.0
    %1214 = vmatprep.subr.mxu0 0.0
    %1215 = vmatpush2.msra.mxu0 0.0
    %1216 = vmatprep.subr.mxu0 0.0
    %1217 = vmatpush2.msra.mxu0 0.0
    %1218 = vmatprep.subr.mxu0 0.0
    %1219 = vmatpush2.msra.mxu0 0.0
    %1220 = vmatprep.subr.mxu0 0.0
    %1221 = vmatpush2.msra.mxu0 0.0
    %1222 = vmatprep.subr.mxu0 0.0
    %1223 = vmatpush2.msra.mxu0 0.0
    %1224 = vmatprep.subr.mxu0 0.0
    %1225 = vmatpush2.msra.mxu0 0.0
    %1226 = vmatprep.subr.mxu0 0.0
    %1227 = vmatpush2.msra.mxu0 0.0
    %1228 = vmatprep.mubr.f32.mxu0 0.0
    %1229 = vmatmul.mubr.f32.gmra.mxu0 %v1137
    %v1230 = vpop.f32.mrf.mxu0
    %v1231 = vadd.f32 0.0, %v1230
    %v1232 = vpop.f32.mrf.mxu0
    %v1233 = vadd.f32 0.0, %v1232
    %1234 = vmatprep.mubr.f32.mxu0 0.0
    %1235 = vmatmul.mubr.f32.gmra.mxu0 %v1140
    %v1236 = vpop.f32.mrf.mxu0
    %v1237 = vadd.f32 0.0, %v1236
    %v1238 = vpop.f32.mrf.mxu0
    %v1239 = vadd.f32 0.0, %v1238
    %1240 = vmatprep.mubr.f32.mxu0 0.0
    %1241 = vmatmul.mubr.f32.gmra.mxu0 %v1143
    %v1242 = vpop.f32.mrf.mxu0
    %v1243 = vadd.f32 0.0, %v1242
    %v1244 = vpop.f32.mrf.mxu0
    %v1245 = vadd.f32 0.0, %v1244
    %1246 = vmatprep.mubr.f32.mxu0 0.0
    %1247 = vmatmul.mubr.f32.gmra.mxu0 %v1146
    %v1248 = vpop.f32.mrf.mxu0
    %v1249 = vadd.f32 0.0, %v1248
    %v1250 = vpop.f32.mrf.mxu0
    %v1251 = vadd.f32 0.0, %v1250
    %1252 = vdwg.mxu0
    %1253 = vmatprep.subr.mxu0 0.0
    %1254 = vmatpush1.msra.mxu0 0.0
    %1255 = vmatprep.subr.mxu0 0.0
    %1256 = vmatpush1.msra.mxu0 0.0
    %1257 = vmatprep.subr.mxu0 0.0
    %1258 = vmatpush1.msra.mxu0 0.0
    %1259 = vmatprep.subr.mxu0 0.0
    %1260 = vmatpush1.msra.mxu0 0.0
    %1261 = vmatprep.subr.mxu0 0.0
    %1262 = vmatpush1.msra.mxu0 0.0
    %1263 = vmatprep.subr.mxu0 0.0
    %1264 = vmatpush1.msra.mxu0 0.0
    %1265 = vmatprep.subr.mxu0 0.0
    %1266 = vmatpush1.msra.mxu0 0.0
    %1267 = vmatprep.subr.mxu0 0.0
    %1268 = vmatpush1.msra.mxu0 0.0
    %1269 = vmatprep.subr.mxu0 0.0
    %1270 = vmatpush1.msra.mxu0 0.0
    %1271 = vmatprep.subr.mxu0 0.0
    %1272 = vmatpush1.msra.mxu0 0.0
    %1273 = vmatprep.subr.mxu0 0.0
    %1274 = vmatpush1.msra.mxu0 0.0
    %1275 = vmatprep.subr.mxu0 0.0
    %1276 = vmatpush1.msra.mxu0 0.0
    %1277 = vmatprep.subr.mxu0 0.0
    %1278 = vmatpush1.msra.mxu0 0.0
    %1279 = vmatprep.subr.mxu0 0.0
    %1280 = vmatpush1.msra.mxu0 0.0
    %1281 = vmatprep.subr.mxu0 0.0
    %1282 = vmatpush1.msra.mxu0 0.0
    %1283 = vmatprep.subr.mxu0 %v1154
    %1284 = vmatpush1.msra.mxu0 %v1152
    %1285 = vmatprep.subr.mxu0 0.0
    %1286 = vmatpush2.msra.mxu0 0.0
    %1287 = vmatprep.subr.mxu0 0.0
    %1288 = vmatpush2.msra.mxu0 0.0
    %1289 = vmatprep.subr.mxu0 0.0
    %1290 = vmatpush2.msra.mxu0 0.0
    %1291 = vmatprep.subr.mxu0 0.0
    %1292 = vmatpush2.msra.mxu0 0.0
    %1293 = vmatprep.subr.mxu0 0.0
    %1294 = vmatpush2.msra.mxu0 0.0
    %1295 = vmatprep.subr.mxu0 0.0
    %1296 = vmatpush2.msra.mxu0 0.0
    %1297 = vmatprep.subr.mxu0 0.0
    %1298 = vmatpush2.msra.mxu0 0.0
    %1299 = vmatprep.subr.mxu0 0.0
    %1300 = vmatpush2.msra.mxu0 0.0
    %1301 = vmatprep.subr.mxu0 0.0
    %1302 = vmatpush2.msra.mxu0 0.0
    %1303 = vmatprep.subr.mxu0 0.0
    %1304 = vmatpush2.msra.mxu0 0.0
    %1305 = vmatprep.subr.mxu0 0.0
    %1306 = vmatpush2.msra.mxu0 0.0
    %1307 = vmatprep.subr.mxu0 0.0
    %1308 = vmatpush2.msra.mxu0 0.0
    %1309 = vmatprep.subr.mxu0 0.0
    %1310 = vmatpush2.msra.mxu0 0.0
    %1311 = vmatprep.subr.mxu0 0.0
    %1312 = vmatpush2.msra.mxu0 0.0
    %1313 = vmatprep.subr.mxu0 0.0
    %1314 = vmatpush2.msra.mxu0 0.0
    %1315 = vmatprep.subr.mxu0 0.0
    %1316 = vmatpush2.msra.mxu0 0.0
    %1317 = vmatprep.mubr.f32.mxu0 0.0
    %1318 = vmatmul.mubr.f32.gmra.mxu0 %v1137
    %v1319 = vpop.f32.mrf.mxu0
    %v1320 = vadd.f32 0.0, %v1319
    %v1321 = vpop.f32.mrf.mxu0
    %v1322 = vadd.f32 0.0, %v1321
    %1323 = vmatprep.mubr.f32.mxu0 0.0
    %1324 = vmatmul.mubr.f32.gmra.mxu0 %v1140
    %v1325 = vpop.f32.mrf.mxu0
    %v1326 = vadd.f32 0.0, %v1325
    %v1327 = vpop.f32.mrf.mxu0
    %v1328 = vadd.f32 0.0, %v1327
    %1329 = vmatprep.mubr.f32.mxu0 0.0
    %1330 = vmatmul.mubr.f32.gmra.mxu0 %v1143
    %v1331 = vpop.f32.mrf.mxu0
    %v1332 = vadd.f32 0.0, %v1331
    %v1333 = vpop.f32.mrf.mxu0
    %v1334 = vadd.f32 0.0, %v1333
    %1335 = vmatprep.mubr.f32.mxu0 0.0
    %1336 = vmatmul.mubr.f32.gmra.mxu0 %v1146
    %v1337 = vpop.f32.mrf.mxu0
    %v1338 = vadd.f32 0.0, %v1337
    %v1339 = vpop.f32.mrf.mxu0
    %v1340 = vadd.f32 0.0, %v1339
    %1341 = vdwg.mxu0
    %1342 = vmatprep.subr.mxu0 0.0
    %1343 = vmatpush1.msra.mxu0 0.0
    %1344 = vmatprep.subr.mxu0 0.0
    %1345 = vmatpush1.msra.mxu0 0.0
    %1346 = vmatprep.subr.mxu0 0.0
    %1347 = vmatpush1.msra.mxu0 0.0
    %1348 = vmatprep.subr.mxu0 0.0
    %1349 = vmatpush1.msra.mxu0 0.0
    %1350 = vmatprep.subr.mxu0 0.0
    %1351 = vmatpush1.msra.mxu0 0.0
    %1352 = vmatprep.subr.mxu0 0.0
    %1353 = vmatpush1.msra.mxu0 0.0
    %1354 = vmatprep.subr.mxu0 0.0
    %1355 = vmatpush1.msra.mxu0 0.0
    %1356 = vmatprep.subr.mxu0 0.0
    %1357 = vmatpush1.msra.mxu0 0.0
    %1358 = vmatprep.subr.mxu0 0.0
    %1359 = vmatpush1.msra.mxu0 0.0
    %1360 = vmatprep.subr.mxu0 0.0
    %1361 = vmatpush1.msra.mxu0 0.0
    %1362 = vmatprep.subr.mxu0 0.0
    %1363 = vmatpush1.msra.mxu0 0.0
    %1364 = vmatprep.subr.mxu0 0.0
    %1365 = vmatpush1.msra.mxu0 0.0
    %1366 = vmatprep.subr.mxu0 0.0
    %1367 = vmatpush1.msra.mxu0 0.0
    %1368 = vmatprep.subr.mxu0 0.0
    %1369 = vmatpush1.msra.mxu0 0.0
    %1370 = vmatprep.subr.mxu0 0.0
    %1371 = vmatpush1.msra.mxu0 0.0
    %1372 = vmatprep.subr.mxu0 %v1158
    %1373 = vmatpush1.msra.mxu0 %v1156
    %1374 = vmatprep.subr.mxu0 0.0
    %1375 = vmatpush2.msra.mxu0 0.0
    %1376 = vmatprep.subr.mxu0 0.0
    %1377 = vmatpush2.msra.mxu0 0.0
    %1378 = vmatprep.subr.mxu0 0.0
    %1379 = vmatpush2.msra.mxu0 0.0
    %1380 = vmatprep.subr.mxu0 0.0
    %1381 = vmatpush2.msra.mxu0 0.0
    %1382 = vmatprep.subr.mxu0 0.0
    %1383 = vmatpush2.msra.mxu0 0.0
    %1384 = vmatprep.subr.mxu0 0.0
    %1385 = vmatpush2.msra.mxu0 0.0
    %1386 = vmatprep.subr.mxu0 0.0
    %1387 = vmatpush2.msra.mxu0 0.0
    %1388 = vmatprep.subr.mxu0 0.0
    %1389 = vmatpush2.msra.mxu0 0.0
    %1390 = vmatprep.subr.mxu0 0.0
    %1391 = vmatpush2.msra.mxu0 0.0
    %1392 = vmatprep.subr.mxu0 0.0
    %1393 = vmatpush2.msra.mxu0 0.0
    %1394 = vmatprep.subr.mxu0 0.0
    %1395 = vmatpush2.msra.mxu0 0.0
    %1396 = vmatprep.subr.mxu0 0.0
    %1397 = vmatpush2.msra.mxu0 0.0
    %1398 = vmatprep.subr.mxu0 0.0
    %1399 = vmatpush2.msra.mxu0 0.0
    %1400 = vmatprep.subr.mxu0 0.0
    %1401 = vmatpush2.msra.mxu0 0.0
    %1402 = vmatprep.subr.mxu0 0.0
    %1403 = vmatpush2.msra.mxu0 0.0
    %1404 = vmatprep.subr.mxu0 0.0
    %1405 = vmatpush2.msra.mxu0 0.0
    %1406 = vmatprep.mubr.f32.mxu0 0.0
    %1407 = vmatmul.mubr.f32.gmra.mxu0 %v1137
    %v1408 = vpop.f32.mrf.mxu0
    %v1409 = vadd.f32 0.0, %v1408
    %v1410 = vpop.f32.mrf.mxu0
    %v1411 = vadd.f32 0.0, %v1410
    %1412 = vmatprep.mubr.f32.mxu0 0.0
    %1413 = vmatmul.mubr.f32.gmra.mxu0 %v1140
    %v1414 = vpop.f32.mrf.mxu0
    %v1415 = vadd.f32 0.0, %v1414
    %v1416 = vpop.f32.mrf.mxu0
    %v1417 = vadd.f32 0.0, %v1416
    %1418 = vmatprep.mubr.f32.mxu0 0.0
    %1419 = vmatmul.mubr.f32.gmra.mxu0 %v1143
    %v1420 = vpop.f32.mrf.mxu0
    %v1421 = vadd.f32 0.0, %v1420
    %v1422 = vpop.f32.mrf.mxu0
    %v1423 = vadd.f32 0.0, %v1422
    %1424 = vmatprep.mubr.f32.mxu0 0.0
    %1425 = vmatmul.mubr.f32.gmra.mxu0 %v1146
    %v1426 = vpop.f32.mrf.mxu0
    %v1427 = vadd.f32 0.0, %v1426
    %v1428 = vpop.f32.mrf.mxu0
    %v1429 = vadd.f32 0.0, %v1428
    %1430 = vdwg.mxu0
    %1431 = vmatprep.subr.mxu0 0.0
    %1432 = vmatpush1.msra.mxu0 0.0
    %1433 = vmatprep.subr.mxu0 0.0
    %1434 = vmatpush1.msra.mxu0 0.0
    %1435 = vmatprep.subr.mxu0 0.0
    %1436 = vmatpush1.msra.mxu0 0.0
    %1437 = vmatprep.subr.mxu0 0.0
    %1438 = vmatpush1.msra.mxu0 0.0
    %1439 = vmatprep.subr.mxu0 0.0
    %1440 = vmatpush1.msra.mxu0 0.0
    %1441 = vmatprep.subr.mxu0 0.0
    %1442 = vmatpush1.msra.mxu0 0.0
    %1443 = vmatprep.subr.mxu0 0.0
    %1444 = vmatpush1.msra.mxu0 0.0
    %1445 = vmatprep.subr.mxu0 0.0
    %1446 = vmatpush1.msra.mxu0 0.0
    %1447 = vmatprep.subr.mxu0 0.0
    %1448 = vmatpush1.msra.mxu0 0.0
    %1449 = vmatprep.subr.mxu0 0.0
    %1450 = vmatpush1.msra.mxu0 0.0
    %1451 = vmatprep.subr.mxu0 0.0
    %1452 = vmatpush1.msra.mxu0 0.0
    %1453 = vmatprep.subr.mxu0 0.0
    %1454 = vmatpush1.msra.mxu0 0.0
    %1455 = vmatprep.subr.mxu0 0.0
    %1456 = vmatpush1.msra.mxu0 0.0
    %1457 = vmatprep.subr.mxu0 0.0
    %1458 = vmatpush1.msra.mxu0 0.0
    %1459 = vmatprep.subr.mxu0 0.0
    %1460 = vmatpush1.msra.mxu0 0.0
    %1461 = vmatprep.subr.mxu0 %v1162
    %1462 = vmatpush1.msra.mxu0 %v1160
    %1463 = vmatprep.subr.mxu0 0.0
    %1464 = vmatpush2.msra.mxu0 0.0
    %1465 = vmatprep.subr.mxu0 0.0
    %1466 = vmatpush2.msra.mxu0 0.0
    %1467 = vmatprep.subr.mxu0 0.0
    %1468 = vmatpush2.msra.mxu0 0.0
    %1469 = vmatprep.subr.mxu0 0.0
    %1470 = vmatpush2.msra.mxu0 0.0
    %1471 = vmatprep.subr.mxu0 0.0
    %1472 = vmatpush2.msra.mxu0 0.0
    %1473 = vmatprep.subr.mxu0 0.0
    %1474 = vmatpush2.msra.mxu0 0.0
    %1475 = vmatprep.subr.mxu0 0.0
    %1476 = vmatpush2.msra.mxu0 0.0
    %1477 = vmatprep.subr.mxu0 0.0
    %1478 = vmatpush2.msra.mxu0 0.0
    %1479 = vmatprep.subr.mxu0 0.0
    %1480 = vmatpush2.msra.mxu0 0.0
    %1481 = vmatprep.subr.mxu0 0.0
    %1482 = vmatpush2.msra.mxu0 0.0
    %1483 = vmatprep.subr.mxu0 0.0
    %1484 = vmatpush2.msra.mxu0 0.0
    %1485 = vmatprep.subr.mxu0 0.0
    %1486 = vmatpush2.msra.mxu0 0.0
    %1487 = vmatprep.subr.mxu0 0.0
    %1488 = vmatpush2.msra.mxu0 0.0
    %1489 = vmatprep.subr.mxu0 0.0
    %1490 = vmatpush2.msra.mxu0 0.0
    %1491 = vmatprep.subr.mxu0 0.0
    %1492 = vmatpush2.msra.mxu0 0.0
    %1493 = vmatprep.subr.mxu0 0.0
    %1494 = vmatpush2.msra.mxu0 0.0
    %1495 = vmatprep.mubr.f32.mxu0 0.0
    %1496 = vmatmul.mubr.f32.gmra.mxu0 %v1137
    %v1497 = vpop.f32.mrf.mxu0
    %v1498 = vadd.f32 0.0, %v1497
    %v1499 = vpop.f32.mrf.mxu0
    %v1500 = vadd.f32 0.0, %v1499
    %1501 = vmatprep.mubr.f32.mxu0 0.0
    %1502 = vmatmul.mubr.f32.gmra.mxu0 %v1140
    %v1503 = vpop.f32.mrf.mxu0
    %v1504 = vadd.f32 0.0, %v1503
    %v1505 = vpop.f32.mrf.mxu0
    %v1506 = vadd.f32 0.0, %v1505
    %1507 = vmatprep.mubr.f32.mxu0 0.0
    %1508 = vmatmul.mubr.f32.gmra.mxu0 %v1143
    %v1509 = vpop.f32.mrf.mxu0
    %v1510 = vadd.f32 0.0, %v1509
    %v1511 = vpop.f32.mrf.mxu0
    %v1512 = vadd.f32 0.0, %v1511
    %1513 = vmatprep.mubr.f32.mxu0 0.0
    %1514 = vmatmul.mubr.f32.gmra.mxu0 %v1146
    %v1515 = vpop.f32.mrf.mxu0
    %v1516 = vadd.f32 0.0, %v1515
    %v1517 = vpop.f32.mrf.mxu0
    %v1518 = vadd.f32 0.0, %v1517
    %1519 = vdwg.mxu0
    %vm1520 = vcmask 257024
    %v1521 = vsel %vm1520, %v1103, 0.0
    %v1522 = vrot.slane %v1521, 4
    %v1523 = vadd.f32 %v1521, %v1522
    %v1524 = vrot.slane %v1523, 2
    %v1525 = vadd.f32 %v1523, %v1524
    %v1526 = vrot.slane %v1525, 1
    %v1527 = vadd.f32 %v1525, %v1526
    %1528 = vxpose.xlu0.b32.start [1/16] %v150, 128
    %1529 = vxpose.xlu0.b32.cont [2/16] 0.0, 128
    %1530 = vxpose.xlu0.b32.cont [3/16] 0.0, 128
    %1531 = vxpose.xlu0.b32.cont [4/16] 0.0, 128
    %1532 = vxpose.xlu0.b32.cont [5/16] 0.0, 128
    %1533 = vxpose.xlu0.b32.cont [6/16] 0.0, 128
    %1534 = vxpose.xlu0.b32.cont [7/16] 0.0, 128
    %1535 = vxpose.xlu0.b32.cont [8/16] 0.0, 128
    %1536 = vxpose.xlu0.b32.cont [9/16] 0.0, 128
    %1537 = vxpose.xlu0.b32.cont [10/16] 0.0, 128
    %1538 = vxpose.xlu0.b32.cont [11/16] 0.0, 128
    %1539 = vxpose.xlu0.b32.cont [12/16] 0.0, 128
    %1540 = vxpose.xlu0.b32.cont [13/16] 0.0, 128
    %1541 = vxpose.xlu0.b32.cont [14/16] 0.0, 128
    %1542 = vxpose.xlu0.b32.cont [15/16] 0.0, 128
    %1543 = vxpose.xlu0.b32.end [16/16] 0.0, 128
    %v1544 = vpop.trf.xlu0
    %v1545 = vpop.trf.xlu0
    %v1546 = vpop.trf.xlu0
    %v1547 = vpop.trf.xlu0
    %v1548 = vpop.trf.xlu0
    %v1549 = vpop.trf.xlu0
    %v1550 = vpop.trf.xlu0
    %v1551 = vpop.trf.xlu0
    %v1552 = vpop.trf.xlu0
    %v1553 = vpop.trf.xlu0
    %v1554 = vpop.trf.xlu0
    %v1555 = vpop.trf.xlu0
    %v1556 = vpop.trf.xlu0
    %v1557 = vpop.trf.xlu0
    %v1558 = vpop.trf.xlu0
    %v1559 = vpop.trf.xlu0
    %v1561 = vsel %vm861, %v1544, 0
    %v1564 = vsel %vm861, %v1545, 0
    %v1567 = vsel %vm861, %v1546, 0
    %v1570 = vsel %vm861, %v1547, 0
    %v1573 = vsel %vm861, %v1548, 0
    %v1576 = vsel %vm861, %v1549, 0
    %v1579 = vsel %vm861, %v1550, 0
    %v1582 = vsel %vm861, %v1551, 0
    %v1584 = vsel %vm886, %v1095, 0
    %1586 = vmatprep.subr.mxu0 0.0
    %1587 = vmatpush1.msra.mxu0 0.0
    %1588 = vmatprep.subr.mxu0 0.0
    %1589 = vmatpush1.msra.mxu0 0.0
    %1590 = vmatprep.subr.mxu0 0.0
    %1591 = vmatpush1.msra.mxu0 0.0
    %1592 = vmatprep.subr.mxu0 0.0
    %1593 = vmatpush1.msra.mxu0 0.0
    %1594 = vmatprep.subr.mxu0 0.0
    %1595 = vmatpush1.msra.mxu0 0.0
    %1596 = vmatprep.subr.mxu0 0.0
    %1597 = vmatpush1.msra.mxu0 0.0
    %1598 = vmatprep.subr.mxu0 0.0
    %1599 = vmatpush1.msra.mxu0 0.0
    %1600 = vmatprep.subr.mxu0 0.0
    %1601 = vmatpush1.msra.mxu0 0.0
    %1602 = vmatprep.subr.mxu0 0.0
    %1603 = vmatpush1.msra.mxu0 0.0
    %1604 = vmatprep.subr.mxu0 0.0
    %1605 = vmatpush1.msra.mxu0 0.0
    %1606 = vmatprep.subr.mxu0 0.0
    %1607 = vmatpush1.msra.mxu0 0.0
    %1608 = vmatprep.subr.mxu0 0.0
    %1609 = vmatpush1.msra.mxu0 0.0
    %1610 = vmatprep.subr.mxu0 0.0
    %1611 = vmatpush1.msra.mxu0 0.0
    %1612 = vmatprep.subr.mxu0 0.0
    %1613 = vmatpush1.msra.mxu0 0.0
    %1614 = vmatprep.subr.mxu0 0.0
    %1615 = vmatpush1.msra.mxu0 0.0
    %1616 = vmatprep.subr.mxu0 0.0
    %1617 = vmatpush1.msra.mxu0 %v1584
    %1618 = vmatprep.subr.mxu0 0.0
    %1619 = vmatpush2.msra.mxu0 0.0
    %1620 = vmatprep.subr.mxu0 0.0
    %1621 = vmatpush2.msra.mxu0 0.0
    %1622 = vmatprep.subr.mxu0 0.0
    %1623 = vmatpush2.msra.mxu0 0.0
    %1624 = vmatprep.subr.mxu0 0.0
    %1625 = vmatpush2.msra.mxu0 0.0
    %1626 = vmatprep.subr.mxu0 0.0
    %1627 = vmatpush2.msra.mxu0 0.0
    %1628 = vmatprep.subr.mxu0 0.0
    %1629 = vmatpush2.msra.mxu0 0.0
    %1630 = vmatprep.subr.mxu0 0.0
    %1631 = vmatpush2.msra.mxu0 0.0
    %1632 = vmatprep.subr.mxu0 0.0
    %1633 = vmatpush2.msra.mxu0 0.0
    %1634 = vmatprep.subr.mxu0 0.0
    %1635 = vmatpush2.msra.mxu0 0.0
    %1636 = vmatprep.subr.mxu0 0.0
    %1637 = vmatpush2.msra.mxu0 0.0
    %1638 = vmatprep.subr.mxu0 0.0
    %1639 = vmatpush2.msra.mxu0 0.0
    %1640 = vmatprep.subr.mxu0 0.0
    %1641 = vmatpush2.msra.mxu0 0.0
    %1642 = vmatprep.subr.mxu0 0.0
    %1643 = vmatpush2.msra.mxu0 0.0
    %1644 = vmatprep.subr.mxu0 0.0
    %1645 = vmatpush2.msra.mxu0 0.0
    %1646 = vmatprep.subr.mxu0 0.0
    %1647 = vmatpush2.msra.mxu0 0.0
    %1648 = vmatprep.subr.mxu0 0.0
    %1649 = vmatpush2.msra.mxu0 0.0
    %1650 = vmatprep.mubr.f32.mxu0 0.0
    %1651 = vmatmul.mubr.f32.gmra.mxu0 %v1561
    %v1652 = vpop.f32.mrf.mxu0
    %v1653 = vadd.f32 0.0, %v1652
    %v1654 = vpop.f32.mrf.mxu0
    %1655 = vmatprep.mubr.f32.mxu0 0.0
    %1656 = vmatmul.mubr.f32.gmra.mxu0 %v1564
    %v1657 = vpop.f32.mrf.mxu0
    %v1658 = vadd.f32 0.0, %v1657
    %v1659 = vpop.f32.mrf.mxu0
    %1660 = vmatprep.mubr.f32.mxu0 0.0
    %1661 = vmatmul.mubr.f32.gmra.mxu0 %v1567
    %v1662 = vpop.f32.mrf.mxu0
    %v1663 = vadd.f32 0.0, %v1662
    %v1664 = vpop.f32.mrf.mxu0
    %1665 = vmatprep.mubr.f32.mxu0 0.0
    %1666 = vmatmul.mubr.f32.gmra.mxu0 %v1570
    %v1667 = vpop.f32.mrf.mxu0
    %v1668 = vadd.f32 0.0, %v1667
    %v1669 = vpop.f32.mrf.mxu0
    %1670 = vmatprep.mubr.f32.mxu0 0.0
    %1671 = vmatmul.mubr.f32.gmra.mxu0 %v1573
    %v1672 = vpop.f32.mrf.mxu0
    %v1673 = vadd.f32 0.0, %v1672
    %v1674 = vpop.f32.mrf.mxu0
    %1675 = vmatprep.mubr.f32.mxu0 0.0
    %1676 = vmatmul.mubr.f32.gmra.mxu0 %v1576
    %v1677 = vpop.f32.mrf.mxu0
    %v1678 = vadd.f32 0.0, %v1677
    %v1679 = vpop.f32.mrf.mxu0
    %1680 = vmatprep.mubr.f32.mxu0 0.0
    %1681 = vmatmul.mubr.f32.gmra.mxu0 %v1579
    %v1682 = vpop.f32.mrf.mxu0
    %v1683 = vadd.f32 0.0, %v1682
    %v1684 = vpop.f32.mrf.mxu0
    %1685 = vmatprep.mubr.f32.mxu0 0.0
    %1686 = vmatmul.mubr.f32.gmra.mxu0 %v1582
    %v1687 = vpop.f32.mrf.mxu0
    %v1688 = vadd.f32 0.0, %v1687
    %v1689 = vpop.f32.mrf.mxu0
    %1690 = vdwg.mxu0
    %vm1691 = vcmp.gt.f32.partialorder %v312, 0.0
    %vm1692 = vcmp.gt.f32.partialorder %v317, 0.0
    %vm1693 = vcmp.gt.f32.partialorder %v322, 0.0
    %vm1694 = vcmp.gt.f32.partialorder %v327, 0.0
    %vm1695 = vcmp.gt.f32.partialorder %v332, 0.0
    %vm1696 = vcmp.gt.f32.partialorder %v337, 0.0
    %vm1697 = vcmp.gt.f32.partialorder %v342, 0.0
    %vm1698 = vcmp.gt.f32.partialorder %v347, 0.0
    %v1699 = vsel %vm1691, %v1653, 0.0
    %v1700 = vsel %vm1692, %v1658, 0.0
    %v1701 = vsel %vm1693, %v1663, 0.0
    %v1702 = vsel %vm1694, %v1668, 0.0
    %v1703 = vsel %vm1695, %v1673, 0.0
    %v1704 = vsel %vm1696, %v1678, 0.0
    %v1705 = vsel %vm1697, %v1683, 0.0
    %v1706 = vsel %vm1698, %v1688, 0.0
    %1707 = vxpose.xlu0.b32.start [1/16] %v142, 128
    %1708 = vxpose.xlu0.b32.cont [2/16] %v143, 128
    %1709 = vxpose.xlu0.b32.cont [3/16] %v144, 128
    %1710 = vxpose.xlu0.b32.cont [4/16] %v145, 128
    %1711 = vxpose.xlu0.b32.cont [5/16] %v146, 128
    %1712 = vxpose.xlu0.b32.cont [6/16] %v147, 128
    %1713 = vxpose.xlu0.b32.cont [7/16] %v148, 128
    %1714 = vxpose.xlu0.b32.cont [8/16] %v149, 128
    %1715 = vxpose.xlu0.b32.cont [9/16] 0.0, 128
    %1716 = vxpose.xlu0.b32.cont [10/16] 0.0, 128
    %1717 = vxpose.xlu0.b32.cont [11/16] 0.0, 128
    %1718 = vxpose.xlu0.b32.cont [12/16] 0.0, 128
    %1719 = vxpose.xlu0.b32.cont [13/16] 0.0, 128
    %1720 = vxpose.xlu0.b32.cont [14/16] 0.0, 128
    %1721 = vxpose.xlu0.b32.cont [15/16] 0.0, 128
    %1722 = vxpose.xlu0.b32.end [16/16] 0.0, 128
    %v1723 = vpop.trf.xlu0
    %v1724 = vpop.trf.xlu0
    %v1725 = vpop.trf.xlu0
    %v1726 = vpop.trf.xlu0
    %v1727 = vpop.trf.xlu0
    %v1728 = vpop.trf.xlu0
    %v1729 = vpop.trf.xlu0
    %v1730 = vpop.trf.xlu0
    %v1731 = vpop.trf.xlu0
    %v1732 = vpop.trf.xlu0
    %v1733 = vpop.trf.xlu0
    %v1734 = vpop.trf.xlu0
    %v1735 = vpop.trf.xlu0
    %v1736 = vpop.trf.xlu0
    %v1737 = vpop.trf.xlu0
    %v1738 = vpop.trf.xlu0
    %v1740 = vsel %vm358, %v1723, 0
    %1742 = vmatprep.subr.mxu0 0.0
    %1743 = vmatpush1.msra.mxu0 0.0
    %1744 = vmatprep.subr.mxu0 0.0
    %1745 = vmatpush1.msra.mxu0 0.0
    %1746 = vmatprep.subr.mxu0 0.0
    %1747 = vmatpush1.msra.mxu0 0.0
    %1748 = vmatprep.subr.mxu0 0.0
    %1749 = vmatpush1.msra.mxu0 0.0
    %1750 = vmatprep.subr.mxu0 0.0
    %1751 = vmatpush1.msra.mxu0 0.0
    %1752 = vmatprep.subr.mxu0 0.0
    %1753 = vmatpush1.msra.mxu0 0.0
    %1754 = vmatprep.subr.mxu0 0.0
    %1755 = vmatpush1.msra.mxu0 0.0
    %1756 = vmatprep.subr.mxu0 0.0
    %1757 = vmatpush1.msra.mxu0 0.0
    %1758 = vmatprep.subr.mxu0 0.0
    %1759 = vmatpush1.msra.mxu0 %v1706
    %1760 = vmatprep.subr.mxu0 0.0
    %1761 = vmatpush1.msra.mxu0 %v1705
    %1762 = vmatprep.subr.mxu0 0.0
    %1763 = vmatpush1.msra.mxu0 %v1704
    %1764 = vmatprep.subr.mxu0 0.0
    %1765 = vmatpush1.msra.mxu0 %v1703
    %1766 = vmatprep.subr.mxu0 0.0
    %1767 = vmatpush1.msra.mxu0 %v1702
    %1768 = vmatprep.subr.mxu0 0.0
    %1769 = vmatpush1.msra.mxu0 %v1701
    %1770 = vmatprep.subr.mxu0 0.0
    %1771 = vmatpush1.msra.mxu0 %v1700
    %1772 = vmatprep.subr.mxu0 0.0
    %1773 = vmatpush1.msra.mxu0 %v1699
    %1774 = vmatprep.subr.mxu0 0.0
    %1775 = vmatpush2.msra.mxu0 0.0
    %1776 = vmatprep.subr.mxu0 0.0
    %1777 = vmatpush2.msra.mxu0 0.0
    %1778 = vmatprep.subr.mxu0 0.0
    %1779 = vmatpush2.msra.mxu0 0.0
    %1780 = vmatprep.subr.mxu0 0.0
    %1781 = vmatpush2.msra.mxu0 0.0
    %1782 = vmatprep.subr.mxu0 0.0
    %1783 = vmatpush2.msra.mxu0 0.0
    %1784 = vmatprep.subr.mxu0 0.0
    %1785 = vmatpush2.msra.mxu0 0.0
    %1786 = vmatprep.subr.mxu0 0.0
    %1787 = vmatpush2.msra.mxu0 0.0
    %1788 = vmatprep.subr.mxu0 0.0
    %1789 = vmatpush2.msra.mxu0 0.0
    %1790 = vmatprep.subr.mxu0 0.0
    %1791 = vmatpush2.msra.mxu0 0.0
    %1792 = vmatprep.subr.mxu0 0.0
    %1793 = vmatpush2.msra.mxu0 0.0
    %1794 = vmatprep.subr.mxu0 0.0
    %1795 = vmatpush2.msra.mxu0 0.0
    %1796 = vmatprep.subr.mxu0 0.0
    %1797 = vmatpush2.msra.mxu0 0.0
    %1798 = vmatprep.subr.mxu0 0.0
    %1799 = vmatpush2.msra.mxu0 0.0
    %1800 = vmatprep.subr.mxu0 0.0
    %1801 = vmatpush2.msra.mxu0 0.0
    %1802 = vmatprep.subr.mxu0 0.0
    %1803 = vmatpush2.msra.mxu0 0.0
    %1804 = vmatprep.subr.mxu0 0.0
    %1805 = vmatpush2.msra.mxu0 0.0
    %1806 = vmatprep.mubr.f32.mxu0 0.0
    %1807 = vmatmul.mubr.f32.gmra.mxu0 %v1740
    %v1808 = vpop.f32.mrf.mxu0
    %v1809 = vadd.f32 0.0, %v1808
    %v1810 = vpop.f32.mrf.mxu0
    %1811 = vdwg.mxu0
    %v1812 = vsel %vm51, %v1699, 0.0
    %v1813 = vsel %vm51, %v1700, 0.0
    %v1814 = vadd.f32 %v1812, %v1813
    %v1815 = vsel %vm51, %v1701, 0.0
    %v1816 = vadd.f32 %v1814, %v1815
    %v1817 = vsel %vm51, %v1702, 0.0
    %v1818 = vadd.f32 %v1816, %v1817
    %v1819 = vsel %vm51, %v1703, 0.0
    %v1820 = vadd.f32 %v1818, %v1819
    %v1821 = vsel %vm51, %v1704, 0.0
    %v1822 = vadd.f32 %v1820, %v1821
    %v1823 = vsel %vm51, %v1705, 0.0
    %v1824 = vadd.f32 %v1822, %v1823
    %v1825 = vsel %vm51, %v1706, 0.0
    %v1826 = vadd.f32 %v1824, %v1825
    %v1827 = vrot.slane %v1826, 4
    %v1828 = vadd.f32 %v1826, %v1827
    %v1829 = vrot.slane %v1828, 2
    %v1830 = vadd.f32 %v1828, %v1829
    %v1831 = vrot.slane %v1830, 1
    %v1832 = vadd.f32 %v1830, %v1831
    %v1833 = vmul.f32 %v1809, 0.001
    %v1834 = vsub.f32 %v170, %v1833
    %1835 = vst.msk [vmem:[#allocation2] sm:$0xff] %vm51, %v1834
    %v1836 = vmul.f32 %v1832, 0.001
    %v1837 = vsub.f32 %v171, %v1836
    %1838 = vst.msk [vmem:[#allocation3] sm:$0x1] %vm54, %v1837
    %v1839 = vmul.f32 %v1231, 0.001
    %v1840 = vmul.f32 %v1233, 0.001
    %v1841 = vmul.f32 %v1320, 0.001
    %v1842 = vmul.f32 %v1322, 0.001
    %v1843 = vmul.f32 %v1409, 0.001
    %v1844 = vmul.f32 %v1411, 0.001
    %v1845 = vmul.f32 %v1498, 0.001
    %v1846 = vmul.f32 %v1500, 0.001
    %v1847 = vmul.f32 %v1237, 0.001
    %v1848 = vmul.f32 %v1239, 0.001
    %v1849 = vmul.f32 %v1326, 0.001
    %v1850 = vmul.f32 %v1328, 0.001
    %v1851 = vmul.f32 %v1415, 0.001
    %v1852 = vmul.f32 %v1417, 0.001
    %v1853 = vmul.f32 %v1504, 0.001
    %v1854 = vmul.f32 %v1506, 0.001
    %v1855 = vmul.f32 %v1243, 0.001
    %v1856 = vmul.f32 %v1245, 0.001
    %v1857 = vmul.f32 %v1332, 0.001
    %v1858 = vmul.f32 %v1334, 0.001
    %v1859 = vmul.f32 %v1421, 0.001
    %v1860 = vmul.f32 %v1423, 0.001
    %v1861 = vmul.f32 %v1510, 0.001
    %v1862 = vmul.f32 %v1512, 0.001
    %v1863 = vmul.f32 %v1249, 0.001
    %v1864 = vmul.f32 %v1251, 0.001
    %v1865 = vmul.f32 %v1338, 0.001
    %v1866 = vmul.f32 %v1340, 0.001
    %v1867 = vmul.f32 %v1427, 0.001
    %v1868 = vmul.f32 %v1429, 0.001
    %v1869 = vmul.f32 %v1516, 0.001
    %v1870 = vmul.f32 %v1518, 0.001
    %v1871 = vsub.f32 %v172, %v1839
    %v1872 = vsub.f32 %v173, %v1840
    %v1873 = vsub.f32 %v174, %v1841
    %v1874 = vsub.f32 %v175, %v1842
    %v1875 = vsub.f32 %v176, %v1843
    %v1876 = vsub.f32 %v177, %v1844
    %v1877 = vsub.f32 %v178, %v1845
    %v1878 = vsub.f32 %v179, %v1846
    %v1879 = vsub.f32 %v180, %v1847
    %v1880 = vsub.f32 %v181, %v1848
    %v1881 = vsub.f32 %v182, %v1849
    %v1882 = vsub.f32 %v183, %v1850
    %v1883 = vsub.f32 %v184, %v1851
    %v1884 = vsub.f32 %v185, %v1852
    %v1885 = vsub.f32 %v186, %v1853
    %v1886 = vsub.f32 %v187, %v1854
    %v1887 = vsub.f32 %v188, %v1855
    %v1888 = vsub.f32 %v189, %v1856
    %v1889 = vsub.f32 %v190, %v1857
    %v1890 = vsub.f32 %v191, %v1858
    %v1891 = vsub.f32 %v192, %v1859
    %v1892 = vsub.f32 %v193, %v1860
    %v1893 = vsub.f32 %v194, %v1861
    %v1894 = vsub.f32 %v195, %v1862
    %v1895 = vsub.f32 %v196, %v1863
    %v1896 = vsub.f32 %v197, %v1864
    %v1897 = vsub.f32 %v198, %v1865
    %v1898 = vsub.f32 %v199, %v1866
    %v1899 = vsub.f32 %v200, %v1867
    %v1900 = vsub.f32 %v201, %v1868
    %v1901 = vsub.f32 %v202, %v1869
    %v1902 = vsub.f32 %v203, %v1870
    %1903 = vst [vmem:[#allocation4] sm:$0xff] %v1871
    %1904 = vst [vmem:[#allocation4 + $0x8] sm:$0xff] %v1872
    %1905 = vst [vmem:[#allocation4 + $0x10] sm:$0xff] %v1873
    %1906 = vst [vmem:[#allocation4 + $0x18] sm:$0xff] %v1874
    %1907 = vst [vmem:[#allocation4 + $0x20] sm:$0xff] %v1875
    %1908 = vst [vmem:[#allocation4 + $0x28] sm:$0xff] %v1876
    %1909 = vst [vmem:[#allocation4 + $0x30] sm:$0xff] %v1877
    %1910 = vst [vmem:[#allocation4 + $0x38] sm:$0xff] %v1878
    %1911 = vst [vmem:[#allocation4 + $0x40] sm:$0xff] %v1879
    %1912 = vst [vmem:[#allocation4 + $0x48] sm:$0xff] %v1880
    %1913 = vst [vmem:[#allocation4 + $0x50] sm:$0xff] %v1881
    %1914 = vst [vmem:[#allocation4 + $0x58] sm:$0xff] %v1882
    %1915 = vst [vmem:[#allocation4 + $0x60] sm:$0xff] %v1883
    %1916 = vst [vmem:[#allocation4 + $0x68] sm:$0xff] %v1884
    %1917 = vst [vmem:[#allocation4 + $0x70] sm:$0xff] %v1885
    %1918 = vst [vmem:[#allocation4 + $0x78] sm:$0xff] %v1886
    %1919 = vst [vmem:[#allocation4 + $0x80] sm:$0xff] %v1887
    %1920 = vst [vmem:[#allocation4 + $0x88] sm:$0xff] %v1888
    %1921 = vst [vmem:[#allocation4 + $0x90] sm:$0xff] %v1889
    %1922 = vst [vmem:[#allocation4 + $0x98] sm:$0xff] %v1890
    %1923 = vst [vmem:[#allocation4 + $0xa0] sm:$0xff] %v1891
    %1924 = vst [vmem:[#allocation4 + $0xa8] sm:$0xff] %v1892
    %1925 = vst [vmem:[#allocation4 + $0xb0] sm:$0xff] %v1893
    %1926 = vst [vmem:[#allocation4 + $0xb8] sm:$0xff] %v1894
    %1927 = vst [vmem:[#allocation4 + $0xc0] sm:$0xff] %v1895
    %1928 = vst [vmem:[#allocation4 + $0xc8] sm:$0xff] %v1896
    %1929 = vst [vmem:[#allocation4 + $0xd0] sm:$0xff] %v1897
    %1930 = vst [vmem:[#allocation4 + $0xd8] sm:$0xff] %v1898
    %1931 = vst [vmem:[#allocation4 + $0xe0] sm:$0xff] %v1899
    %1932 = vst [vmem:[#allocation4 + $0xe8] sm:$0xff] %v1900
    %1933 = vst [vmem:[#allocation4 + $0xf0] sm:$0xff] %v1901
    %1934 = vst [vmem:[#allocation4 + $0xf8] sm:$0xff] %v1902
    %v1935 = vmul.f32 %v1527, 0.001
    %v1936 = vsub.f32 %v204, %v1935
    %1937 = vst.msk [vmem:[#allocation5] sm:$0x1] %vm54, %v1936
    %v1938 = vmul.f32 %v957, 0.001
    %v1939 = vmul.f32 %v962, 0.001
    %v1940 = vmul.f32 %v967, 0.001
    %v1941 = vmul.f32 %v972, 0.001
    %v1942 = vmul.f32 %v977, 0.001
    %v1943 = vmul.f32 %v982, 0.001
    %v1944 = vmul.f32 %v987, 0.001
    %v1945 = vmul.f32 %v992, 0.001
    %v1946 = vsub.f32 %v205, %v1938
    %v1947 = vsub.f32 %v206, %v1939
    %v1948 = vsub.f32 %v207, %v1940
    %v1949 = vsub.f32 %v208, %v1941
    %v1950 = vsub.f32 %v209, %v1942
    %v1951 = vsub.f32 %v210, %v1943
    %v1952 = vsub.f32 %v211, %v1944
    %v1953 = vsub.f32 %v212, %v1945
    %1954 = vst.msk [vmem:[#allocation6] sm:$0xff] %vm130, %v1946
    %1955 = vst.msk [vmem:[#allocation6 + $0x8] sm:$0xff] %vm130, %v1947
    %1956 = vst.msk [vmem:[#allocation6 + $0x10] sm:$0xff] %vm130, %v1948
    %1957 = vst.msk [vmem:[#allocation6 + $0x18] sm:$0xff] %vm130, %v1949
    %1958 = vst.msk [vmem:[#allocation6 + $0x20] sm:$0xff] %vm130, %v1950
    %1959 = vst.msk [vmem:[#allocation6 + $0x28] sm:$0xff] %vm130, %v1951
    %1960 = vst.msk [vmem:[#allocation6 + $0x30] sm:$0xff] %vm130, %v1952
    %1961 = vst.msk [vmem:[#allocation6 + $0x38] sm:$0xff] %vm130, %v1953
    %v1962 = vmul.f32 %v1001, 0.001
    %v1963 = vsub.f32 %v213, %v1962
    %1964 = vst.msk [vmem:[#allocation7] sm:$0x1] %vm140, %v1963
    %v1965 = vld [vmem:[#allocation2] sm:$0xff]
    %v1966 = vld [vmem:[#allocation3] sm:$0x1]
    %v1967 = vld [vmem:[#allocation4] sm:$0xff]
    %v1968 = vld [vmem:[#allocation4 + $0x8] sm:$0xff]
    %v1969 = vld [vmem:[#allocation4 + $0x10] sm:$0xff]
    %v1970 = vld [vmem:[#allocation4 + $0x18] sm:$0xff]
    %v1971 = vld [vmem:[#allocation4 + $0x20] sm:$0xff]
    %v1972 = vld [vmem:[#allocation4 + $0x28] sm:$0xff]
    %v1973 = vld [vmem:[#allocation4 + $0x30] sm:$0xff]
    %v1974 = vld [vmem:[#allocation4 + $0x38] sm:$0xff]
    %v1975 = vld [vmem:[#allocation4 + $0x40] sm:$0xff]
    %v1976 = vld [vmem:[#allocation4 + $0x48] sm:$0xff]
    %v1977 = vld [vmem:[#allocation4 + $0x50] sm:$0xff]
    %v1978 = vld [vmem:[#allocation4 + $0x58] sm:$0xff]
    %v1979 = vld [vmem:[#allocation4 + $0x60] sm:$0xff]
    %v1980 = vld [vmem:[#allocation4 + $0x68] sm:$0xff]
    %v1981 = vld [vmem:[#allocation4 + $0x70] sm:$0xff]
    %v1982 = vld [vmem:[#allocation4 + $0x78] sm:$0xff]
    %v1983 = vld [vmem:[#allocation4 + $0x80] sm:$0xff]
    %v1984 = vld [vmem:[#allocation4 + $0x88] sm:$0xff]
    %v1985 = vld [vmem:[#allocation4 + $0x90] sm:$0xff]
    %v1986 = vld [vmem:[#allocation4 + $0x98] sm:$0xff]
    %v1987 = vld [vmem:[#allocation4 + $0xa0] sm:$0xff]
    %v1988 = vld [vmem:[#allocation4 + $0xa8] sm:$0xff]
    %v1989 = vld [vmem:[#allocation4 + $0xb0] sm:$0xff]
    %v1990 = vld [vmem:[#allocation4 + $0xb8] sm:$0xff]
    %v1991 = vld [vmem:[#allocation4 + $0xc0] sm:$0xff]
    %v1992 = vld [vmem:[#allocation4 + $0xc8] sm:$0xff]
    %v1993 = vld [vmem:[#allocation4 + $0xd0] sm:$0xff]
    %v1994 = vld [vmem:[#allocation4 + $0xd8] sm:$0xff]
    %v1995 = vld [vmem:[#allocation4 + $0xe0] sm:$0xff]
    %v1996 = vld [vmem:[#allocation4 + $0xe8] sm:$0xff]
    %v1997 = vld [vmem:[#allocation4 + $0xf0] sm:$0xff]
    %v1998 = vld [vmem:[#allocation4 + $0xf8] sm:$0xff]
    %v1999 = vld [vmem:[#allocation5] sm:$0x1]
    %v2000 = vld [vmem:[#allocation6] sm:$0xff]
    %v2001 = vld [vmem:[#allocation6 + $0x8] sm:$0xff]
    %v2002 = vld [vmem:[#allocation6 + $0x10] sm:$0xff]
    %v2003 = vld [vmem:[#allocation6 + $0x18] sm:$0xff]
    %v2004 = vld [vmem:[#allocation6 + $0x20] sm:$0xff]
    %v2005 = vld [vmem:[#allocation6 + $0x28] sm:$0xff]
    %v2006 = vld [vmem:[#allocation6 + $0x30] sm:$0xff]
    %v2007 = vld [vmem:[#allocation6 + $0x38] sm:$0xff]
    %v2008 = vld [vmem:[#allocation7] sm:$0x1]
    %v2010 = vlaneseq
    %v2011 = vshrl.u32 %v2010, 7
    %v2012 = vsub.s32 0, %v2011
    %v2013 = vrot.slane %v1966, %v2012
    %2015 = vmatprep.subr.mxu0 0.0
    %2016 = vmatpush1.msra.mxu0 0.0
    %2017 = vmatprep.subr.mxu0 0.0
    %2018 = vmatpush1.msra.mxu0 0.0
    %2019 = vmatprep.subr.mxu0 0.0
    %2020 = vmatpush1.msra.mxu0 0.0
    %2021 = vmatprep.subr.mxu0 0.0
    %2022 = vmatpush1.msra.mxu0 0.0
    %2023 = vmatprep.subr.mxu0 0.0
    %2024 = vmatpush1.msra.mxu0 0.0
    %2025 = vmatprep.subr.mxu0 0.0
    %2026 = vmatpush1.msra.mxu0 0.0
    %2027 = vmatprep.subr.mxu0 0.0
    %2028 = vmatpush1.msra.mxu0 0.0
    %2029 = vmatprep.subr.mxu0 0.0
    %2030 = vmatpush1.msra.mxu0 0.0
    %2031 = vmatprep.subr.mxu0 0.0
    %2032 = vmatpush1.msra.mxu0 0.0
    %2033 = vmatprep.subr.mxu0 0.0
    %2034 = vmatpush1.msra.mxu0 0.0
    %2035 = vmatprep.subr.mxu0 0.0
    %2036 = vmatpush1.msra.mxu0 0.0
    %2037 = vmatprep.subr.mxu0 0.0
    %2038 = vmatpush1.msra.mxu0 0.0
    %2039 = vmatprep.subr.mxu0 0.0
    %2040 = vmatpush1.msra.mxu0 0.0
    %2041 = vmatprep.subr.mxu0 0.0
    %2042 = vmatpush1.msra.mxu0 0.0
    %2043 = vmatprep.subr.mxu0 0.0
    %2044 = vmatpush1.msra.mxu0 0.0
    %2045 = vmatprep.subr.mxu0 0.0
    %2046 = vmatpush1.msra.mxu0 %v1965
    %2047 = vmatprep.subr.mxu0 0.0
    %2048 = vmatpush2.msra.mxu0 0.0
    %2049 = vmatprep.subr.mxu0 0.0
    %2050 = vmatpush2.msra.mxu0 0.0
    %2051 = vmatprep.subr.mxu0 0.0
    %2052 = vmatpush2.msra.mxu0 0.0
    %2053 = vmatprep.subr.mxu0 0.0
    %2054 = vmatpush2.msra.mxu0 0.0
    %2055 = vmatprep.subr.mxu0 0.0
    %2056 = vmatpush2.msra.mxu0 0.0
    %2057 = vmatprep.subr.mxu0 0.0
    %2058 = vmatpush2.msra.mxu0 0.0
    %2059 = vmatprep.subr.mxu0 0.0
    %2060 = vmatpush2.msra.mxu0 0.0
    %2061 = vmatprep.subr.mxu0 0.0
    %2062 = vmatpush2.msra.mxu0 0.0
    %2063 = vmatprep.subr.mxu0 0.0
    %2064 = vmatpush2.msra.mxu0 0.0
    %2065 = vmatprep.subr.mxu0 0.0
    %2066 = vmatpush2.msra.mxu0 0.0
    %2067 = vmatprep.subr.mxu0 0.0
    %2068 = vmatpush2.msra.mxu0 0.0
    %2069 = vmatprep.subr.mxu0 0.0
    %2070 = vmatpush2.msra.mxu0 0.0
    %2071 = vmatprep.subr.mxu0 0.0
    %2072 = vmatpush2.msra.mxu0 0.0
    %2073 = vmatprep.subr.mxu0 0.0
    %2074 = vmatpush2.msra.mxu0 0.0
    %2075 = vmatprep.subr.mxu0 0.0
    %2076 = vmatpush2.msra.mxu0 0.0
    %2077 = vmatprep.subr.mxu0 0.0
    %2078 = vmatpush2.msra.mxu0 0.0
    %2079 = vmatprep.mubr.f32.mxu0 0.0
    %2080 = vmatmul.mubr.f32.gmra.mxu0 %v222
    %v2081 = vpop.f32.mrf.mxu0
    %v2082 = vadd.f32 %v2013, %v2081
    %v2083 = vpop.f32.mrf.mxu0
    %2084 = vmatprep.mubr.f32.mxu0 0.0
    %2085 = vmatmul.mubr.f32.gmra.mxu0 %v225
    %v2086 = vpop.f32.mrf.mxu0
    %v2087 = vadd.f32 %v2013, %v2086
    %v2088 = vpop.f32.mrf.mxu0
    %2089 = vmatprep.mubr.f32.mxu0 0.0
    %2090 = vmatmul.mubr.f32.gmra.mxu0 %v228
    %v2091 = vpop.f32.mrf.mxu0
    %v2092 = vadd.f32 %v2013, %v2091
    %v2093 = vpop.f32.mrf.mxu0
    %2094 = vmatprep.mubr.f32.mxu0 0.0
    %2095 = vmatmul.mubr.f32.gmra.mxu0 %v231
    %v2096 = vpop.f32.mrf.mxu0
    %v2097 = vadd.f32 %v2013, %v2096
    %v2098 = vpop.f32.mrf.mxu0
    %2099 = vmatprep.mubr.f32.mxu0 0.0
    %2100 = vmatmul.mubr.f32.gmra.mxu0 %v234
    %v2101 = vpop.f32.mrf.mxu0
    %v2102 = vadd.f32 %v2013, %v2101
    %v2103 = vpop.f32.mrf.mxu0
    %2104 = vmatprep.mubr.f32.mxu0 0.0
    %2105 = vmatmul.mubr.f32.gmra.mxu0 %v237
    %v2106 = vpop.f32.mrf.mxu0
    %v2107 = vadd.f32 %v2013, %v2106
    %v2108 = vpop.f32.mrf.mxu0
    %2109 = vmatprep.mubr.f32.mxu0 0.0
    %2110 = vmatmul.mubr.f32.gmra.mxu0 %v240
    %v2111 = vpop.f32.mrf.mxu0
    %v2112 = vadd.f32 %v2013, %v2111
    %v2113 = vpop.f32.mrf.mxu0
    %2114 = vmatprep.mubr.f32.mxu0 0.0
    %2115 = vmatmul.mubr.f32.gmra.mxu0 %v243
    %v2116 = vpop.f32.mrf.mxu0
    %v2117 = vadd.f32 %v2013, %v2116
    %v2118 = vpop.f32.mrf.mxu0
    %2119 = vdwg.mxu0
    %v2120 = vmax.f32 %v2082, 0.0
    %v2121 = vmax.f32 %v2087, 0.0
    %v2122 = vmax.f32 %v2092, 0.0
    %v2123 = vmax.f32 %v2097, 0.0
    %v2124 = vmax.f32 %v2102, 0.0
    %v2125 = vmax.f32 %v2107, 0.0
    %v2126 = vmax.f32 %v2112, 0.0
    %v2127 = vmax.f32 %v2117, 0.0
    %2128 = vmatprep.subr.mxu0 0.0
    %2129 = vmatpush1.msra.mxu0 0.0
    %2130 = vmatprep.subr.mxu0 0.0
    %2131 = vmatpush1.msra.mxu0 0.0
    %2132 = vmatprep.subr.mxu0 0.0
    %2133 = vmatpush1.msra.mxu0 0.0
    %2134 = vmatprep.subr.mxu0 0.0
    %2135 = vmatpush1.msra.mxu0 0.0
    %2136 = vmatprep.subr.mxu0 0.0
    %2137 = vmatpush1.msra.mxu0 0.0
    %2138 = vmatprep.subr.mxu0 0.0
    %2139 = vmatpush1.msra.mxu0 0.0
    %2140 = vmatprep.subr.mxu0 0.0
    %2141 = vmatpush1.msra.mxu0 0.0
    %2142 = vmatprep.subr.mxu0 0.0
    %2143 = vmatpush1.msra.mxu0 0.0
    %2144 = vmatprep.subr.mxu0 0.0
    %2145 = vmatpush1.msra.mxu0 %v2127
    %2146 = vmatprep.subr.mxu0 0.0
    %2147 = vmatpush1.msra.mxu0 %v2126
    %2148 = vmatprep.subr.mxu0 0.0
    %2149 = vmatpush1.msra.mxu0 %v2125
    %2150 = vmatprep.subr.mxu0 0.0
    %2151 = vmatpush1.msra.mxu0 %v2124
    %2152 = vmatprep.subr.mxu0 0.0
    %2153 = vmatpush1.msra.mxu0 %v2123
    %2154 = vmatprep.subr.mxu0 0.0
    %2155 = vmatpush1.msra.mxu0 %v2122
    %2156 = vmatprep.subr.mxu0 0.0
    %2157 = vmatpush1.msra.mxu0 %v2121
    %2158 = vmatprep.subr.mxu0 0.0
    %2159 = vmatpush1.msra.mxu0 %v2120
    %2160 = vmatprep.subr.mxu0 0.0
    %2161 = vmatpush2.msra.mxu0 0.0
    %2162 = vmatprep.subr.mxu0 0.0
    %2163 = vmatpush2.msra.mxu0 0.0
    %2164 = vmatprep.subr.mxu0 0.0
    %2165 = vmatpush2.msra.mxu0 0.0
    %2166 = vmatprep.subr.mxu0 0.0
    %2167 = vmatpush2.msra.mxu0 0.0
    %2168 = vmatprep.subr.mxu0 0.0
    %2169 = vmatpush2.msra.mxu0 0.0
    %2170 = vmatprep.subr.mxu0 0.0
    %2171 = vmatpush2.msra.mxu0 0.0
    %2172 = vmatprep.subr.mxu0 0.0
    %2173 = vmatpush2.msra.mxu0 0.0
    %2174 = vmatprep.subr.mxu0 0.0
    %2175 = vmatpush2.msra.mxu0 0.0
    %2176 = vmatprep.subr.mxu0 0.0
    %2177 = vmatpush2.msra.mxu0 0.0
    %2178 = vmatprep.subr.mxu0 0.0
    %2179 = vmatpush2.msra.mxu0 0.0
    %2180 = vmatprep.subr.mxu0 0.0
    %2181 = vmatpush2.msra.mxu0 0.0
    %2182 = vmatprep.subr.mxu0 0.0
    %2183 = vmatpush2.msra.mxu0 0.0
    %2184 = vmatprep.subr.mxu0 0.0
    %2185 = vmatpush2.msra.mxu0 0.0
    %2186 = vmatprep.subr.mxu0 0.0
    %2187 = vmatpush2.msra.mxu0 0.0
    %2188 = vmatprep.subr.mxu0 0.0
    %2189 = vmatpush2.msra.mxu0 0.0
    %2190 = vmatprep.subr.mxu0 0.0
    %2191 = vmatpush2.msra.mxu0 0.0
    %2192 = vmatprep.mubr.f32.mxu0 0.0
    %2193 = vmatmul.mubr.f32.gmra.mxu0 %v360
    %v2194 = vpop.f32.mrf.mxu0
    %v2195 = vadd.f32 0.0, %v2194
    %v2196 = vpop.f32.mrf.mxu0
    %2197 = vdwg.mxu0
    %v2199 = vlaneseq
    %v2200 = vshrl.u32 %v2199, 7
    %v2201 = vsub.s32 0, %v2200
    %v2202 = vrot.slane %v1999, %v2201
    %2204 = vmatprep.subr.mxu0 0.0
    %2205 = vmatpush1.xpose.msra.mxu0 0.0
    %2206 = vmatprep.subr.mxu0 0.0
    %2207 = vmatpush1.xpose.msra.mxu0 0.0
    %2208 = vmatprep.subr.mxu0 0.0
    %2209 = vmatpush1.xpose.msra.mxu0 0.0
    %2210 = vmatprep.subr.mxu0 0.0
    %2211 = vmatpush1.xpose.msra.mxu0 0.0
    %2212 = vmatprep.subr.mxu0 0.0
    %2213 = vmatpush1.xpose.msra.mxu0 0.0
    %2214 = vmatprep.subr.mxu0 0.0
    %2215 = vmatpush1.xpose.msra.mxu0 0.0
    %2216 = vmatprep.subr.mxu0 0.0
    %2217 = vmatpush1.xpose.msra.mxu0 0.0
    %2218 = vmatprep.subr.mxu0 0.0
    %2219 = vmatpush1.xpose.msra.mxu0 0.0
    %2220 = vmatprep.subr.mxu0 0.0
    %2221 = vmatpush1.xpose.msra.mxu0 0.0
    %2222 = vmatprep.subr.mxu0 0.0
    %2223 = vmatpush1.xpose.msra.mxu0 0.0
    %2224 = vmatprep.subr.mxu0 0.0
    %2225 = vmatpush1.xpose.msra.mxu0 0.0
    %2226 = vmatprep.subr.mxu0 0.0
    %2227 = vmatpush1.xpose.msra.mxu0 0.0
    %2228 = vmatprep.subr.mxu0 %v1992
    %2229 = vmatpush1.xpose.msra.mxu0 %v1991
    %2230 = vmatprep.subr.mxu0 %v1984
    %2231 = vmatpush1.xpose.msra.mxu0 %v1983
    %2232 = vmatprep.subr.mxu0 %v1976
    %2233 = vmatpush1.xpose.msra.mxu0 %v1975
    %2234 = vmatprep.subr.mxu0 %v1968
    %2235 = vmatpush1.xpose.msra.mxu0 %v1967
    %2236 = vmatprep.subr.mxu0 0.0
    %2237 = vmatpush2.xpose.msra.mxu0 0.0
    %2238 = vmatprep.subr.mxu0 0.0
    %2239 = vmatpush2.xpose.msra.mxu0 0.0
    %2240 = vmatprep.subr.mxu0 0.0
    %2241 = vmatpush2.xpose.msra.mxu0 0.0
    %2242 = vmatprep.subr.mxu0 0.0
    %2243 = vmatpush2.xpose.msra.mxu0 0.0
    %2244 = vmatprep.subr.mxu0 0.0
    %2245 = vmatpush2.xpose.msra.mxu0 0.0
    %2246 = vmatprep.subr.mxu0 0.0
    %2247 = vmatpush2.xpose.msra.mxu0 0.0
    %2248 = vmatprep.subr.mxu0 0.0
    %2249 = vmatpush2.xpose.msra.mxu0 0.0
    %2250 = vmatprep.subr.mxu0 0.0
    %2251 = vmatpush2.xpose.msra.mxu0 0.0
    %2252 = vmatprep.subr.mxu0 0.0
    %2253 = vmatpush2.xpose.msra.mxu0 0.0
    %2254 = vmatprep.subr.mxu0 0.0
    %2255 = vmatpush2.xpose.msra.mxu0 0.0
    %2256 = vmatprep.subr.mxu0 0.0
    %2257 = vmatpush2.xpose.msra.mxu0 0.0
    %2258 = vmatprep.subr.mxu0 0.0
    %2259 = vmatpush2.xpose.msra.mxu0 0.0
    %2260 = vmatprep.subr.mxu0 0.0
    %2261 = vmatpush2.xpose.msra.mxu0 0.0
    %2262 = vmatprep.subr.mxu0 0.0
    %2263 = vmatpush2.xpose.msra.mxu0 0.0
    %2264 = vmatprep.subr.mxu0 0.0
    %2265 = vmatpush2.xpose.msra.mxu0 0.0
    %2266 = vmatprep.subr.mxu0 0.0
    %2267 = vmatpush2.xpose.msra.mxu0 0.0
    %2268 = vmatprep.mubr.f32.mxu0 %v442
    %2269 = vmatmul.mubr.f32.gmra.mxu0 %v151
    %v2270 = vpop.f32.mrf.mxu0
    %v2271 = vadd.f32 %v2202, %v2270
    %v2272 = vpop.f32.mrf.mxu0
    %2273 = vdwg.mxu0
    %2274 = vmatprep.subr.mxu0 0.0
    %2275 = vmatpush1.xpose.msra.mxu0 0.0
    %2276 = vmatprep.subr.mxu0 0.0
    %2277 = vmatpush1.xpose.msra.mxu0 0.0
    %2278 = vmatprep.subr.mxu0 0.0
    %2279 = vmatpush1.xpose.msra.mxu0 0.0
    %2280 = vmatprep.subr.mxu0 0.0
    %2281 = vmatpush1.xpose.msra.mxu0 0.0
    %2282 = vmatprep.subr.mxu0 0.0
    %2283 = vmatpush1.xpose.msra.mxu0 0.0
    %2284 = vmatprep.subr.mxu0 0.0
    %2285 = vmatpush1.xpose.msra.mxu0 0.0
    %2286 = vmatprep.subr.mxu0 0.0
    %2287 = vmatpush1.xpose.msra.mxu0 0.0
    %2288 = vmatprep.subr.mxu0 0.0
    %2289 = vmatpush1.xpose.msra.mxu0 0.0
    %2290 = vmatprep.subr.mxu0 0.0
    %2291 = vmatpush1.xpose.msra.mxu0 0.0
    %2292 = vmatprep.subr.mxu0 0.0
    %2293 = vmatpush1.xpose.msra.mxu0 0.0
    %2294 = vmatprep.subr.mxu0 0.0
    %2295 = vmatpush1.xpose.msra.mxu0 0.0
    %2296 = vmatprep.subr.mxu0 0.0
    %2297 = vmatpush1.xpose.msra.mxu0 0.0
    %2298 = vmatprep.subr.mxu0 %v1994
    %2299 = vmatpush1.xpose.msra.mxu0 %v1993
    %2300 = vmatprep.subr.mxu0 %v1986
    %2301 = vmatpush1.xpose.msra.mxu0 %v1985
    %2302 = vmatprep.subr.mxu0 %v1978
    %2303 = vmatpush1.xpose.msra.mxu0 %v1977
    %2304 = vmatprep.subr.mxu0 %v1970
    %2305 = vmatpush1.xpose.msra.mxu0 %v1969
    %2306 = vmatprep.subr.mxu0 0.0
    %2307 = vmatpush2.xpose.msra.mxu0 0.0
    %2308 = vmatprep.subr.mxu0 0.0
    %2309 = vmatpush2.xpose.msra.mxu0 0.0
    %2310 = vmatprep.subr.mxu0 0.0
    %2311 = vmatpush2.xpose.msra.mxu0 0.0
    %2312 = vmatprep.subr.mxu0 0.0
    %2313 = vmatpush2.xpose.msra.mxu0 0.0
    %2314 = vmatprep.subr.mxu0 0.0
    %2315 = vmatpush2.xpose.msra.mxu0 0.0
    %2316 = vmatprep.subr.mxu0 0.0
    %2317 = vmatpush2.xpose.msra.mxu0 0.0
    %2318 = vmatprep.subr.mxu0 0.0
    %2319 = vmatpush2.xpose.msra.mxu0 0.0
    %2320 = vmatprep.subr.mxu0 0.0
    %2321 = vmatpush2.xpose.msra.mxu0 0.0
    %2322 = vmatprep.subr.mxu0 0.0
    %2323 = vmatpush2.xpose.msra.mxu0 0.0
    %2324 = vmatprep.subr.mxu0 0.0
    %2325 = vmatpush2.xpose.msra.mxu0 0.0
    %2326 = vmatprep.subr.mxu0 0.0
    %2327 = vmatpush2.xpose.msra.mxu0 0.0
    %2328 = vmatprep.subr.mxu0 0.0
    %2329 = vmatpush2.xpose.msra.mxu0 0.0
    %2330 = vmatprep.subr.mxu0 0.0
    %2331 = vmatpush2.xpose.msra.mxu0 0.0
    %2332 = vmatprep.subr.mxu0 0.0
    %2333 = vmatpush2.xpose.msra.mxu0 0.0
    %2334 = vmatprep.subr.mxu0 0.0
    %2335 = vmatpush2.xpose.msra.mxu0 0.0
    %2336 = vmatprep.subr.mxu0 0.0
    %2337 = vmatpush2.xpose.msra.mxu0 0.0
    %2338 = vmatprep.mubr.f32.mxu0 %v443
    %2339 = vmatmul.mubr.f32.gmra.mxu0 %v152
    %v2340 = vpop.f32.mrf.mxu0
    %v2341 = vadd.f32 %v2271, %v2340
    %v2342 = vpop.f32.mrf.mxu0
    %2343 = vdwg.mxu0
    %2344 = vmatprep.subr.mxu0 0.0
    %2345 = vmatpush1.xpose.msra.mxu0 0.0
    %2346 = vmatprep.subr.mxu0 0.0
    %2347 = vmatpush1.xpose.msra.mxu0 0.0
    %2348 = vmatprep.subr.mxu0 0.0
    %2349 = vmatpush1.xpose.msra.mxu0 0.0
    %2350 = vmatprep.subr.mxu0 0.0
    %2351 = vmatpush1.xpose.msra.mxu0 0.0
    %2352 = vmatprep.subr.mxu0 0.0
    %2353 = vmatpush1.xpose.msra.mxu0 0.0
    %2354 = vmatprep.subr.mxu0 0.0
    %2355 = vmatpush1.xpose.msra.mxu0 0.0
    %2356 = vmatprep.subr.mxu0 0.0
    %2357 = vmatpush1.xpose.msra.mxu0 0.0
    %2358 = vmatprep.subr.mxu0 0.0
    %2359 = vmatpush1.xpose.msra.mxu0 0.0
    %2360 = vmatprep.subr.mxu0 0.0
    %2361 = vmatpush1.xpose.msra.mxu0 0.0
    %2362 = vmatprep.subr.mxu0 0.0
    %2363 = vmatpush1.xpose.msra.mxu0 0.0
    %2364 = vmatprep.subr.mxu0 0.0
    %2365 = vmatpush1.xpose.msra.mxu0 0.0
    %2366 = vmatprep.subr.mxu0 0.0
    %2367 = vmatpush1.xpose.msra.mxu0 0.0
    %2368 = vmatprep.subr.mxu0 %v1996
    %2369 = vmatpush1.xpose.msra.mxu0 %v1995
    %2370 = vmatprep.subr.mxu0 %v1988
    %2371 = vmatpush1.xpose.msra.mxu0 %v1987
    %2372 = vmatprep.subr.mxu0 %v1980
    %2373 = vmatpush1.xpose.msra.mxu0 %v1979
    %2374 = vmatprep.subr.mxu0 %v1972
    %2375 = vmatpush1.xpose.msra.mxu0 %v1971
    %2376 = vmatprep.subr.mxu0 0.0
    %2377 = vmatpush2.xpose.msra.mxu0 0.0
    %2378 = vmatprep.subr.mxu0 0.0
    %2379 = vmatpush2.xpose.msra.mxu0 0.0
    %2380 = vmatprep.subr.mxu0 0.0
    %2381 = vmatpush2.xpose.msra.mxu0 0.0
    %2382 = vmatprep.subr.mxu0 0.0
    %2383 = vmatpush2.xpose.msra.mxu0 0.0
    %2384 = vmatprep.subr.mxu0 0.0
    %2385 = vmatpush2.xpose.msra.mxu0 0.0
    %2386 = vmatprep.subr.mxu0 0.0
    %2387 = vmatpush2.xpose.msra.mxu0 0.0
    %2388 = vmatprep.subr.mxu0 0.0
    %2389 = vmatpush2.xpose.msra.mxu0 0.0
    %2390 = vmatprep.subr.mxu0 0.0
    %2391 = vmatpush2.xpose.msra.mxu0 0.0
    %2392 = vmatprep.subr.mxu0 0.0
    %2393 = vmatpush2.xpose.msra.mxu0 0.0
    %2394 = vmatprep.subr.mxu0 0.0
    %2395 = vmatpush2.xpose.msra.mxu0 0.0
    %2396 = vmatprep.subr.mxu0 0.0
    %2397 = vmatpush2.xpose.msra.mxu0 0.0
    %2398 = vmatprep.subr.mxu0 0.0
    %2399 = vmatpush2.xpose.msra.mxu0 0.0
    %2400 = vmatprep.subr.mxu0 0.0
    %2401 = vmatpush2.xpose.msra.mxu0 0.0
    %2402 = vmatprep.subr.mxu0 0.0
    %2403 = vmatpush2.xpose.msra.mxu0 0.0
    %2404 = vmatprep.subr.mxu0 0.0
    %2405 = vmatpush2.xpose.msra.mxu0 0.0
    %2406 = vmatprep.subr.mxu0 0.0
    %2407 = vmatpush2.xpose.msra.mxu0 0.0
    %2408 = vmatprep.mubr.f32.mxu0 %v444
    %2409 = vmatmul.mubr.f32.gmra.mxu0 %v153
    %v2410 = vpop.f32.mrf.mxu0
    %v2411 = vadd.f32 %v2341, %v2410
    %v2412 = vpop.f32.mrf.mxu0
    %2413 = vdwg.mxu0
    %2414 = vmatprep.subr.mxu0 0.0
    %2415 = vmatpush1.xpose.msra.mxu0 0.0
    %2416 = vmatprep.subr.mxu0 0.0
    %2417 = vmatpush1.xpose.msra.mxu0 0.0
    %2418 = vmatprep.subr.mxu0 0.0
    %2419 = vmatpush1.xpose.msra.mxu0 0.0
    %2420 = vmatprep.subr.mxu0 0.0
    %2421 = vmatpush1.xpose.msra.mxu0 0.0
    %2422 = vmatprep.subr.mxu0 0.0
    %2423 = vmatpush1.xpose.msra.mxu0 0.0
    %2424 = vmatprep.subr.mxu0 0.0
    %2425 = vmatpush1.xpose.msra.mxu0 0.0
    %2426 = vmatprep.subr.mxu0 0.0
    %2427 = vmatpush1.xpose.msra.mxu0 0.0
    %2428 = vmatprep.subr.mxu0 0.0
    %2429 = vmatpush1.xpose.msra.mxu0 0.0
    %2430 = vmatprep.subr.mxu0 0.0
    %2431 = vmatpush1.xpose.msra.mxu0 0.0
    %2432 = vmatprep.subr.mxu0 0.0
    %2433 = vmatpush1.xpose.msra.mxu0 0.0
    %2434 = vmatprep.subr.mxu0 0.0
    %2435 = vmatpush1.xpose.msra.mxu0 0.0
    %2436 = vmatprep.subr.mxu0 0.0
    %2437 = vmatpush1.xpose.msra.mxu0 0.0
    %2438 = vmatprep.subr.mxu0 %v1998
    %2439 = vmatpush1.xpose.msra.mxu0 %v1997
    %2440 = vmatprep.subr.mxu0 %v1990
    %2441 = vmatpush1.xpose.msra.mxu0 %v1989
    %2442 = vmatprep.subr.mxu0 %v1982
    %2443 = vmatpush1.xpose.msra.mxu0 %v1981
    %2444 = vmatprep.subr.mxu0 %v1974
    %2445 = vmatpush1.xpose.msra.mxu0 %v1973
    %2446 = vmatprep.subr.mxu0 0.0
    %2447 = vmatpush2.xpose.msra.mxu0 0.0
    %2448 = vmatprep.subr.mxu0 0.0
    %2449 = vmatpush2.xpose.msra.mxu0 0.0
    %2450 = vmatprep.subr.mxu0 0.0
    %2451 = vmatpush2.xpose.msra.mxu0 0.0
    %2452 = vmatprep.subr.mxu0 0.0
    %2453 = vmatpush2.xpose.msra.mxu0 0.0
    %2454 = vmatprep.subr.mxu0 0.0
    %2455 = vmatpush2.xpose.msra.mxu0 0.0
    %2456 = vmatprep.subr.mxu0 0.0
    %2457 = vmatpush2.xpose.msra.mxu0 0.0
    %2458 = vmatprep.subr.mxu0 0.0
    %2459 = vmatpush2.xpose.msra.mxu0 0.0
    %2460 = vmatprep.subr.mxu0 0.0
    %2461 = vmatpush2.xpose.msra.mxu0 0.0
    %2462 = vmatprep.subr.mxu0 0.0
    %2463 = vmatpush2.xpose.msra.mxu0 0.0
    %2464 = vmatprep.subr.mxu0 0.0
    %2465 = vmatpush2.xpose.msra.mxu0 0.0
    %2466 = vmatprep.subr.mxu0 0.0
    %2467 = vmatpush2.xpose.msra.mxu0 0.0
    %2468 = vmatprep.subr.mxu0 0.0
    %2469 = vmatpush2.xpose.msra.mxu0 0.0
    %2470 = vmatprep.subr.mxu0 0.0
    %2471 = vmatpush2.xpose.msra.mxu0 0.0
    %2472 = vmatprep.subr.mxu0 0.0
    %2473 = vmatpush2.xpose.msra.mxu0 0.0
    %2474 = vmatprep.subr.mxu0 0.0
    %2475 = vmatpush2.xpose.msra.mxu0 0.0
    %2476 = vmatprep.subr.mxu0 0.0
    %2477 = vmatpush2.xpose.msra.mxu0 0.0
    %2478 = vmatprep.mubr.f32.mxu0 %v445
    %2479 = vmatmul.mubr.f32.gmra.mxu0 %v154
    %v2480 = vpop.f32.mrf.mxu0
    %v2481 = vadd.f32 %v2411, %v2480
    %v2482 = vpop.f32.mrf.mxu0
    %2483 = vdwg.mxu0
    %v2484 = vmax.f32 %v2481, 0.0
    %2486 = vrot.lane.b32.xlu0 %v2484, 32
    %v2487 = vpop.permute.xlu0 %2486
    %v2489 = vsel %vm51, %v2195, %v2487
    %v2491 = vlaneseq
    %v2492 = vshrl.u32 %v2491, 7
    %v2493 = vsub.s32 0, %v2492
    %v2494 = vrot.slane %v2008, %v2493
    %v2497 = vsel %vm358, %v2489, 0
    %2499 = vmatprep.subr.mxu0 0.0
    %2500 = vmatpush1.msra.mxu0 0.0
    %2501 = vmatprep.subr.mxu0 0.0
    %2502 = vmatpush1.msra.mxu0 0.0
    %2503 = vmatprep.subr.mxu0 0.0
    %2504 = vmatpush1.msra.mxu0 0.0
    %2505 = vmatprep.subr.mxu0 0.0
    %2506 = vmatpush1.msra.mxu0 0.0
    %2507 = vmatprep.subr.mxu0 0.0
    %2508 = vmatpush1.msra.mxu0 0.0
    %2509 = vmatprep.subr.mxu0 0.0
    %2510 = vmatpush1.msra.mxu0 0.0
    %2511 = vmatprep.subr.mxu0 0.0
    %2512 = vmatpush1.msra.mxu0 0.0
    %2513 = vmatprep.subr.mxu0 0.0
    %2514 = vmatpush1.msra.mxu0 0.0
    %2515 = vmatprep.subr.mxu0 0.0
    %2516 = vmatpush1.msra.mxu0 %v2007
    %2517 = vmatprep.subr.mxu0 0.0
    %2518 = vmatpush1.msra.mxu0 %v2006
    %2519 = vmatprep.subr.mxu0 0.0
    %2520 = vmatpush1.msra.mxu0 %v2005
    %2521 = vmatprep.subr.mxu0 0.0
    %2522 = vmatpush1.msra.mxu0 %v2004
    %2523 = vmatprep.subr.mxu0 0.0
    %2524 = vmatpush1.msra.mxu0 %v2003
    %2525 = vmatprep.subr.mxu0 0.0
    %2526 = vmatpush1.msra.mxu0 %v2002
    %2527 = vmatprep.subr.mxu0 0.0
    %2528 = vmatpush1.msra.mxu0 %v2001
    %2529 = vmatprep.subr.mxu0 0.0
    %2530 = vmatpush1.msra.mxu0 %v2000
    %2531 = vmatprep.subr.mxu0 0.0
    %2532 = vmatpush2.msra.mxu0 0.0
    %2533 = vmatprep.subr.mxu0 0.0
    %2534 = vmatpush2.msra.mxu0 0.0
    %2535 = vmatprep.subr.mxu0 0.0
    %2536 = vmatpush2.msra.mxu0 0.0
    %2537 = vmatprep.subr.mxu0 0.0
    %2538 = vmatpush2.msra.mxu0 0.0
    %2539 = vmatprep.subr.mxu0 0.0
    %2540 = vmatpush2.msra.mxu0 0.0
    %2541 = vmatprep.subr.mxu0 0.0
    %2542 = vmatpush2.msra.mxu0 0.0
    %2543 = vmatprep.subr.mxu0 0.0
    %2544 = vmatpush2.msra.mxu0 0.0
    %2545 = vmatprep.subr.mxu0 0.0
    %2546 = vmatpush2.msra.mxu0 0.0
    %2547 = vmatprep.subr.mxu0 0.0
    %2548 = vmatpush2.msra.mxu0 0.0
    %2549 = vmatprep.subr.mxu0 0.0
    %2550 = vmatpush2.msra.mxu0 0.0
    %2551 = vmatprep.subr.mxu0 0.0
    %2552 = vmatpush2.msra.mxu0 0.0
    %2553 = vmatprep.subr.mxu0 0.0
    %2554 = vmatpush2.msra.mxu0 0.0
    %2555 = vmatprep.subr.mxu0 0.0
    %2556 = vmatpush2.msra.mxu0 0.0
    %2557 = vmatprep.subr.mxu0 0.0
    %2558 = vmatpush2.msra.mxu0 0.0
    %2559 = vmatprep.subr.mxu0 0.0
    %2560 = vmatpush2.msra.mxu0 0.0
    %2561 = vmatprep.subr.mxu0 0.0
    %2562 = vmatpush2.msra.mxu0 0.0
    %2563 = vmatprep.mubr.f32.mxu0 0.0
    %2564 = vmatmul.mubr.f32.gmra.mxu0 %v2497
    %v2565 = vpop.f32.mrf.mxu0
    %v2566 = vadd.f32 %v2494, %v2565
    %v2567 = vpop.f32.mrf.mxu0
    %2568 = vdwg.mxu0
    %v2569 = vsel %vm815, %v2566, -inf
    %2570 = vmax.xlane.f32.xlu0 %v2569
    %v2571 = vpop.xlane.xlu0 %2570
    %v2572 = vsub.f32 %v2566, %v2571
    %v2573 = vmul.f32 %v2572, 1.442695
    %v2574 = vpow.pop %v2573
    %v2575 = vsel %vm815, %v2574, 0.0
    %2576 = vadd.xlane.f32.xlu0 %v2575
    %v2577 = vpop.xlane.xlu0 %2576
    %v2578 = vrcp.pop %v2577
    %v2579 = vmul.f32 %v2574, %v2578
    %v2580 = vsub.f32 %v2579, %v155
    %v2581 = vmul.f32 %v2580, 0.25
    %2582 = vxpose.xlu0.b32.start [1/16] %v2489, 128
    %2583 = vxpose.xlu0.b32.cont [2/16] 0.0, 128
    %2584 = vxpose.xlu0.b32.cont [3/16] 0.0, 128
    %2585 = vxpose.xlu0.b32.cont [4/16] 0.0, 128
    %2586 = vxpose.xlu0.b32.cont [5/16] 0.0, 128
    %2587 = vxpose.xlu0.b32.cont [6/16] 0.0, 128
    %2588 = vxpose.xlu0.b32.cont [7/16] 0.0, 128
    %2589 = vxpose.xlu0.b32.cont [8/16] 0.0, 128
    %2590 = vxpose.xlu0.b32.cont [9/16] 0.0, 128
    %2591 = vxpose.xlu0.b32.cont [10/16] 0.0, 128
    %2592 = vxpose.xlu0.b32.cont [11/16] 0.0, 128
    %2593 = vxpose.xlu0.b32.cont [12/16] 0.0, 128
    %2594 = vxpose.xlu0.b32.cont [13/16] 0.0, 128
    %2595 = vxpose.xlu0.b32.cont [14/16] 0.0, 128
    %2596 = vxpose.xlu0.b32.cont [15/16] 0.0, 128
    %2597 = vxpose.xlu0.b32.end [16/16] 0.0, 128
    %v2598 = vpop.trf.xlu0
    %v2599 = vpop.trf.xlu0
    %v2600 = vpop.trf.xlu0
    %v2601 = vpop.trf.xlu0
    %v2602 = vpop.trf.xlu0
    %v2603 = vpop.trf.xlu0
    %v2604 = vpop.trf.xlu0
    %v2605 = vpop.trf.xlu0
    %v2606 = vpop.trf.xlu0
    %v2607 = vpop.trf.xlu0
    %v2608 = vpop.trf.xlu0
    %v2609 = vpop.trf.xlu0
    %v2610 = vpop.trf.xlu0
    %v2611 = vpop.trf.xlu0
    %v2612 = vpop.trf.xlu0
    %v2613 = vpop.trf.xlu0
    %v2615 = vsel %vm861, %v2598, 0
    %v2618 = vsel %vm861, %v2599, 0
    %v2621 = vsel %vm861, %v2600, 0
    %v2624 = vsel %vm861, %v2601, 0
    %v2627 = vsel %vm861, %v2602, 0
    %v2630 = vsel %vm861, %v2603, 0
    %v2633 = vsel %vm861, %v2604, 0
    %v2636 = vsel %vm861, %v2605, 0
    %v2639 = vsel %vm886, %v2581, 0
    %2641 = vmatprep.subr.mxu0 0.0
    %2642 = vmatpush1.msra.mxu0 0.0
    %2643 = vmatprep.subr.mxu0 0.0
    %2644 = vmatpush1.msra.mxu0 0.0
    %2645 = vmatprep.subr.mxu0 0.0
    %2646 = vmatpush1.msra.mxu0 0.0
    %2647 = vmatprep.subr.mxu0 0.0
    %2648 = vmatpush1.msra.mxu0 0.0
    %2649 = vmatprep.subr.mxu0 0.0
    %2650 = vmatpush1.msra.mxu0 0.0
    %2651 = vmatprep.subr.mxu0 0.0
    %2652 = vmatpush1.msra.mxu0 0.0
    %2653 = vmatprep.subr.mxu0 0.0
    %2654 = vmatpush1.msra.mxu0 0.0
    %2655 = vmatprep.subr.mxu0 0.0
    %2656 = vmatpush1.msra.mxu0 0.0
    %2657 = vmatprep.subr.mxu0 0.0
    %2658 = vmatpush1.msra.mxu0 0.0
    %2659 = vmatprep.subr.mxu0 0.0
    %2660 = vmatpush1.msra.mxu0 0.0
    %2661 = vmatprep.subr.mxu0 0.0
    %2662 = vmatpush1.msra.mxu0 0.0
    %2663 = vmatprep.subr.mxu0 0.0
    %2664 = vmatpush1.msra.mxu0 0.0
    %2665 = vmatprep.subr.mxu0 0.0
    %2666 = vmatpush1.msra.mxu0 0.0
    %2667 = vmatprep.subr.mxu0 0.0
    %2668 = vmatpush1.msra.mxu0 0.0
    %2669 = vmatprep.subr.mxu0 0.0
    %2670 = vmatpush1.msra.mxu0 0.0
    %2671 = vmatprep.subr.mxu0 0.0
    %2672 = vmatpush1.msra.mxu0 %v2639
    %2673 = vmatprep.subr.mxu0 0.0
    %2674 = vmatpush2.msra.mxu0 0.0
    %2675 = vmatprep.subr.mxu0 0.0
    %2676 = vmatpush2.msra.mxu0 0.0
    %2677 = vmatprep.subr.mxu0 0.0
    %2678 = vmatpush2.msra.mxu0 0.0
    %2679 = vmatprep.subr.mxu0 0.0
    %2680 = vmatpush2.msra.mxu0 0.0
    %2681 = vmatprep.subr.mxu0 0.0
    %2682 = vmatpush2.msra.mxu0 0.0
    %2683 = vmatprep.subr.mxu0 0.0
    %2684 = vmatpush2.msra.mxu0 0.0
    %2685 = vmatprep.subr.mxu0 0.0
    %2686 = vmatpush2.msra.mxu0 0.0
    %2687 = vmatprep.subr.mxu0 0.0
    %2688 = vmatpush2.msra.mxu0 0.0
    %2689 = vmatprep.subr.mxu0 0.0
    %2690 = vmatpush2.msra.mxu0 0.0
    %2691 = vmatprep.subr.mxu0 0.0
    %2692 = vmatpush2.msra.mxu0 0.0
    %2693 = vmatprep.subr.mxu0 0.0
    %2694 = vmatpush2.msra.mxu0 0.0
    %2695 = vmatprep.subr.mxu0 0.0
    %2696 = vmatpush2.msra.mxu0 0.0
    %2697 = vmatprep.subr.mxu0 0.0
    %2698 = vmatpush2.msra.mxu0 0.0
    %2699 = vmatprep.subr.mxu0 0.0
    %2700 = vmatpush2.msra.mxu0 0.0
    %2701 = vmatprep.subr.mxu0 0.0
    %2702 = vmatpush2.msra.mxu0 0.0
    %2703 = vmatprep.subr.mxu0 0.0
    %2704 = vmatpush2.msra.mxu0 0.0
    %2705 = vmatprep.mubr.f32.mxu0 0.0
    %2706 = vmatmul.mubr.f32.gmra.mxu0 %v2615
    %v2707 = vpop.f32.mrf.mxu0
    %v2708 = vadd.f32 0.0, %v2707
    %v2709 = vpop.f32.mrf.mxu0
    %2710 = vmatprep.mubr.f32.mxu0 0.0
    %2711 = vmatmul.mubr.f32.gmra.mxu0 %v2618
    %v2712 = vpop.f32.mrf.mxu0
    %v2713 = vadd.f32 0.0, %v2712
    %v2714 = vpop.f32.mrf.mxu0
    %2715 = vmatprep.mubr.f32.mxu0 0.0
    %2716 = vmatmul.mubr.f32.gmra.mxu0 %v2621
    %v2717 = vpop.f32.mrf.mxu0
    %v2718 = vadd.f32 0.0, %v2717
    %v2719 = vpop.f32.mrf.mxu0
    %2720 = vmatprep.mubr.f32.mxu0 0.0
    %2721 = vmatmul.mubr.f32.gmra.mxu0 %v2624
    %v2722 = vpop.f32.mrf.mxu0
    %v2723 = vadd.f32 0.0, %v2722
    %v2724 = vpop.f32.mrf.mxu0
    %2725 = vmatprep.mubr.f32.mxu0 0.0
    %2726 = vmatmul.mubr.f32.gmra.mxu0 %v2627
    %v2727 = vpop.f32.mrf.mxu0
    %v2728 = vadd.f32 0.0, %v2727
    %v2729 = vpop.f32.mrf.mxu0
    %2730 = vmatprep.mubr.f32.mxu0 0.0
    %2731 = vmatmul.mubr.f32.gmra.mxu0 %v2630
    %v2732 = vpop.f32.mrf.mxu0
    %v2733 = vadd.f32 0.0, %v2732
    %v2734 = vpop.f32.mrf.mxu0
    %2735 = vmatprep.mubr.f32.mxu0 0.0
    %2736 = vmatmul.mubr.f32.gmra.mxu0 %v2633
    %v2737 = vpop.f32.mrf.mxu0
    %v2738 = vadd.f32 0.0, %v2737
    %v2739 = vpop.f32.mrf.mxu0
    %2740 = vmatprep.mubr.f32.mxu0 0.0
    %2741 = vmatmul.mubr.f32.gmra.mxu0 %v2636
    %v2742 = vpop.f32.mrf.mxu0
    %v2743 = vadd.f32 0.0, %v2742
    %v2744 = vpop.f32.mrf.mxu0
    %2745 = vdwg.mxu0
    %v2746 = vsel %vm815, %v2581, 0.0
    %v2747 = vrot.slane %v2746, 4
    %v2748 = vadd.f32 %v2746, %v2747
    %v2749 = vrot.slane %v2748, 2
    %v2750 = vadd.f32 %v2748, %v2749
    %v2751 = vrot.slane %v2750, 1
    %v2752 = vadd.f32 %v2750, %v2751
    %v2753 = vsel %vm130, %v2581, 0
    %v2756 = vsel %vm130, %v2000, 0
    %v2759 = vsel %vm130, %v2001, 0
    %v2762 = vsel %vm130, %v2002, 0
    %v2765 = vsel %vm130, %v2003, 0
    %v2768 = vsel %vm130, %v2004, 0
    %v2771 = vsel %vm130, %v2005, 0
    %v2774 = vsel %vm130, %v2006, 0
    %v2777 = vsel %vm130, %v2007, 0
    %2779 = vmatprep.subr.mxu0 0.0
    %2780 = vmatpush1.xpose.msra.mxu0 0.0
    %2781 = vmatprep.subr.mxu0 0.0
    %2782 = vmatpush1.xpose.msra.mxu0 0.0
    %2783 = vmatprep.subr.mxu0 0.0
    %2784 = vmatpush1.xpose.msra.mxu0 0.0
    %2785 = vmatprep.subr.mxu0 0.0
    %2786 = vmatpush1.xpose.msra.mxu0 0.0
    %2787 = vmatprep.subr.mxu0 0.0
    %2788 = vmatpush1.xpose.msra.mxu0 0.0
    %2789 = vmatprep.subr.mxu0 0.0
    %2790 = vmatpush1.xpose.msra.mxu0 0.0
    %2791 = vmatprep.subr.mxu0 0.0
    %2792 = vmatpush1.xpose.msra.mxu0 0.0
    %2793 = vmatprep.subr.mxu0 0.0
    %2794 = vmatpush1.xpose.msra.mxu0 0.0
    %2795 = vmatprep.subr.mxu0 0.0
    %2796 = vmatpush1.xpose.msra.mxu0 %v2777
    %2797 = vmatprep.subr.mxu0 0.0
    %2798 = vmatpush1.xpose.msra.mxu0 %v2774
    %2799 = vmatprep.subr.mxu0 0.0
    %2800 = vmatpush1.xpose.msra.mxu0 %v2771
    %2801 = vmatprep.subr.mxu0 0.0
    %2802 = vmatpush1.xpose.msra.mxu0 %v2768
    %2803 = vmatprep.subr.mxu0 0.0
    %2804 = vmatpush1.xpose.msra.mxu0 %v2765
    %2805 = vmatprep.subr.mxu0 0.0
    %2806 = vmatpush1.xpose.msra.mxu0 %v2762
    %2807 = vmatprep.subr.mxu0 0.0
    %2808 = vmatpush1.xpose.msra.mxu0 %v2759
    %2809 = vmatprep.subr.mxu0 0.0
    %2810 = vmatpush1.xpose.msra.mxu0 %v2756
    %2811 = vmatprep.subr.mxu0 0.0
    %2812 = vmatpush2.xpose.msra.mxu0 0.0
    %2813 = vmatprep.subr.mxu0 0.0
    %2814 = vmatpush2.xpose.msra.mxu0 0.0
    %2815 = vmatprep.subr.mxu0 0.0
    %2816 = vmatpush2.xpose.msra.mxu0 0.0
    %2817 = vmatprep.subr.mxu0 0.0
    %2818 = vmatpush2.xpose.msra.mxu0 0.0
    %2819 = vmatprep.subr.mxu0 0.0
    %2820 = vmatpush2.xpose.msra.mxu0 0.0
    %2821 = vmatprep.subr.mxu0 0.0
    %2822 = vmatpush2.xpose.msra.mxu0 0.0
    %2823 = vmatprep.subr.mxu0 0.0
    %2824 = vmatpush2.xpose.msra.mxu0 0.0
    %2825 = vmatprep.subr.mxu0 0.0
    %2826 = vmatpush2.xpose.msra.mxu0 0.0
    %2827 = vmatprep.subr.mxu0 0.0
    %2828 = vmatpush2.xpose.msra.mxu0 0.0
    %2829 = vmatprep.subr.mxu0 0.0
    %2830 = vmatpush2.xpose.msra.mxu0 0.0
    %2831 = vmatprep.subr.mxu0 0.0
    %2832 = vmatpush2.xpose.msra.mxu0 0.0
    %2833 = vmatprep.subr.mxu0 0.0
    %2834 = vmatpush2.xpose.msra.mxu0 0.0
    %2835 = vmatprep.subr.mxu0 0.0
    %2836 = vmatpush2.xpose.msra.mxu0 0.0
    %2837 = vmatprep.subr.mxu0 0.0
    %2838 = vmatpush2.xpose.msra.mxu0 0.0
    %2839 = vmatprep.subr.mxu0 0.0
    %2840 = vmatpush2.xpose.msra.mxu0 0.0
    %2841 = vmatprep.subr.mxu0 0.0
    %2842 = vmatpush2.xpose.msra.mxu0 0.0
    %2843 = vmatprep.mubr.f32.mxu0 0.0
    %2844 = vmatmul.mubr.f32.gmra.mxu0 %v2753
    %v2845 = vpop.f32.mrf.mxu0
    %v2846 = vadd.f32 0.0, %v2845
    %v2847 = vpop.f32.mrf.mxu0
    %2848 = vdwg.mxu0
    %vm2849 = vcmp.gt.f32.partialorder %v2481, 0.0
    %2851 = vrot.lane.b32.xlu0 %v2846, 96
    %v2852 = vpop.permute.xlu0 %2851
    %v2854 = vsel %vm2849, %v2852, 0.0
    %2855 = vxpose.xlu0.b32.start [1/16] %v2854, 128
    %2856 = vxpose.xlu0.b32.cont [2/16] 0.0, 128
    %2857 = vxpose.xlu0.b32.cont [3/16] 0.0, 128
    %2858 = vxpose.xlu0.b32.cont [4/16] 0.0, 128
    %2859 = vxpose.xlu0.b32.cont [5/16] 0.0, 128
    %2860 = vxpose.xlu0.b32.cont [6/16] 0.0, 128
    %2861 = vxpose.xlu0.b32.cont [7/16] 0.0, 128
    %2862 = vxpose.xlu0.b32.cont [8/16] 0.0, 128
    %2863 = vxpose.xlu0.b32.cont [9/16] 0.0, 128
    %2864 = vxpose.xlu0.b32.cont [10/16] 0.0, 128
    %2865 = vxpose.xlu0.b32.cont [11/16] 0.0, 128
    %2866 = vxpose.xlu0.b32.cont [12/16] 0.0, 128
    %2867 = vxpose.xlu0.b32.cont [13/16] 0.0, 128
    %2868 = vxpose.xlu0.b32.cont [14/16] 0.0, 128
    %2869 = vxpose.xlu0.b32.cont [15/16] 0.0, 128
    %2870 = vxpose.xlu0.b32.end [16/16] 0.0, 128
    %v2871 = vpop.trf.xlu0
    %v2872 = vpop.trf.xlu0
    %v2873 = vpop.trf.xlu0
    %v2874 = vpop.trf.xlu0
    %v2875 = vpop.trf.xlu0
    %v2876 = vpop.trf.xlu0
    %v2877 = vpop.trf.xlu0
    %v2878 = vpop.trf.xlu0
    %v2879 = vpop.trf.xlu0
    %v2880 = vpop.trf.xlu0
    %v2881 = vpop.trf.xlu0
    %v2882 = vpop.trf.xlu0
    %v2883 = vpop.trf.xlu0
    %v2884 = vpop.trf.xlu0
    %v2885 = vpop.trf.xlu0
    %v2886 = vpop.trf.xlu0
    %v2888 = vsel %vm861, %v2871, 0
    %v2891 = vsel %vm861, %v2872, 0
    %v2894 = vsel %vm861, %v2873, 0
    %v2897 = vsel %vm861, %v2874, 0
    %2899 = vmatprep.subr.mxu0 0.0
    %2900 = vmatpush1.msra.mxu0 0.0
    %2901 = vmatprep.subr.mxu0 0.0
    %2902 = vmatpush1.msra.mxu0 0.0
    %2903 = vmatprep.subr.mxu0 0.0
    %2904 = vmatpush1.msra.mxu0 0.0
    %2905 = vmatprep.subr.mxu0 0.0
    %2906 = vmatpush1.msra.mxu0 0.0
    %2907 = vmatprep.subr.mxu0 0.0
    %2908 = vmatpush1.msra.mxu0 0.0
    %2909 = vmatprep.subr.mxu0 0.0
    %2910 = vmatpush1.msra.mxu0 0.0
    %2911 = vmatprep.subr.mxu0 0.0
    %2912 = vmatpush1.msra.mxu0 0.0
    %2913 = vmatprep.subr.mxu0 0.0
    %2914 = vmatpush1.msra.mxu0 0.0
    %2915 = vmatprep.subr.mxu0 0.0
    %2916 = vmatpush1.msra.mxu0 0.0
    %2917 = vmatprep.subr.mxu0 0.0
    %2918 = vmatpush1.msra.mxu0 0.0
    %2919 = vmatprep.subr.mxu0 0.0
    %2920 = vmatpush1.msra.mxu0 0.0
    %2921 = vmatprep.subr.mxu0 0.0
    %2922 = vmatpush1.msra.mxu0 0.0
    %2923 = vmatprep.subr.mxu0 0.0
    %2924 = vmatpush1.msra.mxu0 0.0
    %2925 = vmatprep.subr.mxu0 0.0
    %2926 = vmatpush1.msra.mxu0 0.0
    %2927 = vmatprep.subr.mxu0 0.0
    %2928 = vmatpush1.msra.mxu0 0.0
    %2929 = vmatprep.subr.mxu0 %v1150
    %2930 = vmatpush1.msra.mxu0 %v1148
    %2931 = vmatprep.subr.mxu0 0.0
    %2932 = vmatpush2.msra.mxu0 0.0
    %2933 = vmatprep.subr.mxu0 0.0
    %2934 = vmatpush2.msra.mxu0 0.0
    %2935 = vmatprep.subr.mxu0 0.0
    %2936 = vmatpush2.msra.mxu0 0.0
    %2937 = vmatprep.subr.mxu0 0.0
    %2938 = vmatpush2.msra.mxu0 0.0
    %2939 = vmatprep.subr.mxu0 0.0
    %2940 = vmatpush2.msra.mxu0 0.0
    %2941 = vmatprep.subr.mxu0 0.0
    %2942 = vmatpush2.msra.mxu0 0.0
    %2943 = vmatprep.subr.mxu0 0.0
    %2944 = vmatpush2.msra.mxu0 0.0
    %2945 = vmatprep.subr.mxu0 0.0
    %2946 = vmatpush2.msra.mxu0 0.0
    %2947 = vmatprep.subr.mxu0 0.0
    %2948 = vmatpush2.msra.mxu0 0.0
    %2949 = vmatprep.subr.mxu0 0.0
    %2950 = vmatpush2.msra.mxu0 0.0
    %2951 = vmatprep.subr.mxu0 0.0
    %2952 = vmatpush2.msra.mxu0 0.0
    %2953 = vmatprep.subr.mxu0 0.0
    %2954 = vmatpush2.msra.mxu0 0.0
    %2955 = vmatprep.subr.mxu0 0.0
    %2956 = vmatpush2.msra.mxu0 0.0
    %2957 = vmatprep.subr.mxu0 0.0
    %2958 = vmatpush2.msra.mxu0 0.0
    %2959 = vmatprep.subr.mxu0 0.0
    %2960 = vmatpush2.msra.mxu0 0.0
    %2961 = vmatprep.subr.mxu0 0.0
    %2962 = vmatpush2.msra.mxu0 0.0
    %2963 = vmatprep.mubr.f32.mxu0 0.0
    %2964 = vmatmul.mubr.f32.gmra.mxu0 %v2888
    %v2965 = vpop.f32.mrf.mxu0
    %v2966 = vadd.f32 0.0, %v2965
    %v2967 = vpop.f32.mrf.mxu0
    %v2968 = vadd.f32 0.0, %v2967
    %2969 = vmatprep.mubr.f32.mxu0 0.0
    %2970 = vmatmul.mubr.f32.gmra.mxu0 %v2891
    %v2971 = vpop.f32.mrf.mxu0
    %v2972 = vadd.f32 0.0, %v2971
    %v2973 = vpop.f32.mrf.mxu0
    %v2974 = vadd.f32 0.0, %v2973
    %2975 = vmatprep.mubr.f32.mxu0 0.0
    %2976 = vmatmul.mubr.f32.gmra.mxu0 %v2894
    %v2977 = vpop.f32.mrf.mxu0
    %v2978 = vadd.f32 0.0, %v2977
    %v2979 = vpop.f32.mrf.mxu0
    %v2980 = vadd.f32 0.0, %v2979
    %2981 = vmatprep.mubr.f32.mxu0 0.0
    %2982 = vmatmul.mubr.f32.gmra.mxu0 %v2897
    %v2983 = vpop.f32.mrf.mxu0
    %v2984 = vadd.f32 0.0, %v2983
    %v2985 = vpop.f32.mrf.mxu0
    %v2986 = vadd.f32 0.0, %v2985
    %2987 = vdwg.mxu0
    %2988 = vmatprep.subr.mxu0 0.0
    %2989 = vmatpush1.msra.mxu0 0.0
    %2990 = vmatprep.subr.mxu0 0.0
    %2991 = vmatpush1.msra.mxu0 0.0
    %2992 = vmatprep.subr.mxu0 0.0
    %2993 = vmatpush1.msra.mxu0 0.0
    %2994 = vmatprep.subr.mxu0 0.0
    %2995 = vmatpush1.msra.mxu0 0.0
    %2996 = vmatprep.subr.mxu0 0.0
    %2997 = vmatpush1.msra.mxu0 0.0
    %2998 = vmatprep.subr.mxu0 0.0
    %2999 = vmatpush1.msra.mxu0 0.0
    %3000 = vmatprep.subr.mxu0 0.0
    %3001 = vmatpush1.msra.mxu0 0.0
    %3002 = vmatprep.subr.mxu0 0.0
    %3003 = vmatpush1.msra.mxu0 0.0
    %3004 = vmatprep.subr.mxu0 0.0
    %3005 = vmatpush1.msra.mxu0 0.0
    %3006 = vmatprep.subr.mxu0 0.0
    %3007 = vmatpush1.msra.mxu0 0.0
    %3008 = vmatprep.subr.mxu0 0.0
    %3009 = vmatpush1.msra.mxu0 0.0
    %3010 = vmatprep.subr.mxu0 0.0
    %3011 = vmatpush1.msra.mxu0 0.0
    %3012 = vmatprep.subr.mxu0 0.0
    %3013 = vmatpush1.msra.mxu0 0.0
    %3014 = vmatprep.subr.mxu0 0.0
    %3015 = vmatpush1.msra.mxu0 0.0
    %3016 = vmatprep.subr.mxu0 0.0
    %3017 = vmatpush1.msra.mxu0 0.0
    %3018 = vmatprep.subr.mxu0 %v1154
    %3019 = vmatpush1.msra.mxu0 %v1152
    %3020 = vmatprep.subr.mxu0 0.0
    %3021 = vmatpush2.msra.mxu0 0.0
    %3022 = vmatprep.subr.mxu0 0.0
    %3023 = vmatpush2.msra.mxu0 0.0
    %3024 = vmatprep.subr.mxu0 0.0
    %3025 = vmatpush2.msra.mxu0 0.0
    %3026 = vmatprep.subr.mxu0 0.0
    %3027 = vmatpush2.msra.mxu0 0.0
    %3028 = vmatprep.subr.mxu0 0.0
    %3029 = vmatpush2.msra.mxu0 0.0
    %3030 = vmatprep.subr.mxu0 0.0
    %3031 = vmatpush2.msra.mxu0 0.0
    %3032 = vmatprep.subr.mxu0 0.0
    %3033 = vmatpush2.msra.mxu0 0.0
    %3034 = vmatprep.subr.mxu0 0.0
    %3035 = vmatpush2.msra.mxu0 0.0
    %3036 = vmatprep.subr.mxu0 0.0
    %3037 = vmatpush2.msra.mxu0 0.0
    %3038 = vmatprep.subr.mxu0 0.0
    %3039 = vmatpush2.msra.mxu0 0.0
    %3040 = vmatprep.subr.mxu0 0.0
    %3041 = vmatpush2.msra.mxu0 0.0
    %3042 = vmatprep.subr.mxu0 0.0
    %3043 = vmatpush2.msra.mxu0 0.0
    %3044 = vmatprep.subr.mxu0 0.0
    %3045 = vmatpush2.msra.mxu0 0.0
    %3046 = vmatprep.subr.mxu0 0.0
    %3047 = vmatpush2.msra.mxu0 0.0
    %3048 = vmatprep.subr.mxu0 0.0
    %3049 = vmatpush2.msra.mxu0 0.0
    %3050 = vmatprep.subr.mxu0 0.0
    %3051 = vmatpush2.msra.mxu0 0.0
    %3052 = vmatprep.mubr.f32.mxu0 0.0
    %3053 = vmatmul.mubr.f32.gmra.mxu0 %v2888
    %v3054 = vpop.f32.mrf.mxu0
    %v3055 = vadd.f32 0.0, %v3054
    %v3056 = vpop.f32.mrf.mxu0
    %v3057 = vadd.f32 0.0, %v3056
    %3058 = vmatprep.mubr.f32.mxu0 0.0
    %3059 = vmatmul.mubr.f32.gmra.mxu0 %v2891
    %v3060 = vpop.f32.mrf.mxu0
    %v3061 = vadd.f32 0.0, %v3060
    %v3062 = vpop.f32.mrf.mxu0
    %v3063 = vadd.f32 0.0, %v3062
    %3064 = vmatprep.mubr.f32.mxu0 0.0
    %3065 = vmatmul.mubr.f32.gmra.mxu0 %v2894
    %v3066 = vpop.f32.mrf.mxu0
    %v3067 = vadd.f32 0.0, %v3066
    %v3068 = vpop.f32.mrf.mxu0
    %v3069 = vadd.f32 0.0, %v3068
    %3070 = vmatprep.mubr.f32.mxu0 0.0
    %3071 = vmatmul.mubr.f32.gmra.mxu0 %v2897
    %v3072 = vpop.f32.mrf.mxu0
    %v3073 = vadd.f32 0.0, %v3072
    %v3074 = vpop.f32.mrf.mxu0
    %v3075 = vadd.f32 0.0, %v3074
    %3076 = vdwg.mxu0
    %3077 = vmatprep.subr.mxu0 0.0
    %3078 = vmatpush1.msra.mxu0 0.0
    %3079 = vmatprep.subr.mxu0 0.0
    %3080 = vmatpush1.msra.mxu0 0.0
    %3081 = vmatprep.subr.mxu0 0.0
    %3082 = vmatpush1.msra.mxu0 0.0
    %3083 = vmatprep.subr.mxu0 0.0
    %3084 = vmatpush1.msra.mxu0 0.0
    %3085 = vmatprep.subr.mxu0 0.0
    %3086 = vmatpush1.msra.mxu0 0.0
    %3087 = vmatprep.subr.mxu0 0.0
    %3088 = vmatpush1.msra.mxu0 0.0
    %3089 = vmatprep.subr.mxu0 0.0
    %3090 = vmatpush1.msra.mxu0 0.0
    %3091 = vmatprep.subr.mxu0 0.0
    %3092 = vmatpush1.msra.mxu0 0.0
    %3093 = vmatprep.subr.mxu0 0.0
    %3094 = vmatpush1.msra.mxu0 0.0
    %3095 = vmatprep.subr.mxu0 0.0
    %3096 = vmatpush1.msra.mxu0 0.0
    %3097 = vmatprep.subr.mxu0 0.0
    %3098 = vmatpush1.msra.mxu0 0.0
    %3099 = vmatprep.subr.mxu0 0.0
    %3100 = vmatpush1.msra.mxu0 0.0
    %3101 = vmatprep.subr.mxu0 0.0
    %3102 = vmatpush1.msra.mxu0 0.0
    %3103 = vmatprep.subr.mxu0 0.0
    %3104 = vmatpush1.msra.mxu0 0.0
    %3105 = vmatprep.subr.mxu0 0.0
    %3106 = vmatpush1.msra.mxu0 0.0
    %3107 = vmatprep.subr.mxu0 %v1158
    %3108 = vmatpush1.msra.mxu0 %v1156
    %3109 = vmatprep.subr.mxu0 0.0
    %3110 = vmatpush2.msra.mxu0 0.0
    %3111 = vmatprep.subr.mxu0 0.0
    %3112 = vmatpush2.msra.mxu0 0.0
    %3113 = vmatprep.subr.mxu0 0.0
    %3114 = vmatpush2.msra.mxu0 0.0
    %3115 = vmatprep.subr.mxu0 0.0
    %3116 = vmatpush2.msra.mxu0 0.0
    %3117 = vmatprep.subr.mxu0 0.0
    %3118 = vmatpush2.msra.mxu0 0.0
    %3119 = vmatprep.subr.mxu0 0.0
    %3120 = vmatpush2.msra.mxu0 0.0
    %3121 = vmatprep.subr.mxu0 0.0
    %3122 = vmatpush2.msra.mxu0 0.0
    %3123 = vmatprep.subr.mxu0 0.0
    %3124 = vmatpush2.msra.mxu0 0.0
    %3125 = vmatprep.subr.mxu0 0.0
    %3126 = vmatpush2.msra.mxu0 0.0
    %3127 = vmatprep.subr.mxu0 0.0
    %3128 = vmatpush2.msra.mxu0 0.0
    %3129 = vmatprep.subr.mxu0 0.0
    %3130 = vmatpush2.msra.mxu0 0.0
    %3131 = vmatprep.subr.mxu0 0.0
    %3132 = vmatpush2.msra.mxu0 0.0
    %3133 = vmatprep.subr.mxu0 0.0
    %3134 = vmatpush2.msra.mxu0 0.0
    %3135 = vmatprep.subr.mxu0 0.0
    %3136 = vmatpush2.msra.mxu0 0.0
    %3137 = vmatprep.subr.mxu0 0.0
    %3138 = vmatpush2.msra.mxu0 0.0
    %3139 = vmatprep.subr.mxu0 0.0
    %3140 = vmatpush2.msra.mxu0 0.0
    %3141 = vmatprep.mubr.f32.mxu0 0.0
    %3142 = vmatmul.mubr.f32.gmra.mxu0 %v2888
    %v3143 = vpop.f32.mrf.mxu0
    %v3144 = vadd.f32 0.0, %v3143
    %v3145 = vpop.f32.mrf.mxu0
    %v3146 = vadd.f32 0.0, %v3145
    %3147 = vmatprep.mubr.f32.mxu0 0.0
    %3148 = vmatmul.mubr.f32.gmra.mxu0 %v2891
    %v3149 = vpop.f32.mrf.mxu0
    %v3150 = vadd.f32 0.0, %v3149
    %v3151 = vpop.f32.mrf.mxu0
    %v3152 = vadd.f32 0.0, %v3151
    %3153 = vmatprep.mubr.f32.mxu0 0.0
    %3154 = vmatmul.mubr.f32.gmra.mxu0 %v2894
    %v3155 = vpop.f32.mrf.mxu0
    %v3156 = vadd.f32 0.0, %v3155
    %v3157 = vpop.f32.mrf.mxu0
    %v3158 = vadd.f32 0.0, %v3157
    %3159 = vmatprep.mubr.f32.mxu0 0.0
    %3160 = vmatmul.mubr.f32.gmra.mxu0 %v2897
    %v3161 = vpop.f32.mrf.mxu0
    %v3162 = vadd.f32 0.0, %v3161
    %v3163 = vpop.f32.mrf.mxu0
    %v3164 = vadd.f32 0.0, %v3163
    %3165 = vdwg.mxu0
    %3166 = vmatprep.subr.mxu0 0.0
    %3167 = vmatpush1.msra.mxu0 0.0
    %3168 = vmatprep.subr.mxu0 0.0
    %3169 = vmatpush1.msra.mxu0 0.0
    %3170 = vmatprep.subr.mxu0 0.0
    %3171 = vmatpush1.msra.mxu0 0.0
    %3172 = vmatprep.subr.mxu0 0.0
    %3173 = vmatpush1.msra.mxu0 0.0
    %3174 = vmatprep.subr.mxu0 0.0
    %3175 = vmatpush1.msra.mxu0 0.0
    %3176 = vmatprep.subr.mxu0 0.0
    %3177 = vmatpush1.msra.mxu0 0.0
    %3178 = vmatprep.subr.mxu0 0.0
    %3179 = vmatpush1.msra.mxu0 0.0
    %3180 = vmatprep.subr.mxu0 0.0
    %3181 = vmatpush1.msra.mxu0 0.0
    %3182 = vmatprep.subr.mxu0 0.0
    %3183 = vmatpush1.msra.mxu0 0.0
    %3184 = vmatprep.subr.mxu0 0.0
    %3185 = vmatpush1.msra.mxu0 0.0
    %3186 = vmatprep.subr.mxu0 0.0
    %3187 = vmatpush1.msra.mxu0 0.0
    %3188 = vmatprep.subr.mxu0 0.0
    %3189 = vmatpush1.msra.mxu0 0.0
    %3190 = vmatprep.subr.mxu0 0.0
    %3191 = vmatpush1.msra.mxu0 0.0
    %3192 = vmatprep.subr.mxu0 0.0
    %3193 = vmatpush1.msra.mxu0 0.0
    %3194 = vmatprep.subr.mxu0 0.0
    %3195 = vmatpush1.msra.mxu0 0.0
    %3196 = vmatprep.subr.mxu0 %v1162
    %3197 = vmatpush1.msra.mxu0 %v1160
    %3198 = vmatprep.subr.mxu0 0.0
    %3199 = vmatpush2.msra.mxu0 0.0
    %3200 = vmatprep.subr.mxu0 0.0
    %3201 = vmatpush2.msra.mxu0 0.0
    %3202 = vmatprep.subr.mxu0 0.0
    %3203 = vmatpush2.msra.mxu0 0.0
    %3204 = vmatprep.subr.mxu0 0.0
    %3205 = vmatpush2.msra.mxu0 0.0
    %3206 = vmatprep.subr.mxu0 0.0
    %3207 = vmatpush2.msra.mxu0 0.0
    %3208 = vmatprep.subr.mxu0 0.0
    %3209 = vmatpush2.msra.mxu0 0.0
    %3210 = vmatprep.subr.mxu0 0.0
    %3211 = vmatpush2.msra.mxu0 0.0
    %3212 = vmatprep.subr.mxu0 0.0
    %3213 = vmatpush2.msra.mxu0 0.0
    %3214 = vmatprep.subr.mxu0 0.0
    %3215 = vmatpush2.msra.mxu0 0.0
    %3216 = vmatprep.subr.mxu0 0.0
    %3217 = vmatpush2.msra.mxu0 0.0
    %3218 = vmatprep.subr.mxu0 0.0
    %3219 = vmatpush2.msra.mxu0 0.0
    %3220 = vmatprep.subr.mxu0 0.0
    %3221 = vmatpush2.msra.mxu0 0.0
    %3222 = vmatprep.subr.mxu0 0.0
    %3223 = vmatpush2.msra.mxu0 0.0
    %3224 = vmatprep.subr.mxu0 0.0
    %3225 = vmatpush2.msra.mxu0 0.0
    %3226 = vmatprep.subr.mxu0 0.0
    %3227 = vmatpush2.msra.mxu0 0.0
    %3228 = vmatprep.subr.mxu0 0.0
    %3229 = vmatpush2.msra.mxu0 0.0
    %3230 = vmatprep.mubr.f32.mxu0 0.0
    %3231 = vmatmul.mubr.f32.gmra.mxu0 %v2888
    %v3232 = vpop.f32.mrf.mxu0
    %v3233 = vadd.f32 0.0, %v3232
    %v3234 = vpop.f32.mrf.mxu0
    %v3235 = vadd.f32 0.0, %v3234
    %3236 = vmatprep.mubr.f32.mxu0 0.0
    %3237 = vmatmul.mubr.f32.gmra.mxu0 %v2891
    %v3238 = vpop.f32.mrf.mxu0
    %v3239 = vadd.f32 0.0, %v3238
    %v3240 = vpop.f32.mrf.mxu0
    %v3241 = vadd.f32 0.0, %v3240
    %3242 = vmatprep.mubr.f32.mxu0 0.0
    %3243 = vmatmul.mubr.f32.gmra.mxu0 %v2894
    %v3244 = vpop.f32.mrf.mxu0
    %v3245 = vadd.f32 0.0, %v3244
    %v3246 = vpop.f32.mrf.mxu0
    %v3247 = vadd.f32 0.0, %v3246
    %3248 = vmatprep.mubr.f32.mxu0 0.0
    %3249 = vmatmul.mubr.f32.gmra.mxu0 %v2897
    %v3250 = vpop.f32.mrf.mxu0
    %v3251 = vadd.f32 0.0, %v3250
    %v3252 = vpop.f32.mrf.mxu0
    %v3253 = vadd.f32 0.0, %v3252
    %3254 = vdwg.mxu0
    %v3255 = vsel %vm1520, %v2854, 0.0
    %v3256 = vrot.slane %v3255, 4
    %v3257 = vadd.f32 %v3255, %v3256
    %v3258 = vrot.slane %v3257, 2
    %v3259 = vadd.f32 %v3257, %v3258
    %v3260 = vrot.slane %v3259, 1
    %v3261 = vadd.f32 %v3259, %v3260
    %v3262 = vsel %vm886, %v2846, 0
    %3264 = vmatprep.subr.mxu0 0.0
    %3265 = vmatpush1.msra.mxu0 0.0
    %3266 = vmatprep.subr.mxu0 0.0
    %3267 = vmatpush1.msra.mxu0 0.0
    %3268 = vmatprep.subr.mxu0 0.0
    %3269 = vmatpush1.msra.mxu0 0.0
    %3270 = vmatprep.subr.mxu0 0.0
    %3271 = vmatpush1.msra.mxu0 0.0
    %3272 = vmatprep.subr.mxu0 0.0
    %3273 = vmatpush1.msra.mxu0 0.0
    %3274 = vmatprep.subr.mxu0 0.0
    %3275 = vmatpush1.msra.mxu0 0.0
    %3276 = vmatprep.subr.mxu0 0.0
    %3277 = vmatpush1.msra.mxu0 0.0
    %3278 = vmatprep.subr.mxu0 0.0
    %3279 = vmatpush1.msra.mxu0 0.0
    %3280 = vmatprep.subr.mxu0 0.0
    %3281 = vmatpush1.msra.mxu0 0.0
    %3282 = vmatprep.subr.mxu0 0.0
    %3283 = vmatpush1.msra.mxu0 0.0
    %3284 = vmatprep.subr.mxu0 0.0
    %3285 = vmatpush1.msra.mxu0 0.0
    %3286 = vmatprep.subr.mxu0 0.0
    %3287 = vmatpush1.msra.mxu0 0.0
    %3288 = vmatprep.subr.mxu0 0.0
    %3289 = vmatpush1.msra.mxu0 0.0
    %3290 = vmatprep.subr.mxu0 0.0
    %3291 = vmatpush1.msra.mxu0 0.0
    %3292 = vmatprep.subr.mxu0 0.0
    %3293 = vmatpush1.msra.mxu0 0.0
    %3294 = vmatprep.subr.mxu0 0.0
    %3295 = vmatpush1.msra.mxu0 %v3262
    %3296 = vmatprep.subr.mxu0 0.0
    %3297 = vmatpush2.msra.mxu0 0.0
    %3298 = vmatprep.subr.mxu0 0.0
    %3299 = vmatpush2.msra.mxu0 0.0
    %3300 = vmatprep.subr.mxu0 0.0
    %3301 = vmatpush2.msra.mxu0 0.0
    %3302 = vmatprep.subr.mxu0 0.0
    %3303 = vmatpush2.msra.mxu0 0.0
    %3304 = vmatprep.subr.mxu0 0.0
    %3305 = vmatpush2.msra.mxu0 0.0
    %3306 = vmatprep.subr.mxu0 0.0
    %3307 = vmatpush2.msra.mxu0 0.0
    %3308 = vmatprep.subr.mxu0 0.0
    %3309 = vmatpush2.msra.mxu0 0.0
    %3310 = vmatprep.subr.mxu0 0.0
    %3311 = vmatpush2.msra.mxu0 0.0
    %3312 = vmatprep.subr.mxu0 0.0
    %3313 = vmatpush2.msra.mxu0 0.0
    %3314 = vmatprep.subr.mxu0 0.0
    %3315 = vmatpush2.msra.mxu0 0.0
    %3316 = vmatprep.subr.mxu0 0.0
    %3317 = vmatpush2.msra.mxu0 0.0
    %3318 = vmatprep.subr.mxu0 0.0
    %3319 = vmatpush2.msra.mxu0 0.0
    %3320 = vmatprep.subr.mxu0 0.0
    %3321 = vmatpush2.msra.mxu0 0.0
    %3322 = vmatprep.subr.mxu0 0.0
    %3323 = vmatpush2.msra.mxu0 0.0
    %3324 = vmatprep.subr.mxu0 0.0
    %3325 = vmatpush2.msra.mxu0 0.0
    %3326 = vmatprep.subr.mxu0 0.0
    %3327 = vmatpush2.msra.mxu0 0.0
    %3328 = vmatprep.mubr.f32.mxu0 0.0
    %3329 = vmatmul.mubr.f32.gmra.mxu0 %v1561
    %v3330 = vpop.f32.mrf.mxu0
    %v3331 = vadd.f32 0.0, %v3330
    %v3332 = vpop.f32.mrf.mxu0
    %3333 = vmatprep.mubr.f32.mxu0 0.0
    %3334 = vmatmul.mubr.f32.gmra.mxu0 %v1564
    %v3335 = vpop.f32.mrf.mxu0
    %v3336 = vadd.f32 0.0, %v3335
    %v3337 = vpop.f32.mrf.mxu0
    %3338 = vmatprep.mubr.f32.mxu0 0.0
    %3339 = vmatmul.mubr.f32.gmra.mxu0 %v1567
    %v3340 = vpop.f32.mrf.mxu0
    %v3341 = vadd.f32 0.0, %v3340
    %v3342 = vpop.f32.mrf.mxu0
    %3343 = vmatprep.mubr.f32.mxu0 0.0
    %3344 = vmatmul.mubr.f32.gmra.mxu0 %v1570
    %v3345 = vpop.f32.mrf.mxu0
    %v3346 = vadd.f32 0.0, %v3345
    %v3347 = vpop.f32.mrf.mxu0
    %3348 = vmatprep.mubr.f32.mxu0 0.0
    %3349 = vmatmul.mubr.f32.gmra.mxu0 %v1573
    %v3350 = vpop.f32.mrf.mxu0
    %v3351 = vadd.f32 0.0, %v3350
    %v3352 = vpop.f32.mrf.mxu0
    %3353 = vmatprep.mubr.f32.mxu0 0.0
    %3354 = vmatmul.mubr.f32.gmra.mxu0 %v1576
    %v3355 = vpop.f32.mrf.mxu0
    %v3356 = vadd.f32 0.0, %v3355
    %v3357 = vpop.f32.mrf.mxu0
    %3358 = vmatprep.mubr.f32.mxu0 0.0
    %3359 = vmatmul.mubr.f32.gmra.mxu0 %v1579
    %v3360 = vpop.f32.mrf.mxu0
    %v3361 = vadd.f32 0.0, %v3360
    %v3362 = vpop.f32.mrf.mxu0
    %3363 = vmatprep.mubr.f32.mxu0 0.0
    %3364 = vmatmul.mubr.f32.gmra.mxu0 %v1582
    %v3365 = vpop.f32.mrf.mxu0
    %v3366 = vadd.f32 0.0, %v3365
    %v3367 = vpop.f32.mrf.mxu0
    %3368 = vdwg.mxu0
    %vm3369 = vcmp.gt.f32.partialorder %v2082, 0.0
    %vm3370 = vcmp.gt.f32.partialorder %v2087, 0.0
    %vm3371 = vcmp.gt.f32.partialorder %v2092, 0.0
    %vm3372 = vcmp.gt.f32.partialorder %v2097, 0.0
    %vm3373 = vcmp.gt.f32.partialorder %v2102, 0.0
    %vm3374 = vcmp.gt.f32.partialorder %v2107, 0.0
    %vm3375 = vcmp.gt.f32.partialorder %v2112, 0.0
    %vm3376 = vcmp.gt.f32.partialorder %v2117, 0.0
    %v3377 = vsel %vm3369, %v3331, 0.0
    %v3378 = vsel %vm3370, %v3336, 0.0
    %v3379 = vsel %vm3371, %v3341, 0.0
    %v3380 = vsel %vm3372, %v3346, 0.0
    %v3381 = vsel %vm3373, %v3351, 0.0
    %v3382 = vsel %vm3374, %v3356, 0.0
    %v3383 = vsel %vm3375, %v3361, 0.0
    %v3384 = vsel %vm3376, %v3366, 0.0
    %3385 = vmatprep.subr.mxu0 0.0
    %3386 = vmatpush1.msra.mxu0 0.0
    %3387 = vmatprep.subr.mxu0 0.0
    %3388 = vmatpush1.msra.mxu0 0.0
    %3389 = vmatprep.subr.mxu0 0.0
    %3390 = vmatpush1.msra.mxu0 0.0
    %3391 = vmatprep.subr.mxu0 0.0
    %3392 = vmatpush1.msra.mxu0 0.0
    %3393 = vmatprep.subr.mxu0 0.0
    %3394 = vmatpush1.msra.mxu0 0.0
    %3395 = vmatprep.subr.mxu0 0.0
    %3396 = vmatpush1.msra.mxu0 0.0
    %3397 = vmatprep.subr.mxu0 0.0
    %3398 = vmatpush1.msra.mxu0 0.0
    %3399 = vmatprep.subr.mxu0 0.0
    %3400 = vmatpush1.msra.mxu0 0.0
    %3401 = vmatprep.subr.mxu0 0.0
    %3402 = vmatpush1.msra.mxu0 %v3384
    %3403 = vmatprep.subr.mxu0 0.0
    %3404 = vmatpush1.msra.mxu0 %v3383
    %3405 = vmatprep.subr.mxu0 0.0
    %3406 = vmatpush1.msra.mxu0 %v3382
    %3407 = vmatprep.subr.mxu0 0.0
    %3408 = vmatpush1.msra.mxu0 %v3381
    %3409 = vmatprep.subr.mxu0 0.0
    %3410 = vmatpush1.msra.mxu0 %v3380
    %3411 = vmatprep.subr.mxu0 0.0
    %3412 = vmatpush1.msra.mxu0 %v3379
    %3413 = vmatprep.subr.mxu0 0.0
    %3414 = vmatpush1.msra.mxu0 %v3378
    %3415 = vmatprep.subr.mxu0 0.0
    %3416 = vmatpush1.msra.mxu0 %v3377
    %3417 = vmatprep.subr.mxu0 0.0
    %3418 = vmatpush2.msra.mxu0 0.0
    %3419 = vmatprep.subr.mxu0 0.0
    %3420 = vmatpush2.msra.mxu0 0.0
    %3421 = vmatprep.subr.mxu0 0.0
    %3422 = vmatpush2.msra.mxu0 0.0
    %3423 = vmatprep.subr.mxu0 0.0
    %3424 = vmatpush2.msra.mxu0 0.0
    %3425 = vmatprep.subr.mxu0 0.0
    %3426 = vmatpush2.msra.mxu0 0.0
    %3427 = vmatprep.subr.mxu0 0.0
    %3428 = vmatpush2.msra.mxu0 0.0
    %3429 = vmatprep.subr.mxu0 0.0
    %3430 = vmatpush2.msra.mxu0 0.0
    %3431 = vmatprep.subr.mxu0 0.0
    %3432 = vmatpush2.msra.mxu0 0.0
    %3433 = vmatprep.subr.mxu0 0.0
    %3434 = vmatpush2.msra.mxu0 0.0
    %3435 = vmatprep.subr.mxu0 0.0
    %3436 = vmatpush2.msra.mxu0 0.0
    %3437 = vmatprep.subr.mxu0 0.0
    %3438 = vmatpush2.msra.mxu0 0.0
    %3439 = vmatprep.subr.mxu0 0.0
    %3440 = vmatpush2.msra.mxu0 0.0
    %3441 = vmatprep.subr.mxu0 0.0
    %3442 = vmatpush2.msra.mxu0 0.0
    %3443 = vmatprep.subr.mxu0 0.0
    %3444 = vmatpush2.msra.mxu0 0.0
    %3445 = vmatprep.subr.mxu0 0.0
    %3446 = vmatpush2.msra.mxu0 0.0
    %3447 = vmatprep.subr.mxu0 0.0
    %3448 = vmatpush2.msra.mxu0 0.0
    %3449 = vmatprep.mubr.f32.mxu0 0.0
    %3450 = vmatmul.mubr.f32.gmra.mxu0 %v1740
    %v3451 = vpop.f32.mrf.mxu0
    %v3452 = vadd.f32 0.0, %v3451
    %v3453 = vpop.f32.mrf.mxu0
    %3454 = vdwg.mxu0
    %v3455 = vsel %vm51, %v3377, 0.0
    %v3456 = vsel %vm51, %v3378, 0.0
    %v3457 = vadd.f32 %v3455, %v3456
    %v3458 = vsel %vm51, %v3379, 0.0
    %v3459 = vadd.f32 %v3457, %v3458
    %v3460 = vsel %vm51, %v3380, 0.0
    %v3461 = vadd.f32 %v3459, %v3460
    %v3462 = vsel %vm51, %v3381, 0.0
    %v3463 = vadd.f32 %v3461, %v3462
    %v3464 = vsel %vm51, %v3382, 0.0
    %v3465 = vadd.f32 %v3463, %v3464
    %v3466 = vsel %vm51, %v3383, 0.0
    %v3467 = vadd.f32 %v3465, %v3466
    %v3468 = vsel %vm51, %v3384, 0.0
    %v3469 = vadd.f32 %v3467, %v3468
    %v3470 = vrot.slane %v3469, 4
    %v3471 = vadd.f32 %v3469, %v3470
    %v3472 = vrot.slane %v3471, 2
    %v3473 = vadd.f32 %v3471, %v3472
    %v3474 = vrot.slane %v3473, 1
    %v3475 = vadd.f32 %v3473, %v3474
    %v3476 = vmul.f32 %v3452, 0.001
    %v3477 = vsub.f32 %v1965, %v3476
    %3478 = vst.msk [vmem:[#allocation2] sm:$0xff] %vm51, %v3477
    %v3479 = vmul.f32 %v3475, 0.001
    %v3480 = vsub.f32 %v1966, %v3479
    %3481 = vst.msk [vmem:[#allocation3] sm:$0x1] %vm54, %v3480
    %v3482 = vmul.f32 %v2966, 0.001
    %v3483 = vmul.f32 %v2968, 0.001
    %v3484 = vmul.f32 %v3055, 0.001
    %v3485 = vmul.f32 %v3057, 0.001
    %v3486 = vmul.f32 %v3144, 0.001
    %v3487 = vmul.f32 %v3146, 0.001
    %v3488 = vmul.f32 %v3233, 0.001
    %v3489 = vmul.f32 %v3235, 0.001
    %v3490 = vmul.f32 %v2972, 0.001
    %v3491 = vmul.f32 %v2974, 0.001
    %v3492 = vmul.f32 %v3061, 0.001
    %v3493 = vmul.f32 %v3063, 0.001
    %v3494 = vmul.f32 %v3150, 0.001
    %v3495 = vmul.f32 %v3152, 0.001
    %v3496 = vmul.f32 %v3239, 0.001
    %v3497 = vmul.f32 %v3241, 0.001
    %v3498 = vmul.f32 %v2978, 0.001
    %v3499 = vmul.f32 %v2980, 0.001
    %v3500 = vmul.f32 %v3067, 0.001
    %v3501 = vmul.f32 %v3069, 0.001
    %v3502 = vmul.f32 %v3156, 0.001
    %v3503 = vmul.f32 %v3158, 0.001
    %v3504 = vmul.f32 %v3245, 0.001
    %v3505 = vmul.f32 %v3247, 0.001
    %v3506 = vmul.f32 %v2984, 0.001
    %v3507 = vmul.f32 %v2986, 0.001
    %v3508 = vmul.f32 %v3073, 0.001
    %v3509 = vmul.f32 %v3075, 0.001
    %v3510 = vmul.f32 %v3162, 0.001
    %v3511 = vmul.f32 %v3164, 0.001
    %v3512 = vmul.f32 %v3251, 0.001
    %v3513 = vmul.f32 %v3253, 0.001
    %v3514 = vsub.f32 %v1967, %v3482
    %v3515 = vsub.f32 %v1968, %v3483
    %v3516 = vsub.f32 %v1969, %v3484
    %v3517 = vsub.f32 %v1970, %v3485
    %v3518 = vsub.f32 %v1971, %v3486
    %v3519 = vsub.f32 %v1972, %v3487
    %v3520 = vsub.f32 %v1973, %v3488
    %v3521 = vsub.f32 %v1974, %v3489
    %v3522 = vsub.f32 %v1975, %v3490
    %v3523 = vsub.f32 %v1976, %v3491
    %v3524 = vsub.f32 %v1977, %v3492
    %v3525 = vsub.f32 %v1978, %v3493
    %v3526 = vsub.f32 %v1979, %v3494
    %v3527 = vsub.f32 %v1980, %v3495
    %v3528 = vsub.f32 %v1981, %v3496
    %v3529 = vsub.f32 %v1982, %v3497
    %v3530 = vsub.f32 %v1983, %v3498
    %v3531 = vsub.f32 %v1984, %v3499
    %v3532 = vsub.f32 %v1985, %v3500
    %v3533 = vsub.f32 %v1986, %v3501
    %v3534 = vsub.f32 %v1987, %v3502
    %v3535 = vsub.f32 %v1988, %v3503
    %v3536 = vsub.f32 %v1989, %v3504
    %v3537 = vsub.f32 %v1990, %v3505
    %v3538 = vsub.f32 %v1991, %v3506
    %v3539 = vsub.f32 %v1992, %v3507
    %v3540 = vsub.f32 %v1993, %v3508
    %v3541 = vsub.f32 %v1994, %v3509
    %v3542 = vsub.f32 %v1995, %v3510
    %v3543 = vsub.f32 %v1996, %v3511
    %v3544 = vsub.f32 %v1997, %v3512
    %v3545 = vsub.f32 %v1998, %v3513
    %3546 = vst [vmem:[#allocation4] sm:$0xff] %v3514
    %3547 = vst [vmem:[#allocation4 + $0x8] sm:$0xff] %v3515
    %3548 = vst [vmem:[#allocation4 + $0x10] sm:$0xff] %v3516
    %3549 = vst [vmem:[#allocation4 + $0x18] sm:$0xff] %v3517
    %3550 = vst [vmem:[#allocation4 + $0x20] sm:$0xff] %v3518
    %3551 = vst [vmem:[#allocation4 + $0x28] sm:$0xff] %v3519
    %3552 = vst [vmem:[#allocation4 + $0x30] sm:$0xff] %v3520
    %3553 = vst [vmem:[#allocation4 + $0x38] sm:$0xff] %v3521
    %3554 = vst [vmem:[#allocation4 + $0x40] sm:$0xff] %v3522
    %3555 = vst [vmem:[#allocation4 + $0x48] sm:$0xff] %v3523
    %3556 = vst [vmem:[#allocation4 + $0x50] sm:$0xff] %v3524
    %3557 = vst [vmem:[#allocation4 + $0x58] sm:$0xff] %v3525
    %3558 = vst [vmem:[#allocation4 + $0x60] sm:$0xff] %v3526
    %3559 = vst [vmem:[#allocation4 + $0x68] sm:$0xff] %v3527
    %3560 = vst [vmem:[#allocation4 + $0x70] sm:$0xff] %v3528
    %3561 = vst [vmem:[#allocation4 + $0x78] sm:$0xff] %v3529
    %3562 = vst [vmem:[#allocation4 + $0x80] sm:$0xff] %v3530
    %3563 = vst [vmem:[#allocation4 + $0x88] sm:$0xff] %v3531
    %3564 = vst [vmem:[#allocation4 + $0x90] sm:$0xff] %v3532
    %3565 = vst [vmem:[#allocation4 + $0x98] sm:$0xff] %v3533
    %3566 = vst [vmem:[#allocation4 + $0xa0] sm:$0xff] %v3534
    %3567 = vst [vmem:[#allocation4 + $0xa8] sm:$0xff] %v3535
    %3568 = vst [vmem:[#allocation4 + $0xb0] sm:$0xff] %v3536
    %3569 = vst [vmem:[#allocation4 + $0xb8] sm:$0xff] %v3537
    %3570 = vst [vmem:[#allocation4 + $0xc0] sm:$0xff] %v3538
    %3571 = vst [vmem:[#allocation4 + $0xc8] sm:$0xff] %v3539
    %3572 = vst [vmem:[#allocation4 + $0xd0] sm:$0xff] %v3540
    %3573 = vst [vmem:[#allocation4 + $0xd8] sm:$0xff] %v3541
    %3574 = vst [vmem:[#allocation4 + $0xe0] sm:$0xff] %v3542
    %3575 = vst [vmem:[#allocation4 + $0xe8] sm:$0xff] %v3543
    %3576 = vst [vmem:[#allocation4 + $0xf0] sm:$0xff] %v3544
    %3577 = vst [vmem:[#allocation4 + $0xf8] sm:$0xff] %v3545
    %v3578 = vmul.f32 %v3261, 0.001
    %v3579 = vsub.f32 %v1999, %v3578
    %3580 = vst.msk [vmem:[#allocation5] sm:$0x1] %vm54, %v3579
    %v3581 = vmul.f32 %v2708, 0.001
    %v3582 = vmul.f32 %v2713, 0.001
    %v3583 = vmul.f32 %v2718, 0.001
    %v3584 = vmul.f32 %v2723, 0.001
    %v3585 = vmul.f32 %v2728, 0.001
    %v3586 = vmul.f32 %v2733, 0.001
    %v3587 = vmul.f32 %v2738, 0.001
    %v3588 = vmul.f32 %v2743, 0.001
    %v3589 = vsub.f32 %v2000, %v3581
    %v3590 = vsub.f32 %v2001, %v3582
    %v3591 = vsub.f32 %v2002, %v3583
    %v3592 = vsub.f32 %v2003, %v3584
    %v3593 = vsub.f32 %v2004, %v3585
    %v3594 = vsub.f32 %v2005, %v3586
    %v3595 = vsub.f32 %v2006, %v3587
    %v3596 = vsub.f32 %v2007, %v3588
    %3597 = vst.msk [vmem:[#allocation6] sm:$0xff] %vm130, %v3589
    %3598 = vst.msk [vmem:[#allocation6 + $0x8] sm:$0xff] %vm130, %v3590
    %3599 = vst.msk [vmem:[#allocation6 + $0x10] sm:$0xff] %vm130, %v3591
    %3600 = vst.msk [vmem:[#allocation6 + $0x18] sm:$0xff] %vm130, %v3592
    %3601 = vst.msk [vmem:[#allocation6 + $0x20] sm:$0xff] %vm130, %v3593
    %3602 = vst.msk [vmem:[#allocation6 + $0x28] sm:$0xff] %vm130, %v3594
    %3603 = vst.msk [vmem:[#allocation6 + $0x30] sm:$0xff] %vm130, %v3595
    %3604 = vst.msk [vmem:[#allocation6 + $0x38] sm:$0xff] %vm130, %v3596
    %v3605 = vmul.f32 %v2752, 0.001
    %v3606 = vsub.f32 %v2008, %v3605
    %3607 = vst.msk [vmem:[#allocation7] sm:$0x1] %vm140, %v3606
    %v3608 = vld [vmem:[#allocation2] sm:$0xff]
    %v3609 = vld [vmem:[#allocation3] sm:$0x1]
    %v3610 = vld [vmem:[#allocation4] sm:$0xff]
    %v3611 = vld [vmem:[#allocation4 + $0x8] sm:$0xff]
    %v3612 = vld [vmem:[#allocation4 + $0x10] sm:$0xff]
    %v3613 = vld [vmem:[#allocation4 + $0x18] sm:$0xff]
    %v3614 = vld [vmem:[#allocation4 + $0x20] sm:$0xff]
    %v3615 = vld [vmem:[#allocation4 + $0x28] sm:$0xff]
    %v3616 = vld [vmem:[#allocation4 + $0x30] sm:$0xff]
    %v3617 = vld [vmem:[#allocation4 + $0x38] sm:$0xff]
    %v3618 = vld [vmem:[#allocation4 + $0x40] sm:$0xff]
    %v3619 = vld [vmem:[#allocation4 + $0x48] sm:$0xff]
    %v3620 = vld [vmem:[#allocation4 + $0x50] sm:$0xff]
    %v3621 = vld [vmem:[#allocation4 + $0x58] sm:$0xff]
    %v3622 = vld [vmem:[#allocation4 + $0x60] sm:$0xff]
    %v3623 = vld [vmem:[#allocation4 + $0x68] sm:$0xff]
    %v3624 = vld [vmem:[#allocation4 + $0x70] sm:$0xff]
    %v3625 = vld [vmem:[#allocation4 + $0x78] sm:$0xff]
    %v3626 = vld [vmem:[#allocation4 + $0x80] sm:$0xff]
    %v3627 = vld [vmem:[#allocation4 + $0x88] sm:$0xff]
    %v3628 = vld [vmem:[#allocation4 + $0x90] sm:$0xff]
    %v3629 = vld [vmem:[#allocation4 + $0x98] sm:$0xff]
    %v3630 = vld [vmem:[#allocation4 + $0xa0] sm:$0xff]
    %v3631 = vld [vmem:[#allocation4 + $0xa8] sm:$0xff]
    %v3632 = vld [vmem:[#allocation4 + $0xb0] sm:$0xff]
    %v3633 = vld [vmem:[#allocation4 + $0xb8] sm:$0xff]
    %v3634 = vld [vmem:[#allocation4 + $0xc0] sm:$0xff]
    %v3635 = vld [vmem:[#allocation4 + $0xc8] sm:$0xff]
    %v3636 = vld [vmem:[#allocation4 + $0xd0] sm:$0xff]
    %v3637 = vld [vmem:[#allocation4 + $0xd8] sm:$0xff]
    %v3638 = vld [vmem:[#allocation4 + $0xe0] sm:$0xff]
    %v3639 = vld [vmem:[#allocation4 + $0xe8] sm:$0xff]
    %v3640 = vld [vmem:[#allocation4 + $0xf0] sm:$0xff]
    %v3641 = vld [vmem:[#allocation4 + $0xf8] sm:$0xff]
    %v3642 = vld [vmem:[#allocation5] sm:$0x1]
    %v3643 = vld [vmem:[#allocation6] sm:$0xff]
    %v3644 = vld [vmem:[#allocation6 + $0x8] sm:$0xff]
    %v3645 = vld [vmem:[#allocation6 + $0x10] sm:$0xff]
    %v3646 = vld [vmem:[#allocation6 + $0x18] sm:$0xff]
    %v3647 = vld [vmem:[#allocation6 + $0x20] sm:$0xff]
    %v3648 = vld [vmem:[#allocation6 + $0x28] sm:$0xff]
    %v3649 = vld [vmem:[#allocation6 + $0x30] sm:$0xff]
    %v3650 = vld [vmem:[#allocation6 + $0x38] sm:$0xff]
    %v3651 = vld [vmem:[#allocation7] sm:$0x1]
    %v3653 = vlaneseq
    %v3654 = vshrl.u32 %v3653, 7
    %v3655 = vsub.s32 0, %v3654
    %v3656 = vrot.slane %v3609, %v3655
    %3658 = vmatprep.subr.mxu0 0.0
    %3659 = vmatpush1.msra.mxu0 0.0
    %3660 = vmatprep.subr.mxu0 0.0
    %3661 = vmatpush1.msra.mxu0 0.0
    %3662 = vmatprep.subr.mxu0 0.0
    %3663 = vmatpush1.msra.mxu0 0.0
    %3664 = vmatprep.subr.mxu0 0.0
    %3665 = vmatpush1.msra.mxu0 0.0
    %3666 = vmatprep.subr.mxu0 0.0
    %3667 = vmatpush1.msra.mxu0 0.0
    %3668 = vmatprep.subr.mxu0 0.0
    %3669 = vmatpush1.msra.mxu0 0.0
    %3670 = vmatprep.subr.mxu0 0.0
    %3671 = vmatpush1.msra.mxu0 0.0
    %3672 = vmatprep.subr.mxu0 0.0
    %3673 = vmatpush1.msra.mxu0 0.0
    %3674 = vmatprep.subr.mxu0 0.0
    %3675 = vmatpush1.msra.mxu0 0.0
    %3676 = vmatprep.subr.mxu0 0.0
    %3677 = vmatpush1.msra.mxu0 0.0
    %3678 = vmatprep.subr.mxu0 0.0
    %3679 = vmatpush1.msra.mxu0 0.0
    %3680 = vmatprep.subr.mxu0 0.0
    %3681 = vmatpush1.msra.mxu0 0.0
    %3682 = vmatprep.subr.mxu0 0.0
    %3683 = vmatpush1.msra.mxu0 0.0
    %3684 = vmatprep.subr.mxu0 0.0
    %3685 = vmatpush1.msra.mxu0 0.0
    %3686 = vmatprep.subr.mxu0 0.0
    %3687 = vmatpush1.msra.mxu0 0.0
    %3688 = vmatprep.subr.mxu0 0.0
    %3689 = vmatpush1.msra.mxu0 %v3608
    %3690 = vmatprep.subr.mxu0 0.0
    %3691 = vmatpush2.msra.mxu0 0.0
    %3692 = vmatprep.subr.mxu0 0.0
    %3693 = vmatpush2.msra.mxu0 0.0
    %3694 = vmatprep.subr.mxu0 0.0
    %3695 = vmatpush2.msra.mxu0 0.0
    %3696 = vmatprep.subr.mxu0 0.0
    %3697 = vmatpush2.msra.mxu0 0.0
    %3698 = vmatprep.subr.mxu0 0.0
    %3699 = vmatpush2.msra.mxu0 0.0
    %3700 = vmatprep.subr.mxu0 0.0
    %3701 = vmatpush2.msra.mxu0 0.0
    %3702 = vmatprep.subr.mxu0 0.0
    %3703 = vmatpush2.msra.mxu0 0.0
    %3704 = vmatprep.subr.mxu0 0.0
    %3705 = vmatpush2.msra.mxu0 0.0
    %3706 = vmatprep.subr.mxu0 0.0
    %3707 = vmatpush2.msra.mxu0 0.0
    %3708 = vmatprep.subr.mxu0 0.0
    %3709 = vmatpush2.msra.mxu0 0.0
    %3710 = vmatprep.subr.mxu0 0.0
    %3711 = vmatpush2.msra.mxu0 0.0
    %3712 = vmatprep.subr.mxu0 0.0
    %3713 = vmatpush2.msra.mxu0 0.0
    %3714 = vmatprep.subr.mxu0 0.0
    %3715 = vmatpush2.msra.mxu0 0.0
    %3716 = vmatprep.subr.mxu0 0.0
    %3717 = vmatpush2.msra.mxu0 0.0
    %3718 = vmatprep.subr.mxu0 0.0
    %3719 = vmatpush2.msra.mxu0 0.0
    %3720 = vmatprep.subr.mxu0 0.0
    %3721 = vmatpush2.msra.mxu0 0.0
    %3722 = vmatprep.mubr.f32.mxu0 0.0
    %3723 = vmatmul.mubr.f32.gmra.mxu0 %v222
    %v3724 = vpop.f32.mrf.mxu0
    %v3725 = vadd.f32 %v3656, %v3724
    %v3726 = vpop.f32.mrf.mxu0
    %3727 = vmatprep.mubr.f32.mxu0 0.0
    %3728 = vmatmul.mubr.f32.gmra.mxu0 %v225
    %v3729 = vpop.f32.mrf.mxu0
    %v3730 = vadd.f32 %v3656, %v3729
    %v3731 = vpop.f32.mrf.mxu0
    %3732 = vmatprep.mubr.f32.mxu0 0.0
    %3733 = vmatmul.mubr.f32.gmra.mxu0 %v228
    %v3734 = vpop.f32.mrf.mxu0
    %v3735 = vadd.f32 %v3656, %v3734
    %v3736 = vpop.f32.mrf.mxu0
    %3737 = vmatprep.mubr.f32.mxu0 0.0
    %3738 = vmatmul.mubr.f32.gmra.mxu0 %v231
    %v3739 = vpop.f32.mrf.mxu0
    %v3740 = vadd.f32 %v3656, %v3739
    %v3741 = vpop.f32.mrf.mxu0
    %3742 = vmatprep.mubr.f32.mxu0 0.0
    %3743 = vmatmul.mubr.f32.gmra.mxu0 %v234
    %v3744 = vpop.f32.mrf.mxu0
    %v3745 = vadd.f32 %v3656, %v3744
    %v3746 = vpop.f32.mrf.mxu0
    %3747 = vmatprep.mubr.f32.mxu0 0.0
    %3748 = vmatmul.mubr.f32.gmra.mxu0 %v237
    %v3749 = vpop.f32.mrf.mxu0
    %v3750 = vadd.f32 %v3656, %v3749
    %v3751 = vpop.f32.mrf.mxu0
    %3752 = vmatprep.mubr.f32.mxu0 0.0
    %3753 = vmatmul.mubr.f32.gmra.mxu0 %v240
    %v3754 = vpop.f32.mrf.mxu0
    %v3755 = vadd.f32 %v3656, %v3754
    %v3756 = vpop.f32.mrf.mxu0
    %3757 = vmatprep.mubr.f32.mxu0 0.0
    %3758 = vmatmul.mubr.f32.gmra.mxu0 %v243
    %v3759 = vpop.f32.mrf.mxu0
    %v3760 = vadd.f32 %v3656, %v3759
    %v3761 = vpop.f32.mrf.mxu0
    %3762 = vdwg.mxu0
    %v3763 = vmax.f32 %v3725, 0.0
    %v3764 = vmax.f32 %v3730, 0.0
    %v3765 = vmax.f32 %v3735, 0.0
    %v3766 = vmax.f32 %v3740, 0.0
    %v3767 = vmax.f32 %v3745, 0.0
    %v3768 = vmax.f32 %v3750, 0.0
    %v3769 = vmax.f32 %v3755, 0.0
    %v3770 = vmax.f32 %v3760, 0.0
    %3771 = vmatprep.subr.mxu0 0.0
    %3772 = vmatpush1.msra.mxu0 0.0
    %3773 = vmatprep.subr.mxu0 0.0
    %3774 = vmatpush1.msra.mxu0 0.0
    %3775 = vmatprep.subr.mxu0 0.0
    %3776 = vmatpush1.msra.mxu0 0.0
    %3777 = vmatprep.subr.mxu0 0.0
    %3778 = vmatpush1.msra.mxu0 0.0
    %3779 = vmatprep.subr.mxu0 0.0
    %3780 = vmatpush1.msra.mxu0 0.0
    %3781 = vmatprep.subr.mxu0 0.0
    %3782 = vmatpush1.msra.mxu0 0.0
    %3783 = vmatprep.subr.mxu0 0.0
    %3784 = vmatpush1.msra.mxu0 0.0
    %3785 = vmatprep.subr.mxu0 0.0
    %3786 = vmatpush1.msra.mxu0 0.0
    %3787 = vmatprep.subr.mxu0 0.0
    %3788 = vmatpush1.msra.mxu0 %v3770
    %3789 = vmatprep.subr.mxu0 0.0
    %3790 = vmatpush1.msra.mxu0 %v3769
    %3791 = vmatprep.subr.mxu0 0.0
    %3792 = vmatpush1.msra.mxu0 %v3768
    %3793 = vmatprep.subr.mxu0 0.0
    %3794 = vmatpush1.msra.mxu0 %v3767
    %3795 = vmatprep.subr.mxu0 0.0
    %3796 = vmatpush1.msra.mxu0 %v3766
    %3797 = vmatprep.subr.mxu0 0.0
    %3798 = vmatpush1.msra.mxu0 %v3765
    %3799 = vmatprep.subr.mxu0 0.0
    %3800 = vmatpush1.msra.mxu0 %v3764
    %3801 = vmatprep.subr.mxu0 0.0
    %3802 = vmatpush1.msra.mxu0 %v3763
    %3803 = vmatprep.subr.mxu0 0.0
    %3804 = vmatpush2.msra.mxu0 0.0
    %3805 = vmatprep.subr.mxu0 0.0
    %3806 = vmatpush2.msra.mxu0 0.0
    %3807 = vmatprep.subr.mxu0 0.0
    %3808 = vmatpush2.msra.mxu0 0.0
    %3809 = vmatprep.subr.mxu0 0.0
    %3810 = vmatpush2.msra.mxu0 0.0
    %3811 = vmatprep.subr.mxu0 0.0
    %3812 = vmatpush2.msra.mxu0 0.0
    %3813 = vmatprep.subr.mxu0 0.0
    %3814 = vmatpush2.msra.mxu0 0.0
    %3815 = vmatprep.subr.mxu0 0.0
    %3816 = vmatpush2.msra.mxu0 0.0
    %3817 = vmatprep.subr.mxu0 0.0
    %3818 = vmatpush2.msra.mxu0 0.0
    %3819 = vmatprep.subr.mxu0 0.0
    %3820 = vmatpush2.msra.mxu0 0.0
    %3821 = vmatprep.subr.mxu0 0.0
    %3822 = vmatpush2.msra.mxu0 0.0
    %3823 = vmatprep.subr.mxu0 0.0
    %3824 = vmatpush2.msra.mxu0 0.0
    %3825 = vmatprep.subr.mxu0 0.0
    %3826 = vmatpush2.msra.mxu0 0.0
    %3827 = vmatprep.subr.mxu0 0.0
    %3828 = vmatpush2.msra.mxu0 0.0
    %3829 = vmatprep.subr.mxu0 0.0
    %3830 = vmatpush2.msra.mxu0 0.0
    %3831 = vmatprep.subr.mxu0 0.0
    %3832 = vmatpush2.msra.mxu0 0.0
    %3833 = vmatprep.subr.mxu0 0.0
    %3834 = vmatpush2.msra.mxu0 0.0
    %3835 = vmatprep.mubr.f32.mxu0 0.0
    %3836 = vmatmul.mubr.f32.gmra.mxu0 %v360
    %v3837 = vpop.f32.mrf.mxu0
    %v3838 = vadd.f32 0.0, %v3837
    %v3839 = vpop.f32.mrf.mxu0
    %3840 = vdwg.mxu0
    %v3842 = vlaneseq
    %v3843 = vshrl.u32 %v3842, 7
    %v3844 = vsub.s32 0, %v3843
    %v3845 = vrot.slane %v3642, %v3844
    %3847 = vmatprep.subr.mxu0 0.0
    %3848 = vmatpush1.xpose.msra.mxu0 0.0
    %3849 = vmatprep.subr.mxu0 0.0
    %3850 = vmatpush1.xpose.msra.mxu0 0.0
    %3851 = vmatprep.subr.mxu0 0.0
    %3852 = vmatpush1.xpose.msra.mxu0 0.0
    %3853 = vmatprep.subr.mxu0 0.0
    %3854 = vmatpush1.xpose.msra.mxu0 0.0
    %3855 = vmatprep.subr.mxu0 0.0
    %3856 = vmatpush1.xpose.msra.mxu0 0.0
    %3857 = vmatprep.subr.mxu0 0.0
    %3858 = vmatpush1.xpose.msra.mxu0 0.0
    %3859 = vmatprep.subr.mxu0 0.0
    %3860 = vmatpush1.xpose.msra.mxu0 0.0
    %3861 = vmatprep.subr.mxu0 0.0
    %3862 = vmatpush1.xpose.msra.mxu0 0.0
    %3863 = vmatprep.subr.mxu0 0.0
    %3864 = vmatpush1.xpose.msra.mxu0 0.0
    %3865 = vmatprep.subr.mxu0 0.0
    %3866 = vmatpush1.xpose.msra.mxu0 0.0
    %3867 = vmatprep.subr.mxu0 0.0
    %3868 = vmatpush1.xpose.msra.mxu0 0.0
    %3869 = vmatprep.subr.mxu0 0.0
    %3870 = vmatpush1.xpose.msra.mxu0 0.0
    %3871 = vmatprep.subr.mxu0 %v3635
    %3872 = vmatpush1.xpose.msra.mxu0 %v3634
    %3873 = vmatprep.subr.mxu0 %v3627
    %3874 = vmatpush1.xpose.msra.mxu0 %v3626
    %3875 = vmatprep.subr.mxu0 %v3619
    %3876 = vmatpush1.xpose.msra.mxu0 %v3618
    %3877 = vmatprep.subr.mxu0 %v3611
    %3878 = vmatpush1.xpose.msra.mxu0 %v3610
    %3879 = vmatprep.subr.mxu0 0.0
    %3880 = vmatpush2.xpose.msra.mxu0 0.0
    %3881 = vmatprep.subr.mxu0 0.0
    %3882 = vmatpush2.xpose.msra.mxu0 0.0
    %3883 = vmatprep.subr.mxu0 0.0
    %3884 = vmatpush2.xpose.msra.mxu0 0.0
    %3885 = vmatprep.subr.mxu0 0.0
    %3886 = vmatpush2.xpose.msra.mxu0 0.0
    %3887 = vmatprep.subr.mxu0 0.0
    %3888 = vmatpush2.xpose.msra.mxu0 0.0
    %3889 = vmatprep.subr.mxu0 0.0
    %3890 = vmatpush2.xpose.msra.mxu0 0.0
    %3891 = vmatprep.subr.mxu0 0.0
    %3892 = vmatpush2.xpose.msra.mxu0 0.0
    %3893 = vmatprep.subr.mxu0 0.0
    %3894 = vmatpush2.xpose.msra.mxu0 0.0
    %3895 = vmatprep.subr.mxu0 0.0
    %3896 = vmatpush2.xpose.msra.mxu0 0.0
    %3897 = vmatprep.subr.mxu0 0.0
    %3898 = vmatpush2.xpose.msra.mxu0 0.0
    %3899 = vmatprep.subr.mxu0 0.0
    %3900 = vmatpush2.xpose.msra.mxu0 0.0
    %3901 = vmatprep.subr.mxu0 0.0
    %3902 = vmatpush2.xpose.msra.mxu0 0.0
    %3903 = vmatprep.subr.mxu0 0.0
    %3904 = vmatpush2.xpose.msra.mxu0 0.0
    %3905 = vmatprep.subr.mxu0 0.0
    %3906 = vmatpush2.xpose.msra.mxu0 0.0
    %3907 = vmatprep.subr.mxu0 0.0
    %3908 = vmatpush2.xpose.msra.mxu0 0.0
    %3909 = vmatprep.subr.mxu0 0.0
    %3910 = vmatpush2.xpose.msra.mxu0 0.0
    %3911 = vmatprep.mubr.f32.mxu0 %v442
    %3912 = vmatmul.mubr.f32.gmra.mxu0 %v151
    %v3913 = vpop.f32.mrf.mxu0
    %v3914 = vadd.f32 %v3845, %v3913
    %v3915 = vpop.f32.mrf.mxu0
    %3916 = vdwg.mxu0
    %3917 = vmatprep.subr.mxu0 0.0
    %3918 = vmatpush1.xpose.msra.mxu0 0.0
    %3919 = vmatprep.subr.mxu0 0.0
    %3920 = vmatpush1.xpose.msra.mxu0 0.0
    %3921 = vmatprep.subr.mxu0 0.0
    %3922 = vmatpush1.xpose.msra.mxu0 0.0
    %3923 = vmatprep.subr.mxu0 0.0
    %3924 = vmatpush1.xpose.msra.mxu0 0.0
    %3925 = vmatprep.subr.mxu0 0.0
    %3926 = vmatpush1.xpose.msra.mxu0 0.0
    %3927 = vmatprep.subr.mxu0 0.0
    %3928 = vmatpush1.xpose.msra.mxu0 0.0
    %3929 = vmatprep.subr.mxu0 0.0
    %3930 = vmatpush1.xpose.msra.mxu0 0.0
    %3931 = vmatprep.subr.mxu0 0.0
    %3932 = vmatpush1.xpose.msra.mxu0 0.0
    %3933 = vmatprep.subr.mxu0 0.0
    %3934 = vmatpush1.xpose.msra.mxu0 0.0
    %3935 = vmatprep.subr.mxu0 0.0
    %3936 = vmatpush1.xpose.msra.mxu0 0.0
    %3937 = vmatprep.subr.mxu0 0.0
    %3938 = vmatpush1.xpose.msra.mxu0 0.0
    %3939 = vmatprep.subr.mxu0 0.0
    %3940 = vmatpush1.xpose.msra.mxu0 0.0
    %3941 = vmatprep.subr.mxu0 %v3637
    %3942 = vmatpush1.xpose.msra.mxu0 %v3636
    %3943 = vmatprep.subr.mxu0 %v3629
    %3944 = vmatpush1.xpose.msra.mxu0 %v3628
    %3945 = vmatprep.subr.mxu0 %v3621
    %3946 = vmatpush1.xpose.msra.mxu0 %v3620
    %3947 = vmatprep.subr.mxu0 %v3613
    %3948 = vmatpush1.xpose.msra.mxu0 %v3612
    %3949 = vmatprep.subr.mxu0 0.0
    %3950 = vmatpush2.xpose.msra.mxu0 0.0
    %3951 = vmatprep.subr.mxu0 0.0
    %3952 = vmatpush2.xpose.msra.mxu0 0.0
    %3953 = vmatprep.subr.mxu0 0.0
    %3954 = vmatpush2.xpose.msra.mxu0 0.0
    %3955 = vmatprep.subr.mxu0 0.0
    %3956 = vmatpush2.xpose.msra.mxu0 0.0
    %3957 = vmatprep.subr.mxu0 0.0
    %3958 = vmatpush2.xpose.msra.mxu0 0.0
    %3959 = vmatprep.subr.mxu0 0.0
    %3960 = vmatpush2.xpose.msra.mxu0 0.0
    %3961 = vmatprep.subr.mxu0 0.0
    %3962 = vmatpush2.xpose.msra.mxu0 0.0
    %3963 = vmatprep.subr.mxu0 0.0
    %3964 = vmatpush2.xpose.msra.mxu0 0.0
    %3965 = vmatprep.subr.mxu0 0.0
    %3966 = vmatpush2.xpose.msra.mxu0 0.0
    %3967 = vmatprep.subr.mxu0 0.0
    %3968 = vmatpush2.xpose.msra.mxu0 0.0
    %3969 = vmatprep.subr.mxu0 0.0
    %3970 = vmatpush2.xpose.msra.mxu0 0.0
    %3971 = vmatprep.subr.mxu0 0.0
    %3972 = vmatpush2.xpose.msra.mxu0 0.0
    %3973 = vmatprep.subr.mxu0 0.0
    %3974 = vmatpush2.xpose.msra.mxu0 0.0
    %3975 = vmatprep.subr.mxu0 0.0
    %3976 = vmatpush2.xpose.msra.mxu0 0.0
    %3977 = vmatprep.subr.mxu0 0.0
    %3978 = vmatpush2.xpose.msra.mxu0 0.0
    %3979 = vmatprep.subr.mxu0 0.0
    %3980 = vmatpush2.xpose.msra.mxu0 0.0
    %3981 = vmatprep.mubr.f32.mxu0 %v443
    %3982 = vmatmul.mubr.f32.gmra.mxu0 %v152
    %v3983 = vpop.f32.mrf.mxu0
    %v3984 = vadd.f32 %v3914, %v3983
    %v3985 = vpop.f32.mrf.mxu0
    %3986 = vdwg.mxu0
    %3987 = vmatprep.subr.mxu0 0.0
    %3988 = vmatpush1.xpose.msra.mxu0 0.0
    %3989 = vmatprep.subr.mxu0 0.0
    %3990 = vmatpush1.xpose.msra.mxu0 0.0
    %3991 = vmatprep.subr.mxu0 0.0
    %3992 = vmatpush1.xpose.msra.mxu0 0.0
    %3993 = vmatprep.subr.mxu0 0.0
    %3994 = vmatpush1.xpose.msra.mxu0 0.0
    %3995 = vmatprep.subr.mxu0 0.0
    %3996 = vmatpush1.xpose.msra.mxu0 0.0
    %3997 = vmatprep.subr.mxu0 0.0
    %3998 = vmatpush1.xpose.msra.mxu0 0.0
    %3999 = vmatprep.subr.mxu0 0.0
    %4000 = vmatpush1.xpose.msra.mxu0 0.0
    %4001 = vmatprep.subr.mxu0 0.0
    %4002 = vmatpush1.xpose.msra.mxu0 0.0
    %4003 = vmatprep.subr.mxu0 0.0
    %4004 = vmatpush1.xpose.msra.mxu0 0.0
    %4005 = vmatprep.subr.mxu0 0.0
    %4006 = vmatpush1.xpose.msra.mxu0 0.0
    %4007 = vmatprep.subr.mxu0 0.0
    %4008 = vmatpush1.xpose.msra.mxu0 0.0
    %4009 = vmatprep.subr.mxu0 0.0
    %4010 = vmatpush1.xpose.msra.mxu0 0.0
    %4011 = vmatprep.subr.mxu0 %v3639
    %4012 = vmatpush1.xpose.msra.mxu0 %v3638
    %4013 = vmatprep.subr.mxu0 %v3631
    %4014 = vmatpush1.xpose.msra.mxu0 %v3630
    %4015 = vmatprep.subr.mxu0 %v3623
    %4016 = vmatpush1.xpose.msra.mxu0 %v3622
    %4017 = vmatprep.subr.mxu0 %v3615
    %4018 = vmatpush1.xpose.msra.mxu0 %v3614
    %4019 = vmatprep.subr.mxu0 0.0
    %4020 = vmatpush2.xpose.msra.mxu0 0.0
    %4021 = vmatprep.subr.mxu0 0.0
    %4022 = vmatpush2.xpose.msra.mxu0 0.0
    %4023 = vmatprep.subr.mxu0 0.0
    %4024 = vmatpush2.xpose.msra.mxu0 0.0
    %4025 = vmatprep.subr.mxu0 0.0
    %4026 = vmatpush2.xpose.msra.mxu0 0.0
    %4027 = vmatprep.subr.mxu0 0.0
    %4028 = vmatpush2.xpose.msra.mxu0 0.0
    %4029 = vmatprep.subr.mxu0 0.0
    %4030 = vmatpush2.xpose.msra.mxu0 0.0
    %4031 = vmatprep.subr.mxu0 0.0
    %4032 = vmatpush2.xpose.msra.mxu0 0.0
    %4033 = vmatprep.subr.mxu0 0.0
    %4034 = vmatpush2.xpose.msra.mxu0 0.0
    %4035 = vmatprep.subr.mxu0 0.0
    %4036 = vmatpush2.xpose.msra.mxu0 0.0
    %4037 = vmatprep.subr.mxu0 0.0
    %4038 = vmatpush2.xpose.msra.mxu0 0.0
    %4039 = vmatprep.subr.mxu0 0.0
    %4040 = vmatpush2.xpose.msra.mxu0 0.0
    %4041 = vmatprep.subr.mxu0 0.0
    %4042 = vmatpush2.xpose.msra.mxu0 0.0
    %4043 = vmatprep.subr.mxu0 0.0
    %4044 = vmatpush2.xpose.msra.mxu0 0.0
    %4045 = vmatprep.subr.mxu0 0.0
    %4046 = vmatpush2.xpose.msra.mxu0 0.0
    %4047 = vmatprep.subr.mxu0 0.0
    %4048 = vmatpush2.xpose.msra.mxu0 0.0
    %4049 = vmatprep.subr.mxu0 0.0
    %4050 = vmatpush2.xpose.msra.mxu0 0.0
    %4051 = vmatprep.mubr.f32.mxu0 %v444
    %4052 = vmatmul.mubr.f32.gmra.mxu0 %v153
    %v4053 = vpop.f32.mrf.mxu0
    %v4054 = vadd.f32 %v3984, %v4053
    %v4055 = vpop.f32.mrf.mxu0
    %4056 = vdwg.mxu0
    %4057 = vmatprep.subr.mxu0 0.0
    %4058 = vmatpush1.xpose.msra.mxu0 0.0
    %4059 = vmatprep.subr.mxu0 0.0
    %4060 = vmatpush1.xpose.msra.mxu0 0.0
    %4061 = vmatprep.subr.mxu0 0.0
    %4062 = vmatpush1.xpose.msra.mxu0 0.0
    %4063 = vmatprep.subr.mxu0 0.0
    %4064 = vmatpush1.xpose.msra.mxu0 0.0
    %4065 = vmatprep.subr.mxu0 0.0
    %4066 = vmatpush1.xpose.msra.mxu0 0.0
    %4067 = vmatprep.subr.mxu0 0.0
    %4068 = vmatpush1.xpose.msra.mxu0 0.0
    %4069 = vmatprep.subr.mxu0 0.0
    %4070 = vmatpush1.xpose.msra.mxu0 0.0
    %4071 = vmatprep.subr.mxu0 0.0
    %4072 = vmatpush1.xpose.msra.mxu0 0.0
    %4073 = vmatprep.subr.mxu0 0.0
    %4074 = vmatpush1.xpose.msra.mxu0 0.0
    %4075 = vmatprep.subr.mxu0 0.0
    %4076 = vmatpush1.xpose.msra.mxu0 0.0
    %4077 = vmatprep.subr.mxu0 0.0
    %4078 = vmatpush1.xpose.msra.mxu0 0.0
    %4079 = vmatprep.subr.mxu0 0.0
    %4080 = vmatpush1.xpose.msra.mxu0 0.0
    %4081 = vmatprep.subr.mxu0 %v3641
    %4082 = vmatpush1.xpose.msra.mxu0 %v3640
    %4083 = vmatprep.subr.mxu0 %v3633
    %4084 = vmatpush1.xpose.msra.mxu0 %v3632
    %4085 = vmatprep.subr.mxu0 %v3625
    %4086 = vmatpush1.xpose.msra.mxu0 %v3624
    %4087 = vmatprep.subr.mxu0 %v3617
    %4088 = vmatpush1.xpose.msra.mxu0 %v3616
    %4089 = vmatprep.subr.mxu0 0.0
    %4090 = vmatpush2.xpose.msra.mxu0 0.0
    %4091 = vmatprep.subr.mxu0 0.0
    %4092 = vmatpush2.xpose.msra.mxu0 0.0
    %4093 = vmatprep.subr.mxu0 0.0
    %4094 = vmatpush2.xpose.msra.mxu0 0.0
    %4095 = vmatprep.subr.mxu0 0.0
    %4096 = vmatpush2.xpose.msra.mxu0 0.0
    %4097 = vmatprep.subr.mxu0 0.0
    %4098 = vmatpush2.xpose.msra.mxu0 0.0
    %4099 = vmatprep.subr.mxu0 0.0
    %4100 = vmatpush2.xpose.msra.mxu0 0.0
    %4101 = vmatprep.subr.mxu0 0.0
    %4102 = vmatpush2.xpose.msra.mxu0 0.0
    %4103 = vmatprep.subr.mxu0 0.0
    %4104 = vmatpush2.xpose.msra.mxu0 0.0
    %4105 = vmatprep.subr.mxu0 0.0
    %4106 = vmatpush2.xpose.msra.mxu0 0.0
    %4107 = vmatprep.subr.mxu0 0.0
    %4108 = vmatpush2.xpose.msra.mxu0 0.0
    %4109 = vmatprep.subr.mxu0 0.0
    %4110 = vmatpush2.xpose.msra.mxu0 0.0
    %4111 = vmatprep.subr.mxu0 0.0
    %4112 = vmatpush2.xpose.msra.mxu0 0.0
    %4113 = vmatprep.subr.mxu0 0.0
    %4114 = vmatpush2.xpose.msra.mxu0 0.0
    %4115 = vmatprep.subr.mxu0 0.0
    %4116 = vmatpush2.xpose.msra.mxu0 0.0
    %4117 = vmatprep.subr.mxu0 0.0
    %4118 = vmatpush2.xpose.msra.mxu0 0.0
    %4119 = vmatprep.subr.mxu0 0.0
    %4120 = vmatpush2.xpose.msra.mxu0 0.0
    %4121 = vmatprep.mubr.f32.mxu0 %v445
    %4122 = vmatmul.mubr.f32.gmra.mxu0 %v154
    %v4123 = vpop.f32.mrf.mxu0
    %v4124 = vadd.f32 %v4054, %v4123
    %v4125 = vpop.f32.mrf.mxu0
    %4126 = vdwg.mxu0
    %v4127 = vmax.f32 %v4124, 0.0
    %4129 = vrot.lane.b32.xlu0 %v4127, 32
    %v4130 = vpop.permute.xlu0 %4129
    %v4132 = vsel %vm51, %v3838, %v4130
    %v4134 = vlaneseq
    %v4135 = vshrl.u32 %v4134, 7
    %v4136 = vsub.s32 0, %v4135
    %v4137 = vrot.slane %v3651, %v4136
    %v4140 = vsel %vm358, %v4132, 0
    %4142 = vmatprep.subr.mxu0 0.0
    %4143 = vmatpush1.msra.mxu0 0.0
    %4144 = vmatprep.subr.mxu0 0.0
    %4145 = vmatpush1.msra.mxu0 0.0
    %4146 = vmatprep.subr.mxu0 0.0
    %4147 = vmatpush1.msra.mxu0 0.0
    %4148 = vmatprep.subr.mxu0 0.0
    %4149 = vmatpush1.msra.mxu0 0.0
    %4150 = vmatprep.subr.mxu0 0.0
    %4151 = vmatpush1.msra.mxu0 0.0
    %4152 = vmatprep.subr.mxu0 0.0
    %4153 = vmatpush1.msra.mxu0 0.0
    %4154 = vmatprep.subr.mxu0 0.0
    %4155 = vmatpush1.msra.mxu0 0.0
    %4156 = vmatprep.subr.mxu0 0.0
    %4157 = vmatpush1.msra.mxu0 0.0
    %4158 = vmatprep.subr.mxu0 0.0
    %4159 = vmatpush1.msra.mxu0 %v3650
    %4160 = vmatprep.subr.mxu0 0.0
    %4161 = vmatpush1.msra.mxu0 %v3649
    %4162 = vmatprep.subr.mxu0 0.0
    %4163 = vmatpush1.msra.mxu0 %v3648
    %4164 = vmatprep.subr.mxu0 0.0
    %4165 = vmatpush1.msra.mxu0 %v3647
    %4166 = vmatprep.subr.mxu0 0.0
    %4167 = vmatpush1.msra.mxu0 %v3646
    %4168 = vmatprep.subr.mxu0 0.0
    %4169 = vmatpush1.msra.mxu0 %v3645
    %4170 = vmatprep.subr.mxu0 0.0
    %4171 = vmatpush1.msra.mxu0 %v3644
    %4172 = vmatprep.subr.mxu0 0.0
    %4173 = vmatpush1.msra.mxu0 %v3643
    %4174 = vmatprep.subr.mxu0 0.0
    %4175 = vmatpush2.msra.mxu0 0.0
    %4176 = vmatprep.subr.mxu0 0.0
    %4177 = vmatpush2.msra.mxu0 0.0
    %4178 = vmatprep.subr.mxu0 0.0
    %4179 = vmatpush2.msra.mxu0 0.0
    %4180 = vmatprep.subr.mxu0 0.0
    %4181 = vmatpush2.msra.mxu0 0.0
    %4182 = vmatprep.subr.mxu0 0.0
    %4183 = vmatpush2.msra.mxu0 0.0
    %4184 = vmatprep.subr.mxu0 0.0
    %4185 = vmatpush2.msra.mxu0 0.0
    %4186 = vmatprep.subr.mxu0 0.0
    %4187 = vmatpush2.msra.mxu0 0.0
    %4188 = vmatprep.subr.mxu0 0.0
    %4189 = vmatpush2.msra.mxu0 0.0
    %4190 = vmatprep.subr.mxu0 0.0
    %4191 = vmatpush2.msra.mxu0 0.0
    %4192 = vmatprep.subr.mxu0 0.0
    %4193 = vmatpush2.msra.mxu0 0.0
    %4194 = vmatprep.subr.mxu0 0.0
    %4195 = vmatpush2.msra.mxu0 0.0
    %4196 = vmatprep.subr.mxu0 0.0
    %4197 = vmatpush2.msra.mxu0 0.0
    %4198 = vmatprep.subr.mxu0 0.0
    %4199 = vmatpush2.msra.mxu0 0.0
    %4200 = vmatprep.subr.mxu0 0.0
    %4201 = vmatpush2.msra.mxu0 0.0
    %4202 = vmatprep.subr.mxu0 0.0
    %4203 = vmatpush2.msra.mxu0 0.0
    %4204 = vmatprep.subr.mxu0 0.0
    %4205 = vmatpush2.msra.mxu0 0.0
    %4206 = vmatprep.mubr.f32.mxu0 0.0
    %4207 = vmatmul.mubr.f32.gmra.mxu0 %v4140
    %v4208 = vpop.f32.mrf.mxu0
    %v4209 = vadd.f32 %v4137, %v4208
    %v4210 = vpop.f32.mrf.mxu0
    %4211 = vdwg.mxu0
    %v4212 = vsel %vm815, %v4209, -inf
    %4213 = vmax.xlane.f32.xlu0 %v4212
    %v4214 = vpop.xlane.xlu0 %4213
    %v4215 = vsub.f32 %v4209, %v4214
    %v4216 = vmul.f32 %v4215, 1.442695
    %v4217 = vpow.pop %v4216
    %v4218 = vsel %vm815, %v4217, 0.0
    %4219 = vadd.xlane.f32.xlu0 %v4218
    %v4220 = vpop.xlane.xlu0 %4219
    %v4221 = vrcp.pop %v4220
    %v4222 = vmul.f32 %v4217, %v4221
    %v4223 = vsub.f32 %v4222, %v155
    %v4224 = vmul.f32 %v4223, 0.25
    %4225 = vxpose.xlu0.b32.start [1/16] %v4132, 128
    %4226 = vxpose.xlu0.b32.cont [2/16] 0.0, 128
    %4227 = vxpose.xlu0.b32.cont [3/16] 0.0, 128
    %4228 = vxpose.xlu0.b32.cont [4/16] 0.0, 128
    %4229 = vxpose.xlu0.b32.cont [5/16] 0.0, 128
    %4230 = vxpose.xlu0.b32.cont [6/16] 0.0, 128
    %4231 = vxpose.xlu0.b32.cont [7/16] 0.0, 128
    %4232 = vxpose.xlu0.b32.cont [8/16] 0.0, 128
    %4233 = vxpose.xlu0.b32.cont [9/16] 0.0, 128
    %4234 = vxpose.xlu0.b32.cont [10/16] 0.0, 128
    %4235 = vxpose.xlu0.b32.cont [11/16] 0.0, 128
    %4236 = vxpose.xlu0.b32.cont [12/16] 0.0, 128
    %4237 = vxpose.xlu0.b32.cont [13/16] 0.0, 128
    %4238 = vxpose.xlu0.b32.cont [14/16] 0.0, 128
    %4239 = vxpose.xlu0.b32.cont [15/16] 0.0, 128
    %4240 = vxpose.xlu0.b32.end [16/16] 0.0, 128
    %v4241 = vpop.trf.xlu0
    %v4242 = vpop.trf.xlu0
    %v4243 = vpop.trf.xlu0
    %v4244 = vpop.trf.xlu0
    %v4245 = vpop.trf.xlu0
    %v4246 = vpop.trf.xlu0
    %v4247 = vpop.trf.xlu0
    %v4248 = vpop.trf.xlu0
    %v4249 = vpop.trf.xlu0
    %v4250 = vpop.trf.xlu0
    %v4251 = vpop.trf.xlu0
    %v4252 = vpop.trf.xlu0
    %v4253 = vpop.trf.xlu0
    %v4254 = vpop.trf.xlu0
    %v4255 = vpop.trf.xlu0
    %v4256 = vpop.trf.xlu0
    %v4258 = vsel %vm861, %v4241, 0
    %v4261 = vsel %vm861, %v4242, 0
    %v4264 = vsel %vm861, %v4243, 0
    %v4267 = vsel %vm861, %v4244, 0
    %v4270 = vsel %vm861, %v4245, 0
    %v4273 = vsel %vm861, %v4246, 0
    %v4276 = vsel %vm861, %v4247, 0
    %v4279 = vsel %vm861, %v4248, 0
    %v4282 = vsel %vm886, %v4224, 0
    %4284 = vmatprep.subr.mxu0 0.0
    %4285 = vmatpush1.msra.mxu0 0.0
    %4286 = vmatprep.subr.mxu0 0.0
    %4287 = vmatpush1.msra.mxu0 0.0
    %4288 = vmatprep.subr.mxu0 0.0
    %4289 = vmatpush1.msra.mxu0 0.0
    %4290 = vmatprep.subr.mxu0 0.0
    %4291 = vmatpush1.msra.mxu0 0.0
    %4292 = vmatprep.subr.mxu0 0.0
    %4293 = vmatpush1.msra.mxu0 0.0
    %4294 = vmatprep.subr.mxu0 0.0
    %4295 = vmatpush1.msra.mxu0 0.0
    %4296 = vmatprep.subr.mxu0 0.0
    %4297 = vmatpush1.msra.mxu0 0.0
    %4298 = vmatprep.subr.mxu0 0.0
    %4299 = vmatpush1.msra.mxu0 0.0
    %4300 = vmatprep.subr.mxu0 0.0
    %4301 = vmatpush1.msra.mxu0 0.0
    %4302 = vmatprep.subr.mxu0 0.0
    %4303 = vmatpush1.msra.mxu0 0.0
    %4304 = vmatprep.subr.mxu0 0.0
    %4305 = vmatpush1.msra.mxu0 0.0
    %4306 = vmatprep.subr.mxu0 0.0
    %4307 = vmatpush1.msra.mxu0 0.0
    %4308 = vmatprep.subr.mxu0 0.0
    %4309 = vmatpush1.msra.mxu0 0.0
    %4310 = vmatprep.subr.mxu0 0.0
    %4311 = vmatpush1.msra.mxu0 0.0
    %4312 = vmatprep.subr.mxu0 0.0
    %4313 = vmatpush1.msra.mxu0 0.0
    %4314 = vmatprep.subr.mxu0 0.0
    %4315 = vmatpush1.msra.mxu0 %v4282
    %4316 = vmatprep.subr.mxu0 0.0
    %4317 = vmatpush2.msra.mxu0 0.0
    %4318 = vmatprep.subr.mxu0 0.0
    %4319 = vmatpush2.msra.mxu0 0.0
    %4320 = vmatprep.subr.mxu0 0.0
    %4321 = vmatpush2.msra.mxu0 0.0
    %4322 = vmatprep.subr.mxu0 0.0
    %4323 = vmatpush2.msra.mxu0 0.0
    %4324 = vmatprep.subr.mxu0 0.0
    %4325 = vmatpush2.msra.mxu0 0.0
    %4326 = vmatprep.subr.mxu0 0.0
    %4327 = vmatpush2.msra.mxu0 0.0
    %4328 = vmatprep.subr.mxu0 0.0
    %4329 = vmatpush2.msra.mxu0 0.0
    %4330 = vmatprep.subr.mxu0 0.0
    %4331 = vmatpush2.msra.mxu0 0.0
    %4332 = vmatprep.subr.mxu0 0.0
    %4333 = vmatpush2.msra.mxu0 0.0
    %4334 = vmatprep.subr.mxu0 0.0
    %4335 = vmatpush2.msra.mxu0 0.0
    %4336 = vmatprep.subr.mxu0 0.0
    %4337 = vmatpush2.msra.mxu0 0.0
    %4338 = vmatprep.subr.mxu0 0.0
    %4339 = vmatpush2.msra.mxu0 0.0
    %4340 = vmatprep.subr.mxu0 0.0
    %4341 = vmatpush2.msra.mxu0 0.0
    %4342 = vmatprep.subr.mxu0 0.0
    %4343 = vmatpush2.msra.mxu0 0.0
    %4344 = vmatprep.subr.mxu0 0.0
    %4345 = vmatpush2.msra.mxu0 0.0
    %4346 = vmatprep.subr.mxu0 0.0
    %4347 = vmatpush2.msra.mxu0 0.0
    %4348 = vmatprep.mubr.f32.mxu0 0.0
    %4349 = vmatmul.mubr.f32.gmra.mxu0 %v4258
    %v4350 = vpop.f32.mrf.mxu0
    %v4351 = vadd.f32 0.0, %v4350
    %v4352 = vpop.f32.mrf.mxu0
    %4353 = vmatprep.mubr.f32.mxu0 0.0
    %4354 = vmatmul.mubr.f32.gmra.mxu0 %v4261
    %v4355 = vpop.f32.mrf.mxu0
    %v4356 = vadd.f32 0.0, %v4355
    %v4357 = vpop.f32.mrf.mxu0
    %4358 = vmatprep.mubr.f32.mxu0 0.0
    %4359 = vmatmul.mubr.f32.gmra.mxu0 %v4264
    %v4360 = vpop.f32.mrf.mxu0
    %v4361 = vadd.f32 0.0, %v4360
    %v4362 = vpop.f32.mrf.mxu0
    %4363 = vmatprep.mubr.f32.mxu0 0.0
    %4364 = vmatmul.mubr.f32.gmra.mxu0 %v4267
    %v4365 = vpop.f32.mrf.mxu0
    %v4366 = vadd.f32 0.0, %v4365
    %v4367 = vpop.f32.mrf.mxu0
    %4368 = vmatprep.mubr.f32.mxu0 0.0
    %4369 = vmatmul.mubr.f32.gmra.mxu0 %v4270
    %v4370 = vpop.f32.mrf.mxu0
    %v4371 = vadd.f32 0.0, %v4370
    %v4372 = vpop.f32.mrf.mxu0
    %4373 = vmatprep.mubr.f32.mxu0 0.0
    %4374 = vmatmul.mubr.f32.gmra.mxu0 %v4273
    %v4375 = vpop.f32.mrf.mxu0
    %v4376 = vadd.f32 0.0, %v4375
    %v4377 = vpop.f32.mrf.mxu0
    %4378 = vmatprep.mubr.f32.mxu0 0.0
    %4379 = vmatmul.mubr.f32.gmra.mxu0 %v4276
    %v4380 = vpop.f32.mrf.mxu0
    %v4381 = vadd.f32 0.0, %v4380
    %v4382 = vpop.f32.mrf.mxu0
    %4383 = vmatprep.mubr.f32.mxu0 0.0
    %4384 = vmatmul.mubr.f32.gmra.mxu0 %v4279
    %v4385 = vpop.f32.mrf.mxu0
    %v4386 = vadd.f32 0.0, %v4385
    %v4387 = vpop.f32.mrf.mxu0
    %4388 = vdwg.mxu0
    %v4389 = vsel %vm815, %v4224, 0.0
    %v4390 = vrot.slane %v4389, 4
    %v4391 = vadd.f32 %v4389, %v4390
    %v4392 = vrot.slane %v4391, 2
    %v4393 = vadd.f32 %v4391, %v4392
    %v4394 = vrot.slane %v4393, 1
    %v4395 = vadd.f32 %v4393, %v4394
    %v4396 = vsel %vm130, %v4224, 0
    %v4399 = vsel %vm130, %v3643, 0
    %v4402 = vsel %vm130, %v3644, 0
    %v4405 = vsel %vm130, %v3645, 0
    %v4408 = vsel %vm130, %v3646, 0
    %v4411 = vsel %vm130, %v3647, 0
    %v4414 = vsel %vm130, %v3648, 0
    %v4417 = vsel %vm130, %v3649, 0
    %v4420 = vsel %vm130, %v3650, 0
    %4422 = vmatprep.subr.mxu0 0.0
    %4423 = vmatpush1.xpose.msra.mxu0 0.0
    %4424 = vmatprep.subr.mxu0 0.0
    %4425 = vmatpush1.xpose.msra.mxu0 0.0
    %4426 = vmatprep.subr.mxu0 0.0
    %4427 = vmatpush1.xpose.msra.mxu0 0.0
    %4428 = vmatprep.subr.mxu0 0.0
    %4429 = vmatpush1.xpose.msra.mxu0 0.0
    %4430 = vmatprep.subr.mxu0 0.0
    %4431 = vmatpush1.xpose.msra.mxu0 0.0
    %4432 = vmatprep.subr.mxu0 0.0
    %4433 = vmatpush1.xpose.msra.mxu0 0.0
    %4434 = vmatprep.subr.mxu0 0.0
    %4435 = vmatpush1.xpose.msra.mxu0 0.0
    %4436 = vmatprep.subr.mxu0 0.0
    %4437 = vmatpush1.xpose.msra.mxu0 0.0
    %4438 = vmatprep.subr.mxu0 0.0
    %4439 = vmatpush1.xpose.msra.mxu0 %v4420
    %4440 = vmatprep.subr.mxu0 0.0
    %4441 = vmatpush1.xpose.msra.mxu0 %v4417
    %4442 = vmatprep.subr.mxu0 0.0
    %4443 = vmatpush1.xpose.msra.mxu0 %v4414
    %4444 = vmatprep.subr.mxu0 0.0
    %4445 = vmatpush1.xpose.msra.mxu0 %v4411
    %4446 = vmatprep.subr.mxu0 0.0
    %4447 = vmatpush1.xpose.msra.mxu0 %v4408
    %4448 = vmatprep.subr.mxu0 0.0
    %4449 = vmatpush1.xpose.msra.mxu0 %v4405
    %4450 = vmatprep.subr.mxu0 0.0
    %4451 = vmatpush1.xpose.msra.mxu0 %v4402
    %4452 = vmatprep.subr.mxu0 0.0
    %4453 = vmatpush1.xpose.msra.mxu0 %v4399
    %4454 = vmatprep.subr.mxu0 0.0
    %4455 = vmatpush2.xpose.msra.mxu0 0.0
    %4456 = vmatprep.subr.mxu0 0.0
    %4457 = vmatpush2.xpose.msra.mxu0 0.0
    %4458 = vmatprep.subr.mxu0 0.0
    %4459 = vmatpush2.xpose.msra.mxu0 0.0
    %4460 = vmatprep.subr.mxu0 0.0
    %4461 = vmatpush2.xpose.msra.mxu0 0.0
    %4462 = vmatprep.subr.mxu0 0.0
    %4463 = vmatpush2.xpose.msra.mxu0 0.0
    %4464 = vmatprep.subr.mxu0 0.0
    %4465 = vmatpush2.xpose.msra.mxu0 0.0
    %4466 = vmatprep.subr.mxu0 0.0
    %4467 = vmatpush2.xpose.msra.mxu0 0.0
    %4468 = vmatprep.subr.mxu0 0.0
    %4469 = vmatpush2.xpose.msra.mxu0 0.0
    %4470 = vmatprep.subr.mxu0 0.0
    %4471 = vmatpush2.xpose.msra.mxu0 0.0
    %4472 = vmatprep.subr.mxu0 0.0
    %4473 = vmatpush2.xpose.msra.mxu0 0.0
    %4474 = vmatprep.subr.mxu0 0.0
    %4475 = vmatpush2.xpose.msra.mxu0 0.0
    %4476 = vmatprep.subr.mxu0 0.0
    %4477 = vmatpush2.xpose.msra.mxu0 0.0
    %4478 = vmatprep.subr.mxu0 0.0
    %4479 = vmatpush2.xpose.msra.mxu0 0.0
    %4480 = vmatprep.subr.mxu0 0.0
    %4481 = vmatpush2.xpose.msra.mxu0 0.0
    %4482 = vmatprep.subr.mxu0 0.0
    %4483 = vmatpush2.xpose.msra.mxu0 0.0
    %4484 = vmatprep.subr.mxu0 0.0
    %4485 = vmatpush2.xpose.msra.mxu0 0.0
    %4486 = vmatprep.mubr.f32.mxu0 0.0
    %4487 = vmatmul.mubr.f32.gmra.mxu0 %v4396
    %v4488 = vpop.f32.mrf.mxu0
    %v4489 = vadd.f32 0.0, %v4488
    %v4490 = vpop.f32.mrf.mxu0
    %4491 = vdwg.mxu0
    %vm4492 = vcmp.gt.f32.partialorder %v4124, 0.0
    %4494 = vrot.lane.b32.xlu0 %v4489, 96
    %v4495 = vpop.permute.xlu0 %4494
    %v4497 = vsel %vm4492, %v4495, 0.0
    %4498 = vxpose.xlu0.b32.start [1/16] %v4497, 128
    %4499 = vxpose.xlu0.b32.cont [2/16] 0.0, 128
    %4500 = vxpose.xlu0.b32.cont [3/16] 0.0, 128
    %4501 = vxpose.xlu0.b32.cont [4/16] 0.0, 128
    %4502 = vxpose.xlu0.b32.cont [5/16] 0.0, 128
    %4503 = vxpose.xlu0.b32.cont [6/16] 0.0, 128
    %4504 = vxpose.xlu0.b32.cont [7/16] 0.0, 128
    %4505 = vxpose.xlu0.b32.cont [8/16] 0.0, 128
    %4506 = vxpose.xlu0.b32.cont [9/16] 0.0, 128
    %4507 = vxpose.xlu0.b32.cont [10/16] 0.0, 128
    %4508 = vxpose.xlu0.b32.cont [11/16] 0.0, 128
    %4509 = vxpose.xlu0.b32.cont [12/16] 0.0, 128
    %4510 = vxpose.xlu0.b32.cont [13/16] 0.0, 128
    %4511 = vxpose.xlu0.b32.cont [14/16] 0.0, 128
    %4512 = vxpose.xlu0.b32.cont [15/16] 0.0, 128
    %4513 = vxpose.xlu0.b32.end [16/16] 0.0, 128
    %v4514 = vpop.trf.xlu0
    %v4515 = vpop.trf.xlu0
    %v4516 = vpop.trf.xlu0
    %v4517 = vpop.trf.xlu0
    %v4518 = vpop.trf.xlu0
    %v4519 = vpop.trf.xlu0
    %v4520 = vpop.trf.xlu0
    %v4521 = vpop.trf.xlu0
    %v4522 = vpop.trf.xlu0
    %v4523 = vpop.trf.xlu0
    %v4524 = vpop.trf.xlu0
    %v4525 = vpop.trf.xlu0
    %v4526 = vpop.trf.xlu0
    %v4527 = vpop.trf.xlu0
    %v4528 = vpop.trf.xlu0
    %v4529 = vpop.trf.xlu0
    %v4531 = vsel %vm861, %v4514, 0
    %v4534 = vsel %vm861, %v4515, 0
    %v4537 = vsel %vm861, %v4516, 0
    %v4540 = vsel %vm861, %v4517, 0
    %4542 = vmatprep.subr.mxu0 0.0
    %4543 = vmatpush1.msra.mxu0 0.0
    %4544 = vmatprep.subr.mxu0 0.0
    %4545 = vmatpush1.msra.mxu0 0.0
    %4546 = vmatprep.subr.mxu0 0.0
    %4547 = vmatpush1.msra.mxu0 0.0
    %4548 = vmatprep.subr.mxu0 0.0
    %4549 = vmatpush1.msra.mxu0 0.0
    %4550 = vmatprep.subr.mxu0 0.0
    %4551 = vmatpush1.msra.mxu0 0.0
    %4552 = vmatprep.subr.mxu0 0.0
    %4553 = vmatpush1.msra.mxu0 0.0
    %4554 = vmatprep.subr.mxu0 0.0
    %4555 = vmatpush1.msra.mxu0 0.0
    %4556 = vmatprep.subr.mxu0 0.0
    %4557 = vmatpush1.msra.mxu0 0.0
    %4558 = vmatprep.subr.mxu0 0.0
    %4559 = vmatpush1.msra.mxu0 0.0
    %4560 = vmatprep.subr.mxu0 0.0
    %4561 = vmatpush1.msra.mxu0 0.0
    %4562 = vmatprep.subr.mxu0 0.0
    %4563 = vmatpush1.msra.mxu0 0.0
    %4564 = vmatprep.subr.mxu0 0.0
    %4565 = vmatpush1.msra.mxu0 0.0
    %4566 = vmatprep.subr.mxu0 0.0
    %4567 = vmatpush1.msra.mxu0 0.0
    %4568 = vmatprep.subr.mxu0 0.0
    %4569 = vmatpush1.msra.mxu0 0.0
    %4570 = vmatprep.subr.mxu0 0.0
    %4571 = vmatpush1.msra.mxu0 0.0
    %4572 = vmatprep.subr.mxu0 %v1150
    %4573 = vmatpush1.msra.mxu0 %v1148
    %4574 = vmatprep.subr.mxu0 0.0
    %4575 = vmatpush2.msra.mxu0 0.0
    %4576 = vmatprep.subr.mxu0 0.0
    %4577 = vmatpush2.msra.mxu0 0.0
    %4578 = vmatprep.subr.mxu0 0.0
    %4579 = vmatpush2.msra.mxu0 0.0
    %4580 = vmatprep.subr.mxu0 0.0
    %4581 = vmatpush2.msra.mxu0 0.0
    %4582 = vmatprep.subr.mxu0 0.0
    %4583 = vmatpush2.msra.mxu0 0.0
    %4584 = vmatprep.subr.mxu0 0.0
    %4585 = vmatpush2.msra.mxu0 0.0
    %4586 = vmatprep.subr.mxu0 0.0
    %4587 = vmatpush2.msra.mxu0 0.0
    %4588 = vmatprep.subr.mxu0 0.0
    %4589 = vmatpush2.msra.mxu0 0.0
    %4590 = vmatprep.subr.mxu0 0.0
    %4591 = vmatpush2.msra.mxu0 0.0
    %4592 = vmatprep.subr.mxu0 0.0
    %4593 = vmatpush2.msra.mxu0 0.0
    %4594 = vmatprep.subr.mxu0 0.0
    %4595 = vmatpush2.msra.mxu0 0.0
    %4596 = vmatprep.subr.mxu0 0.0
    %4597 = vmatpush2.msra.mxu0 0.0
    %4598 = vmatprep.subr.mxu0 0.0
    %4599 = vmatpush2.msra.mxu0 0.0
    %4600 = vmatprep.subr.mxu0 0.0
    %4601 = vmatpush2.msra.mxu0 0.0
    %4602 = vmatprep.subr.mxu0 0.0
    %4603 = vmatpush2.msra.mxu0 0.0
    %4604 = vmatprep.subr.mxu0 0.0
    %4605 = vmatpush2.msra.mxu0 0.0
    %4606 = vmatprep.mubr.f32.mxu0 0.0
    %4607 = vmatmul.mubr.f32.gmra.mxu0 %v4531
    %v4608 = vpop.f32.mrf.mxu0
    %v4609 = vadd.f32 0.0, %v4608
    %v4610 = vpop.f32.mrf.mxu0
    %v4611 = vadd.f32 0.0, %v4610
    %4612 = vmatprep.mubr.f32.mxu0 0.0
    %4613 = vmatmul.mubr.f32.gmra.mxu0 %v4534
    %v4614 = vpop.f32.mrf.mxu0
    %v4615 = vadd.f32 0.0, %v4614
    %v4616 = vpop.f32.mrf.mxu0
    %v4617 = vadd.f32 0.0, %v4616
    %4618 = vmatprep.mubr.f32.mxu0 0.0
    %4619 = vmatmul.mubr.f32.gmra.mxu0 %v4537
    %v4620 = vpop.f32.mrf.mxu0
    %v4621 = vadd.f32 0.0, %v4620
    %v4622 = vpop.f32.mrf.mxu0
    %v4623 = vadd.f32 0.0, %v4622
    %4624 = vmatprep.mubr.f32.mxu0 0.0
    %4625 = vmatmul.mubr.f32.gmra.mxu0 %v4540
    %v4626 = vpop.f32.mrf.mxu0
    %v4627 = vadd.f32 0.0, %v4626
    %v4628 = vpop.f32.mrf.mxu0
    %v4629 = vadd.f32 0.0, %v4628
    %4630 = vdwg.mxu0
    %4631 = vmatprep.subr.mxu0 0.0
    %4632 = vmatpush1.msra.mxu0 0.0
    %4633 = vmatprep.subr.mxu0 0.0
    %4634 = vmatpush1.msra.mxu0 0.0
    %4635 = vmatprep.subr.mxu0 0.0
    %4636 = vmatpush1.msra.mxu0 0.0
    %4637 = vmatprep.subr.mxu0 0.0
    %4638 = vmatpush1.msra.mxu0 0.0
    %4639 = vmatprep.subr.mxu0 0.0
    %4640 = vmatpush1.msra.mxu0 0.0
    %4641 = vmatprep.subr.mxu0 0.0
    %4642 = vmatpush1.msra.mxu0 0.0
    %4643 = vmatprep.subr.mxu0 0.0
    %4644 = vmatpush1.msra.mxu0 0.0
    %4645 = vmatprep.subr.mxu0 0.0
    %4646 = vmatpush1.msra.mxu0 0.0
    %4647 = vmatprep.subr.mxu0 0.0
    %4648 = vmatpush1.msra.mxu0 0.0
    %4649 = vmatprep.subr.mxu0 0.0
    %4650 = vmatpush1.msra.mxu0 0.0
    %4651 = vmatprep.subr.mxu0 0.0
    %4652 = vmatpush1.msra.mxu0 0.0
    %4653 = vmatprep.subr.mxu0 0.0
    %4654 = vmatpush1.msra.mxu0 0.0
    %4655 = vmatprep.subr.mxu0 0.0
    %4656 = vmatpush1.msra.mxu0 0.0
    %4657 = vmatprep.subr.mxu0 0.0
    %4658 = vmatpush1.msra.mxu0 0.0
    %4659 = vmatprep.subr.mxu0 0.0
    %4660 = vmatpush1.msra.mxu0 0.0
    %4661 = vmatprep.subr.mxu0 %v1154
    %4662 = vmatpush1.msra.mxu0 %v1152
    %4663 = vmatprep.subr.mxu0 0.0
    %4664 = vmatpush2.msra.mxu0 0.0
    %4665 = vmatprep.subr.mxu0 0.0
    %4666 = vmatpush2.msra.mxu0 0.0
    %4667 = vmatprep.subr.mxu0 0.0
    %4668 = vmatpush2.msra.mxu0 0.0
    %4669 = vmatprep.subr.mxu0 0.0
    %4670 = vmatpush2.msra.mxu0 0.0
    %4671 = vmatprep.subr.mxu0 0.0
    %4672 = vmatpush2.msra.mxu0 0.0
    %4673 = vmatprep.subr.mxu0 0.0
    %4674 = vmatpush2.msra.mxu0 0.0
    %4675 = vmatprep.subr.mxu0 0.0
    %4676 = vmatpush2.msra.mxu0 0.0
    %4677 = vmatprep.subr.mxu0 0.0
    %4678 = vmatpush2.msra.mxu0 0.0
    %4679 = vmatprep.subr.mxu0 0.0
    %4680 = vmatpush2.msra.mxu0 0.0
    %4681 = vmatprep.subr.mxu0 0.0
    %4682 = vmatpush2.msra.mxu0 0.0
    %4683 = vmatprep.subr.mxu0 0.0
    %4684 = vmatpush2.msra.mxu0 0.0
    %4685 = vmatprep.subr.mxu0 0.0
    %4686 = vmatpush2.msra.mxu0 0.0
    %4687 = vmatprep.subr.mxu0 0.0
    %4688 = vmatpush2.msra.mxu0 0.0
    %4689 = vmatprep.subr.mxu0 0.0
    %4690 = vmatpush2.msra.mxu0 0.0
    %4691 = vmatprep.subr.mxu0 0.0
    %4692 = vmatpush2.msra.mxu0 0.0
    %4693 = vmatprep.subr.mxu0 0.0
    %4694 = vmatpush2.msra.mxu0 0.0
    %4695 = vmatprep.mubr.f32.mxu0 0.0
    %4696 = vmatmul.mubr.f32.gmra.mxu0 %v4531
    %v4697 = vpop.f32.mrf.mxu0
    %v4698 = vadd.f32 0.0, %v4697
    %v4699 = vpop.f32.mrf.mxu0
    %v4700 = vadd.f32 0.0, %v4699
    %4701 = vmatprep.mubr.f32.mxu0 0.0
    %4702 = vmatmul.mubr.f32.gmra.mxu0 %v4534
    %v4703 = vpop.f32.mrf.mxu0
    %v4704 = vadd.f32 0.0, %v4703
    %v4705 = vpop.f32.mrf.mxu0
    %v4706 = vadd.f32 0.0, %v4705
    %4707 = vmatprep.mubr.f32.mxu0 0.0
    %4708 = vmatmul.mubr.f32.gmra.mxu0 %v4537
    %v4709 = vpop.f32.mrf.mxu0
    %v4710 = vadd.f32 0.0, %v4709
    %v4711 = vpop.f32.mrf.mxu0
    %v4712 = vadd.f32 0.0, %v4711
    %4713 = vmatprep.mubr.f32.mxu0 0.0
    %4714 = vmatmul.mubr.f32.gmra.mxu0 %v4540
    %v4715 = vpop.f32.mrf.mxu0
    %v4716 = vadd.f32 0.0, %v4715
    %v4717 = vpop.f32.mrf.mxu0
    %v4718 = vadd.f32 0.0, %v4717
    %4719 = vdwg.mxu0
    %4720 = vmatprep.subr.mxu0 0.0
    %4721 = vmatpush1.msra.mxu0 0.0
    %4722 = vmatprep.subr.mxu0 0.0
    %4723 = vmatpush1.msra.mxu0 0.0
    %4724 = vmatprep.subr.mxu0 0.0
    %4725 = vmatpush1.msra.mxu0 0.0
    %4726 = vmatprep.subr.mxu0 0.0
    %4727 = vmatpush1.msra.mxu0 0.0
    %4728 = vmatprep.subr.mxu0 0.0
    %4729 = vmatpush1.msra.mxu0 0.0
    %4730 = vmatprep.subr.mxu0 0.0
    %4731 = vmatpush1.msra.mxu0 0.0
    %4732 = vmatprep.subr.mxu0 0.0
    %4733 = vmatpush1.msra.mxu0 0.0
    %4734 = vmatprep.subr.mxu0 0.0
    %4735 = vmatpush1.msra.mxu0 0.0
    %4736 = vmatprep.subr.mxu0 0.0
    %4737 = vmatpush1.msra.mxu0 0.0
    %4738 = vmatprep.subr.mxu0 0.0
    %4739 = vmatpush1.msra.mxu0 0.0
    %4740 = vmatprep.subr.mxu0 0.0
    %4741 = vmatpush1.msra.mxu0 0.0
    %4742 = vmatprep.subr.mxu0 0.0
    %4743 = vmatpush1.msra.mxu0 0.0
    %4744 = vmatprep.subr.mxu0 0.0
    %4745 = vmatpush1.msra.mxu0 0.0
    %4746 = vmatprep.subr.mxu0 0.0
    %4747 = vmatpush1.msra.mxu0 0.0
    %4748 = vmatprep.subr.mxu0 0.0
    %4749 = vmatpush1.msra.mxu0 0.0
    %4750 = vmatprep.subr.mxu0 %v1158
    %4751 = vmatpush1.msra.mxu0 %v1156
    %4752 = vmatprep.subr.mxu0 0.0
    %4753 = vmatpush2.msra.mxu0 0.0
    %4754 = vmatprep.subr.mxu0 0.0
    %4755 = vmatpush2.msra.mxu0 0.0
    %4756 = vmatprep.subr.mxu0 0.0
    %4757 = vmatpush2.msra.mxu0 0.0
    %4758 = vmatprep.subr.mxu0 0.0
    %4759 = vmatpush2.msra.mxu0 0.0
    %4760 = vmatprep.subr.mxu0 0.0
    %4761 = vmatpush2.msra.mxu0 0.0
    %4762 = vmatprep.subr.mxu0 0.0
    %4763 = vmatpush2.msra.mxu0 0.0
    %4764 = vmatprep.subr.mxu0 0.0
    %4765 = vmatpush2.msra.mxu0 0.0
    %4766 = vmatprep.subr.mxu0 0.0
    %4767 = vmatpush2.msra.mxu0 0.0
    %4768 = vmatprep.subr.mxu0 0.0
    %4769 = vmatpush2.msra.mxu0 0.0
    %4770 = vmatprep.subr.mxu0 0.0
    %4771 = vmatpush2.msra.mxu0 0.0
    %4772 = vmatprep.subr.mxu0 0.0
    %4773 = vmatpush2.msra.mxu0 0.0
    %4774 = vmatprep.subr.mxu0 0.0
    %4775 = vmatpush2.msra.mxu0 0.0
    %4776 = vmatprep.subr.mxu0 0.0
    %4777 = vmatpush2.msra.mxu0 0.0
    %4778 = vmatprep.subr.mxu0 0.0
    %4779 = vmatpush2.msra.mxu0 0.0
    %4780 = vmatprep.subr.mxu0 0.0
    %4781 = vmatpush2.msra.mxu0 0.0
    %4782 = vmatprep.subr.mxu0 0.0
    %4783 = vmatpush2.msra.mxu0 0.0
    %4784 = vmatprep.mubr.f32.mxu0 0.0
    %4785 = vmatmul.mubr.f32.gmra.mxu0 %v4531
    %v4786 = vpop.f32.mrf.mxu0
    %v4787 = vadd.f32 0.0, %v4786
    %v4788 = vpop.f32.mrf.mxu0
    %v4789 = vadd.f32 0.0, %v4788
    %4790 = vmatprep.mubr.f32.mxu0 0.0
    %4791 = vmatmul.mubr.f32.gmra.mxu0 %v4534
    %v4792 = vpop.f32.mrf.mxu0
    %v4793 = vadd.f32 0.0, %v4792
    %v4794 = vpop.f32.mrf.mxu0
    %v4795 = vadd.f32 0.0, %v4794
    %4796 = vmatprep.mubr.f32.mxu0 0.0
    %4797 = vmatmul.mubr.f32.gmra.mxu0 %v4537
    %v4798 = vpop.f32.mrf.mxu0
    %v4799 = vadd.f32 0.0, %v4798
    %v4800 = vpop.f32.mrf.mxu0
    %v4801 = vadd.f32 0.0, %v4800
    %4802 = vmatprep.mubr.f32.mxu0 0.0
    %4803 = vmatmul.mubr.f32.gmra.mxu0 %v4540
    %v4804 = vpop.f32.mrf.mxu0
    %v4805 = vadd.f32 0.0, %v4804
    %v4806 = vpop.f32.mrf.mxu0
    %v4807 = vadd.f32 0.0, %v4806
    %4808 = vdwg.mxu0
    %4809 = vmatprep.subr.mxu0 0.0
    %4810 = vmatpush1.msra.mxu0 0.0
    %4811 = vmatprep.subr.mxu0 0.0
    %4812 = vmatpush1.msra.mxu0 0.0
    %4813 = vmatprep.subr.mxu0 0.0
    %4814 = vmatpush1.msra.mxu0 0.0
    %4815 = vmatprep.subr.mxu0 0.0
    %4816 = vmatpush1.msra.mxu0 0.0
    %4817 = vmatprep.subr.mxu0 0.0
    %4818 = vmatpush1.msra.mxu0 0.0
    %4819 = vmatprep.subr.mxu0 0.0
    %4820 = vmatpush1.msra.mxu0 0.0
    %4821 = vmatprep.subr.mxu0 0.0
    %4822 = vmatpush1.msra.mxu0 0.0
    %4823 = vmatprep.subr.mxu0 0.0
    %4824 = vmatpush1.msra.mxu0 0.0
    %4825 = vmatprep.subr.mxu0 0.0
    %4826 = vmatpush1.msra.mxu0 0.0
    %4827 = vmatprep.subr.mxu0 0.0
    %4828 = vmatpush1.msra.mxu0 0.0
    %4829 = vmatprep.subr.mxu0 0.0
    %4830 = vmatpush1.msra.mxu0 0.0
    %4831 = vmatprep.subr.mxu0 0.0
    %4832 = vmatpush1.msra.mxu0 0.0
    %4833 = vmatprep.subr.mxu0 0.0
    %4834 = vmatpush1.msra.mxu0 0.0
    %4835 = vmatprep.subr.mxu0 0.0
    %4836 = vmatpush1.msra.mxu0 0.0
    %4837 = vmatprep.subr.mxu0 0.0
    %4838 = vmatpush1.msra.mxu0 0.0
    %4839 = vmatprep.subr.mxu0 %v1162
    %4840 = vmatpush1.msra.mxu0 %v1160
    %4841 = vmatprep.subr.mxu0 0.0
    %4842 = vmatpush2.msra.mxu0 0.0
    %4843 = vmatprep.subr.mxu0 0.0
    %4844 = vmatpush2.msra.mxu0 0.0
    %4845 = vmatprep.subr.mxu0 0.0
    %4846 = vmatpush2.msra.mxu0 0.0
    %4847 = vmatprep.subr.mxu0 0.0
    %4848 = vmatpush2.msra.mxu0 0.0
    %4849 = vmatprep.subr.mxu0 0.0
    %4850 = vmatpush2.msra.mxu0 0.0
    %4851 = vmatprep.subr.mxu0 0.0
    %4852 = vmatpush2.msra.mxu0 0.0
    %4853 = vmatprep.subr.mxu0 0.0
    %4854 = vmatpush2.msra.mxu0 0.0
    %4855 = vmatprep.subr.mxu0 0.0
    %4856 = vmatpush2.msra.mxu0 0.0
    %4857 = vmatprep.subr.mxu0 0.0
    %4858 = vmatpush2.msra.mxu0 0.0
    %4859 = vmatprep.subr.mxu0 0.0
    %4860 = vmatpush2.msra.mxu0 0.0
    %4861 = vmatprep.subr.mxu0 0.0
    %4862 = vmatpush2.msra.mxu0 0.0
    %4863 = vmatprep.subr.mxu0 0.0
    %4864 = vmatpush2.msra.mxu0 0.0
    %4865 = vmatprep.subr.mxu0 0.0
    %4866 = vmatpush2.msra.mxu0 0.0
    %4867 = vmatprep.subr.mxu0 0.0
    %4868 = vmatpush2.msra.mxu0 0.0
    %4869 = vmatprep.subr.mxu0 0.0
    %4870 = vmatpush2.msra.mxu0 0.0
    %4871 = vmatprep.subr.mxu0 0.0
    %4872 = vmatpush2.msra.mxu0 0.0
    %4873 = vmatprep.mubr.f32.mxu0 0.0
    %4874 = vmatmul.mubr.f32.gmra.mxu0 %v4531
    %v4875 = vpop.f32.mrf.mxu0
    %v4876 = vadd.f32 0.0, %v4875
    %v4877 = vpop.f32.mrf.mxu0
    %v4878 = vadd.f32 0.0, %v4877
    %4879 = vmatprep.mubr.f32.mxu0 0.0
    %4880 = vmatmul.mubr.f32.gmra.mxu0 %v4534
    %v4881 = vpop.f32.mrf.mxu0
    %v4882 = vadd.f32 0.0, %v4881
    %v4883 = vpop.f32.mrf.mxu0
    %v4884 = vadd.f32 0.0, %v4883
    %4885 = vmatprep.mubr.f32.mxu0 0.0
    %4886 = vmatmul.mubr.f32.gmra.mxu0 %v4537
    %v4887 = vpop.f32.mrf.mxu0
    %v4888 = vadd.f32 0.0, %v4887
    %v4889 = vpop.f32.mrf.mxu0
    %v4890 = vadd.f32 0.0, %v4889
    %4891 = vmatprep.mubr.f32.mxu0 0.0
    %4892 = vmatmul.mubr.f32.gmra.mxu0 %v4540
    %v4893 = vpop.f32.mrf.mxu0
    %v4894 = vadd.f32 0.0, %v4893
    %v4895 = vpop.f32.mrf.mxu0
    %v4896 = vadd.f32 0.0, %v4895
    %4897 = vdwg.mxu0
    %v4898 = vsel %vm1520, %v4497, 0.0
    %v4899 = vrot.slane %v4898, 4
    %v4900 = vadd.f32 %v4898, %v4899
    %v4901 = vrot.slane %v4900, 2
    %v4902 = vadd.f32 %v4900, %v4901
    %v4903 = vrot.slane %v4902, 1
    %v4904 = vadd.f32 %v4902, %v4903
    %v4905 = vsel %vm886, %v4489, 0
    %4907 = vmatprep.subr.mxu0 0.0
    %4908 = vmatpush1.msra.mxu0 0.0
    %4909 = vmatprep.subr.mxu0 0.0
    %4910 = vmatpush1.msra.mxu0 0.0
    %4911 = vmatprep.subr.mxu0 0.0
    %4912 = vmatpush1.msra.mxu0 0.0
    %4913 = vmatprep.subr.mxu0 0.0
    %4914 = vmatpush1.msra.mxu0 0.0
    %4915 = vmatprep.subr.mxu0 0.0
    %4916 = vmatpush1.msra.mxu0 0.0
    %4917 = vmatprep.subr.mxu0 0.0
    %4918 = vmatpush1.msra.mxu0 0.0
    %4919 = vmatprep.subr.mxu0 0.0
    %4920 = vmatpush1.msra.mxu0 0.0
    %4921 = vmatprep.subr.mxu0 0.0
    %4922 = vmatpush1.msra.mxu0 0.0
    %4923 = vmatprep.subr.mxu0 0.0
    %4924 = vmatpush1.msra.mxu0 0.0
    %4925 = vmatprep.subr.mxu0 0.0
    %4926 = vmatpush1.msra.mxu0 0.0
    %4927 = vmatprep.subr.mxu0 0.0
    %4928 = vmatpush1.msra.mxu0 0.0
    %4929 = vmatprep.subr.mxu0 0.0
    %4930 = vmatpush1.msra.mxu0 0.0
    %4931 = vmatprep.subr.mxu0 0.0
    %4932 = vmatpush1.msra.mxu0 0.0
    %4933 = vmatprep.subr.mxu0 0.0
    %4934 = vmatpush1.msra.mxu0 0.0
    %4935 = vmatprep.subr.mxu0 0.0
    %4936 = vmatpush1.msra.mxu0 0.0
    %4937 = vmatprep.subr.mxu0 0.0
    %4938 = vmatpush1.msra.mxu0 %v4905
    %4939 = vmatprep.subr.mxu0 0.0
    %4940 = vmatpush2.msra.mxu0 0.0
    %4941 = vmatprep.subr.mxu0 0.0
    %4942 = vmatpush2.msra.mxu0 0.0
    %4943 = vmatprep.subr.mxu0 0.0
    %4944 = vmatpush2.msra.mxu0 0.0
    %4945 = vmatprep.subr.mxu0 0.0
    %4946 = vmatpush2.msra.mxu0 0.0
    %4947 = vmatprep.subr.mxu0 0.0
    %4948 = vmatpush2.msra.mxu0 0.0
    %4949 = vmatprep.subr.mxu0 0.0
    %4950 = vmatpush2.msra.mxu0 0.0
    %4951 = vmatprep.subr.mxu0 0.0
    %4952 = vmatpush2.msra.mxu0 0.0
    %4953 = vmatprep.subr.mxu0 0.0
    %4954 = vmatpush2.msra.mxu0 0.0
    %4955 = vmatprep.subr.mxu0 0.0
    %4956 = vmatpush2.msra.mxu0 0.0
    %4957 = vmatprep.subr.mxu0 0.0
    %4958 = vmatpush2.msra.mxu0 0.0
    %4959 = vmatprep.subr.mxu0 0.0
    %4960 = vmatpush2.msra.mxu0 0.0
    %4961 = vmatprep.subr.mxu0 0.0
    %4962 = vmatpush2.msra.mxu0 0.0
    %4963 = vmatprep.subr.mxu0 0.0
    %4964 = vmatpush2.msra.mxu0 0.0
    %4965 = vmatprep.subr.mxu0 0.0
    %4966 = vmatpush2.msra.mxu0 0.0
    %4967 = vmatprep.subr.mxu0 0.0
    %4968 = vmatpush2.msra.mxu0 0.0
    %4969 = vmatprep.subr.mxu0 0.0
    %4970 = vmatpush2.msra.mxu0 0.0
    %4971 = vmatprep.mubr.f32.mxu0 0.0
    %4972 = vmatmul.mubr.f32.gmra.mxu0 %v1561
    %v4973 = vpop.f32.mrf.mxu0
    %v4974 = vadd.f32 0.0, %v4973
    %v4975 = vpop.f32.mrf.mxu0
    %4976 = vmatprep.mubr.f32.mxu0 0.0
    %4977 = vmatmul.mubr.f32.gmra.mxu0 %v1564
    %v4978 = vpop.f32.mrf.mxu0
    %v4979 = vadd.f32 0.0, %v4978
    %v4980 = vpop.f32.mrf.mxu0
    %4981 = vmatprep.mubr.f32.mxu0 0.0
    %4982 = vmatmul.mubr.f32.gmra.mxu0 %v1567
    %v4983 = vpop.f32.mrf.mxu0
    %v4984 = vadd.f32 0.0, %v4983
    %v4985 = vpop.f32.mrf.mxu0
    %4986 = vmatprep.mubr.f32.mxu0 0.0
    %4987 = vmatmul.mubr.f32.gmra.mxu0 %v1570
    %v4988 = vpop.f32.mrf.mxu0
    %v4989 = vadd.f32 0.0, %v4988
    %v4990 = vpop.f32.mrf.mxu0
    %4991 = vmatprep.mubr.f32.mxu0 0.0
    %4992 = vmatmul.mubr.f32.gmra.mxu0 %v1573
    %v4993 = vpop.f32.mrf.mxu0
    %v4994 = vadd.f32 0.0, %v4993
    %v4995 = vpop.f32.mrf.mxu0
    %4996 = vmatprep.mubr.f32.mxu0 0.0
    %4997 = vmatmul.mubr.f32.gmra.mxu0 %v1576
    %v4998 = vpop.f32.mrf.mxu0
    %v4999 = vadd.f32 0.0, %v4998
    %v5000 = vpop.f32.mrf.mxu0
    %5001 = vmatprep.mubr.f32.mxu0 0.0
    %5002 = vmatmul.mubr.f32.gmra.mxu0 %v1579
    %v5003 = vpop.f32.mrf.mxu0
    %v5004 = vadd.f32 0.0, %v5003
    %v5005 = vpop.f32.mrf.mxu0
    %5006 = vmatprep.mubr.f32.mxu0 0.0
    %5007 = vmatmul.mubr.f32.gmra.mxu0 %v1582
    %v5008 = vpop.f32.mrf.mxu0
    %v5009 = vadd.f32 0.0, %v5008
    %v5010 = vpop.f32.mrf.mxu0
    %5011 = vdwg.mxu0
    %vm5012 = vcmp.gt.f32.partialorder %v3725, 0.0
    %vm5013 = vcmp.gt.f32.partialorder %v3730, 0.0
    %vm5014 = vcmp.gt.f32.partialorder %v3735, 0.0
    %vm5015 = vcmp.gt.f32.partialorder %v3740, 0.0
    %vm5016 = vcmp.gt.f32.partialorder %v3745, 0.0
    %vm5017 = vcmp.gt.f32.partialorder %v3750, 0.0
    %vm5018 = vcmp.gt.f32.partialorder %v3755, 0.0
    %vm5019 = vcmp.gt.f32.partialorder %v3760, 0.0
    %v5020 = vsel %vm5012, %v4974, 0.0
    %v5021 = vsel %vm5013, %v4979, 0.0
    %v5022 = vsel %vm5014, %v4984, 0.0
    %v5023 = vsel %vm5015, %v4989, 0.0
    %v5024 = vsel %vm5016, %v4994, 0.0
    %v5025 = vsel %vm5017, %v4999, 0.0
    %v5026 = vsel %vm5018, %v5004, 0.0
    %v5027 = vsel %vm5019, %v5009, 0.0
    %5028 = vmatprep.subr.mxu0 0.0
    %5029 = vmatpush1.msra.mxu0 0.0
    %5030 = vmatprep.subr.mxu0 0.0
    %5031 = vmatpush1.msra.mxu0 0.0
    %5032 = vmatprep.subr.mxu0 0.0
    %5033 = vmatpush1.msra.mxu0 0.0
    %5034 = vmatprep.subr.mxu0 0.0
    %5035 = vmatpush1.msra.mxu0 0.0
    %5036 = vmatprep.subr.mxu0 0.0
    %5037 = vmatpush1.msra.mxu0 0.0
    %5038 = vmatprep.subr.mxu0 0.0
    %5039 = vmatpush1.msra.mxu0 0.0
    %5040 = vmatprep.subr.mxu0 0.0
    %5041 = vmatpush1.msra.mxu0 0.0
    %5042 = vmatprep.subr.mxu0 0.0
    %5043 = vmatpush1.msra.mxu0 0.0
    %5044 = vmatprep.subr.mxu0 0.0
    %5045 = vmatpush1.msra.mxu0 %v5027
    %5046 = vmatprep.subr.mxu0 0.0
    %5047 = vmatpush1.msra.mxu0 %v5026
    %5048 = vmatprep.subr.mxu0 0.0
    %5049 = vmatpush1.msra.mxu0 %v5025
    %5050 = vmatprep.subr.mxu0 0.0
    %5051 = vmatpush1.msra.mxu0 %v5024
    %5052 = vmatprep.subr.mxu0 0.0
    %5053 = vmatpush1.msra.mxu0 %v5023
    %5054 = vmatprep.subr.mxu0 0.0
    %5055 = vmatpush1.msra.mxu0 %v5022
    %5056 = vmatprep.subr.mxu0 0.0
    %5057 = vmatpush1.msra.mxu0 %v5021
    %5058 = vmatprep.subr.mxu0 0.0
    %5059 = vmatpush1.msra.mxu0 %v5020
    %5060 = vmatprep.subr.mxu0 0.0
    %5061 = vmatpush2.msra.mxu0 0.0
    %5062 = vmatprep.subr.mxu0 0.0
    %5063 = vmatpush2.msra.mxu0 0.0
    %5064 = vmatprep.subr.mxu0 0.0
    %5065 = vmatpush2.msra.mxu0 0.0
    %5066 = vmatprep.subr.mxu0 0.0
    %5067 = vmatpush2.msra.mxu0 0.0
    %5068 = vmatprep.subr.mxu0 0.0
    %5069 = vmatpush2.msra.mxu0 0.0
    %5070 = vmatprep.subr.mxu0 0.0
    %5071 = vmatpush2.msra.mxu0 0.0
    %5072 = vmatprep.subr.mxu0 0.0
    %5073 = vmatpush2.msra.mxu0 0.0
    %5074 = vmatprep.subr.mxu0 0.0
    %5075 = vmatpush2.msra.mxu0 0.0
    %5076 = vmatprep.subr.mxu0 0.0
    %5077 = vmatpush2.msra.mxu0 0.0
    %5078 = vmatprep.subr.mxu0 0.0
    %5079 = vmatpush2.msra.mxu0 0.0
    %5080 = vmatprep.subr.mxu0 0.0
    %5081 = vmatpush2.msra.mxu0 0.0
    %5082 = vmatprep.subr.mxu0 0.0
    %5083 = vmatpush2.msra.mxu0 0.0
    %5084 = vmatprep.subr.mxu0 0.0
    %5085 = vmatpush2.msra.mxu0 0.0
    %5086 = vmatprep.subr.mxu0 0.0
    %5087 = vmatpush2.msra.mxu0 0.0
    %5088 = vmatprep.subr.mxu0 0.0
    %5089 = vmatpush2.msra.mxu0 0.0
    %5090 = vmatprep.subr.mxu0 0.0
    %5091 = vmatpush2.msra.mxu0 0.0
    %5092 = vmatprep.mubr.f32.mxu0 0.0
    %5093 = vmatmul.mubr.f32.gmra.mxu0 %v1740
    %v5094 = vpop.f32.mrf.mxu0
    %v5095 = vadd.f32 0.0, %v5094
    %v5096 = vpop.f32.mrf.mxu0
    %5097 = vdwg.mxu0
    %v5098 = vsel %vm51, %v5020, 0.0
    %v5099 = vsel %vm51, %v5021, 0.0
    %v5100 = vadd.f32 %v5098, %v5099
    %v5101 = vsel %vm51, %v5022, 0.0
    %v5102 = vadd.f32 %v5100, %v5101
    %v5103 = vsel %vm51, %v5023, 0.0
    %v5104 = vadd.f32 %v5102, %v5103
    %v5105 = vsel %vm51, %v5024, 0.0
    %v5106 = vadd.f32 %v5104, %v5105
    %v5107 = vsel %vm51, %v5025, 0.0
    %v5108 = vadd.f32 %v5106, %v5107
    %v5109 = vsel %vm51, %v5026, 0.0
    %v5110 = vadd.f32 %v5108, %v5109
    %v5111 = vsel %vm51, %v5027, 0.0
    %v5112 = vadd.f32 %v5110, %v5111
    %v5113 = vrot.slane %v5112, 4
    %v5114 = vadd.f32 %v5112, %v5113
    %v5115 = vrot.slane %v5114, 2
    %v5116 = vadd.f32 %v5114, %v5115
    %v5117 = vrot.slane %v5116, 1
    %v5118 = vadd.f32 %v5116, %v5117
    %v5119 = vmul.f32 %v5095, 0.001
    %v5120 = vsub.f32 %v3608, %v5119
    %5121 = vst.msk [vmem:[#allocation2] sm:$0xff] %vm51, %v5120
    %v5122 = vmul.f32 %v5118, 0.001
    %v5123 = vsub.f32 %v3609, %v5122
    %5124 = vst.msk [vmem:[#allocation3] sm:$0x1] %vm54, %v5123
    %v5125 = vmul.f32 %v4609, 0.001
    %v5126 = vmul.f32 %v4611, 0.001
    %v5127 = vmul.f32 %v4698, 0.001
    %v5128 = vmul.f32 %v4700, 0.001
    %v5129 = vmul.f32 %v4787, 0.001
    %v5130 = vmul.f32 %v4789, 0.001
    %v5131 = vmul.f32 %v4876, 0.001
    %v5132 = vmul.f32 %v4878, 0.001
    %v5133 = vmul.f32 %v4615, 0.001
    %v5134 = vmul.f32 %v4617, 0.001
    %v5135 = vmul.f32 %v4704, 0.001
    %v5136 = vmul.f32 %v4706, 0.001
    %v5137 = vmul.f32 %v4793, 0.001
    %v5138 = vmul.f32 %v4795, 0.001
    %v5139 = vmul.f32 %v4882, 0.001
    %v5140 = vmul.f32 %v4884, 0.001
    %v5141 = vmul.f32 %v4621, 0.001
    %v5142 = vmul.f32 %v4623, 0.001
    %v5143 = vmul.f32 %v4710, 0.001
    %v5144 = vmul.f32 %v4712, 0.001
    %v5145 = vmul.f32 %v4799, 0.001
    %v5146 = vmul.f32 %v4801, 0.001
    %v5147 = vmul.f32 %v4888, 0.001
    %v5148 = vmul.f32 %v4890, 0.001
    %v5149 = vmul.f32 %v4627, 0.001
    %v5150 = vmul.f32 %v4629, 0.001
    %v5151 = vmul.f32 %v4716, 0.001
    %v5152 = vmul.f32 %v4718, 0.001
    %v5153 = vmul.f32 %v4805, 0.001
    %v5154 = vmul.f32 %v4807, 0.001
    %v5155 = vmul.f32 %v4894, 0.001
    %v5156 = vmul.f32 %v4896, 0.001
    %v5157 = vsub.f32 %v3610, %v5125
    %v5158 = vsub.f32 %v3611, %v5126
    %v5159 = vsub.f32 %v3612, %v5127
    %v5160 = vsub.f32 %v3613, %v5128
    %v5161 = vsub.f32 %v3614, %v5129
    %v5162 = vsub.f32 %v3615, %v5130
    %v5163 = vsub.f32 %v3616, %v5131
    %v5164 = vsub.f32 %v3617, %v5132
    %v5165 = vsub.f32 %v3618, %v5133
    %v5166 = vsub.f32 %v3619, %v5134
    %v5167 = vsub.f32 %v3620, %v5135
    %v5168 = vsub.f32 %v3621, %v5136
    %v5169 = vsub.f32 %v3622, %v5137
    %v5170 = vsub.f32 %v3623, %v5138
    %v5171 = vsub.f32 %v3624, %v5139
    %v5172 = vsub.f32 %v3625, %v5140
    %v5173 = vsub.f32 %v3626, %v5141
    %v5174 = vsub.f32 %v3627, %v5142
    %v5175 = vsub.f32 %v3628, %v5143
    %v5176 = vsub.f32 %v3629, %v5144
    %v5177 = vsub.f32 %v3630, %v5145
    %v5178 = vsub.f32 %v3631, %v5146
    %v5179 = vsub.f32 %v3632, %v5147
    %v5180 = vsub.f32 %v3633, %v5148
    %v5181 = vsub.f32 %v3634, %v5149
    %v5182 = vsub.f32 %v3635, %v5150
    %v5183 = vsub.f32 %v3636, %v5151
    %v5184 = vsub.f32 %v3637, %v5152
    %v5185 = vsub.f32 %v3638, %v5153
    %v5186 = vsub.f32 %v3639, %v5154
    %v5187 = vsub.f32 %v3640, %v5155
    %v5188 = vsub.f32 %v3641, %v5156
    %5189 = vst [vmem:[#allocation4] sm:$0xff] %v5157
    %5190 = vst [vmem:[#allocation4 + $0x8] sm:$0xff] %v5158
    %5191 = vst [vmem:[#allocation4 + $0x10] sm:$0xff] %v5159
    %5192 = vst [vmem:[#allocation4 + $0x18] sm:$0xff] %v5160
    %5193 = vst [vmem:[#allocation4 + $0x20] sm:$0xff] %v5161
    %5194 = vst [vmem:[#allocation4 + $0x28] sm:$0xff] %v5162
    %5195 = vst [vmem:[#allocation4 + $0x30] sm:$0xff] %v5163
    %5196 = vst [vmem:[#allocation4 + $0x38] sm:$0xff] %v5164
    %5197 = vst [vmem:[#allocation4 + $0x40] sm:$0xff] %v5165
    %5198 = vst [vmem:[#allocation4 + $0x48] sm:$0xff] %v5166
    %5199 = vst [vmem:[#allocation4 + $0x50] sm:$0xff] %v5167
    %5200 = vst [vmem:[#allocation4 + $0x58] sm:$0xff] %v5168
    %5201 = vst [vmem:[#allocation4 + $0x60] sm:$0xff] %v5169
    %5202 = vst [vmem:[#allocation4 + $0x68] sm:$0xff] %v5170
    %5203 = vst [vmem:[#allocation4 + $0x70] sm:$0xff] %v5171
    %5204 = vst [vmem:[#allocation4 + $0x78] sm:$0xff] %v5172
    %5205 = vst [vmem:[#allocation4 + $0x80] sm:$0xff] %v5173
    %5206 = vst [vmem:[#allocation4 + $0x88] sm:$0xff] %v5174
    %5207 = vst [vmem:[#allocation4 + $0x90] sm:$0xff] %v5175
    %5208 = vst [vmem:[#allocation4 + $0x98] sm:$0xff] %v5176
    %5209 = vst [vmem:[#allocation4 + $0xa0] sm:$0xff] %v5177
    %5210 = vst [vmem:[#allocation4 + $0xa8] sm:$0xff] %v5178
    %5211 = vst [vmem:[#allocation4 + $0xb0] sm:$0xff] %v5179
    %5212 = vst [vmem:[#allocation4 + $0xb8] sm:$0xff] %v5180
    %5213 = vst [vmem:[#allocation4 + $0xc0] sm:$0xff] %v5181
    %5214 = vst [vmem:[#allocation4 + $0xc8] sm:$0xff] %v5182
    %5215 = vst [vmem:[#allocation4 + $0xd0] sm:$0xff] %v5183
    %5216 = vst [vmem:[#allocation4 + $0xd8] sm:$0xff] %v5184
    %5217 = vst [vmem:[#allocation4 + $0xe0] sm:$0xff] %v5185
    %5218 = vst [vmem:[#allocation4 + $0xe8] sm:$0xff] %v5186
    %5219 = vst [vmem:[#allocation4 + $0xf0] sm:$0xff] %v5187
    %5220 = vst [vmem:[#allocation4 + $0xf8] sm:$0xff] %v5188
    %v5221 = vmul.f32 %v4904, 0.001
    %v5222 = vsub.f32 %v3642, %v5221
    %5223 = vst.msk [vmem:[#allocation5] sm:$0x1] %vm54, %v5222
    %v5224 = vmul.f32 %v4351, 0.001
    %v5225 = vmul.f32 %v4356, 0.001
    %v5226 = vmul.f32 %v4361, 0.001
    %v5227 = vmul.f32 %v4366, 0.001
    %v5228 = vmul.f32 %v4371, 0.001
    %v5229 = vmul.f32 %v4376, 0.001
    %v5230 = vmul.f32 %v4381, 0.001
    %v5231 = vmul.f32 %v4386, 0.001
    %v5232 = vsub.f32 %v3643, %v5224
    %v5233 = vsub.f32 %v3644, %v5225
    %v5234 = vsub.f32 %v3645, %v5226
    %v5235 = vsub.f32 %v3646, %v5227
    %v5236 = vsub.f32 %v3647, %v5228
    %v5237 = vsub.f32 %v3648, %v5229
    %v5238 = vsub.f32 %v3649, %v5230
    %v5239 = vsub.f32 %v3650, %v5231
    %5240 = vst.msk [vmem:[#allocation6] sm:$0xff] %vm130, %v5232
    %5241 = vst.msk [vmem:[#allocation6 + $0x8] sm:$0xff] %vm130, %v5233
    %5242 = vst.msk [vmem:[#allocation6 + $0x10] sm:$0xff] %vm130, %v5234
    %5243 = vst.msk [vmem:[#allocation6 + $0x18] sm:$0xff] %vm130, %v5235
    %5244 = vst.msk [vmem:[#allocation6 + $0x20] sm:$0xff] %vm130, %v5236
    %5245 = vst.msk [vmem:[#allocation6 + $0x28] sm:$0xff] %vm130, %v5237
    %5246 = vst.msk [vmem:[#allocation6 + $0x30] sm:$0xff] %vm130, %v5238
    %5247 = vst.msk [vmem:[#allocation6 + $0x38] sm:$0xff] %vm130, %v5239
    %v5248 = vmul.f32 %v4395, 0.001
    %v5249 = vsub.f32 %v3651, %v5248
    %5250 = vst.msk [vmem:[#allocation7] sm:$0x1] %vm140, %v5249
    %v5251 = vld [vmem:[#allocation2] sm:$0xff]
    %v5252 = vld [vmem:[#allocation3] sm:$0x1]
    %v5253 = vld [vmem:[#allocation4] sm:$0xff]
    %v5254 = vld [vmem:[#allocation4 + $0x8] sm:$0xff]
    %v5255 = vld [vmem:[#allocation4 + $0x10] sm:$0xff]
    %v5256 = vld [vmem:[#allocation4 + $0x18] sm:$0xff]
    %v5257 = vld [vmem:[#allocation4 + $0x20] sm:$0xff]
    %v5258 = vld [vmem:[#allocation4 + $0x28] sm:$0xff]
    %v5259 = vld [vmem:[#allocation4 + $0x30] sm:$0xff]
    %v5260 = vld [vmem:[#allocation4 + $0x38] sm:$0xff]
    %v5261 = vld [vmem:[#allocation4 + $0x40] sm:$0xff]
    %v5262 = vld [vmem:[#allocation4 + $0x48] sm:$0xff]
    %v5263 = vld [vmem:[#allocation4 + $0x50] sm:$0xff]
    %v5264 = vld [vmem:[#allocation4 + $0x58] sm:$0xff]
    %v5265 = vld [vmem:[#allocation4 + $0x60] sm:$0xff]
    %v5266 = vld [vmem:[#allocation4 + $0x68] sm:$0xff]
    %v5267 = vld [vmem:[#allocation4 + $0x70] sm:$0xff]
    %v5268 = vld [vmem:[#allocation4 + $0x78] sm:$0xff]
    %v5269 = vld [vmem:[#allocation4 + $0x80] sm:$0xff]
    %v5270 = vld [vmem:[#allocation4 + $0x88] sm:$0xff]
    %v5271 = vld [vmem:[#allocation4 + $0x90] sm:$0xff]
    %v5272 = vld [vmem:[#allocation4 + $0x98] sm:$0xff]
    %v5273 = vld [vmem:[#allocation4 + $0xa0] sm:$0xff]
    %v5274 = vld [vmem:[#allocation4 + $0xa8] sm:$0xff]
    %v5275 = vld [vmem:[#allocation4 + $0xb0] sm:$0xff]
    %v5276 = vld [vmem:[#allocation4 + $0xb8] sm:$0xff]
    %v5277 = vld [vmem:[#allocation4 + $0xc0] sm:$0xff]
    %v5278 = vld [vmem:[#allocation4 + $0xc8] sm:$0xff]
    %v5279 = vld [vmem:[#allocation4 + $0xd0] sm:$0xff]
    %v5280 = vld [vmem:[#allocation4 + $0xd8] sm:$0xff]
    %v5281 = vld [vmem:[#allocation4 + $0xe0] sm:$0xff]
    %v5282 = vld [vmem:[#allocation4 + $0xe8] sm:$0xff]
    %v5283 = vld [vmem:[#allocation4 + $0xf0] sm:$0xff]
    %v5284 = vld [vmem:[#allocation4 + $0xf8] sm:$0xff]
    %v5285 = vld [vmem:[#allocation5] sm:$0x1]
    %v5286 = vld [vmem:[#allocation6] sm:$0xff]
    %v5287 = vld [vmem:[#allocation6 + $0x8] sm:$0xff]
    %v5288 = vld [vmem:[#allocation6 + $0x10] sm:$0xff]
    %v5289 = vld [vmem:[#allocation6 + $0x18] sm:$0xff]
    %v5290 = vld [vmem:[#allocation6 + $0x20] sm:$0xff]
    %v5291 = vld [vmem:[#allocation6 + $0x28] sm:$0xff]
    %v5292 = vld [vmem:[#allocation6 + $0x30] sm:$0xff]
    %v5293 = vld [vmem:[#allocation6 + $0x38] sm:$0xff]
    %v5294 = vld [vmem:[#allocation7] sm:$0x1]
    %v5296 = vlaneseq
    %v5297 = vshrl.u32 %v5296, 7
    %v5298 = vsub.s32 0, %v5297
    %v5299 = vrot.slane %v5252, %v5298
    %5301 = vmatprep.subr.mxu0 0.0
    %5302 = vmatpush1.msra.mxu0 0.0
    %5303 = vmatprep.subr.mxu0 0.0
    %5304 = vmatpush1.msra.mxu0 0.0
    %5305 = vmatprep.subr.mxu0 0.0
    %5306 = vmatpush1.msra.mxu0 0.0
    %5307 = vmatprep.subr.mxu0 0.0
    %5308 = vmatpush1.msra.mxu0 0.0
    %5309 = vmatprep.subr.mxu0 0.0
    %5310 = vmatpush1.msra.mxu0 0.0
    %5311 = vmatprep.subr.mxu0 0.0
    %5312 = vmatpush1.msra.mxu0 0.0
    %5313 = vmatprep.subr.mxu0 0.0
    %5314 = vmatpush1.msra.mxu0 0.0
    %5315 = vmatprep.subr.mxu0 0.0
    %5316 = vmatpush1.msra.mxu0 0.0
    %5317 = vmatprep.subr.mxu0 0.0
    %5318 = vmatpush1.msra.mxu0 0.0
    %5319 = vmatprep.subr.mxu0 0.0
    %5320 = vmatpush1.msra.mxu0 0.0
    %5321 = vmatprep.subr.mxu0 0.0
    %5322 = vmatpush1.msra.mxu0 0.0
    %5323 = vmatprep.subr.mxu0 0.0
    %5324 = vmatpush1.msra.mxu0 0.0
    %5325 = vmatprep.subr.mxu0 0.0
    %5326 = vmatpush1.msra.mxu0 0.0
    %5327 = vmatprep.subr.mxu0 0.0
    %5328 = vmatpush1.msra.mxu0 0.0
    %5329 = vmatprep.subr.mxu0 0.0
    %5330 = vmatpush1.msra.mxu0 0.0
    %5331 = vmatprep.subr.mxu0 0.0
    %5332 = vmatpush1.msra.mxu0 %v5251
    %5333 = vmatprep.subr.mxu0 0.0
    %5334 = vmatpush2.msra.mxu0 0.0
    %5335 = vmatprep.subr.mxu0 0.0
    %5336 = vmatpush2.msra.mxu0 0.0
    %5337 = vmatprep.subr.mxu0 0.0
    %5338 = vmatpush2.msra.mxu0 0.0
    %5339 = vmatprep.subr.mxu0 0.0
    %5340 = vmatpush2.msra.mxu0 0.0
    %5341 = vmatprep.subr.mxu0 0.0
    %5342 = vmatpush2.msra.mxu0 0.0
    %5343 = vmatprep.subr.mxu0 0.0
    %5344 = vmatpush2.msra.mxu0 0.0
    %5345 = vmatprep.subr.mxu0 0.0
    %5346 = vmatpush2.msra.mxu0 0.0
    %5347 = vmatprep.subr.mxu0 0.0
    %5348 = vmatpush2.msra.mxu0 0.0
    %5349 = vmatprep.subr.mxu0 0.0
    %5350 = vmatpush2.msra.mxu0 0.0
    %5351 = vmatprep.subr.mxu0 0.0
    %5352 = vmatpush2.msra.mxu0 0.0
    %5353 = vmatprep.subr.mxu0 0.0
    %5354 = vmatpush2.msra.mxu0 0.0
    %5355 = vmatprep.subr.mxu0 0.0
    %5356 = vmatpush2.msra.mxu0 0.0
    %5357 = vmatprep.subr.mxu0 0.0
    %5358 = vmatpush2.msra.mxu0 0.0
    %5359 = vmatprep.subr.mxu0 0.0
    %5360 = vmatpush2.msra.mxu0 0.0
    %5361 = vmatprep.subr.mxu0 0.0
    %5362 = vmatpush2.msra.mxu0 0.0
    %5363 = vmatprep.subr.mxu0 0.0
    %5364 = vmatpush2.msra.mxu0 0.0
    %5365 = vmatprep.mubr.f32.mxu0 0.0
    %5366 = vmatmul.mubr.f32.gmra.mxu0 %v222
    %v5367 = vpop.f32.mrf.mxu0
    %v5368 = vadd.f32 %v5299, %v5367
    %v5369 = vpop.f32.mrf.mxu0
    %5370 = vmatprep.mubr.f32.mxu0 0.0
    %5371 = vmatmul.mubr.f32.gmra.mxu0 %v225
    %v5372 = vpop.f32.mrf.mxu0
    %v5373 = vadd.f32 %v5299, %v5372
    %v5374 = vpop.f32.mrf.mxu0
    %5375 = vmatprep.mubr.f32.mxu0 0.0
    %5376 = vmatmul.mubr.f32.gmra.mxu0 %v228
    %v5377 = vpop.f32.mrf.mxu0
    %v5378 = vadd.f32 %v5299, %v5377
    %v5379 = vpop.f32.mrf.mxu0
    %5380 = vmatprep.mubr.f32.mxu0 0.0
    %5381 = vmatmul.mubr.f32.gmra.mxu0 %v231
    %v5382 = vpop.f32.mrf.mxu0
    %v5383 = vadd.f32 %v5299, %v5382
    %v5384 = vpop.f32.mrf.mxu0
    %5385 = vmatprep.mubr.f32.mxu0 0.0
    %5386 = vmatmul.mubr.f32.gmra.mxu0 %v234
    %v5387 = vpop.f32.mrf.mxu0
    %v5388 = vadd.f32 %v5299, %v5387
    %v5389 = vpop.f32.mrf.mxu0
    %5390 = vmatprep.mubr.f32.mxu0 0.0
    %5391 = vmatmul.mubr.f32.gmra.mxu0 %v237
    %v5392 = vpop.f32.mrf.mxu0
    %v5393 = vadd.f32 %v5299, %v5392
    %v5394 = vpop.f32.mrf.mxu0
    %5395 = vmatprep.mubr.f32.mxu0 0.0
    %5396 = vmatmul.mubr.f32.gmra.mxu0 %v240
    %v5397 = vpop.f32.mrf.mxu0
    %v5398 = vadd.f32 %v5299, %v5397
    %v5399 = vpop.f32.mrf.mxu0
    %5400 = vmatprep.mubr.f32.mxu0 0.0
    %5401 = vmatmul.mubr.f32.gmra.mxu0 %v243
    %v5402 = vpop.f32.mrf.mxu0
    %v5403 = vadd.f32 %v5299, %v5402
    %v5404 = vpop.f32.mrf.mxu0
    %5405 = vdwg.mxu0
    %v5406 = vmax.f32 %v5368, 0.0
    %v5407 = vmax.f32 %v5373, 0.0
    %v5408 = vmax.f32 %v5378, 0.0
    %v5409 = vmax.f32 %v5383, 0.0
    %v5410 = vmax.f32 %v5388, 0.0
    %v5411 = vmax.f32 %v5393, 0.0
    %v5412 = vmax.f32 %v5398, 0.0
    %v5413 = vmax.f32 %v5403, 0.0
    %5414 = vmatprep.subr.mxu0 0.0
    %5415 = vmatpush1.msra.mxu0 0.0
    %5416 = vmatprep.subr.mxu0 0.0
    %5417 = vmatpush1.msra.mxu0 0.0
    %5418 = vmatprep.subr.mxu0 0.0
    %5419 = vmatpush1.msra.mxu0 0.0
    %5420 = vmatprep.subr.mxu0 0.0
    %5421 = vmatpush1.msra.mxu0 0.0
    %5422 = vmatprep.subr.mxu0 0.0
    %5423 = vmatpush1.msra.mxu0 0.0
    %5424 = vmatprep.subr.mxu0 0.0
    %5425 = vmatpush1.msra.mxu0 0.0
    %5426 = vmatprep.subr.mxu0 0.0
    %5427 = vmatpush1.msra.mxu0 0.0
    %5428 = vmatprep.subr.mxu0 0.0
    %5429 = vmatpush1.msra.mxu0 0.0
    %5430 = vmatprep.subr.mxu0 0.0
    %5431 = vmatpush1.msra.mxu0 %v5413
    %5432 = vmatprep.subr.mxu0 0.0
    %5433 = vmatpush1.msra.mxu0 %v5412
    %5434 = vmatprep.subr.mxu0 0.0
    %5435 = vmatpush1.msra.mxu0 %v5411
    %5436 = vmatprep.subr.mxu0 0.0
    %5437 = vmatpush1.msra.mxu0 %v5410
    %5438 = vmatprep.subr.mxu0 0.0
    %5439 = vmatpush1.msra.mxu0 %v5409
    %5440 = vmatprep.subr.mxu0 0.0
    %5441 = vmatpush1.msra.mxu0 %v5408
    %5442 = vmatprep.subr.mxu0 0.0
    %5443 = vmatpush1.msra.mxu0 %v5407
    %5444 = vmatprep.subr.mxu0 0.0
    %5445 = vmatpush1.msra.mxu0 %v5406
    %5446 = vmatprep.subr.mxu0 0.0
    %5447 = vmatpush2.msra.mxu0 0.0
    %5448 = vmatprep.subr.mxu0 0.0
    %5449 = vmatpush2.msra.mxu0 0.0
    %5450 = vmatprep.subr.mxu0 0.0
    %5451 = vmatpush2.msra.mxu0 0.0
    %5452 = vmatprep.subr.mxu0 0.0
    %5453 = vmatpush2.msra.mxu0 0.0
    %5454 = vmatprep.subr.mxu0 0.0
    %5455 = vmatpush2.msra.mxu0 0.0
    %5456 = vmatprep.subr.mxu0 0.0
    %5457 = vmatpush2.msra.mxu0 0.0
    %5458 = vmatprep.subr.mxu0 0.0
    %5459 = vmatpush2.msra.mxu0 0.0
    %5460 = vmatprep.subr.mxu0 0.0
    %5461 = vmatpush2.msra.mxu0 0.0
    %5462 = vmatprep.subr.mxu0 0.0
    %5463 = vmatpush2.msra.mxu0 0.0
    %5464 = vmatprep.subr.mxu0 0.0
    %5465 = vmatpush2.msra.mxu0 0.0
    %5466 = vmatprep.subr.mxu0 0.0
    %5467 = vmatpush2.msra.mxu0 0.0
    %5468 = vmatprep.subr.mxu0 0.0
    %5469 = vmatpush2.msra.mxu0 0.0
    %5470 = vmatprep.subr.mxu0 0.0
    %5471 = vmatpush2.msra.mxu0 0.0
    %5472 = vmatprep.subr.mxu0 0.0
    %5473 = vmatpush2.msra.mxu0 0.0
    %5474 = vmatprep.subr.mxu0 0.0
    %5475 = vmatpush2.msra.mxu0 0.0
    %5476 = vmatprep.subr.mxu0 0.0
    %5477 = vmatpush2.msra.mxu0 0.0
    %5478 = vmatprep.mubr.f32.mxu0 0.0
    %5479 = vmatmul.mubr.f32.gmra.mxu0 %v360
    %v5480 = vpop.f32.mrf.mxu0
    %v5481 = vadd.f32 0.0, %v5480
    %v5482 = vpop.f32.mrf.mxu0
    %5483 = vdwg.mxu0
    %v5485 = vlaneseq
    %v5486 = vshrl.u32 %v5485, 7
    %v5487 = vsub.s32 0, %v5486
    %v5488 = vrot.slane %v5285, %v5487
    %5490 = vmatprep.subr.mxu0 0.0
    %5491 = vmatpush1.xpose.msra.mxu0 0.0
    %5492 = vmatprep.subr.mxu0 0.0
    %5493 = vmatpush1.xpose.msra.mxu0 0.0
    %5494 = vmatprep.subr.mxu0 0.0
    %5495 = vmatpush1.xpose.msra.mxu0 0.0
    %5496 = vmatprep.subr.mxu0 0.0
    %5497 = vmatpush1.xpose.msra.mxu0 0.0
    %5498 = vmatprep.subr.mxu0 0.0
    %5499 = vmatpush1.xpose.msra.mxu0 0.0
    %5500 = vmatprep.subr.mxu0 0.0
    %5501 = vmatpush1.xpose.msra.mxu0 0.0
    %5502 = vmatprep.subr.mxu0 0.0
    %5503 = vmatpush1.xpose.msra.mxu0 0.0
    %5504 = vmatprep.subr.mxu0 0.0
    %5505 = vmatpush1.xpose.msra.mxu0 0.0
    %5506 = vmatprep.subr.mxu0 0.0
    %5507 = vmatpush1.xpose.msra.mxu0 0.0
    %5508 = vmatprep.subr.mxu0 0.0
    %5509 = vmatpush1.xpose.msra.mxu0 0.0
    %5510 = vmatprep.subr.mxu0 0.0
    %5511 = vmatpush1.xpose.msra.mxu0 0.0
    %5512 = vmatprep.subr.mxu0 0.0
    %5513 = vmatpush1.xpose.msra.mxu0 0.0
    %5514 = vmatprep.subr.mxu0 %v5278
    %5515 = vmatpush1.xpose.msra.mxu0 %v5277
    %5516 = vmatprep.subr.mxu0 %v5270
    %5517 = vmatpush1.xpose.msra.mxu0 %v5269
    %5518 = vmatprep.subr.mxu0 %v5262
    %5519 = vmatpush1.xpose.msra.mxu0 %v5261
    %5520 = vmatprep.subr.mxu0 %v5254
    %5521 = vmatpush1.xpose.msra.mxu0 %v5253
    %5522 = vmatprep.subr.mxu0 0.0
    %5523 = vmatpush2.xpose.msra.mxu0 0.0
    %5524 = vmatprep.subr.mxu0 0.0
    %5525 = vmatpush2.xpose.msra.mxu0 0.0
    %5526 = vmatprep.subr.mxu0 0.0
    %5527 = vmatpush2.xpose.msra.mxu0 0.0
    %5528 = vmatprep.subr.mxu0 0.0
    %5529 = vmatpush2.xpose.msra.mxu0 0.0
    %5530 = vmatprep.subr.mxu0 0.0
    %5531 = vmatpush2.xpose.msra.mxu0 0.0
    %5532 = vmatprep.subr.mxu0 0.0
    %5533 = vmatpush2.xpose.msra.mxu0 0.0
    %5534 = vmatprep.subr.mxu0 0.0
    %5535 = vmatpush2.xpose.msra.mxu0 0.0
    %5536 = vmatprep.subr.mxu0 0.0
    %5537 = vmatpush2.xpose.msra.mxu0 0.0
    %5538 = vmatprep.subr.mxu0 0.0
    %5539 = vmatpush2.xpose.msra.mxu0 0.0
    %5540 = vmatprep.subr.mxu0 0.0
    %5541 = vmatpush2.xpose.msra.mxu0 0.0
    %5542 = vmatprep.subr.mxu0 0.0
    %5543 = vmatpush2.xpose.msra.mxu0 0.0
    %5544 = vmatprep.subr.mxu0 0.0
    %5545 = vmatpush2.xpose.msra.mxu0 0.0
    %5546 = vmatprep.subr.mxu0 0.0
    %5547 = vmatpush2.xpose.msra.mxu0 0.0
    %5548 = vmatprep.subr.mxu0 0.0
    %5549 = vmatpush2.xpose.msra.mxu0 0.0
    %5550 = vmatprep.subr.mxu0 0.0
    %5551 = vmatpush2.xpose.msra.mxu0 0.0
    %5552 = vmatprep.subr.mxu0 0.0
    %5553 = vmatpush2.xpose.msra.mxu0 0.0
    %5554 = vmatprep.mubr.f32.mxu0 %v442
    %5555 = vmatmul.mubr.f32.gmra.mxu0 %v151
    %v5556 = vpop.f32.mrf.mxu0
    %v5557 = vadd.f32 %v5488, %v5556
    %v5558 = vpop.f32.mrf.mxu0
    %5559 = vdwg.mxu0
    %5560 = vmatprep.subr.mxu0 0.0
    %5561 = vmatpush1.xpose.msra.mxu0 0.0
    %5562 = vmatprep.subr.mxu0 0.0
    %5563 = vmatpush1.xpose.msra.mxu0 0.0
    %5564 = vmatprep.subr.mxu0 0.0
    %5565 = vmatpush1.xpose.msra.mxu0 0.0
    %5566 = vmatprep.subr.mxu0 0.0
    %5567 = vmatpush1.xpose.msra.mxu0 0.0
    %5568 = vmatprep.subr.mxu0 0.0
    %5569 = vmatpush1.xpose.msra.mxu0 0.0
    %5570 = vmatprep.subr.mxu0 0.0
    %5571 = vmatpush1.xpose.msra.mxu0 0.0
    %5572 = vmatprep.subr.mxu0 0.0
    %5573 = vmatpush1.xpose.msra.mxu0 0.0
    %5574 = vmatprep.subr.mxu0 0.0
    %5575 = vmatpush1.xpose.msra.mxu0 0.0
    %5576 = vmatprep.subr.mxu0 0.0
    %5577 = vmatpush1.xpose.msra.mxu0 0.0
    %5578 = vmatprep.subr.mxu0 0.0
    %5579 = vmatpush1.xpose.msra.mxu0 0.0
    %5580 = vmatprep.subr.mxu0 0.0
    %5581 = vmatpush1.xpose.msra.mxu0 0.0
    %5582 = vmatprep.subr.mxu0 0.0
    %5583 = vmatpush1.xpose.msra.mxu0 0.0
    %5584 = vmatprep.subr.mxu0 %v5280
    %5585 = vmatpush1.xpose.msra.mxu0 %v5279
    %5586 = vmatprep.subr.mxu0 %v5272
    %5587 = vmatpush1.xpose.msra.mxu0 %v5271
    %5588 = vmatprep.subr.mxu0 %v5264
    %5589 = vmatpush1.xpose.msra.mxu0 %v5263
    %5590 = vmatprep.subr.mxu0 %v5256
    %5591 = vmatpush1.xpose.msra.mxu0 %v5255
    %5592 = vmatprep.subr.mxu0 0.0
    %5593 = vmatpush2.xpose.msra.mxu0 0.0
    %5594 = vmatprep.subr.mxu0 0.0
    %5595 = vmatpush2.xpose.msra.mxu0 0.0
    %5596 = vmatprep.subr.mxu0 0.0
    %5597 = vmatpush2.xpose.msra.mxu0 0.0
    %5598 = vmatprep.subr.mxu0 0.0
    %5599 = vmatpush2.xpose.msra.mxu0 0.0
    %5600 = vmatprep.subr.mxu0 0.0
    %5601 = vmatpush2.xpose.msra.mxu0 0.0
    %5602 = vmatprep.subr.mxu0 0.0
    %5603 = vmatpush2.xpose.msra.mxu0 0.0
    %5604 = vmatprep.subr.mxu0 0.0
    %5605 = vmatpush2.xpose.msra.mxu0 0.0
    %5606 = vmatprep.subr.mxu0 0.0
    %5607 = vmatpush2.xpose.msra.mxu0 0.0
    %5608 = vmatprep.subr.mxu0 0.0
    %5609 = vmatpush2.xpose.msra.mxu0 0.0
    %5610 = vmatprep.subr.mxu0 0.0
    %5611 = vmatpush2.xpose.msra.mxu0 0.0
    %5612 = vmatprep.subr.mxu0 0.0
    %5613 = vmatpush2.xpose.msra.mxu0 0.0
    %5614 = vmatprep.subr.mxu0 0.0
    %5615 = vmatpush2.xpose.msra.mxu0 0.0
    %5616 = vmatprep.subr.mxu0 0.0
    %5617 = vmatpush2.xpose.msra.mxu0 0.0
    %5618 = vmatprep.subr.mxu0 0.0
    %5619 = vmatpush2.xpose.msra.mxu0 0.0
    %5620 = vmatprep.subr.mxu0 0.0
    %5621 = vmatpush2.xpose.msra.mxu0 0.0
    %5622 = vmatprep.subr.mxu0 0.0
    %5623 = vmatpush2.xpose.msra.mxu0 0.0
    %5624 = vmatprep.mubr.f32.mxu0 %v443
    %5625 = vmatmul.mubr.f32.gmra.mxu0 %v152
    %v5626 = vpop.f32.mrf.mxu0
    %v5627 = vadd.f32 %v5557, %v5626
    %v5628 = vpop.f32.mrf.mxu0
    %5629 = vdwg.mxu0
    %5630 = vmatprep.subr.mxu0 0.0
    %5631 = vmatpush1.xpose.msra.mxu0 0.0
    %5632 = vmatprep.subr.mxu0 0.0
    %5633 = vmatpush1.xpose.msra.mxu0 0.0
    %5634 = vmatprep.subr.mxu0 0.0
    %5635 = vmatpush1.xpose.msra.mxu0 0.0
    %5636 = vmatprep.subr.mxu0 0.0
    %5637 = vmatpush1.xpose.msra.mxu0 0.0
    %5638 = vmatprep.subr.mxu0 0.0
    %5639 = vmatpush1.xpose.msra.mxu0 0.0
    %5640 = vmatprep.subr.mxu0 0.0
    %5641 = vmatpush1.xpose.msra.mxu0 0.0
    %5642 = vmatprep.subr.mxu0 0.0
    %5643 = vmatpush1.xpose.msra.mxu0 0.0
    %5644 = vmatprep.subr.mxu0 0.0
    %5645 = vmatpush1.xpose.msra.mxu0 0.0
    %5646 = vmatprep.subr.mxu0 0.0
    %5647 = vmatpush1.xpose.msra.mxu0 0.0
    %5648 = vmatprep.subr.mxu0 0.0
    %5649 = vmatpush1.xpose.msra.mxu0 0.0
    %5650 = vmatprep.subr.mxu0 0.0
    %5651 = vmatpush1.xpose.msra.mxu0 0.0
    %5652 = vmatprep.subr.mxu0 0.0
    %5653 = vmatpush1.xpose.msra.mxu0 0.0
    %5654 = vmatprep.subr.mxu0 %v5282
    %5655 = vmatpush1.xpose.msra.mxu0 %v5281
    %5656 = vmatprep.subr.mxu0 %v5274
    %5657 = vmatpush1.xpose.msra.mxu0 %v5273
    %5658 = vmatprep.subr.mxu0 %v5266
    %5659 = vmatpush1.xpose.msra.mxu0 %v5265
    %5660 = vmatprep.subr.mxu0 %v5258
    %5661 = vmatpush1.xpose.msra.mxu0 %v5257
    %5662 = vmatprep.subr.mxu0 0.0
    %5663 = vmatpush2.xpose.msra.mxu0 0.0
    %5664 = vmatprep.subr.mxu0 0.0
    %5665 = vmatpush2.xpose.msra.mxu0 0.0
    %5666 = vmatprep.subr.mxu0 0.0
    %5667 = vmatpush2.xpose.msra.mxu0 0.0
    %5668 = vmatprep.subr.mxu0 0.0
    %5669 = vmatpush2.xpose.msra.mxu0 0.0
    %5670 = vmatprep.subr.mxu0 0.0
    %5671 = vmatpush2.xpose.msra.mxu0 0.0
    %5672 = vmatprep.subr.mxu0 0.0
    %5673 = vmatpush2.xpose.msra.mxu0 0.0
    %5674 = vmatprep.subr.mxu0 0.0
    %5675 = vmatpush2.xpose.msra.mxu0 0.0
    %5676 = vmatprep.subr.mxu0 0.0
    %5677 = vmatpush2.xpose.msra.mxu0 0.0
    %5678 = vmatprep.subr.mxu0 0.0
    %5679 = vmatpush2.xpose.msra.mxu0 0.0
    %5680 = vmatprep.subr.mxu0 0.0
    %5681 = vmatpush2.xpose.msra.mxu0 0.0
    %5682 = vmatprep.subr.mxu0 0.0
    %5683 = vmatpush2.xpose.msra.mxu0 0.0
    %5684 = vmatprep.subr.mxu0 0.0
    %5685 = vmatpush2.xpose.msra.mxu0 0.0
    %5686 = vmatprep.subr.mxu0 0.0
    %5687 = vmatpush2.xpose.msra.mxu0 0.0
    %5688 = vmatprep.subr.mxu0 0.0
    %5689 = vmatpush2.xpose.msra.mxu0 0.0
    %5690 = vmatprep.subr.mxu0 0.0
    %5691 = vmatpush2.xpose.msra.mxu0 0.0
    %5692 = vmatprep.subr.mxu0 0.0
    %5693 = vmatpush2.xpose.msra.mxu0 0.0
    %5694 = vmatprep.mubr.f32.mxu0 %v444
    %5695 = vmatmul.mubr.f32.gmra.mxu0 %v153
    %v5696 = vpop.f32.mrf.mxu0
    %v5697 = vadd.f32 %v5627, %v5696
    %v5698 = vpop.f32.mrf.mxu0
    %5699 = vdwg.mxu0
    %5700 = vmatprep.subr.mxu0 0.0
    %5701 = vmatpush1.xpose.msra.mxu0 0.0
    %5702 = vmatprep.subr.mxu0 0.0
    %5703 = vmatpush1.xpose.msra.mxu0 0.0
    %5704 = vmatprep.subr.mxu0 0.0
    %5705 = vmatpush1.xpose.msra.mxu0 0.0
    %5706 = vmatprep.subr.mxu0 0.0
    %5707 = vmatpush1.xpose.msra.mxu0 0.0
    %5708 = vmatprep.subr.mxu0 0.0
    %5709 = vmatpush1.xpose.msra.mxu0 0.0
    %5710 = vmatprep.subr.mxu0 0.0
    %5711 = vmatpush1.xpose.msra.mxu0 0.0
    %5712 = vmatprep.subr.mxu0 0.0
    %5713 = vmatpush1.xpose.msra.mxu0 0.0
    %5714 = vmatprep.subr.mxu0 0.0
    %5715 = vmatpush1.xpose.msra.mxu0 0.0
    %5716 = vmatprep.subr.mxu0 0.0
    %5717 = vmatpush1.xpose.msra.mxu0 0.0
    %5718 = vmatprep.subr.mxu0 0.0
    %5719 = vmatpush1.xpose.msra.mxu0 0.0
    %5720 = vmatprep.subr.mxu0 0.0
    %5721 = vmatpush1.xpose.msra.mxu0 0.0
    %5722 = vmatprep.subr.mxu0 0.0
    %5723 = vmatpush1.xpose.msra.mxu0 0.0
    %5724 = vmatprep.subr.mxu0 %v5284
    %5725 = vmatpush1.xpose.msra.mxu0 %v5283
    %5726 = vmatprep.subr.mxu0 %v5276
    %5727 = vmatpush1.xpose.msra.mxu0 %v5275
    %5728 = vmatprep.subr.mxu0 %v5268
    %5729 = vmatpush1.xpose.msra.mxu0 %v5267
    %5730 = vmatprep.subr.mxu0 %v5260
    %5731 = vmatpush1.xpose.msra.mxu0 %v5259
    %5732 = vmatprep.subr.mxu0 0.0
    %5733 = vmatpush2.xpose.msra.mxu0 0.0
    %5734 = vmatprep.subr.mxu0 0.0
    %5735 = vmatpush2.xpose.msra.mxu0 0.0
    %5736 = vmatprep.subr.mxu0 0.0
    %5737 = vmatpush2.xpose.msra.mxu0 0.0
    %5738 = vmatprep.subr.mxu0 0.0
    %5739 = vmatpush2.xpose.msra.mxu0 0.0
    %5740 = vmatprep.subr.mxu0 0.0
    %5741 = vmatpush2.xpose.msra.mxu0 0.0
    %5742 = vmatprep.subr.mxu0 0.0
    %5743 = vmatpush2.xpose.msra.mxu0 0.0
    %5744 = vmatprep.subr.mxu0 0.0
    %5745 = vmatpush2.xpose.msra.mxu0 0.0
    %5746 = vmatprep.subr.mxu0 0.0
    %5747 = vmatpush2.xpose.msra.mxu0 0.0
    %5748 = vmatprep.subr.mxu0 0.0
    %5749 = vmatpush2.xpose.msra.mxu0 0.0
    %5750 = vmatprep.subr.mxu0 0.0
    %5751 = vmatpush2.xpose.msra.mxu0 0.0
    %5752 = vmatprep.subr.mxu0 0.0
    %5753 = vmatpush2.xpose.msra.mxu0 0.0
    %5754 = vmatprep.subr.mxu0 0.0
    %5755 = vmatpush2.xpose.msra.mxu0 0.0
    %5756 = vmatprep.subr.mxu0 0.0
    %5757 = vmatpush2.xpose.msra.mxu0 0.0
    %5758 = vmatprep.subr.mxu0 0.0
    %5759 = vmatpush2.xpose.msra.mxu0 0.0
    %5760 = vmatprep.subr.mxu0 0.0
    %5761 = vmatpush2.xpose.msra.mxu0 0.0
    %5762 = vmatprep.subr.mxu0 0.0
    %5763 = vmatpush2.xpose.msra.mxu0 0.0
    %5764 = vmatprep.mubr.f32.mxu0 %v445
    %5765 = vmatmul.mubr.f32.gmra.mxu0 %v154
    %v5766 = vpop.f32.mrf.mxu0
    %v5767 = vadd.f32 %v5697, %v5766
    %v5768 = vpop.f32.mrf.mxu0
    %5769 = vdwg.mxu0
    %v5770 = vmax.f32 %v5767, 0.0
    %5772 = vrot.lane.b32.xlu0 %v5770, 32
    %v5773 = vpop.permute.xlu0 %5772
    %v5775 = vsel %vm51, %v5481, %v5773
    %v5777 = vlaneseq
    %v5778 = vshrl.u32 %v5777, 7
    %v5779 = vsub.s32 0, %v5778
    %v5780 = vrot.slane %v5294, %v5779
    %v5783 = vsel %vm358, %v5775, 0
    %5785 = vmatprep.subr.mxu0 0.0
    %5786 = vmatpush1.msra.mxu0 0.0
    %5787 = vmatprep.subr.mxu0 0.0
    %5788 = vmatpush1.msra.mxu0 0.0
    %5789 = vmatprep.subr.mxu0 0.0
    %5790 = vmatpush1.msra.mxu0 0.0
    %5791 = vmatprep.subr.mxu0 0.0
    %5792 = vmatpush1.msra.mxu0 0.0
    %5793 = vmatprep.subr.mxu0 0.0
    %5794 = vmatpush1.msra.mxu0 0.0
    %5795 = vmatprep.subr.mxu0 0.0
    %5796 = vmatpush1.msra.mxu0 0.0
    %5797 = vmatprep.subr.mxu0 0.0
    %5798 = vmatpush1.msra.mxu0 0.0
    %5799 = vmatprep.subr.mxu0 0.0
    %5800 = vmatpush1.msra.mxu0 0.0
    %5801 = vmatprep.subr.mxu0 0.0
    %5802 = vmatpush1.msra.mxu0 %v5293
    %5803 = vmatprep.subr.mxu0 0.0
    %5804 = vmatpush1.msra.mxu0 %v5292
    %5805 = vmatprep.subr.mxu0 0.0
    %5806 = vmatpush1.msra.mxu0 %v5291
    %5807 = vmatprep.subr.mxu0 0.0
    %5808 = vmatpush1.msra.mxu0 %v5290
    %5809 = vmatprep.subr.mxu0 0.0
    %5810 = vmatpush1.msra.mxu0 %v5289
    %5811 = vmatprep.subr.mxu0 0.0
    %5812 = vmatpush1.msra.mxu0 %v5288
    %5813 = vmatprep.subr.mxu0 0.0
    %5814 = vmatpush1.msra.mxu0 %v5287
    %5815 = vmatprep.subr.mxu0 0.0
    %5816 = vmatpush1.msra.mxu0 %v5286
    %5817 = vmatprep.subr.mxu0 0.0
    %5818 = vmatpush2.msra.mxu0 0.0
    %5819 = vmatprep.subr.mxu0 0.0
    %5820 = vmatpush2.msra.mxu0 0.0
    %5821 = vmatprep.subr.mxu0 0.0
    %5822 = vmatpush2.msra.mxu0 0.0
    %5823 = vmatprep.subr.mxu0 0.0
    %5824 = vmatpush2.msra.mxu0 0.0
    %5825 = vmatprep.subr.mxu0 0.0
    %5826 = vmatpush2.msra.mxu0 0.0
    %5827 = vmatprep.subr.mxu0 0.0
    %5828 = vmatpush2.msra.mxu0 0.0
    %5829 = vmatprep.subr.mxu0 0.0
    %5830 = vmatpush2.msra.mxu0 0.0
    %5831 = vmatprep.subr.mxu0 0.0
    %5832 = vmatpush2.msra.mxu0 0.0
    %5833 = vmatprep.subr.mxu0 0.0
    %5834 = vmatpush2.msra.mxu0 0.0
    %5835 = vmatprep.subr.mxu0 0.0
    %5836 = vmatpush2.msra.mxu0 0.0
    %5837 = vmatprep.subr.mxu0 0.0
    %5838 = vmatpush2.msra.mxu0 0.0
    %5839 = vmatprep.subr.mxu0 0.0
    %5840 = vmatpush2.msra.mxu0 0.0
    %5841 = vmatprep.subr.mxu0 0.0
    %5842 = vmatpush2.msra.mxu0 0.0
    %5843 = vmatprep.subr.mxu0 0.0
    %5844 = vmatpush2.msra.mxu0 0.0
    %5845 = vmatprep.subr.mxu0 0.0
    %5846 = vmatpush2.msra.mxu0 0.0
    %5847 = vmatprep.subr.mxu0 0.0
    %5848 = vmatpush2.msra.mxu0 0.0
    %5849 = vmatprep.mubr.f32.mxu0 0.0
    %5850 = vmatmul.mubr.f32.gmra.mxu0 %v5783
    %v5851 = vpop.f32.mrf.mxu0
    %v5852 = vadd.f32 %v5780, %v5851
    %v5853 = vpop.f32.mrf.mxu0
    %5854 = vdwg.mxu0
    %v5855 = vsel %vm815, %v5852, -inf
    %5856 = vmax.xlane.f32.xlu0 %v5855
    %v5857 = vpop.xlane.xlu0 %5856
    %v5858 = vsub.f32 %v5852, %v5857
    %v5859 = vmul.f32 %v5858, 1.442695
    %v5860 = vpow.pop %v5859
    %v5861 = vsel %vm815, %v5860, 0.0
    %5862 = vadd.xlane.f32.xlu0 %v5861
    %v5863 = vpop.xlane.xlu0 %5862
    %v5864 = vrcp.pop %v5863
    %v5865 = vmul.f32 %v5860, %v5864
    %v5866 = vsub.f32 %v5865, %v155
    %v5867 = vmul.f32 %v5866, 0.25
    %5868 = vxpose.xlu0.b32.start [1/16] %v5775, 128
    %5869 = vxpose.xlu0.b32.cont [2/16] 0.0, 128
    %5870 = vxpose.xlu0.b32.cont [3/16] 0.0, 128
    %5871 = vxpose.xlu0.b32.cont [4/16] 0.0, 128
    %5872 = vxpose.xlu0.b32.cont [5/16] 0.0, 128
    %5873 = vxpose.xlu0.b32.cont [6/16] 0.0, 128
    %5874 = vxpose.xlu0.b32.cont [7/16] 0.0, 128
    %5875 = vxpose.xlu0.b32.cont [8/16] 0.0, 128
    %5876 = vxpose.xlu0.b32.cont [9/16] 0.0, 128
    %5877 = vxpose.xlu0.b32.cont [10/16] 0.0, 128
    %5878 = vxpose.xlu0.b32.cont [11/16] 0.0, 128
    %5879 = vxpose.xlu0.b32.cont [12/16] 0.0, 128
    %5880 = vxpose.xlu0.b32.cont [13/16] 0.0, 128
    %5881 = vxpose.xlu0.b32.cont [14/16] 0.0, 128
    %5882 = vxpose.xlu0.b32.cont [15/16] 0.0, 128
    %5883 = vxpose.xlu0.b32.end [16/16] 0.0, 128
    %v5884 = vpop.trf.xlu0
    %v5885 = vpop.trf.xlu0
    %v5886 = vpop.trf.xlu0
    %v5887 = vpop.trf.xlu0
    %v5888 = vpop.trf.xlu0
    %v5889 = vpop.trf.xlu0
    %v5890 = vpop.trf.xlu0
    %v5891 = vpop.trf.xlu0
    %v5892 = vpop.trf.xlu0
    %v5893 = vpop.trf.xlu0
    %v5894 = vpop.trf.xlu0
    %v5895 = vpop.trf.xlu0
    %v5896 = vpop.trf.xlu0
    %v5897 = vpop.trf.xlu0
    %v5898 = vpop.trf.xlu0
    %v5899 = vpop.trf.xlu0
    %v5901 = vsel %vm861, %v5884, 0
    %v5904 = vsel %vm861, %v5885, 0
    %v5907 = vsel %vm861, %v5886, 0
    %v5910 = vsel %vm861, %v5887, 0
    %v5913 = vsel %vm861, %v5888, 0
    %v5916 = vsel %vm861, %v5889, 0
    %v5919 = vsel %vm861, %v5890, 0
    %v5922 = vsel %vm861, %v5891, 0
    %v5925 = vsel %vm886, %v5867, 0
    %5927 = vmatprep.subr.mxu0 0.0
    %5928 = vmatpush1.msra.mxu0 0.0
    %5929 = vmatprep.subr.mxu0 0.0
    %5930 = vmatpush1.msra.mxu0 0.0
    %5931 = vmatprep.subr.mxu0 0.0
    %5932 = vmatpush1.msra.mxu0 0.0
    %5933 = vmatprep.subr.mxu0 0.0
    %5934 = vmatpush1.msra.mxu0 0.0
    %5935 = vmatprep.subr.mxu0 0.0
    %5936 = vmatpush1.msra.mxu0 0.0
    %5937 = vmatprep.subr.mxu0 0.0
    %5938 = vmatpush1.msra.mxu0 0.0
    %5939 = vmatprep.subr.mxu0 0.0
    %5940 = vmatpush1.msra.mxu0 0.0
    %5941 = vmatprep.subr.mxu0 0.0
    %5942 = vmatpush1.msra.mxu0 0.0
    %5943 = vmatprep.subr.mxu0 0.0
    %5944 = vmatpush1.msra.mxu0 0.0
    %5945 = vmatprep.subr.mxu0 0.0
    %5946 = vmatpush1.msra.mxu0 0.0
    %5947 = vmatprep.subr.mxu0 0.0
    %5948 = vmatpush1.msra.mxu0 0.0
    %5949 = vmatprep.subr.mxu0 0.0
    %5950 = vmatpush1.msra.mxu0 0.0
    %5951 = vmatprep.subr.mxu0 0.0
    %5952 = vmatpush1.msra.mxu0 0.0
    %5953 = vmatprep.subr.mxu0 0.0
    %5954 = vmatpush1.msra.mxu0 0.0
    %5955 = vmatprep.subr.mxu0 0.0
    %5956 = vmatpush1.msra.mxu0 0.0
    %5957 = vmatprep.subr.mxu0 0.0
    %5958 = vmatpush1.msra.mxu0 %v5925
    %5959 = vmatprep.subr.mxu0 0.0
    %5960 = vmatpush2.msra.mxu0 0.0
    %5961 = vmatprep.subr.mxu0 0.0
    %5962 = vmatpush2.msra.mxu0 0.0
    %5963 = vmatprep.subr.mxu0 0.0
    %5964 = vmatpush2.msra.mxu0 0.0
    %5965 = vmatprep.subr.mxu0 0.0
    %5966 = vmatpush2.msra.mxu0 0.0
    %5967 = vmatprep.subr.mxu0 0.0
    %5968 = vmatpush2.msra.mxu0 0.0
    %5969 = vmatprep.subr.mxu0 0.0
    %5970 = vmatpush2.msra.mxu0 0.0
    %5971 = vmatprep.subr.mxu0 0.0
    %5972 = vmatpush2.msra.mxu0 0.0
    %5973 = vmatprep.subr.mxu0 0.0
    %5974 = vmatpush2.msra.mxu0 0.0
    %5975 = vmatprep.subr.mxu0 0.0
    %5976 = vmatpush2.msra.mxu0 0.0
    %5977 = vmatprep.subr.mxu0 0.0
    %5978 = vmatpush2.msra.mxu0 0.0
    %5979 = vmatprep.subr.mxu0 0.0
    %5980 = vmatpush2.msra.mxu0 0.0
    %5981 = vmatprep.subr.mxu0 0.0
    %5982 = vmatpush2.msra.mxu0 0.0
    %5983 = vmatprep.subr.mxu0 0.0
    %5984 = vmatpush2.msra.mxu0 0.0
    %5985 = vmatprep.subr.mxu0 0.0
    %5986 = vmatpush2.msra.mxu0 0.0
    %5987 = vmatprep.subr.mxu0 0.0
    %5988 = vmatpush2.msra.mxu0 0.0
    %5989 = vmatprep.subr.mxu0 0.0
    %5990 = vmatpush2.msra.mxu0 0.0
    %5991 = vmatprep.mubr.f32.mxu0 0.0
    %5992 = vmatmul.mubr.f32.gmra.mxu0 %v5901
    %v5993 = vpop.f32.mrf.mxu0
    %v5994 = vadd.f32 0.0, %v5993
    %v5995 = vpop.f32.mrf.mxu0
    %5996 = vmatprep.mubr.f32.mxu0 0.0
    %5997 = vmatmul.mubr.f32.gmra.mxu0 %v5904
    %v5998 = vpop.f32.mrf.mxu0
    %v5999 = vadd.f32 0.0, %v5998
    %v6000 = vpop.f32.mrf.mxu0
    %6001 = vmatprep.mubr.f32.mxu0 0.0
    %6002 = vmatmul.mubr.f32.gmra.mxu0 %v5907
    %v6003 = vpop.f32.mrf.mxu0
    %v6004 = vadd.f32 0.0, %v6003
    %v6005 = vpop.f32.mrf.mxu0
    %6006 = vmatprep.mubr.f32.mxu0 0.0
    %6007 = vmatmul.mubr.f32.gmra.mxu0 %v5910
    %v6008 = vpop.f32.mrf.mxu0
    %v6009 = vadd.f32 0.0, %v6008
    %v6010 = vpop.f32.mrf.mxu0
    %6011 = vmatprep.mubr.f32.mxu0 0.0
    %6012 = vmatmul.mubr.f32.gmra.mxu0 %v5913
    %v6013 = vpop.f32.mrf.mxu0
    %v6014 = vadd.f32 0.0, %v6013
    %v6015 = vpop.f32.mrf.mxu0
    %6016 = vmatprep.mubr.f32.mxu0 0.0
    %6017 = vmatmul.mubr.f32.gmra.mxu0 %v5916
    %v6018 = vpop.f32.mrf.mxu0
    %v6019 = vadd.f32 0.0, %v6018
    %v6020 = vpop.f32.mrf.mxu0
    %6021 = vmatprep.mubr.f32.mxu0 0.0
    %6022 = vmatmul.mubr.f32.gmra.mxu0 %v5919
    %v6023 = vpop.f32.mrf.mxu0
    %v6024 = vadd.f32 0.0, %v6023
    %v6025 = vpop.f32.mrf.mxu0
    %6026 = vmatprep.mubr.f32.mxu0 0.0
    %6027 = vmatmul.mubr.f32.gmra.mxu0 %v5922
    %v6028 = vpop.f32.mrf.mxu0
    %v6029 = vadd.f32 0.0, %v6028
    %v6030 = vpop.f32.mrf.mxu0
    %6031 = vdwg.mxu0
    %v6032 = vsel %vm815, %v5867, 0.0
    %v6033 = vrot.slane %v6032, 4
    %v6034 = vadd.f32 %v6032, %v6033
    %v6035 = vrot.slane %v6034, 2
    %v6036 = vadd.f32 %v6034, %v6035
    %v6037 = vrot.slane %v6036, 1
    %v6038 = vadd.f32 %v6036, %v6037
    %v6039 = vsel %vm130, %v5867, 0
    %v6042 = vsel %vm130, %v5286, 0
    %v6045 = vsel %vm130, %v5287, 0
    %v6048 = vsel %vm130, %v5288, 0
    %v6051 = vsel %vm130, %v5289, 0
    %v6054 = vsel %vm130, %v5290, 0
    %v6057 = vsel %vm130, %v5291, 0
    %v6060 = vsel %vm130, %v5292, 0
    %v6063 = vsel %vm130, %v5293, 0
    %6065 = vmatprep.subr.mxu0 0.0
    %6066 = vmatpush1.xpose.msra.mxu0 0.0
    %6067 = vmatprep.subr.mxu0 0.0
    %6068 = vmatpush1.xpose.msra.mxu0 0.0
    %6069 = vmatprep.subr.mxu0 0.0
    %6070 = vmatpush1.xpose.msra.mxu0 0.0
    %6071 = vmatprep.subr.mxu0 0.0
    %6072 = vmatpush1.xpose.msra.mxu0 0.0
    %6073 = vmatprep.subr.mxu0 0.0
    %6074 = vmatpush1.xpose.msra.mxu0 0.0
    %6075 = vmatprep.subr.mxu0 0.0
    %6076 = vmatpush1.xpose.msra.mxu0 0.0
    %6077 = vmatprep.subr.mxu0 0.0
    %6078 = vmatpush1.xpose.msra.mxu0 0.0
    %6079 = vmatprep.subr.mxu0 0.0
    %6080 = vmatpush1.xpose.msra.mxu0 0.0
    %6081 = vmatprep.subr.mxu0 0.0
    %6082 = vmatpush1.xpose.msra.mxu0 %v6063
    %6083 = vmatprep.subr.mxu0 0.0
    %6084 = vmatpush1.xpose.msra.mxu0 %v6060
    %6085 = vmatprep.subr.mxu0 0.0
    %6086 = vmatpush1.xpose.msra.mxu0 %v6057
    %6087 = vmatprep.subr.mxu0 0.0
    %6088 = vmatpush1.xpose.msra.mxu0 %v6054
    %6089 = vmatprep.subr.mxu0 0.0
    %6090 = vmatpush1.xpose.msra.mxu0 %v6051
    %6091 = vmatprep.subr.mxu0 0.0
    %6092 = vmatpush1.xpose.msra.mxu0 %v6048
    %6093 = vmatprep.subr.mxu0 0.0
    %6094 = vmatpush1.xpose.msra.mxu0 %v6045
    %6095 = vmatprep.subr.mxu0 0.0
    %6096 = vmatpush1.xpose.msra.mxu0 %v6042
    %6097 = vmatprep.subr.mxu0 0.0
    %6098 = vmatpush2.xpose.msra.mxu0 0.0
    %6099 = vmatprep.subr.mxu0 0.0
    %6100 = vmatpush2.xpose.msra.mxu0 0.0
    %6101 = vmatprep.subr.mxu0 0.0
    %6102 = vmatpush2.xpose.msra.mxu0 0.0
    %6103 = vmatprep.subr.mxu0 0.0
    %6104 = vmatpush2.xpose.msra.mxu0 0.0
    %6105 = vmatprep.subr.mxu0 0.0
    %6106 = vmatpush2.xpose.msra.mxu0 0.0
    %6107 = vmatprep.subr.mxu0 0.0
    %6108 = vmatpush2.xpose.msra.mxu0 0.0
    %6109 = vmatprep.subr.mxu0 0.0
    %6110 = vmatpush2.xpose.msra.mxu0 0.0
    %6111 = vmatprep.subr.mxu0 0.0
    %6112 = vmatpush2.xpose.msra.mxu0 0.0
    %6113 = vmatprep.subr.mxu0 0.0
    %6114 = vmatpush2.xpose.msra.mxu0 0.0
    %6115 = vmatprep.subr.mxu0 0.0
    %6116 = vmatpush2.xpose.msra.mxu0 0.0
    %6117 = vmatprep.subr.mxu0 0.0
    %6118 = vmatpush2.xpose.msra.mxu0 0.0
    %6119 = vmatprep.subr.mxu0 0.0
    %6120 = vmatpush2.xpose.msra.mxu0 0.0
    %6121 = vmatprep.subr.mxu0 0.0
    %6122 = vmatpush2.xpose.msra.mxu0 0.0
    %6123 = vmatprep.subr.mxu0 0.0
    %6124 = vmatpush2.xpose.msra.mxu0 0.0
    %6125 = vmatprep.subr.mxu0 0.0
    %6126 = vmatpush2.xpose.msra.mxu0 0.0
    %6127 = vmatprep.subr.mxu0 0.0
    %6128 = vmatpush2.xpose.msra.mxu0 0.0
    %6129 = vmatprep.mubr.f32.mxu0 0.0
    %6130 = vmatmul.mubr.f32.gmra.mxu0 %v6039
    %v6131 = vpop.f32.mrf.mxu0
    %v6132 = vadd.f32 0.0, %v6131
    %v6133 = vpop.f32.mrf.mxu0
    %6134 = vdwg.mxu0
    %vm6135 = vcmp.gt.f32.partialorder %v5767, 0.0
    %6137 = vrot.lane.b32.xlu0 %v6132, 96
    %v6138 = vpop.permute.xlu0 %6137
    %v6140 = vsel %vm6135, %v6138, 0.0
    %6141 = vxpose.xlu0.b32.start [1/16] %v6140, 128
    %6142 = vxpose.xlu0.b32.cont [2/16] 0.0, 128
    %6143 = vxpose.xlu0.b32.cont [3/16] 0.0, 128
    %6144 = vxpose.xlu0.b32.cont [4/16] 0.0, 128
    %6145 = vxpose.xlu0.b32.cont [5/16] 0.0, 128
    %6146 = vxpose.xlu0.b32.cont [6/16] 0.0, 128
    %6147 = vxpose.xlu0.b32.cont [7/16] 0.0, 128
    %6148 = vxpose.xlu0.b32.cont [8/16] 0.0, 128
    %6149 = vxpose.xlu0.b32.cont [9/16] 0.0, 128
    %6150 = vxpose.xlu0.b32.cont [10/16] 0.0, 128
    %6151 = vxpose.xlu0.b32.cont [11/16] 0.0, 128
    %6152 = vxpose.xlu0.b32.cont [12/16] 0.0, 128
    %6153 = vxpose.xlu0.b32.cont [13/16] 0.0, 128
    %6154 = vxpose.xlu0.b32.cont [14/16] 0.0, 128
    %6155 = vxpose.xlu0.b32.cont [15/16] 0.0, 128
    %6156 = vxpose.xlu0.b32.end [16/16] 0.0, 128
    %v6157 = vpop.trf.xlu0
    %v6158 = vpop.trf.xlu0
    %v6159 = vpop.trf.xlu0
    %v6160 = vpop.trf.xlu0
    %v6161 = vpop.trf.xlu0
    %v6162 = vpop.trf.xlu0
    %v6163 = vpop.trf.xlu0
    %v6164 = vpop.trf.xlu0
    %v6165 = vpop.trf.xlu0
    %v6166 = vpop.trf.xlu0
    %v6167 = vpop.trf.xlu0
    %v6168 = vpop.trf.xlu0
    %v6169 = vpop.trf.xlu0
    %v6170 = vpop.trf.xlu0
    %v6171 = vpop.trf.xlu0
    %v6172 = vpop.trf.xlu0
    %v6174 = vsel %vm861, %v6157, 0
    %v6177 = vsel %vm861, %v6158, 0
    %v6180 = vsel %vm861, %v6159, 0
    %v6183 = vsel %vm861, %v6160, 0
    %6185 = vmatprep.subr.mxu0 0.0
    %6186 = vmatpush1.msra.mxu0 0.0
    %6187 = vmatprep.subr.mxu0 0.0
    %6188 = vmatpush1.msra.mxu0 0.0
    %6189 = vmatprep.subr.mxu0 0.0
    %6190 = vmatpush1.msra.mxu0 0.0
    %6191 = vmatprep.subr.mxu0 0.0
    %6192 = vmatpush1.msra.mxu0 0.0
    %6193 = vmatprep.subr.mxu0 0.0
    %6194 = vmatpush1.msra.mxu0 0.0
    %6195 = vmatprep.subr.mxu0 0.0
    %6196 = vmatpush1.msra.mxu0 0.0
    %6197 = vmatprep.subr.mxu0 0.0
    %6198 = vmatpush1.msra.mxu0 0.0
    %6199 = vmatprep.subr.mxu0 0.0
    %6200 = vmatpush1.msra.mxu0 0.0
    %6201 = vmatprep.subr.mxu0 0.0
    %6202 = vmatpush1.msra.mxu0 0.0
    %6203 = vmatprep.subr.mxu0 0.0
    %6204 = vmatpush1.msra.mxu0 0.0
    %6205 = vmatprep.subr.mxu0 0.0
    %6206 = vmatpush1.msra.mxu0 0.0
    %6207 = vmatprep.subr.mxu0 0.0
    %6208 = vmatpush1.msra.mxu0 0.0
    %6209 = vmatprep.subr.mxu0 0.0
    %6210 = vmatpush1.msra.mxu0 0.0
    %6211 = vmatprep.subr.mxu0 0.0
    %6212 = vmatpush1.msra.mxu0 0.0
    %6213 = vmatprep.subr.mxu0 0.0
    %6214 = vmatpush1.msra.mxu0 0.0
    %6215 = vmatprep.subr.mxu0 %v1150
    %6216 = vmatpush1.msra.mxu0 %v1148
    %6217 = vmatprep.subr.mxu0 0.0
    %6218 = vmatpush2.msra.mxu0 0.0
    %6219 = vmatprep.subr.mxu0 0.0
    %6220 = vmatpush2.msra.mxu0 0.0
    %6221 = vmatprep.subr.mxu0 0.0
    %6222 = vmatpush2.msra.mxu0 0.0
    %6223 = vmatprep.subr.mxu0 0.0
    %6224 = vmatpush2.msra.mxu0 0.0
    %6225 = vmatprep.subr.mxu0 0.0
    %6226 = vmatpush2.msra.mxu0 0.0
    %6227 = vmatprep.subr.mxu0 0.0
    %6228 = vmatpush2.msra.mxu0 0.0
    %6229 = vmatprep.subr.mxu0 0.0
    %6230 = vmatpush2.msra.mxu0 0.0
    %6231 = vmatprep.subr.mxu0 0.0
    %6232 = vmatpush2.msra.mxu0 0.0
    %6233 = vmatprep.subr.mxu0 0.0
    %6234 = vmatpush2.msra.mxu0 0.0
    %6235 = vmatprep.subr.mxu0 0.0
    %6236 = vmatpush2.msra.mxu0 0.0
    %6237 = vmatprep.subr.mxu0 0.0
    %6238 = vmatpush2.msra.mxu0 0.0
    %6239 = vmatprep.subr.mxu0 0.0
    %6240 = vmatpush2.msra.mxu0 0.0
    %6241 = vmatprep.subr.mxu0 0.0
    %6242 = vmatpush2.msra.mxu0 0.0
    %6243 = vmatprep.subr.mxu0 0.0
    %6244 = vmatpush2.msra.mxu0 0.0
    %6245 = vmatprep.subr.mxu0 0.0
    %6246 = vmatpush2.msra.mxu0 0.0
    %6247 = vmatprep.subr.mxu0 0.0
    %6248 = vmatpush2.msra.mxu0 0.0
    %6249 = vmatprep.mubr.f32.mxu0 0.0
    %6250 = vmatmul.mubr.f32.gmra.mxu0 %v6174
    %v6251 = vpop.f32.mrf.mxu0
    %v6252 = vadd.f32 0.0, %v6251
    %v6253 = vpop.f32.mrf.mxu0
    %v6254 = vadd.f32 0.0, %v6253
    %6255 = vmatprep.mubr.f32.mxu0 0.0
    %6256 = vmatmul.mubr.f32.gmra.mxu0 %v6177
    %v6257 = vpop.f32.mrf.mxu0
    %v6258 = vadd.f32 0.0, %v6257
    %v6259 = vpop.f32.mrf.mxu0
    %v6260 = vadd.f32 0.0, %v6259
    %6261 = vmatprep.mubr.f32.mxu0 0.0
    %6262 = vmatmul.mubr.f32.gmra.mxu0 %v6180
    %v6263 = vpop.f32.mrf.mxu0
    %v6264 = vadd.f32 0.0, %v6263
    %v6265 = vpop.f32.mrf.mxu0
    %v6266 = vadd.f32 0.0, %v6265
    %6267 = vmatprep.mubr.f32.mxu0 0.0
    %6268 = vmatmul.mubr.f32.gmra.mxu0 %v6183
    %v6269 = vpop.f32.mrf.mxu0
    %v6270 = vadd.f32 0.0, %v6269
    %v6271 = vpop.f32.mrf.mxu0
    %v6272 = vadd.f32 0.0, %v6271
    %6273 = vdwg.mxu0
    %6274 = vmatprep.subr.mxu0 0.0
    %6275 = vmatpush1.msra.mxu0 0.0
    %6276 = vmatprep.subr.mxu0 0.0
    %6277 = vmatpush1.msra.mxu0 0.0
    %6278 = vmatprep.subr.mxu0 0.0
    %6279 = vmatpush1.msra.mxu0 0.0
    %6280 = vmatprep.subr.mxu0 0.0
    %6281 = vmatpush1.msra.mxu0 0.0
    %6282 = vmatprep.subr.mxu0 0.0
    %6283 = vmatpush1.msra.mxu0 0.0
    %6284 = vmatprep.subr.mxu0 0.0
    %6285 = vmatpush1.msra.mxu0 0.0
    %6286 = vmatprep.subr.mxu0 0.0
    %6287 = vmatpush1.msra.mxu0 0.0
    %6288 = vmatprep.subr.mxu0 0.0
    %6289 = vmatpush1.msra.mxu0 0.0
    %6290 = vmatprep.subr.mxu0 0.0
    %6291 = vmatpush1.msra.mxu0 0.0
    %6292 = vmatprep.subr.mxu0 0.0
    %6293 = vmatpush1.msra.mxu0 0.0
    %6294 = vmatprep.subr.mxu0 0.0
    %6295 = vmatpush1.msra.mxu0 0.0
    %6296 = vmatprep.subr.mxu0 0.0
    %6297 = vmatpush1.msra.mxu0 0.0
    %6298 = vmatprep.subr.mxu0 0.0
    %6299 = vmatpush1.msra.mxu0 0.0
    %6300 = vmatprep.subr.mxu0 0.0
    %6301 = vmatpush1.msra.mxu0 0.0
    %6302 = vmatprep.subr.mxu0 0.0
    %6303 = vmatpush1.msra.mxu0 0.0
    %6304 = vmatprep.subr.mxu0 %v1154
    %6305 = vmatpush1.msra.mxu0 %v1152
    %6306 = vmatprep.subr.mxu0 0.0
    %6307 = vmatpush2.msra.mxu0 0.0
    %6308 = vmatprep.subr.mxu0 0.0
    %6309 = vmatpush2.msra.mxu0 0.0
    %6310 = vmatprep.subr.mxu0 0.0
    %6311 = vmatpush2.msra.mxu0 0.0
    %6312 = vmatprep.subr.mxu0 0.0
    %6313 = vmatpush2.msra.mxu0 0.0
    %6314 = vmatprep.subr.mxu0 0.0
    %6315 = vmatpush2.msra.mxu0 0.0
    %6316 = vmatprep.subr.mxu0 0.0
    %6317 = vmatpush2.msra.mxu0 0.0
    %6318 = vmatprep.subr.mxu0 0.0
    %6319 = vmatpush2.msra.mxu0 0.0
    %6320 = vmatprep.subr.mxu0 0.0
    %6321 = vmatpush2.msra.mxu0 0.0
    %6322 = vmatprep.subr.mxu0 0.0
    %6323 = vmatpush2.msra.mxu0 0.0
    %6324 = vmatprep.subr.mxu0 0.0
    %6325 = vmatpush2.msra.mxu0 0.0
    %6326 = vmatprep.subr.mxu0 0.0
    %6327 = vmatpush2.msra.mxu0 0.0
    %6328 = vmatprep.subr.mxu0 0.0
    %6329 = vmatpush2.msra.mxu0 0.0
    %6330 = vmatprep.subr.mxu0 0.0
    %6331 = vmatpush2.msra.mxu0 0.0
    %6332 = vmatprep.subr.mxu0 0.0
    %6333 = vmatpush2.msra.mxu0 0.0
    %6334 = vmatprep.subr.mxu0 0.0
    %6335 = vmatpush2.msra.mxu0 0.0
    %6336 = vmatprep.subr.mxu0 0.0
    %6337 = vmatpush2.msra.mxu0 0.0
    %6338 = vmatprep.mubr.f32.mxu0 0.0
    %6339 = vmatmul.mubr.f32.gmra.mxu0 %v6174
    %v6340 = vpop.f32.mrf.mxu0
    %v6341 = vadd.f32 0.0, %v6340
    %v6342 = vpop.f32.mrf.mxu0
    %v6343 = vadd.f32 0.0, %v6342
    %6344 = vmatprep.mubr.f32.mxu0 0.0
    %6345 = vmatmul.mubr.f32.gmra.mxu0 %v6177
    %v6346 = vpop.f32.mrf.mxu0
    %v6347 = vadd.f32 0.0, %v6346
    %v6348 = vpop.f32.mrf.mxu0
    %v6349 = vadd.f32 0.0, %v6348
    %6350 = vmatprep.mubr.f32.mxu0 0.0
    %6351 = vmatmul.mubr.f32.gmra.mxu0 %v6180
    %v6352 = vpop.f32.mrf.mxu0
    %v6353 = vadd.f32 0.0, %v6352
    %v6354 = vpop.f32.mrf.mxu0
    %v6355 = vadd.f32 0.0, %v6354
    %6356 = vmatprep.mubr.f32.mxu0 0.0
    %6357 = vmatmul.mubr.f32.gmra.mxu0 %v6183
    %v6358 = vpop.f32.mrf.mxu0
    %v6359 = vadd.f32 0.0, %v6358
    %v6360 = vpop.f32.mrf.mxu0
    %v6361 = vadd.f32 0.0, %v6360
    %6362 = vdwg.mxu0
    %6363 = vmatprep.subr.mxu0 0.0
    %6364 = vmatpush1.msra.mxu0 0.0
    %6365 = vmatprep.subr.mxu0 0.0
    %6366 = vmatpush1.msra.mxu0 0.0
    %6367 = vmatprep.subr.mxu0 0.0
    %6368 = vmatpush1.msra.mxu0 0.0
    %6369 = vmatprep.subr.mxu0 0.0
    %6370 = vmatpush1.msra.mxu0 0.0
    %6371 = vmatprep.subr.mxu0 0.0
    %6372 = vmatpush1.msra.mxu0 0.0
    %6373 = vmatprep.subr.mxu0 0.0
    %6374 = vmatpush1.msra.mxu0 0.0
    %6375 = vmatprep.subr.mxu0 0.0
    %6376 = vmatpush1.msra.mxu0 0.0
    %6377 = vmatprep.subr.mxu0 0.0
    %6378 = vmatpush1.msra.mxu0 0.0
    %6379 = vmatprep.subr.mxu0 0.0
    %6380 = vmatpush1.msra.mxu0 0.0
    %6381 = vmatprep.subr.mxu0 0.0
    %6382 = vmatpush1.msra.mxu0 0.0
    %6383 = vmatprep.subr.mxu0 0.0
    %6384 = vmatpush1.msra.mxu0 0.0
    %6385 = vmatprep.subr.mxu0 0.0
    %6386 = vmatpush1.msra.mxu0 0.0
    %6387 = vmatprep.subr.mxu0 0.0
    %6388 = vmatpush1.msra.mxu0 0.0
    %6389 = vmatprep.subr.mxu0 0.0
    %6390 = vmatpush1.msra.mxu0 0.0
    %6391 = vmatprep.subr.mxu0 0.0
    %6392 = vmatpush1.msra.mxu0 0.0
    %6393 = vmatprep.subr.mxu0 %v1158
    %6394 = vmatpush1.msra.mxu0 %v1156
    %6395 = vmatprep.subr.mxu0 0.0
    %6396 = vmatpush2.msra.mxu0 0.0
    %6397 = vmatprep.subr.mxu0 0.0
    %6398 = vmatpush2.msra.mxu0 0.0
    %6399 = vmatprep.subr.mxu0 0.0
    %6400 = vmatpush2.msra.mxu0 0.0
    %6401 = vmatprep.subr.mxu0 0.0
    %6402 = vmatpush2.msra.mxu0 0.0
    %6403 = vmatprep.subr.mxu0 0.0
    %6404 = vmatpush2.msra.mxu0 0.0
    %6405 = vmatprep.subr.mxu0 0.0
    %6406 = vmatpush2.msra.mxu0 0.0
    %6407 = vmatprep.subr.mxu0 0.0
    %6408 = vmatpush2.msra.mxu0 0.0
    %6409 = vmatprep.subr.mxu0 0.0
    %6410 = vmatpush2.msra.mxu0 0.0
    %6411 = vmatprep.subr.mxu0 0.0
    %6412 = vmatpush2.msra.mxu0 0.0
    %6413 = vmatprep.subr.mxu0 0.0
    %6414 = vmatpush2.msra.mxu0 0.0
    %6415 = vmatprep.subr.mxu0 0.0
    %6416 = vmatpush2.msra.mxu0 0.0
    %6417 = vmatprep.subr.mxu0 0.0
    %6418 = vmatpush2.msra.mxu0 0.0
    %6419 = vmatprep.subr.mxu0 0.0
    %6420 = vmatpush2.msra.mxu0 0.0
    %6421 = vmatprep.subr.mxu0 0.0
    %6422 = vmatpush2.msra.mxu0 0.0
    %6423 = vmatprep.subr.mxu0 0.0
    %6424 = vmatpush2.msra.mxu0 0.0
    %6425 = vmatprep.subr.mxu0 0.0
    %6426 = vmatpush2.msra.mxu0 0.0
    %6427 = vmatprep.mubr.f32.mxu0 0.0
    %6428 = vmatmul.mubr.f32.gmra.mxu0 %v6174
    %v6429 = vpop.f32.mrf.mxu0
    %v6430 = vadd.f32 0.0, %v6429
    %v6431 = vpop.f32.mrf.mxu0
    %v6432 = vadd.f32 0.0, %v6431
    %6433 = vmatprep.mubr.f32.mxu0 0.0
    %6434 = vmatmul.mubr.f32.gmra.mxu0 %v6177
    %v6435 = vpop.f32.mrf.mxu0
    %v6436 = vadd.f32 0.0, %v6435
    %v6437 = vpop.f32.mrf.mxu0
    %v6438 = vadd.f32 0.0, %v6437
    %6439 = vmatprep.mubr.f32.mxu0 0.0
    %6440 = vmatmul.mubr.f32.gmra.mxu0 %v6180
    %v6441 = vpop.f32.mrf.mxu0
    %v6442 = vadd.f32 0.0, %v6441
    %v6443 = vpop.f32.mrf.mxu0
    %v6444 = vadd.f32 0.0, %v6443
    %6445 = vmatprep.mubr.f32.mxu0 0.0
    %6446 = vmatmul.mubr.f32.gmra.mxu0 %v6183
    %v6447 = vpop.f32.mrf.mxu0
    %v6448 = vadd.f32 0.0, %v6447
    %v6449 = vpop.f32.mrf.mxu0
    %v6450 = vadd.f32 0.0, %v6449
    %6451 = vdwg.mxu0
    %6452 = vmatprep.subr.mxu0 0.0
    %6453 = vmatpush1.msra.mxu0 0.0
    %6454 = vmatprep.subr.mxu0 0.0
    %6455 = vmatpush1.msra.mxu0 0.0
    %6456 = vmatprep.subr.mxu0 0.0
    %6457 = vmatpush1.msra.mxu0 0.0
    %6458 = vmatprep.subr.mxu0 0.0
    %6459 = vmatpush1.msra.mxu0 0.0
    %6460 = vmatprep.subr.mxu0 0.0
    %6461 = vmatpush1.msra.mxu0 0.0
    %6462 = vmatprep.subr.mxu0 0.0
    %6463 = vmatpush1.msra.mxu0 0.0
    %6464 = vmatprep.subr.mxu0 0.0
    %6465 = vmatpush1.msra.mxu0 0.0
    %6466 = vmatprep.subr.mxu0 0.0
    %6467 = vmatpush1.msra.mxu0 0.0
    %6468 = vmatprep.subr.mxu0 0.0
    %6469 = vmatpush1.msra.mxu0 0.0
    %6470 = vmatprep.subr.mxu0 0.0
    %6471 = vmatpush1.msra.mxu0 0.0
    %6472 = vmatprep.subr.mxu0 0.0
    %6473 = vmatpush1.msra.mxu0 0.0
    %6474 = vmatprep.subr.mxu0 0.0
    %6475 = vmatpush1.msra.mxu0 0.0
    %6476 = vmatprep.subr.mxu0 0.0
    %6477 = vmatpush1.msra.mxu0 0.0
    %6478 = vmatprep.subr.mxu0 0.0
    %6479 = vmatpush1.msra.mxu0 0.0
    %6480 = vmatprep.subr.mxu0 0.0
    %6481 = vmatpush1.msra.mxu0 0.0
    %6482 = vmatprep.subr.mxu0 %v1162
    %6483 = vmatpush1.msra.mxu0 %v1160
    %6484 = vmatprep.subr.mxu0 0.0
    %6485 = vmatpush2.msra.mxu0 0.0
    %6486 = vmatprep.subr.mxu0 0.0
    %6487 = vmatpush2.msra.mxu0 0.0
    %6488 = vmatprep.subr.mxu0 0.0
    %6489 = vmatpush2.msra.mxu0 0.0
    %6490 = vmatprep.subr.mxu0 0.0
    %6491 = vmatpush2.msra.mxu0 0.0
    %6492 = vmatprep.subr.mxu0 0.0
    %6493 = vmatpush2.msra.mxu0 0.0
    %6494 = vmatprep.subr.mxu0 0.0
    %6495 = vmatpush2.msra.mxu0 0.0
    %6496 = vmatprep.subr.mxu0 0.0
    %6497 = vmatpush2.msra.mxu0 0.0
    %6498 = vmatprep.subr.mxu0 0.0
    %6499 = vmatpush2.msra.mxu0 0.0
    %6500 = vmatprep.subr.mxu0 0.0
    %6501 = vmatpush2.msra.mxu0 0.0
    %6502 = vmatprep.subr.mxu0 0.0
    %6503 = vmatpush2.msra.mxu0 0.0
    %6504 = vmatprep.subr.mxu0 0.0
    %6505 = vmatpush2.msra.mxu0 0.0
    %6506 = vmatprep.subr.mxu0 0.0
    %6507 = vmatpush2.msra.mxu0 0.0
    %6508 = vmatprep.subr.mxu0 0.0
    %6509 = vmatpush2.msra.mxu0 0.0
    %6510 = vmatprep.subr.mxu0 0.0
    %6511 = vmatpush2.msra.mxu0 0.0
    %6512 = vmatprep.subr.mxu0 0.0
    %6513 = vmatpush2.msra.mxu0 0.0
    %6514 = vmatprep.subr.mxu0 0.0
    %6515 = vmatpush2.msra.mxu0 0.0
    %6516 = vmatprep.mubr.f32.mxu0 0.0
    %6517 = vmatmul.mubr.f32.gmra.mxu0 %v6174
    %v6518 = vpop.f32.mrf.mxu0
    %v6519 = vadd.f32 0.0, %v6518
    %v6520 = vpop.f32.mrf.mxu0
    %v6521 = vadd.f32 0.0, %v6520
    %6522 = vmatprep.mubr.f32.mxu0 0.0
    %6523 = vmatmul.mubr.f32.gmra.mxu0 %v6177
    %v6524 = vpop.f32.mrf.mxu0
    %v6525 = vadd.f32 0.0, %v6524
    %v6526 = vpop.f32.mrf.mxu0
    %v6527 = vadd.f32 0.0, %v6526
    %6528 = vmatprep.mubr.f32.mxu0 0.0
    %6529 = vmatmul.mubr.f32.gmra.mxu0 %v6180
    %v6530 = vpop.f32.mrf.mxu0
    %v6531 = vadd.f32 0.0, %v6530
    %v6532 = vpop.f32.mrf.mxu0
    %v6533 = vadd.f32 0.0, %v6532
    %6534 = vmatprep.mubr.f32.mxu0 0.0
    %6535 = vmatmul.mubr.f32.gmra.mxu0 %v6183
    %v6536 = vpop.f32.mrf.mxu0
    %v6537 = vadd.f32 0.0, %v6536
    %v6538 = vpop.f32.mrf.mxu0
    %v6539 = vadd.f32 0.0, %v6538
    %6540 = vdwg.mxu0
    %v6541 = vsel %vm1520, %v6140, 0.0
    %v6542 = vrot.slane %v6541, 4
    %v6543 = vadd.f32 %v6541, %v6542
    %v6544 = vrot.slane %v6543, 2
    %v6545 = vadd.f32 %v6543, %v6544
    %v6546 = vrot.slane %v6545, 1
    %v6547 = vadd.f32 %v6545, %v6546
    %v6548 = vsel %vm886, %v6132, 0
    %6550 = vmatprep.subr.mxu0 0.0
    %6551 = vmatpush1.msra.mxu0 0.0
    %6552 = vmatprep.subr.mxu0 0.0
    %6553 = vmatpush1.msra.mxu0 0.0
    %6554 = vmatprep.subr.mxu0 0.0
    %6555 = vmatpush1.msra.mxu0 0.0
    %6556 = vmatprep.subr.mxu0 0.0
    %6557 = vmatpush1.msra.mxu0 0.0
    %6558 = vmatprep.subr.mxu0 0.0
    %6559 = vmatpush1.msra.mxu0 0.0
    %6560 = vmatprep.subr.mxu0 0.0
    %6561 = vmatpush1.msra.mxu0 0.0
    %6562 = vmatprep.subr.mxu0 0.0
    %6563 = vmatpush1.msra.mxu0 0.0
    %6564 = vmatprep.subr.mxu0 0.0
    %6565 = vmatpush1.msra.mxu0 0.0
    %6566 = vmatprep.subr.mxu0 0.0
    %6567 = vmatpush1.msra.mxu0 0.0
    %6568 = vmatprep.subr.mxu0 0.0
    %6569 = vmatpush1.msra.mxu0 0.0
    %6570 = vmatprep.subr.mxu0 0.0
    %6571 = vmatpush1.msra.mxu0 0.0
    %6572 = vmatprep.subr.mxu0 0.0
    %6573 = vmatpush1.msra.mxu0 0.0
    %6574 = vmatprep.subr.mxu0 0.0
    %6575 = vmatpush1.msra.mxu0 0.0
    %6576 = vmatprep.subr.mxu0 0.0
    %6577 = vmatpush1.msra.mxu0 0.0
    %6578 = vmatprep.subr.mxu0 0.0
    %6579 = vmatpush1.msra.mxu0 0.0
    %6580 = vmatprep.subr.mxu0 0.0
    %6581 = vmatpush1.msra.mxu0 %v6548
    %6582 = vmatprep.subr.mxu0 0.0
    %6583 = vmatpush2.msra.mxu0 0.0
    %6584 = vmatprep.subr.mxu0 0.0
    %6585 = vmatpush2.msra.mxu0 0.0
    %6586 = vmatprep.subr.mxu0 0.0
    %6587 = vmatpush2.msra.mxu0 0.0
    %6588 = vmatprep.subr.mxu0 0.0
    %6589 = vmatpush2.msra.mxu0 0.0
    %6590 = vmatprep.subr.mxu0 0.0
    %6591 = vmatpush2.msra.mxu0 0.0
    %6592 = vmatprep.subr.mxu0 0.0
    %6593 = vmatpush2.msra.mxu0 0.0
    %6594 = vmatprep.subr.mxu0 0.0
    %6595 = vmatpush2.msra.mxu0 0.0
    %6596 = vmatprep.subr.mxu0 0.0
    %6597 = vmatpush2.msra.mxu0 0.0
    %6598 = vmatprep.subr.mxu0 0.0
    %6599 = vmatpush2.msra.mxu0 0.0
    %6600 = vmatprep.subr.mxu0 0.0
    %6601 = vmatpush2.msra.mxu0 0.0
    %6602 = vmatprep.subr.mxu0 0.0
    %6603 = vmatpush2.msra.mxu0 0.0
    %6604 = vmatprep.subr.mxu0 0.0
    %6605 = vmatpush2.msra.mxu0 0.0
    %6606 = vmatprep.subr.mxu0 0.0
    %6607 = vmatpush2.msra.mxu0 0.0
    %6608 = vmatprep.subr.mxu0 0.0
    %6609 = vmatpush2.msra.mxu0 0.0
    %6610 = vmatprep.subr.mxu0 0.0
    %6611 = vmatpush2.msra.mxu0 0.0
    %6612 = vmatprep.subr.mxu0 0.0
    %6613 = vmatpush2.msra.mxu0 0.0
    %6614 = vmatprep.mubr.f32.mxu0 0.0
    %6615 = vmatmul.mubr.f32.gmra.mxu0 %v1561
    %v6616 = vpop.f32.mrf.mxu0
    %v6617 = vadd.f32 0.0, %v6616
    %v6618 = vpop.f32.mrf.mxu0
    %6619 = vmatprep.mubr.f32.mxu0 0.0
    %6620 = vmatmul.mubr.f32.gmra.mxu0 %v1564
    %v6621 = vpop.f32.mrf.mxu0
    %v6622 = vadd.f32 0.0, %v6621
    %v6623 = vpop.f32.mrf.mxu0
    %6624 = vmatprep.mubr.f32.mxu0 0.0
    %6625 = vmatmul.mubr.f32.gmra.mxu0 %v1567
    %v6626 = vpop.f32.mrf.mxu0
    %v6627 = vadd.f32 0.0, %v6626
    %v6628 = vpop.f32.mrf.mxu0
    %6629 = vmatprep.mubr.f32.mxu0 0.0
    %6630 = vmatmul.mubr.f32.gmra.mxu0 %v1570
    %v6631 = vpop.f32.mrf.mxu0
    %v6632 = vadd.f32 0.0, %v6631
    %v6633 = vpop.f32.mrf.mxu0
    %6634 = vmatprep.mubr.f32.mxu0 0.0
    %6635 = vmatmul.mubr.f32.gmra.mxu0 %v1573
    %v6636 = vpop.f32.mrf.mxu0
    %v6637 = vadd.f32 0.0, %v6636
    %v6638 = vpop.f32.mrf.mxu0
    %6639 = vmatprep.mubr.f32.mxu0 0.0
    %6640 = vmatmul.mubr.f32.gmra.mxu0 %v1576
    %v6641 = vpop.f32.mrf.mxu0
    %v6642 = vadd.f32 0.0, %v6641
    %v6643 = vpop.f32.mrf.mxu0
    %6644 = vmatprep.mubr.f32.mxu0 0.0
    %6645 = vmatmul.mubr.f32.gmra.mxu0 %v1579
    %v6646 = vpop.f32.mrf.mxu0
    %v6647 = vadd.f32 0.0, %v6646
    %v6648 = vpop.f32.mrf.mxu0
    %6649 = vmatprep.mubr.f32.mxu0 0.0
    %6650 = vmatmul.mubr.f32.gmra.mxu0 %v1582
    %v6651 = vpop.f32.mrf.mxu0
    %v6652 = vadd.f32 0.0, %v6651
    %v6653 = vpop.f32.mrf.mxu0
    %6654 = vdwg.mxu0
    %vm6655 = vcmp.gt.f32.partialorder %v5368, 0.0
    %vm6656 = vcmp.gt.f32.partialorder %v5373, 0.0
    %vm6657 = vcmp.gt.f32.partialorder %v5378, 0.0
    %vm6658 = vcmp.gt.f32.partialorder %v5383, 0.0
    %vm6659 = vcmp.gt.f32.partialorder %v5388, 0.0
    %vm6660 = vcmp.gt.f32.partialorder %v5393, 0.0
    %vm6661 = vcmp.gt.f32.partialorder %v5398, 0.0
    %vm6662 = vcmp.gt.f32.partialorder %v5403, 0.0
    %v6663 = vsel %vm6655, %v6617, 0.0
    %v6664 = vsel %vm6656, %v6622, 0.0
    %v6665 = vsel %vm6657, %v6627, 0.0
    %v6666 = vsel %vm6658, %v6632, 0.0
    %v6667 = vsel %vm6659, %v6637, 0.0
    %v6668 = vsel %vm6660, %v6642, 0.0
    %v6669 = vsel %vm6661, %v6647, 0.0
    %v6670 = vsel %vm6662, %v6652, 0.0
    %6671 = vmatprep.subr.mxu0 0.0
    %6672 = vmatpush1.msra.mxu0 0.0
    %6673 = vmatprep.subr.mxu0 0.0
    %6674 = vmatpush1.msra.mxu0 0.0
    %6675 = vmatprep.subr.mxu0 0.0
    %6676 = vmatpush1.msra.mxu0 0.0
    %6677 = vmatprep.subr.mxu0 0.0
    %6678 = vmatpush1.msra.mxu0 0.0
    %6679 = vmatprep.subr.mxu0 0.0
    %6680 = vmatpush1.msra.mxu0 0.0
    %6681 = vmatprep.subr.mxu0 0.0
    %6682 = vmatpush1.msra.mxu0 0.0
    %6683 = vmatprep.subr.mxu0 0.0
    %6684 = vmatpush1.msra.mxu0 0.0
    %6685 = vmatprep.subr.mxu0 0.0
    %6686 = vmatpush1.msra.mxu0 0.0
    %6687 = vmatprep.subr.mxu0 0.0
    %6688 = vmatpush1.msra.mxu0 %v6670
    %6689 = vmatprep.subr.mxu0 0.0
    %6690 = vmatpush1.msra.mxu0 %v6669
    %6691 = vmatprep.subr.mxu0 0.0
    %6692 = vmatpush1.msra.mxu0 %v6668
    %6693 = vmatprep.subr.mxu0 0.0
    %6694 = vmatpush1.msra.mxu0 %v6667
    %6695 = vmatprep.subr.mxu0 0.0
    %6696 = vmatpush1.msra.mxu0 %v6666
    %6697 = vmatprep.subr.mxu0 0.0
    %6698 = vmatpush1.msra.mxu0 %v6665
    %6699 = vmatprep.subr.mxu0 0.0
    %6700 = vmatpush1.msra.mxu0 %v6664
    %6701 = vmatprep.subr.mxu0 0.0
    %6702 = vmatpush1.msra.mxu0 %v6663
    %6703 = vmatprep.subr.mxu0 0.0
    %6704 = vmatpush2.msra.mxu0 0.0
    %6705 = vmatprep.subr.mxu0 0.0
    %6706 = vmatpush2.msra.mxu0 0.0
    %6707 = vmatprep.subr.mxu0 0.0
    %6708 = vmatpush2.msra.mxu0 0.0
    %6709 = vmatprep.subr.mxu0 0.0
    %6710 = vmatpush2.msra.mxu0 0.0
    %6711 = vmatprep.subr.mxu0 0.0
    %6712 = vmatpush2.msra.mxu0 0.0
    %6713 = vmatprep.subr.mxu0 0.0
    %6714 = vmatpush2.msra.mxu0 0.0
    %6715 = vmatprep.subr.mxu0 0.0
    %6716 = vmatpush2.msra.mxu0 0.0
    %6717 = vmatprep.subr.mxu0 0.0
    %6718 = vmatpush2.msra.mxu0 0.0
    %6719 = vmatprep.subr.mxu0 0.0
    %6720 = vmatpush2.msra.mxu0 0.0
    %6721 = vmatprep.subr.mxu0 0.0
    %6722 = vmatpush2.msra.mxu0 0.0
    %6723 = vmatprep.subr.mxu0 0.0
    %6724 = vmatpush2.msra.mxu0 0.0
    %6725 = vmatprep.subr.mxu0 0.0
    %6726 = vmatpush2.msra.mxu0 0.0
    %6727 = vmatprep.subr.mxu0 0.0
    %6728 = vmatpush2.msra.mxu0 0.0
    %6729 = vmatprep.subr.mxu0 0.0
    %6730 = vmatpush2.msra.mxu0 0.0
    %6731 = vmatprep.subr.mxu0 0.0
    %6732 = vmatpush2.msra.mxu0 0.0
    %6733 = vmatprep.subr.mxu0 0.0
    %6734 = vmatpush2.msra.mxu0 0.0
    %6735 = vmatprep.mubr.f32.mxu0 0.0
    %6736 = vmatmul.mubr.f32.gmra.mxu0 %v1740
    %v6737 = vpop.f32.mrf.mxu0
    %v6738 = vadd.f32 0.0, %v6737
    %v6739 = vpop.f32.mrf.mxu0
    %6740 = vdwg.mxu0
    %v6741 = vsel %vm51, %v6663, 0.0
    %v6742 = vsel %vm51, %v6664, 0.0
    %v6743 = vadd.f32 %v6741, %v6742
    %v6744 = vsel %vm51, %v6665, 0.0
    %v6745 = vadd.f32 %v6743, %v6744
    %v6746 = vsel %vm51, %v6666, 0.0
    %v6747 = vadd.f32 %v6745, %v6746
    %v6748 = vsel %vm51, %v6667, 0.0
    %v6749 = vadd.f32 %v6747, %v6748
    %v6750 = vsel %vm51, %v6668, 0.0
    %v6751 = vadd.f32 %v6749, %v6750
    %v6752 = vsel %vm51, %v6669, 0.0
    %v6753 = vadd.f32 %v6751, %v6752
    %v6754 = vsel %vm51, %v6670, 0.0
    %v6755 = vadd.f32 %v6753, %v6754
    %v6756 = vrot.slane %v6755, 4
    %v6757 = vadd.f32 %v6755, %v6756
    %v6758 = vrot.slane %v6757, 2
    %v6759 = vadd.f32 %v6757, %v6758
    %v6760 = vrot.slane %v6759, 1
    %v6761 = vadd.f32 %v6759, %v6760
    %v6762 = vmul.f32 %v6738, 0.001
    %v6763 = vsub.f32 %v5251, %v6762
    %6764 = vst.msk [vmem:[#allocation2] sm:$0xff] %vm51, %v6763
    %v6765 = vmul.f32 %v6761, 0.001
    %v6766 = vsub.f32 %v5252, %v6765
    %6767 = vst.msk [vmem:[#allocation3] sm:$0x1] %vm54, %v6766
    %v6768 = vmul.f32 %v6252, 0.001
    %v6769 = vmul.f32 %v6254, 0.001
    %v6770 = vmul.f32 %v6341, 0.001
    %v6771 = vmul.f32 %v6343, 0.001
    %v6772 = vmul.f32 %v6430, 0.001
    %v6773 = vmul.f32 %v6432, 0.001
    %v6774 = vmul.f32 %v6519, 0.001
    %v6775 = vmul.f32 %v6521, 0.001
    %v6776 = vmul.f32 %v6258, 0.001
    %v6777 = vmul.f32 %v6260, 0.001
    %v6778 = vmul.f32 %v6347, 0.001
    %v6779 = vmul.f32 %v6349, 0.001
    %v6780 = vmul.f32 %v6436, 0.001
    %v6781 = vmul.f32 %v6438, 0.001
    %v6782 = vmul.f32 %v6525, 0.001
    %v6783 = vmul.f32 %v6527, 0.001
    %v6784 = vmul.f32 %v6264, 0.001
    %v6785 = vmul.f32 %v6266, 0.001
    %v6786 = vmul.f32 %v6353, 0.001
    %v6787 = vmul.f32 %v6355, 0.001
    %v6788 = vmul.f32 %v6442, 0.001
    %v6789 = vmul.f32 %v6444, 0.001
    %v6790 = vmul.f32 %v6531, 0.001
    %v6791 = vmul.f32 %v6533, 0.001
    %v6792 = vmul.f32 %v6270, 0.001
    %v6793 = vmul.f32 %v6272, 0.001
    %v6794 = vmul.f32 %v6359, 0.001
    %v6795 = vmul.f32 %v6361, 0.001
    %v6796 = vmul.f32 %v6448, 0.001
    %v6797 = vmul.f32 %v6450, 0.001
    %v6798 = vmul.f32 %v6537, 0.001
    %v6799 = vmul.f32 %v6539, 0.001
    %v6800 = vsub.f32 %v5253, %v6768
    %v6801 = vsub.f32 %v5254, %v6769
    %v6802 = vsub.f32 %v5255, %v6770
    %v6803 = vsub.f32 %v5256, %v6771
    %v6804 = vsub.f32 %v5257, %v6772
    %v6805 = vsub.f32 %v5258, %v6773
    %v6806 = vsub.f32 %v5259, %v6774
    %v6807 = vsub.f32 %v5260, %v6775
    %v6808 = vsub.f32 %v5261, %v6776
    %v6809 = vsub.f32 %v5262, %v6777
    %v6810 = vsub.f32 %v5263, %v6778
    %v6811 = vsub.f32 %v5264, %v6779
    %v6812 = vsub.f32 %v5265, %v6780
    %v6813 = vsub.f32 %v5266, %v6781
    %v6814 = vsub.f32 %v5267, %v6782
    %v6815 = vsub.f32 %v5268, %v6783
    %v6816 = vsub.f32 %v5269, %v6784
    %v6817 = vsub.f32 %v5270, %v6785
    %v6818 = vsub.f32 %v5271, %v6786
    %v6819 = vsub.f32 %v5272, %v6787
    %v6820 = vsub.f32 %v5273, %v6788
    %v6821 = vsub.f32 %v5274, %v6789
    %v6822 = vsub.f32 %v5275, %v6790
    %v6823 = vsub.f32 %v5276, %v6791
    %v6824 = vsub.f32 %v5277, %v6792
    %v6825 = vsub.f32 %v5278, %v6793
    %v6826 = vsub.f32 %v5279, %v6794
    %v6827 = vsub.f32 %v5280, %v6795
    %v6828 = vsub.f32 %v5281, %v6796
    %v6829 = vsub.f32 %v5282, %v6797
    %v6830 = vsub.f32 %v5283, %v6798
    %v6831 = vsub.f32 %v5284, %v6799
    %6832 = vst [vmem:[#allocation4] sm:$0xff] %v6800
    %6833 = vst [vmem:[#allocation4 + $0x8] sm:$0xff] %v6801
    %6834 = vst [vmem:[#allocation4 + $0x10] sm:$0xff] %v6802
    %6835 = vst [vmem:[#allocation4 + $0x18] sm:$0xff] %v6803
    %6836 = vst [vmem:[#allocation4 + $0x20] sm:$0xff] %v6804
    %6837 = vst [vmem:[#allocation4 + $0x28] sm:$0xff] %v6805
    %6838 = vst [vmem:[#allocation4 + $0x30] sm:$0xff] %v6806
    %6839 = vst [vmem:[#allocation4 + $0x38] sm:$0xff] %v6807
    %6840 = vst [vmem:[#allocation4 + $0x40] sm:$0xff] %v6808
    %6841 = vst [vmem:[#allocation4 + $0x48] sm:$0xff] %v6809
    %6842 = vst [vmem:[#allocation4 + $0x50] sm:$0xff] %v6810
    %6843 = vst [vmem:[#allocation4 + $0x58] sm:$0xff] %v6811
    %6844 = vst [vmem:[#allocation4 + $0x60] sm:$0xff] %v6812
    %6845 = vst [vmem:[#allocation4 + $0x68] sm:$0xff] %v6813
    %6846 = vst [vmem:[#allocation4 + $0x70] sm:$0xff] %v6814
    %6847 = vst [vmem:[#allocation4 + $0x78] sm:$0xff] %v6815
    %6848 = vst [vmem:[#allocation4 + $0x80] sm:$0xff] %v6816
    %6849 = vst [vmem:[#allocation4 + $0x88] sm:$0xff] %v6817
    %6850 = vst [vmem:[#allocation4 + $0x90] sm:$0xff] %v6818
    %6851 = vst [vmem:[#allocation4 + $0x98] sm:$0xff] %v6819
    %6852 = vst [vmem:[#allocation4 + $0xa0] sm:$0xff] %v6820
    %6853 = vst [vmem:[#allocation4 + $0xa8] sm:$0xff] %v6821
    %6854 = vst [vmem:[#allocation4 + $0xb0] sm:$0xff] %v6822
    %6855 = vst [vmem:[#allocation4 + $0xb8] sm:$0xff] %v6823
    %6856 = vst [vmem:[#allocation4 + $0xc0] sm:$0xff] %v6824
    %6857 = vst [vmem:[#allocation4 + $0xc8] sm:$0xff] %v6825
    %6858 = vst [vmem:[#allocation4 + $0xd0] sm:$0xff] %v6826
    %6859 = vst [vmem:[#allocation4 + $0xd8] sm:$0xff] %v6827
    %6860 = vst [vmem:[#allocation4 + $0xe0] sm:$0xff] %v6828
    %6861 = vst [vmem:[#allocation4 + $0xe8] sm:$0xff] %v6829
    %6862 = vst [vmem:[#allocation4 + $0xf0] sm:$0xff] %v6830
    %6863 = vst [vmem:[#allocation4 + $0xf8] sm:$0xff] %v6831
    %v6864 = vmul.f32 %v6547, 0.001
    %v6865 = vsub.f32 %v5285, %v6864
    %6866 = vst.msk [vmem:[#allocation5] sm:$0x1] %vm54, %v6865
    %v6867 = vmul.f32 %v5994, 0.001
    %v6868 = vmul.f32 %v5999, 0.001
    %v6869 = vmul.f32 %v6004, 0.001
    %v6870 = vmul.f32 %v6009, 0.001
    %v6871 = vmul.f32 %v6014, 0.001
    %v6872 = vmul.f32 %v6019, 0.001
    %v6873 = vmul.f32 %v6024, 0.001
    %v6874 = vmul.f32 %v6029, 0.001
    %v6875 = vsub.f32 %v5286, %v6867
    %v6876 = vsub.f32 %v5287, %v6868
    %v6877 = vsub.f32 %v5288, %v6869
    %v6878 = vsub.f32 %v5289, %v6870
    %v6879 = vsub.f32 %v5290, %v6871
    %v6880 = vsub.f32 %v5291, %v6872
    %v6881 = vsub.f32 %v5292, %v6873
    %v6882 = vsub.f32 %v5293, %v6874
    %6883 = vst.msk [vmem:[#allocation6] sm:$0xff] %vm130, %v6875
    %6884 = vst.msk [vmem:[#allocation6 + $0x8] sm:$0xff] %vm130, %v6876
    %6885 = vst.msk [vmem:[#allocation6 + $0x10] sm:$0xff] %vm130, %v6877
    %6886 = vst.msk [vmem:[#allocation6 + $0x18] sm:$0xff] %vm130, %v6878
    %6887 = vst.msk [vmem:[#allocation6 + $0x20] sm:$0xff] %vm130, %v6879
    %6888 = vst.msk [vmem:[#allocation6 + $0x28] sm:$0xff] %vm130, %v6880
    %6889 = vst.msk [vmem:[#allocation6 + $0x30] sm:$0xff] %vm130, %v6881
    %6890 = vst.msk [vmem:[#allocation6 + $0x38] sm:$0xff] %vm130, %v6882
    %v6891 = vmul.f32 %v6038, 0.001
    %v6892 = vsub.f32 %v5294, %v6891
    %6893 = vst.msk [vmem:[#allocation7] sm:$0x1] %vm140, %v6892
    %v6894 = vld [vmem:[#allocation2] sm:$0xff]
    %v6895 = vld [vmem:[#allocation3] sm:$0x1]
    %v6896 = vld [vmem:[#allocation4] sm:$0xff]
    %v6897 = vld [vmem:[#allocation4 + $0x8] sm:$0xff]
    %v6898 = vld [vmem:[#allocation4 + $0x10] sm:$0xff]
    %v6899 = vld [vmem:[#allocation4 + $0x18] sm:$0xff]
    %v6900 = vld [vmem:[#allocation4 + $0x20] sm:$0xff]
    %v6901 = vld [vmem:[#allocation4 + $0x28] sm:$0xff]
    %v6902 = vld [vmem:[#allocation4 + $0x30] sm:$0xff]
    %v6903 = vld [vmem:[#allocation4 + $0x38] sm:$0xff]
    %v6904 = vld [vmem:[#allocation4 + $0x40] sm:$0xff]
    %v6905 = vld [vmem:[#allocation4 + $0x48] sm:$0xff]
    %v6906 = vld [vmem:[#allocation4 + $0x50] sm:$0xff]
    %v6907 = vld [vmem:[#allocation4 + $0x58] sm:$0xff]
    %v6908 = vld [vmem:[#allocation4 + $0x60] sm:$0xff]
    %v6909 = vld [vmem:[#allocation4 + $0x68] sm:$0xff]
    %v6910 = vld [vmem:[#allocation4 + $0x70] sm:$0xff]
    %v6911 = vld [vmem:[#allocation4 + $0x78] sm:$0xff]
    %v6912 = vld [vmem:[#allocation4 + $0x80] sm:$0xff]
    %v6913 = vld [vmem:[#allocation4 + $0x88] sm:$0xff]
    %v6914 = vld [vmem:[#allocation4 + $0x90] sm:$0xff]
    %v6915 = vld [vmem:[#allocation4 + $0x98] sm:$0xff]
    %v6916 = vld [vmem:[#allocation4 + $0xa0] sm:$0xff]
    %v6917 = vld [vmem:[#allocation4 + $0xa8] sm:$0xff]
    %v6918 = vld [vmem:[#allocation4 + $0xb0] sm:$0xff]
    %v6919 = vld [vmem:[#allocation4 + $0xb8] sm:$0xff]
    %v6920 = vld [vmem:[#allocation4 + $0xc0] sm:$0xff]
    %v6921 = vld [vmem:[#allocation4 + $0xc8] sm:$0xff]
    %v6922 = vld [vmem:[#allocation4 + $0xd0] sm:$0xff]
    %v6923 = vld [vmem:[#allocation4 + $0xd8] sm:$0xff]
    %v6924 = vld [vmem:[#allocation4 + $0xe0] sm:$0xff]
    %v6925 = vld [vmem:[#allocation4 + $0xe8] sm:$0xff]
    %v6926 = vld [vmem:[#allocation4 + $0xf0] sm:$0xff]
    %v6927 = vld [vmem:[#allocation4 + $0xf8] sm:$0xff]
    %v6928 = vld [vmem:[#allocation5] sm:$0x1]
    %v6929 = vld [vmem:[#allocation6] sm:$0xff]
    %v6930 = vld [vmem:[#allocation6 + $0x8] sm:$0xff]
    %v6931 = vld [vmem:[#allocation6 + $0x10] sm:$0xff]
    %v6932 = vld [vmem:[#allocation6 + $0x18] sm:$0xff]
    %v6933 = vld [vmem:[#allocation6 + $0x20] sm:$0xff]
    %v6934 = vld [vmem:[#allocation6 + $0x28] sm:$0xff]
    %v6935 = vld [vmem:[#allocation6 + $0x30] sm:$0xff]
    %v6936 = vld [vmem:[#allocation6 + $0x38] sm:$0xff]
    %v6937 = vld [vmem:[#allocation7] sm:$0x1]
    %v6939 = vlaneseq
    %v6940 = vshrl.u32 %v6939, 7
    %v6941 = vsub.s32 0, %v6940
    %v6942 = vrot.slane %v6895, %v6941
    %6944 = vmatprep.subr.mxu0 0.0
    %6945 = vmatpush1.msra.mxu0 0.0
    %6946 = vmatprep.subr.mxu0 0.0
    %6947 = vmatpush1.msra.mxu0 0.0
    %6948 = vmatprep.subr.mxu0 0.0
    %6949 = vmatpush1.msra.mxu0 0.0
    %6950 = vmatprep.subr.mxu0 0.0
    %6951 = vmatpush1.msra.mxu0 0.0
    %6952 = vmatprep.subr.mxu0 0.0
    %6953 = vmatpush1.msra.mxu0 0.0
    %6954 = vmatprep.subr.mxu0 0.0
    %6955 = vmatpush1.msra.mxu0 0.0
    %6956 = vmatprep.subr.mxu0 0.0
    %6957 = vmatpush1.msra.mxu0 0.0
    %6958 = vmatprep.subr.mxu0 0.0
    %6959 = vmatpush1.msra.mxu0 0.0
    %6960 = vmatprep.subr.mxu0 0.0
    %6961 = vmatpush1.msra.mxu0 0.0
    %6962 = vmatprep.subr.mxu0 0.0
    %6963 = vmatpush1.msra.mxu0 0.0
    %6964 = vmatprep.subr.mxu0 0.0
    %6965 = vmatpush1.msra.mxu0 0.0
    %6966 = vmatprep.subr.mxu0 0.0
    %6967 = vmatpush1.msra.mxu0 0.0
    %6968 = vmatprep.subr.mxu0 0.0
    %6969 = vmatpush1.msra.mxu0 0.0
    %6970 = vmatprep.subr.mxu0 0.0
    %6971 = vmatpush1.msra.mxu0 0.0
    %6972 = vmatprep.subr.mxu0 0.0
    %6973 = vmatpush1.msra.mxu0 0.0
    %6974 = vmatprep.subr.mxu0 0.0
    %6975 = vmatpush1.msra.mxu0 %v6894
    %6976 = vmatprep.subr.mxu0 0.0
    %6977 = vmatpush2.msra.mxu0 0.0
    %6978 = vmatprep.subr.mxu0 0.0
    %6979 = vmatpush2.msra.mxu0 0.0
    %6980 = vmatprep.subr.mxu0 0.0
    %6981 = vmatpush2.msra.mxu0 0.0
    %6982 = vmatprep.subr.mxu0 0.0
    %6983 = vmatpush2.msra.mxu0 0.0
    %6984 = vmatprep.subr.mxu0 0.0
    %6985 = vmatpush2.msra.mxu0 0.0
    %6986 = vmatprep.subr.mxu0 0.0
    %6987 = vmatpush2.msra.mxu0 0.0
    %6988 = vmatprep.subr.mxu0 0.0
    %6989 = vmatpush2.msra.mxu0 0.0
    %6990 = vmatprep.subr.mxu0 0.0
    %6991 = vmatpush2.msra.mxu0 0.0
    %6992 = vmatprep.subr.mxu0 0.0
    %6993 = vmatpush2.msra.mxu0 0.0
    %6994 = vmatprep.subr.mxu0 0.0
    %6995 = vmatpush2.msra.mxu0 0.0
    %6996 = vmatprep.subr.mxu0 0.0
    %6997 = vmatpush2.msra.mxu0 0.0
    %6998 = vmatprep.subr.mxu0 0.0
    %6999 = vmatpush2.msra.mxu0 0.0
    %7000 = vmatprep.subr.mxu0 0.0
    %7001 = vmatpush2.msra.mxu0 0.0
    %7002 = vmatprep.subr.mxu0 0.0
    %7003 = vmatpush2.msra.mxu0 0.0
    %7004 = vmatprep.subr.mxu0 0.0
    %7005 = vmatpush2.msra.mxu0 0.0
    %7006 = vmatprep.subr.mxu0 0.0
    %7007 = vmatpush2.msra.mxu0 0.0
    %7008 = vmatprep.mubr.f32.mxu0 0.0
    %7009 = vmatmul.mubr.f32.gmra.mxu0 %v222
    %v7010 = vpop.f32.mrf.mxu0
    %v7011 = vadd.f32 %v6942, %v7010
    %v7012 = vpop.f32.mrf.mxu0
    %7013 = vmatprep.mubr.f32.mxu0 0.0
    %7014 = vmatmul.mubr.f32.gmra.mxu0 %v225
    %v7015 = vpop.f32.mrf.mxu0
    %v7016 = vadd.f32 %v6942, %v7015
    %v7017 = vpop.f32.mrf.mxu0
    %7018 = vmatprep.mubr.f32.mxu0 0.0
    %7019 = vmatmul.mubr.f32.gmra.mxu0 %v228
    %v7020 = vpop.f32.mrf.mxu0
    %v7021 = vadd.f32 %v6942, %v7020
    %v7022 = vpop.f32.mrf.mxu0
    %7023 = vmatprep.mubr.f32.mxu0 0.0
    %7024 = vmatmul.mubr.f32.gmra.mxu0 %v231
    %v7025 = vpop.f32.mrf.mxu0
    %v7026 = vadd.f32 %v6942, %v7025
    %v7027 = vpop.f32.mrf.mxu0
    %7028 = vmatprep.mubr.f32.mxu0 0.0
    %7029 = vmatmul.mubr.f32.gmra.mxu0 %v234
    %v7030 = vpop.f32.mrf.mxu0
    %v7031 = vadd.f32 %v6942, %v7030
    %v7032 = vpop.f32.mrf.mxu0
    %7033 = vmatprep.mubr.f32.mxu0 0.0
    %7034 = vmatmul.mubr.f32.gmra.mxu0 %v237
    %v7035 = vpop.f32.mrf.mxu0
    %v7036 = vadd.f32 %v6942, %v7035
    %v7037 = vpop.f32.mrf.mxu0
    %7038 = vmatprep.mubr.f32.mxu0 0.0
    %7039 = vmatmul.mubr.f32.gmra.mxu0 %v240
    %v7040 = vpop.f32.mrf.mxu0
    %v7041 = vadd.f32 %v6942, %v7040
    %v7042 = vpop.f32.mrf.mxu0
    %7043 = vmatprep.mubr.f32.mxu0 0.0
    %7044 = vmatmul.mubr.f32.gmra.mxu0 %v243
    %v7045 = vpop.f32.mrf.mxu0
    %v7046 = vadd.f32 %v6942, %v7045
    %v7047 = vpop.f32.mrf.mxu0
    %7048 = vdwg.mxu0
    %v7049 = vmax.f32 %v7011, 0.0
    %v7050 = vmax.f32 %v7016, 0.0
    %v7051 = vmax.f32 %v7021, 0.0
    %v7052 = vmax.f32 %v7026, 0.0
    %v7053 = vmax.f32 %v7031, 0.0
    %v7054 = vmax.f32 %v7036, 0.0
    %v7055 = vmax.f32 %v7041, 0.0
    %v7056 = vmax.f32 %v7046, 0.0
    %7057 = vmatprep.subr.mxu0 0.0
    %7058 = vmatpush1.msra.mxu0 0.0
    %7059 = vmatprep.subr.mxu0 0.0
    %7060 = vmatpush1.msra.mxu0 0.0
    %7061 = vmatprep.subr.mxu0 0.0
    %7062 = vmatpush1.msra.mxu0 0.0
    %7063 = vmatprep.subr.mxu0 0.0
    %7064 = vmatpush1.msra.mxu0 0.0
    %7065 = vmatprep.subr.mxu0 0.0
    %7066 = vmatpush1.msra.mxu0 0.0
    %7067 = vmatprep.subr.mxu0 0.0
    %7068 = vmatpush1.msra.mxu0 0.0
    %7069 = vmatprep.subr.mxu0 0.0
    %7070 = vmatpush1.msra.mxu0 0.0
    %7071 = vmatprep.subr.mxu0 0.0
    %7072 = vmatpush1.msra.mxu0 0.0
    %7073 = vmatprep.subr.mxu0 0.0
    %7074 = vmatpush1.msra.mxu0 %v7056
    %7075 = vmatprep.subr.mxu0 0.0
    %7076 = vmatpush1.msra.mxu0 %v7055
    %7077 = vmatprep.subr.mxu0 0.0
    %7078 = vmatpush1.msra.mxu0 %v7054
    %7079 = vmatprep.subr.mxu0 0.0
    %7080 = vmatpush1.msra.mxu0 %v7053
    %7081 = vmatprep.subr.mxu0 0.0
    %7082 = vmatpush1.msra.mxu0 %v7052
    %7083 = vmatprep.subr.mxu0 0.0
    %7084 = vmatpush1.msra.mxu0 %v7051
    %7085 = vmatprep.subr.mxu0 0.0
    %7086 = vmatpush1.msra.mxu0 %v7050
    %7087 = vmatprep.subr.mxu0 0.0
    %7088 = vmatpush1.msra.mxu0 %v7049
    %7089 = vmatprep.subr.mxu0 0.0
    %7090 = vmatpush2.msra.mxu0 0.0
    %7091 = vmatprep.subr.mxu0 0.0
    %7092 = vmatpush2.msra.mxu0 0.0
    %7093 = vmatprep.subr.mxu0 0.0
    %7094 = vmatpush2.msra.mxu0 0.0
    %7095 = vmatprep.subr.mxu0 0.0
    %7096 = vmatpush2.msra.mxu0 0.0
    %7097 = vmatprep.subr.mxu0 0.0
    %7098 = vmatpush2.msra.mxu0 0.0
    %7099 = vmatprep.subr.mxu0 0.0
    %7100 = vmatpush2.msra.mxu0 0.0
    %7101 = vmatprep.subr.mxu0 0.0
    %7102 = vmatpush2.msra.mxu0 0.0
    %7103 = vmatprep.subr.mxu0 0.0
    %7104 = vmatpush2.msra.mxu0 0.0
    %7105 = vmatprep.subr.mxu0 0.0
    %7106 = vmatpush2.msra.mxu0 0.0
    %7107 = vmatprep.subr.mxu0 0.0
    %7108 = vmatpush2.msra.mxu0 0.0
    %7109 = vmatprep.subr.mxu0 0.0
    %7110 = vmatpush2.msra.mxu0 0.0
    %7111 = vmatprep.subr.mxu0 0.0
    %7112 = vmatpush2.msra.mxu0 0.0
    %7113 = vmatprep.subr.mxu0 0.0
    %7114 = vmatpush2.msra.mxu0 0.0
    %7115 = vmatprep.subr.mxu0 0.0
    %7116 = vmatpush2.msra.mxu0 0.0
    %7117 = vmatprep.subr.mxu0 0.0
    %7118 = vmatpush2.msra.mxu0 0.0
    %7119 = vmatprep.subr.mxu0 0.0
    %7120 = vmatpush2.msra.mxu0 0.0
    %7121 = vmatprep.mubr.f32.mxu0 0.0
    %7122 = vmatmul.mubr.f32.gmra.mxu0 %v360
    %v7123 = vpop.f32.mrf.mxu0
    %v7124 = vadd.f32 0.0, %v7123
    %v7125 = vpop.f32.mrf.mxu0
    %7126 = vdwg.mxu0
    %v7128 = vlaneseq
    %v7129 = vshrl.u32 %v7128, 7
    %v7130 = vsub.s32 0, %v7129
    %v7131 = vrot.slane %v6928, %v7130
    %7133 = vmatprep.subr.mxu0 0.0
    %7134 = vmatpush1.xpose.msra.mxu0 0.0
    %7135 = vmatprep.subr.mxu0 0.0
    %7136 = vmatpush1.xpose.msra.mxu0 0.0
    %7137 = vmatprep.subr.mxu0 0.0
    %7138 = vmatpush1.xpose.msra.mxu0 0.0
    %7139 = vmatprep.subr.mxu0 0.0
    %7140 = vmatpush1.xpose.msra.mxu0 0.0
    %7141 = vmatprep.subr.mxu0 0.0
    %7142 = vmatpush1.xpose.msra.mxu0 0.0
    %7143 = vmatprep.subr.mxu0 0.0
    %7144 = vmatpush1.xpose.msra.mxu0 0.0
    %7145 = vmatprep.subr.mxu0 0.0
    %7146 = vmatpush1.xpose.msra.mxu0 0.0
    %7147 = vmatprep.subr.mxu0 0.0
    %7148 = vmatpush1.xpose.msra.mxu0 0.0
    %7149 = vmatprep.subr.mxu0 0.0
    %7150 = vmatpush1.xpose.msra.mxu0 0.0
    %7151 = vmatprep.subr.mxu0 0.0
    %7152 = vmatpush1.xpose.msra.mxu0 0.0
    %7153 = vmatprep.subr.mxu0 0.0
    %7154 = vmatpush1.xpose.msra.mxu0 0.0
    %7155 = vmatprep.subr.mxu0 0.0
    %7156 = vmatpush1.xpose.msra.mxu0 0.0
    %7157 = vmatprep.subr.mxu0 %v6921
    %7158 = vmatpush1.xpose.msra.mxu0 %v6920
    %7159 = vmatprep.subr.mxu0 %v6913
    %7160 = vmatpush1.xpose.msra.mxu0 %v6912
    %7161 = vmatprep.subr.mxu0 %v6905
    %7162 = vmatpush1.xpose.msra.mxu0 %v6904
    %7163 = vmatprep.subr.mxu0 %v6897
    %7164 = vmatpush1.xpose.msra.mxu0 %v6896
    %7165 = vmatprep.subr.mxu0 0.0
    %7166 = vmatpush2.xpose.msra.mxu0 0.0
    %7167 = vmatprep.subr.mxu0 0.0
    %7168 = vmatpush2.xpose.msra.mxu0 0.0
    %7169 = vmatprep.subr.mxu0 0.0
    %7170 = vmatpush2.xpose.msra.mxu0 0.0
    %7171 = vmatprep.subr.mxu0 0.0
    %7172 = vmatpush2.xpose.msra.mxu0 0.0
    %7173 = vmatprep.subr.mxu0 0.0
    %7174 = vmatpush2.xpose.msra.mxu0 0.0
    %7175 = vmatprep.subr.mxu0 0.0
    %7176 = vmatpush2.xpose.msra.mxu0 0.0
    %7177 = vmatprep.subr.mxu0 0.0
    %7178 = vmatpush2.xpose.msra.mxu0 0.0
    %7179 = vmatprep.subr.mxu0 0.0
    %7180 = vmatpush2.xpose.msra.mxu0 0.0
    %7181 = vmatprep.subr.mxu0 0.0
    %7182 = vmatpush2.xpose.msra.mxu0 0.0
    %7183 = vmatprep.subr.mxu0 0.0
    %7184 = vmatpush2.xpose.msra.mxu0 0.0
    %7185 = vmatprep.subr.mxu0 0.0
    %7186 = vmatpush2.xpose.msra.mxu0 0.0
    %7187 = vmatprep.subr.mxu0 0.0
    %7188 = vmatpush2.xpose.msra.mxu0 0.0
    %7189 = vmatprep.subr.mxu0 0.0
    %7190 = vmatpush2.xpose.msra.mxu0 0.0
    %7191 = vmatprep.subr.mxu0 0.0
    %7192 = vmatpush2.xpose.msra.mxu0 0.0
    %7193 = vmatprep.subr.mxu0 0.0
    %7194 = vmatpush2.xpose.msra.mxu0 0.0
    %7195 = vmatprep.subr.mxu0 0.0
    %7196 = vmatpush2.xpose.msra.mxu0 0.0
    %7197 = vmatprep.mubr.f32.mxu0 %v442
    %7198 = vmatmul.mubr.f32.gmra.mxu0 %v151
    %v7199 = vpop.f32.mrf.mxu0
    %v7200 = vadd.f32 %v7131, %v7199
    %v7201 = vpop.f32.mrf.mxu0
    %7202 = vdwg.mxu0
    %7203 = vmatprep.subr.mxu0 0.0
    %7204 = vmatpush1.xpose.msra.mxu0 0.0
    %7205 = vmatprep.subr.mxu0 0.0
    %7206 = vmatpush1.xpose.msra.mxu0 0.0
    %7207 = vmatprep.subr.mxu0 0.0
    %7208 = vmatpush1.xpose.msra.mxu0 0.0
    %7209 = vmatprep.subr.mxu0 0.0
    %7210 = vmatpush1.xpose.msra.mxu0 0.0
    %7211 = vmatprep.subr.mxu0 0.0
    %7212 = vmatpush1.xpose.msra.mxu0 0.0
    %7213 = vmatprep.subr.mxu0 0.0
    %7214 = vmatpush1.xpose.msra.mxu0 0.0
    %7215 = vmatprep.subr.mxu0 0.0
    %7216 = vmatpush1.xpose.msra.mxu0 0.0
    %7217 = vmatprep.subr.mxu0 0.0
    %7218 = vmatpush1.xpose.msra.mxu0 0.0
    %7219 = vmatprep.subr.mxu0 0.0
    %7220 = vmatpush1.xpose.msra.mxu0 0.0
    %7221 = vmatprep.subr.mxu0 0.0
    %7222 = vmatpush1.xpose.msra.mxu0 0.0
    %7223 = vmatprep.subr.mxu0 0.0
    %7224 = vmatpush1.xpose.msra.mxu0 0.0
    %7225 = vmatprep.subr.mxu0 0.0
    %7226 = vmatpush1.xpose.msra.mxu0 0.0
    %7227 = vmatprep.subr.mxu0 %v6923
    %7228 = vmatpush1.xpose.msra.mxu0 %v6922
    %7229 = vmatprep.subr.mxu0 %v6915
    %7230 = vmatpush1.xpose.msra.mxu0 %v6914
    %7231 = vmatprep.subr.mxu0 %v6907
    %7232 = vmatpush1.xpose.msra.mxu0 %v6906
    %7233 = vmatprep.subr.mxu0 %v6899
    %7234 = vmatpush1.xpose.msra.mxu0 %v6898
    %7235 = vmatprep.subr.mxu0 0.0
    %7236 = vmatpush2.xpose.msra.mxu0 0.0
    %7237 = vmatprep.subr.mxu0 0.0
    %7238 = vmatpush2.xpose.msra.mxu0 0.0
    %7239 = vmatprep.subr.mxu0 0.0
    %7240 = vmatpush2.xpose.msra.mxu0 0.0
    %7241 = vmatprep.subr.mxu0 0.0
    %7242 = vmatpush2.xpose.msra.mxu0 0.0
    %7243 = vmatprep.subr.mxu0 0.0
    %7244 = vmatpush2.xpose.msra.mxu0 0.0
    %7245 = vmatprep.subr.mxu0 0.0
    %7246 = vmatpush2.xpose.msra.mxu0 0.0
    %7247 = vmatprep.subr.mxu0 0.0
    %7248 = vmatpush2.xpose.msra.mxu0 0.0
    %7249 = vmatprep.subr.mxu0 0.0
    %7250 = vmatpush2.xpose.msra.mxu0 0.0
    %7251 = vmatprep.subr.mxu0 0.0
    %7252 = vmatpush2.xpose.msra.mxu0 0.0
    %7253 = vmatprep.subr.mxu0 0.0
    %7254 = vmatpush2.xpose.msra.mxu0 0.0
    %7255 = vmatprep.subr.mxu0 0.0
    %7256 = vmatpush2.xpose.msra.mxu0 0.0
    %7257 = vmatprep.subr.mxu0 0.0
    %7258 = vmatpush2.xpose.msra.mxu0 0.0
    %7259 = vmatprep.subr.mxu0 0.0
    %7260 = vmatpush2.xpose.msra.mxu0 0.0
    %7261 = vmatprep.subr.mxu0 0.0
    %7262 = vmatpush2.xpose.msra.mxu0 0.0
    %7263 = vmatprep.subr.mxu0 0.0
    %7264 = vmatpush2.xpose.msra.mxu0 0.0
    %7265 = vmatprep.subr.mxu0 0.0
    %7266 = vmatpush2.xpose.msra.mxu0 0.0
    %7267 = vmatprep.mubr.f32.mxu0 %v443
    %7268 = vmatmul.mubr.f32.gmra.mxu0 %v152
    %v7269 = vpop.f32.mrf.mxu0
    %v7270 = vadd.f32 %v7200, %v7269
    %v7271 = vpop.f32.mrf.mxu0
    %7272 = vdwg.mxu0
    %7273 = vmatprep.subr.mxu0 0.0
    %7274 = vmatpush1.xpose.msra.mxu0 0.0
    %7275 = vmatprep.subr.mxu0 0.0
    %7276 = vmatpush1.xpose.msra.mxu0 0.0
    %7277 = vmatprep.subr.mxu0 0.0
    %7278 = vmatpush1.xpose.msra.mxu0 0.0
    %7279 = vmatprep.subr.mxu0 0.0
    %7280 = vmatpush1.xpose.msra.mxu0 0.0
    %7281 = vmatprep.subr.mxu0 0.0
    %7282 = vmatpush1.xpose.msra.mxu0 0.0
    %7283 = vmatprep.subr.mxu0 0.0
    %7284 = vmatpush1.xpose.msra.mxu0 0.0
    %7285 = vmatprep.subr.mxu0 0.0
    %7286 = vmatpush1.xpose.msra.mxu0 0.0
    %7287 = vmatprep.subr.mxu0 0.0
    %7288 = vmatpush1.xpose.msra.mxu0 0.0
    %7289 = vmatprep.subr.mxu0 0.0
    %7290 = vmatpush1.xpose.msra.mxu0 0.0
    %7291 = vmatprep.subr.mxu0 0.0
    %7292 = vmatpush1.xpose.msra.mxu0 0.0
    %7293 = vmatprep.subr.mxu0 0.0
    %7294 = vmatpush1.xpose.msra.mxu0 0.0
    %7295 = vmatprep.subr.mxu0 0.0
    %7296 = vmatpush1.xpose.msra.mxu0 0.0
    %7297 = vmatprep.subr.mxu0 %v6925
    %7298 = vmatpush1.xpose.msra.mxu0 %v6924
    %7299 = vmatprep.subr.mxu0 %v6917
    %7300 = vmatpush1.xpose.msra.mxu0 %v6916
    %7301 = vmatprep.subr.mxu0 %v6909
    %7302 = vmatpush1.xpose.msra.mxu0 %v6908
    %7303 = vmatprep.subr.mxu0 %v6901
    %7304 = vmatpush1.xpose.msra.mxu0 %v6900
    %7305 = vmatprep.subr.mxu0 0.0
    %7306 = vmatpush2.xpose.msra.mxu0 0.0
    %7307 = vmatprep.subr.mxu0 0.0
    %7308 = vmatpush2.xpose.msra.mxu0 0.0
    %7309 = vmatprep.subr.mxu0 0.0
    %7310 = vmatpush2.xpose.msra.mxu0 0.0
    %7311 = vmatprep.subr.mxu0 0.0
    %7312 = vmatpush2.xpose.msra.mxu0 0.0
    %7313 = vmatprep.subr.mxu0 0.0
    %7314 = vmatpush2.xpose.msra.mxu0 0.0
    %7315 = vmatprep.subr.mxu0 0.0
    %7316 = vmatpush2.xpose.msra.mxu0 0.0
    %7317 = vmatprep.subr.mxu0 0.0
    %7318 = vmatpush2.xpose.msra.mxu0 0.0
    %7319 = vmatprep.subr.mxu0 0.0
    %7320 = vmatpush2.xpose.msra.mxu0 0.0
    %7321 = vmatprep.subr.mxu0 0.0
    %7322 = vmatpush2.xpose.msra.mxu0 0.0
    %7323 = vmatprep.subr.mxu0 0.0
    %7324 = vmatpush2.xpose.msra.mxu0 0.0
    %7325 = vmatprep.subr.mxu0 0.0
    %7326 = vmatpush2.xpose.msra.mxu0 0.0
    %7327 = vmatprep.subr.mxu0 0.0
    %7328 = vmatpush2.xpose.msra.mxu0 0.0
    %7329 = vmatprep.subr.mxu0 0.0
    %7330 = vmatpush2.xpose.msra.mxu0 0.0
    %7331 = vmatprep.subr.mxu0 0.0
    %7332 = vmatpush2.xpose.msra.mxu0 0.0
    %7333 = vmatprep.subr.mxu0 0.0
    %7334 = vmatpush2.xpose.msra.mxu0 0.0
    %7335 = vmatprep.subr.mxu0 0.0
    %7336 = vmatpush2.xpose.msra.mxu0 0.0
    %7337 = vmatprep.mubr.f32.mxu0 %v444
    %7338 = vmatmul.mubr.f32.gmra.mxu0 %v153
    %v7339 = vpop.f32.mrf.mxu0
    %v7340 = vadd.f32 %v7270, %v7339
    %v7341 = vpop.f32.mrf.mxu0
    %7342 = vdwg.mxu0
    %7343 = vmatprep.subr.mxu0 0.0
    %7344 = vmatpush1.xpose.msra.mxu0 0.0
    %7345 = vmatprep.subr.mxu0 0.0
    %7346 = vmatpush1.xpose.msra.mxu0 0.0
    %7347 = vmatprep.subr.mxu0 0.0
    %7348 = vmatpush1.xpose.msra.mxu0 0.0
    %7349 = vmatprep.subr.mxu0 0.0
    %7350 = vmatpush1.xpose.msra.mxu0 0.0
    %7351 = vmatprep.subr.mxu0 0.0
    %7352 = vmatpush1.xpose.msra.mxu0 0.0
    %7353 = vmatprep.subr.mxu0 0.0
    %7354 = vmatpush1.xpose.msra.mxu0 0.0
    %7355 = vmatprep.subr.mxu0 0.0
    %7356 = vmatpush1.xpose.msra.mxu0 0.0
    %7357 = vmatprep.subr.mxu0 0.0
    %7358 = vmatpush1.xpose.msra.mxu0 0.0
    %7359 = vmatprep.subr.mxu0 0.0
    %7360 = vmatpush1.xpose.msra.mxu0 0.0
    %7361 = vmatprep.subr.mxu0 0.0
    %7362 = vmatpush1.xpose.msra.mxu0 0.0
    %7363 = vmatprep.subr.mxu0 0.0
    %7364 = vmatpush1.xpose.msra.mxu0 0.0
    %7365 = vmatprep.subr.mxu0 0.0
    %7366 = vmatpush1.xpose.msra.mxu0 0.0
    %7367 = vmatprep.subr.mxu0 %v6927
    %7368 = vmatpush1.xpose.msra.mxu0 %v6926
    %7369 = vmatprep.subr.mxu0 %v6919
    %7370 = vmatpush1.xpose.msra.mxu0 %v6918
    %7371 = vmatprep.subr.mxu0 %v6911
    %7372 = vmatpush1.xpose.msra.mxu0 %v6910
    %7373 = vmatprep.subr.mxu0 %v6903
    %7374 = vmatpush1.xpose.msra.mxu0 %v6902
    %7375 = vmatprep.subr.mxu0 0.0
    %7376 = vmatpush2.xpose.msra.mxu0 0.0
    %7377 = vmatprep.subr.mxu0 0.0
    %7378 = vmatpush2.xpose.msra.mxu0 0.0
    %7379 = vmatprep.subr.mxu0 0.0
    %7380 = vmatpush2.xpose.msra.mxu0 0.0
    %7381 = vmatprep.subr.mxu0 0.0
    %7382 = vmatpush2.xpose.msra.mxu0 0.0
    %7383 = vmatprep.subr.mxu0 0.0
    %7384 = vmatpush2.xpose.msra.mxu0 0.0
    %7385 = vmatprep.subr.mxu0 0.0
    %7386 = vmatpush2.xpose.msra.mxu0 0.0
    %7387 = vmatprep.subr.mxu0 0.0
    %7388 = vmatpush2.xpose.msra.mxu0 0.0
    %7389 = vmatprep.subr.mxu0 0.0
    %7390 = vmatpush2.xpose.msra.mxu0 0.0
    %7391 = vmatprep.subr.mxu0 0.0
    %7392 = vmatpush2.xpose.msra.mxu0 0.0
    %7393 = vmatprep.subr.mxu0 0.0
    %7394 = vmatpush2.xpose.msra.mxu0 0.0
    %7395 = vmatprep.subr.mxu0 0.0
    %7396 = vmatpush2.xpose.msra.mxu0 0.0
    %7397 = vmatprep.subr.mxu0 0.0
    %7398 = vmatpush2.xpose.msra.mxu0 0.0
    %7399 = vmatprep.subr.mxu0 0.0
    %7400 = vmatpush2.xpose.msra.mxu0 0.0
    %7401 = vmatprep.subr.mxu0 0.0
    %7402 = vmatpush2.xpose.msra.mxu0 0.0
    %7403 = vmatprep.subr.mxu0 0.0
    %7404 = vmatpush2.xpose.msra.mxu0 0.0
    %7405 = vmatprep.subr.mxu0 0.0
    %7406 = vmatpush2.xpose.msra.mxu0 0.0
    %7407 = vmatprep.mubr.f32.mxu0 %v445
    %7408 = vmatmul.mubr.f32.gmra.mxu0 %v154
    %v7409 = vpop.f32.mrf.mxu0
    %v7410 = vadd.f32 %v7340, %v7409
    %v7411 = vpop.f32.mrf.mxu0
    %7412 = vdwg.mxu0
    %v7413 = vmax.f32 %v7410, 0.0
    %7415 = vrot.lane.b32.xlu0 %v7413, 32
    %v7416 = vpop.permute.xlu0 %7415
    %v7418 = vsel %vm51, %v7124, %v7416
    %v7420 = vlaneseq
    %v7421 = vshrl.u32 %v7420, 7
    %v7422 = vsub.s32 0, %v7421
    %v7423 = vrot.slane %v6937, %v7422
    %v7426 = vsel %vm358, %v7418, 0
    %7428 = vmatprep.subr.mxu0 0.0
    %7429 = vmatpush1.msra.mxu0 0.0
    %7430 = vmatprep.subr.mxu0 0.0
    %7431 = vmatpush1.msra.mxu0 0.0
    %7432 = vmatprep.subr.mxu0 0.0
    %7433 = vmatpush1.msra.mxu0 0.0
    %7434 = vmatprep.subr.mxu0 0.0
    %7435 = vmatpush1.msra.mxu0 0.0
    %7436 = vmatprep.subr.mxu0 0.0
    %7437 = vmatpush1.msra.mxu0 0.0
    %7438 = vmatprep.subr.mxu0 0.0
    %7439 = vmatpush1.msra.mxu0 0.0
    %7440 = vmatprep.subr.mxu0 0.0
    %7441 = vmatpush1.msra.mxu0 0.0
    %7442 = vmatprep.subr.mxu0 0.0
    %7443 = vmatpush1.msra.mxu0 0.0
    %7444 = vmatprep.subr.mxu0 0.0
    %7445 = vmatpush1.msra.mxu0 %v6936
    %7446 = vmatprep.subr.mxu0 0.0
    %7447 = vmatpush1.msra.mxu0 %v6935
    %7448 = vmatprep.subr.mxu0 0.0
    %7449 = vmatpush1.msra.mxu0 %v6934
    %7450 = vmatprep.subr.mxu0 0.0
    %7451 = vmatpush1.msra.mxu0 %v6933
    %7452 = vmatprep.subr.mxu0 0.0
    %7453 = vmatpush1.msra.mxu0 %v6932
    %7454 = vmatprep.subr.mxu0 0.0
    %7455 = vmatpush1.msra.mxu0 %v6931
    %7456 = vmatprep.subr.mxu0 0.0
    %7457 = vmatpush1.msra.mxu0 %v6930
    %7458 = vmatprep.subr.mxu0 0.0
    %7459 = vmatpush1.msra.mxu0 %v6929
    %7460 = vmatprep.subr.mxu0 0.0
    %7461 = vmatpush2.msra.mxu0 0.0
    %7462 = vmatprep.subr.mxu0 0.0
    %7463 = vmatpush2.msra.mxu0 0.0
    %7464 = vmatprep.subr.mxu0 0.0
    %7465 = vmatpush2.msra.mxu0 0.0
    %7466 = vmatprep.subr.mxu0 0.0
    %7467 = vmatpush2.msra.mxu0 0.0
    %7468 = vmatprep.subr.mxu0 0.0
    %7469 = vmatpush2.msra.mxu0 0.0
    %7470 = vmatprep.subr.mxu0 0.0
    %7471 = vmatpush2.msra.mxu0 0.0
    %7472 = vmatprep.subr.mxu0 0.0
    %7473 = vmatpush2.msra.mxu0 0.0
    %7474 = vmatprep.subr.mxu0 0.0
    %7475 = vmatpush2.msra.mxu0 0.0
    %7476 = vmatprep.subr.mxu0 0.0
    %7477 = vmatpush2.msra.mxu0 0.0
    %7478 = vmatprep.subr.mxu0 0.0
    %7479 = vmatpush2.msra.mxu0 0.0
    %7480 = vmatprep.subr.mxu0 0.0
    %7481 = vmatpush2.msra.mxu0 0.0
    %7482 = vmatprep.subr.mxu0 0.0
    %7483 = vmatpush2.msra.mxu0 0.0
    %7484 = vmatprep.subr.mxu0 0.0
    %7485 = vmatpush2.msra.mxu0 0.0
    %7486 = vmatprep.subr.mxu0 0.0
    %7487 = vmatpush2.msra.mxu0 0.0
    %7488 = vmatprep.subr.mxu0 0.0
    %7489 = vmatpush2.msra.mxu0 0.0
    %7490 = vmatprep.subr.mxu0 0.0
    %7491 = vmatpush2.msra.mxu0 0.0
    %7492 = vmatprep.mubr.f32.mxu0 0.0
    %7493 = vmatmul.mubr.f32.gmra.mxu0 %v7426
    %v7494 = vpop.f32.mrf.mxu0
    %v7495 = vadd.f32 %v7423, %v7494
    %v7496 = vpop.f32.mrf.mxu0
    %7497 = vdwg.mxu0
    %v7498 = vsel %vm815, %v7495, -inf
    %7499 = vmax.xlane.f32.xlu0 %v7498
    %v7500 = vpop.xlane.xlu0 %7499
    %v7501 = vsub.f32 %v7495, %v7500
    %v7502 = vmul.f32 %v7501, 1.442695
    %v7503 = vpow.pop %v7502
    %v7504 = vsel %vm815, %v7503, 0.0
    %7505 = vadd.xlane.f32.xlu0 %v7504
    %v7506 = vpop.xlane.xlu0 %7505
    %v7507 = vrcp.pop %v7506
    %v7508 = vmul.f32 %v7503, %v7507
    %v7509 = vsub.f32 %v7508, %v155
    %v7510 = vmul.f32 %v7509, 0.25
    %7511 = vxpose.xlu0.b32.start [1/16] %v7418, 128
    %7512 = vxpose.xlu0.b32.cont [2/16] 0.0, 128
    %7513 = vxpose.xlu0.b32.cont [3/16] 0.0, 128
    %7514 = vxpose.xlu0.b32.cont [4/16] 0.0, 128
    %7515 = vxpose.xlu0.b32.cont [5/16] 0.0, 128
    %7516 = vxpose.xlu0.b32.cont [6/16] 0.0, 128
    %7517 = vxpose.xlu0.b32.cont [7/16] 0.0, 128
    %7518 = vxpose.xlu0.b32.cont [8/16] 0.0, 128
    %7519 = vxpose.xlu0.b32.cont [9/16] 0.0, 128
    %7520 = vxpose.xlu0.b32.cont [10/16] 0.0, 128
    %7521 = vxpose.xlu0.b32.cont [11/16] 0.0, 128
    %7522 = vxpose.xlu0.b32.cont [12/16] 0.0, 128
    %7523 = vxpose.xlu0.b32.cont [13/16] 0.0, 128
    %7524 = vxpose.xlu0.b32.cont [14/16] 0.0, 128
    %7525 = vxpose.xlu0.b32.cont [15/16] 0.0, 128
    %7526 = vxpose.xlu0.b32.end [16/16] 0.0, 128
    %v7527 = vpop.trf.xlu0
    %v7528 = vpop.trf.xlu0
    %v7529 = vpop.trf.xlu0
    %v7530 = vpop.trf.xlu0
    %v7531 = vpop.trf.xlu0
    %v7532 = vpop.trf.xlu0
    %v7533 = vpop.trf.xlu0
    %v7534 = vpop.trf.xlu0
    %v7535 = vpop.trf.xlu0
    %v7536 = vpop.trf.xlu0
    %v7537 = vpop.trf.xlu0
    %v7538 = vpop.trf.xlu0
    %v7539 = vpop.trf.xlu0
    %v7540 = vpop.trf.xlu0
    %v7541 = vpop.trf.xlu0
    %v7542 = vpop.trf.xlu0
    %v7544 = vsel %vm861, %v7527, 0
    %v7547 = vsel %vm861, %v7528, 0
    %v7550 = vsel %vm861, %v7529, 0
    %v7553 = vsel %vm861, %v7530, 0
    %v7556 = vsel %vm861, %v7531, 0
    %v7559 = vsel %vm861, %v7532, 0
    %v7562 = vsel %vm861, %v7533, 0
    %v7565 = vsel %vm861, %v7534, 0
    %v7568 = vsel %vm886, %v7510, 0
    %7570 = vmatprep.subr.mxu0 0.0
    %7571 = vmatpush1.msra.mxu0 0.0
    %7572 = vmatprep.subr.mxu0 0.0
    %7573 = vmatpush1.msra.mxu0 0.0
    %7574 = vmatprep.subr.mxu0 0.0
    %7575 = vmatpush1.msra.mxu0 0.0
    %7576 = vmatprep.subr.mxu0 0.0
    %7577 = vmatpush1.msra.mxu0 0.0
    %7578 = vmatprep.subr.mxu0 0.0
    %7579 = vmatpush1.msra.mxu0 0.0
    %7580 = vmatprep.subr.mxu0 0.0
    %7581 = vmatpush1.msra.mxu0 0.0
    %7582 = vmatprep.subr.mxu0 0.0
    %7583 = vmatpush1.msra.mxu0 0.0
    %7584 = vmatprep.subr.mxu0 0.0
    %7585 = vmatpush1.msra.mxu0 0.0
    %7586 = vmatprep.subr.mxu0 0.0
    %7587 = vmatpush1.msra.mxu0 0.0
    %7588 = vmatprep.subr.mxu0 0.0
    %7589 = vmatpush1.msra.mxu0 0.0
    %7590 = vmatprep.subr.mxu0 0.0
    %7591 = vmatpush1.msra.mxu0 0.0
    %7592 = vmatprep.subr.mxu0 0.0
    %7593 = vmatpush1.msra.mxu0 0.0
    %7594 = vmatprep.subr.mxu0 0.0
    %7595 = vmatpush1.msra.mxu0 0.0
    %7596 = vmatprep.subr.mxu0 0.0
    %7597 = vmatpush1.msra.mxu0 0.0
    %7598 = vmatprep.subr.mxu0 0.0
    %7599 = vmatpush1.msra.mxu0 0.0
    %7600 = vmatprep.subr.mxu0 0.0
    %7601 = vmatpush1.msra.mxu0 %v7568
    %7602 = vmatprep.subr.mxu0 0.0
    %7603 = vmatpush2.msra.mxu0 0.0
    %7604 = vmatprep.subr.mxu0 0.0
    %7605 = vmatpush2.msra.mxu0 0.0
    %7606 = vmatprep.subr.mxu0 0.0
    %7607 = vmatpush2.msra.mxu0 0.0
    %7608 = vmatprep.subr.mxu0 0.0
    %7609 = vmatpush2.msra.mxu0 0.0
    %7610 = vmatprep.subr.mxu0 0.0
    %7611 = vmatpush2.msra.mxu0 0.0
    %7612 = vmatprep.subr.mxu0 0.0
    %7613 = vmatpush2.msra.mxu0 0.0
    %7614 = vmatprep.subr.mxu0 0.0
    %7615 = vmatpush2.msra.mxu0 0.0
    %7616 = vmatprep.subr.mxu0 0.0
    %7617 = vmatpush2.msra.mxu0 0.0
    %7618 = vmatprep.subr.mxu0 0.0
    %7619 = vmatpush2.msra.mxu0 0.0
    %7620 = vmatprep.subr.mxu0 0.0
    %7621 = vmatpush2.msra.mxu0 0.0
    %7622 = vmatprep.subr.mxu0 0.0
    %7623 = vmatpush2.msra.mxu0 0.0
    %7624 = vmatprep.subr.mxu0 0.0
    %7625 = vmatpush2.msra.mxu0 0.0
    %7626 = vmatprep.subr.mxu0 0.0
    %7627 = vmatpush2.msra.mxu0 0.0
    %7628 = vmatprep.subr.mxu0 0.0
    %7629 = vmatpush2.msra.mxu0 0.0
    %7630 = vmatprep.subr.mxu0 0.0
    %7631 = vmatpush2.msra.mxu0 0.0
    %7632 = vmatprep.subr.mxu0 0.0
    %7633 = vmatpush2.msra.mxu0 0.0
    %7634 = vmatprep.mubr.f32.mxu0 0.0
    %7635 = vmatmul.mubr.f32.gmra.mxu0 %v7544
    %v7636 = vpop.f32.mrf.mxu0
    %v7637 = vadd.f32 0.0, %v7636
    %v7638 = vpop.f32.mrf.mxu0
    %7639 = vmatprep.mubr.f32.mxu0 0.0
    %7640 = vmatmul.mubr.f32.gmra.mxu0 %v7547
    %v7641 = vpop.f32.mrf.mxu0
    %v7642 = vadd.f32 0.0, %v7641
    %v7643 = vpop.f32.mrf.mxu0
    %7644 = vmatprep.mubr.f32.mxu0 0.0
    %7645 = vmatmul.mubr.f32.gmra.mxu0 %v7550
    %v7646 = vpop.f32.mrf.mxu0
    %v7647 = vadd.f32 0.0, %v7646
    %v7648 = vpop.f32.mrf.mxu0
    %7649 = vmatprep.mubr.f32.mxu0 0.0
    %7650 = vmatmul.mubr.f32.gmra.mxu0 %v7553
    %v7651 = vpop.f32.mrf.mxu0
    %v7652 = vadd.f32 0.0, %v7651
    %v7653 = vpop.f32.mrf.mxu0
    %7654 = vmatprep.mubr.f32.mxu0 0.0
    %7655 = vmatmul.mubr.f32.gmra.mxu0 %v7556
    %v7656 = vpop.f32.mrf.mxu0
    %v7657 = vadd.f32 0.0, %v7656
    %v7658 = vpop.f32.mrf.mxu0
    %7659 = vmatprep.mubr.f32.mxu0 0.0
    %7660 = vmatmul.mubr.f32.gmra.mxu0 %v7559
    %v7661 = vpop.f32.mrf.mxu0
    %v7662 = vadd.f32 0.0, %v7661
    %v7663 = vpop.f32.mrf.mxu0
    %7664 = vmatprep.mubr.f32.mxu0 0.0
    %7665 = vmatmul.mubr.f32.gmra.mxu0 %v7562
    %v7666 = vpop.f32.mrf.mxu0
    %v7667 = vadd.f32 0.0, %v7666
    %v7668 = vpop.f32.mrf.mxu0
    %7669 = vmatprep.mubr.f32.mxu0 0.0
    %7670 = vmatmul.mubr.f32.gmra.mxu0 %v7565
    %v7671 = vpop.f32.mrf.mxu0
    %v7672 = vadd.f32 0.0, %v7671
    %v7673 = vpop.f32.mrf.mxu0
    %7674 = vdwg.mxu0
    %v7675 = vsel %vm815, %v7510, 0.0
    %v7676 = vrot.slane %v7675, 4
    %v7677 = vadd.f32 %v7675, %v7676
    %v7678 = vrot.slane %v7677, 2
    %v7679 = vadd.f32 %v7677, %v7678
    %v7680 = vrot.slane %v7679, 1
    %v7681 = vadd.f32 %v7679, %v7680
    %v7682 = vsel %vm130, %v7510, 0
    %v7685 = vsel %vm130, %v6929, 0
    %v7688 = vsel %vm130, %v6930, 0
    %v7691 = vsel %vm130, %v6931, 0
    %v7694 = vsel %vm130, %v6932, 0
    %v7697 = vsel %vm130, %v6933, 0
    %v7700 = vsel %vm130, %v6934, 0
    %v7703 = vsel %vm130, %v6935, 0
    %v7706 = vsel %vm130, %v6936, 0
    %7708 = vmatprep.subr.mxu0 0.0
    %7709 = vmatpush1.xpose.msra.mxu0 0.0
    %7710 = vmatprep.subr.mxu0 0.0
    %7711 = vmatpush1.xpose.msra.mxu0 0.0
    %7712 = vmatprep.subr.mxu0 0.0
    %7713 = vmatpush1.xpose.msra.mxu0 0.0
    %7714 = vmatprep.subr.mxu0 0.0
    %7715 = vmatpush1.xpose.msra.mxu0 0.0
    %7716 = vmatprep.subr.mxu0 0.0
    %7717 = vmatpush1.xpose.msra.mxu0 0.0
    %7718 = vmatprep.subr.mxu0 0.0
    %7719 = vmatpush1.xpose.msra.mxu0 0.0
    %7720 = vmatprep.subr.mxu0 0.0
    %7721 = vmatpush1.xpose.msra.mxu0 0.0
    %7722 = vmatprep.subr.mxu0 0.0
    %7723 = vmatpush1.xpose.msra.mxu0 0.0
    %7724 = vmatprep.subr.mxu0 0.0
    %7725 = vmatpush1.xpose.msra.mxu0 %v7706
    %7726 = vmatprep.subr.mxu0 0.0
    %7727 = vmatpush1.xpose.msra.mxu0 %v7703
    %7728 = vmatprep.subr.mxu0 0.0
    %7729 = vmatpush1.xpose.msra.mxu0 %v7700
    %7730 = vmatprep.subr.mxu0 0.0
    %7731 = vmatpush1.xpose.msra.mxu0 %v7697
    %7732 = vmatprep.subr.mxu0 0.0
    %7733 = vmatpush1.xpose.msra.mxu0 %v7694
    %7734 = vmatprep.subr.mxu0 0.0
    %7735 = vmatpush1.xpose.msra.mxu0 %v7691
    %7736 = vmatprep.subr.mxu0 0.0
    %7737 = vmatpush1.xpose.msra.mxu0 %v7688
    %7738 = vmatprep.subr.mxu0 0.0
    %7739 = vmatpush1.xpose.msra.mxu0 %v7685
    %7740 = vmatprep.subr.mxu0 0.0
    %7741 = vmatpush2.xpose.msra.mxu0 0.0
    %7742 = vmatprep.subr.mxu0 0.0
    %7743 = vmatpush2.xpose.msra.mxu0 0.0
    %7744 = vmatprep.subr.mxu0 0.0
    %7745 = vmatpush2.xpose.msra.mxu0 0.0
    %7746 = vmatprep.subr.mxu0 0.0
    %7747 = vmatpush2.xpose.msra.mxu0 0.0
    %7748 = vmatprep.subr.mxu0 0.0
    %7749 = vmatpush2.xpose.msra.mxu0 0.0
    %7750 = vmatprep.subr.mxu0 0.0
    %7751 = vmatpush2.xpose.msra.mxu0 0.0
    %7752 = vmatprep.subr.mxu0 0.0
    %7753 = vmatpush2.xpose.msra.mxu0 0.0
    %7754 = vmatprep.subr.mxu0 0.0
    %7755 = vmatpush2.xpose.msra.mxu0 0.0
    %7756 = vmatprep.subr.mxu0 0.0
    %7757 = vmatpush2.xpose.msra.mxu0 0.0
    %7758 = vmatprep.subr.mxu0 0.0
    %7759 = vmatpush2.xpose.msra.mxu0 0.0
    %7760 = vmatprep.subr.mxu0 0.0
    %7761 = vmatpush2.xpose.msra.mxu0 0.0
    %7762 = vmatprep.subr.mxu0 0.0
    %7763 = vmatpush2.xpose.msra.mxu0 0.0
    %7764 = vmatprep.subr.mxu0 0.0
    %7765 = vmatpush2.xpose.msra.mxu0 0.0
    %7766 = vmatprep.subr.mxu0 0.0
    %7767 = vmatpush2.xpose.msra.mxu0 0.0
    %7768 = vmatprep.subr.mxu0 0.0
    %7769 = vmatpush2.xpose.msra.mxu0 0.0
    %7770 = vmatprep.subr.mxu0 0.0
    %7771 = vmatpush2.xpose.msra.mxu0 0.0
    %7772 = vmatprep.mubr.f32.mxu0 0.0
    %7773 = vmatmul.mubr.f32.gmra.mxu0 %v7682
    %v7774 = vpop.f32.mrf.mxu0
    %v7775 = vadd.f32 0.0, %v7774
    %v7776 = vpop.f32.mrf.mxu0
    %7777 = vdwg.mxu0
    %vm7778 = vcmp.gt.f32.partialorder %v7410, 0.0
    %7780 = vrot.lane.b32.xlu0 %v7775, 96
    %v7781 = vpop.permute.xlu0 %7780
    %v7783 = vsel %vm7778, %v7781, 0.0
    %7784 = vxpose.xlu0.b32.start [1/16] %v7783, 128
    %7785 = vxpose.xlu0.b32.cont [2/16] 0.0, 128
    %7786 = vxpose.xlu0.b32.cont [3/16] 0.0, 128
    %7787 = vxpose.xlu0.b32.cont [4/16] 0.0, 128
    %7788 = vxpose.xlu0.b32.cont [5/16] 0.0, 128
    %7789 = vxpose.xlu0.b32.cont [6/16] 0.0, 128
    %7790 = vxpose.xlu0.b32.cont [7/16] 0.0, 128
    %7791 = vxpose.xlu0.b32.cont [8/16] 0.0, 128
    %7792 = vxpose.xlu0.b32.cont [9/16] 0.0, 128
    %7793 = vxpose.xlu0.b32.cont [10/16] 0.0, 128
    %7794 = vxpose.xlu0.b32.cont [11/16] 0.0, 128
    %7795 = vxpose.xlu0.b32.cont [12/16] 0.0, 128
    %7796 = vxpose.xlu0.b32.cont [13/16] 0.0, 128
    %7797 = vxpose.xlu0.b32.cont [14/16] 0.0, 128
    %7798 = vxpose.xlu0.b32.cont [15/16] 0.0, 128
    %7799 = vxpose.xlu0.b32.end [16/16] 0.0, 128
    %v7800 = vpop.trf.xlu0
    %v7801 = vpop.trf.xlu0
    %v7802 = vpop.trf.xlu0
    %v7803 = vpop.trf.xlu0
    %v7804 = vpop.trf.xlu0
    %v7805 = vpop.trf.xlu0
    %v7806 = vpop.trf.xlu0
    %v7807 = vpop.trf.xlu0
    %v7808 = vpop.trf.xlu0
    %v7809 = vpop.trf.xlu0
    %v7810 = vpop.trf.xlu0
    %v7811 = vpop.trf.xlu0
    %v7812 = vpop.trf.xlu0
    %v7813 = vpop.trf.xlu0
    %v7814 = vpop.trf.xlu0
    %v7815 = vpop.trf.xlu0
    %v7817 = vsel %vm861, %v7800, 0
    %v7820 = vsel %vm861, %v7801, 0
    %v7823 = vsel %vm861, %v7802, 0
    %v7826 = vsel %vm861, %v7803, 0
    %7828 = vmatprep.subr.mxu0 0.0
    %7829 = vmatpush1.msra.mxu0 0.0
    %7830 = vmatprep.subr.mxu0 0.0
    %7831 = vmatpush1.msra.mxu0 0.0
    %7832 = vmatprep.subr.mxu0 0.0
    %7833 = vmatpush1.msra.mxu0 0.0
    %7834 = vmatprep.subr.mxu0 0.0
    %7835 = vmatpush1.msra.mxu0 0.0
    %7836 = vmatprep.subr.mxu0 0.0
    %7837 = vmatpush1.msra.mxu0 0.0
    %7838 = vmatprep.subr.mxu0 0.0
    %7839 = vmatpush1.msra.mxu0 0.0
    %7840 = vmatprep.subr.mxu0 0.0
    %7841 = vmatpush1.msra.mxu0 0.0
    %7842 = vmatprep.subr.mxu0 0.0
    %7843 = vmatpush1.msra.mxu0 0.0
    %7844 = vmatprep.subr.mxu0 0.0
    %7845 = vmatpush1.msra.mxu0 0.0
    %7846 = vmatprep.subr.mxu0 0.0
    %7847 = vmatpush1.msra.mxu0 0.0
    %7848 = vmatprep.subr.mxu0 0.0
    %7849 = vmatpush1.msra.mxu0 0.0
    %7850 = vmatprep.subr.mxu0 0.0
    %7851 = vmatpush1.msra.mxu0 0.0
    %7852 = vmatprep.subr.mxu0 0.0
    %7853 = vmatpush1.msra.mxu0 0.0
    %7854 = vmatprep.subr.mxu0 0.0
    %7855 = vmatpush1.msra.mxu0 0.0
    %7856 = vmatprep.subr.mxu0 0.0
    %7857 = vmatpush1.msra.mxu0 0.0
    %7858 = vmatprep.subr.mxu0 %v1150
    %7859 = vmatpush1.msra.mxu0 %v1148
    %7860 = vmatprep.subr.mxu0 0.0
    %7861 = vmatpush2.msra.mxu0 0.0
    %7862 = vmatprep.subr.mxu0 0.0
    %7863 = vmatpush2.msra.mxu0 0.0
    %7864 = vmatprep.subr.mxu0 0.0
    %7865 = vmatpush2.msra.mxu0 0.0
    %7866 = vmatprep.subr.mxu0 0.0
    %7867 = vmatpush2.msra.mxu0 0.0
    %7868 = vmatprep.subr.mxu0 0.0
    %7869 = vmatpush2.msra.mxu0 0.0
    %7870 = vmatprep.subr.mxu0 0.0
    %7871 = vmatpush2.msra.mxu0 0.0
    %7872 = vmatprep.subr.mxu0 0.0
    %7873 = vmatpush2.msra.mxu0 0.0
    %7874 = vmatprep.subr.mxu0 0.0
    %7875 = vmatpush2.msra.mxu0 0.0
    %7876 = vmatprep.subr.mxu0 0.0
    %7877 = vmatpush2.msra.mxu0 0.0
    %7878 = vmatprep.subr.mxu0 0.0
    %7879 = vmatpush2.msra.mxu0 0.0
    %7880 = vmatprep.subr.mxu0 0.0
    %7881 = vmatpush2.msra.mxu0 0.0
    %7882 = vmatprep.subr.mxu0 0.0
    %7883 = vmatpush2.msra.mxu0 0.0
    %7884 = vmatprep.subr.mxu0 0.0
    %7885 = vmatpush2.msra.mxu0 0.0
    %7886 = vmatprep.subr.mxu0 0.0
    %7887 = vmatpush2.msra.mxu0 0.0
    %7888 = vmatprep.subr.mxu0 0.0
    %7889 = vmatpush2.msra.mxu0 0.0
    %7890 = vmatprep.subr.mxu0 0.0
    %7891 = vmatpush2.msra.mxu0 0.0
    %7892 = vmatprep.mubr.f32.mxu0 0.0
    %7893 = vmatmul.mubr.f32.gmra.mxu0 %v7817
    %v7894 = vpop.f32.mrf.mxu0
    %v7895 = vadd.f32 0.0, %v7894
    %v7896 = vpop.f32.mrf.mxu0
    %v7897 = vadd.f32 0.0, %v7896
    %7898 = vmatprep.mubr.f32.mxu0 0.0
    %7899 = vmatmul.mubr.f32.gmra.mxu0 %v7820
    %v7900 = vpop.f32.mrf.mxu0
    %v7901 = vadd.f32 0.0, %v7900
    %v7902 = vpop.f32.mrf.mxu0
    %v7903 = vadd.f32 0.0, %v7902
    %7904 = vmatprep.mubr.f32.mxu0 0.0
    %7905 = vmatmul.mubr.f32.gmra.mxu0 %v7823
    %v7906 = vpop.f32.mrf.mxu0
    %v7907 = vadd.f32 0.0, %v7906
    %v7908 = vpop.f32.mrf.mxu0
    %v7909 = vadd.f32 0.0, %v7908
    %7910 = vmatprep.mubr.f32.mxu0 0.0
    %7911 = vmatmul.mubr.f32.gmra.mxu0 %v7826
    %v7912 = vpop.f32.mrf.mxu0
    %v7913 = vadd.f32 0.0, %v7912
    %v7914 = vpop.f32.mrf.mxu0
    %v7915 = vadd.f32 0.0, %v7914
    %7916 = vdwg.mxu0
    %7917 = vmatprep.subr.mxu0 0.0
    %7918 = vmatpush1.msra.mxu0 0.0
    %7919 = vmatprep.subr.mxu0 0.0
    %7920 = vmatpush1.msra.mxu0 0.0
    %7921 = vmatprep.subr.mxu0 0.0
    %7922 = vmatpush1.msra.mxu0 0.0
    %7923 = vmatprep.subr.mxu0 0.0
    %7924 = vmatpush1.msra.mxu0 0.0
    %7925 = vmatprep.subr.mxu0 0.0
    %7926 = vmatpush1.msra.mxu0 0.0
    %7927 = vmatprep.subr.mxu0 0.0
    %7928 = vmatpush1.msra.mxu0 0.0
    %7929 = vmatprep.subr.mxu0 0.0
    %7930 = vmatpush1.msra.mxu0 0.0
    %7931 = vmatprep.subr.mxu0 0.0
    %7932 = vmatpush1.msra.mxu0 0.0
    %7933 = vmatprep.subr.mxu0 0.0
    %7934 = vmatpush1.msra.mxu0 0.0
    %7935 = vmatprep.subr.mxu0 0.0
    %7936 = vmatpush1.msra.mxu0 0.0
    %7937 = vmatprep.subr.mxu0 0.0
    %7938 = vmatpush1.msra.mxu0 0.0
    %7939 = vmatprep.subr.mxu0 0.0
    %7940 = vmatpush1.msra.mxu0 0.0
    %7941 = vmatprep.subr.mxu0 0.0
    %7942 = vmatpush1.msra.mxu0 0.0
    %7943 = vmatprep.subr.mxu0 0.0
    %7944 = vmatpush1.msra.mxu0 0.0
    %7945 = vmatprep.subr.mxu0 0.0
    %7946 = vmatpush1.msra.mxu0 0.0
    %7947 = vmatprep.subr.mxu0 %v1154
    %7948 = vmatpush1.msra.mxu0 %v1152
    %7949 = vmatprep.subr.mxu0 0.0
    %7950 = vmatpush2.msra.mxu0 0.0
    %7951 = vmatprep.subr.mxu0 0.0
    %7952 = vmatpush2.msra.mxu0 0.0
    %7953 = vmatprep.subr.mxu0 0.0
    %7954 = vmatpush2.msra.mxu0 0.0
    %7955 = vmatprep.subr.mxu0 0.0
    %7956 = vmatpush2.msra.mxu0 0.0
    %7957 = vmatprep.subr.mxu0 0.0
    %7958 = vmatpush2.msra.mxu0 0.0
    %7959 = vmatprep.subr.mxu0 0.0
    %7960 = vmatpush2.msra.mxu0 0.0
    %7961 = vmatprep.subr.mxu0 0.0
    %7962 = vmatpush2.msra.mxu0 0.0
    %7963 = vmatprep.subr.mxu0 0.0
    %7964 = vmatpush2.msra.mxu0 0.0
    %7965 = vmatprep.subr.mxu0 0.0
    %7966 = vmatpush2.msra.mxu0 0.0
    %7967 = vmatprep.subr.mxu0 0.0
    %7968 = vmatpush2.msra.mxu0 0.0
    %7969 = vmatprep.subr.mxu0 0.0
    %7970 = vmatpush2.msra.mxu0 0.0
    %7971 = vmatprep.subr.mxu0 0.0
    %7972 = vmatpush2.msra.mxu0 0.0
    %7973 = vmatprep.subr.mxu0 0.0
    %7974 = vmatpush2.msra.mxu0 0.0
    %7975 = vmatprep.subr.mxu0 0.0
    %7976 = vmatpush2.msra.mxu0 0.0
    %7977 = vmatprep.subr.mxu0 0.0
    %7978 = vmatpush2.msra.mxu0 0.0
    %7979 = vmatprep.subr.mxu0 0.0
    %7980 = vmatpush2.msra.mxu0 0.0
    %7981 = vmatprep.mubr.f32.mxu0 0.0
    %7982 = vmatmul.mubr.f32.gmra.mxu0 %v7817
    %v7983 = vpop.f32.mrf.mxu0
    %v7984 = vadd.f32 0.0, %v7983
    %v7985 = vpop.f32.mrf.mxu0
    %v7986 = vadd.f32 0.0, %v7985
    %7987 = vmatprep.mubr.f32.mxu0 0.0
    %7988 = vmatmul.mubr.f32.gmra.mxu0 %v7820
    %v7989 = vpop.f32.mrf.mxu0
    %v7990 = vadd.f32 0.0, %v7989
    %v7991 = vpop.f32.mrf.mxu0
    %v7992 = vadd.f32 0.0, %v7991
    %7993 = vmatprep.mubr.f32.mxu0 0.0
    %7994 = vmatmul.mubr.f32.gmra.mxu0 %v7823
    %v7995 = vpop.f32.mrf.mxu0
    %v7996 = vadd.f32 0.0, %v7995
    %v7997 = vpop.f32.mrf.mxu0
    %v7998 = vadd.f32 0.0, %v7997
    %7999 = vmatprep.mubr.f32.mxu0 0.0
    %8000 = vmatmul.mubr.f32.gmra.mxu0 %v7826
    %v8001 = vpop.f32.mrf.mxu0
    %v8002 = vadd.f32 0.0, %v8001
    %v8003 = vpop.f32.mrf.mxu0
    %v8004 = vadd.f32 0.0, %v8003
    %8005 = vdwg.mxu0
    %8006 = vmatprep.subr.mxu0 0.0
    %8007 = vmatpush1.msra.mxu0 0.0
    %8008 = vmatprep.subr.mxu0 0.0
    %8009 = vmatpush1.msra.mxu0 0.0
    %8010 = vmatprep.subr.mxu0 0.0
    %8011 = vmatpush1.msra.mxu0 0.0
    %8012 = vmatprep.subr.mxu0 0.0
    %8013 = vmatpush1.msra.mxu0 0.0
    %8014 = vmatprep.subr.mxu0 0.0
    %8015 = vmatpush1.msra.mxu0 0.0
    %8016 = vmatprep.subr.mxu0 0.0
    %8017 = vmatpush1.msra.mxu0 0.0
    %8018 = vmatprep.subr.mxu0 0.0
    %8019 = vmatpush1.msra.mxu0 0.0
    %8020 = vmatprep.subr.mxu0 0.0
    %8021 = vmatpush1.msra.mxu0 0.0
    %8022 = vmatprep.subr.mxu0 0.0
    %8023 = vmatpush1.msra.mxu0 0.0
    %8024 = vmatprep.subr.mxu0 0.0
    %8025 = vmatpush1.msra.mxu0 0.0
    %8026 = vmatprep.subr.mxu0 0.0
    %8027 = vmatpush1.msra.mxu0 0.0
    %8028 = vmatprep.subr.mxu0 0.0
    %8029 = vmatpush1.msra.mxu0 0.0
    %8030 = vmatprep.subr.mxu0 0.0
    %8031 = vmatpush1.msra.mxu0 0.0
    %8032 = vmatprep.subr.mxu0 0.0
    %8033 = vmatpush1.msra.mxu0 0.0
    %8034 = vmatprep.subr.mxu0 0.0
    %8035 = vmatpush1.msra.mxu0 0.0
    %8036 = vmatprep.subr.mxu0 %v1158
    %8037 = vmatpush1.msra.mxu0 %v1156
    %8038 = vmatprep.subr.mxu0 0.0
    %8039 = vmatpush2.msra.mxu0 0.0
    %8040 = vmatprep.subr.mxu0 0.0
    %8041 = vmatpush2.msra.mxu0 0.0
    %8042 = vmatprep.subr.mxu0 0.0
    %8043 = vmatpush2.msra.mxu0 0.0
    %8044 = vmatprep.subr.mxu0 0.0
    %8045 = vmatpush2.msra.mxu0 0.0
    %8046 = vmatprep.subr.mxu0 0.0
    %8047 = vmatpush2.msra.mxu0 0.0
    %8048 = vmatprep.subr.mxu0 0.0
    %8049 = vmatpush2.msra.mxu0 0.0
    %8050 = vmatprep.subr.mxu0 0.0
    %8051 = vmatpush2.msra.mxu0 0.0
    %8052 = vmatprep.subr.mxu0 0.0
    %8053 = vmatpush2.msra.mxu0 0.0
    %8054 = vmatprep.subr.mxu0 0.0
    %8055 = vmatpush2.msra.mxu0 0.0
    %8056 = vmatprep.subr.mxu0 0.0
    %8057 = vmatpush2.msra.mxu0 0.0
    %8058 = vmatprep.subr.mxu0 0.0
    %8059 = vmatpush2.msra.mxu0 0.0
    %8060 = vmatprep.subr.mxu0 0.0
    %8061 = vmatpush2.msra.mxu0 0.0
    %8062 = vmatprep.subr.mxu0 0.0
    %8063 = vmatpush2.msra.mxu0 0.0
    %8064 = vmatprep.subr.mxu0 0.0
    %8065 = vmatpush2.msra.mxu0 0.0
    %8066 = vmatprep.subr.mxu0 0.0
    %8067 = vmatpush2.msra.mxu0 0.0
    %8068 = vmatprep.subr.mxu0 0.0
    %8069 = vmatpush2.msra.mxu0 0.0
    %8070 = vmatprep.mubr.f32.mxu0 0.0
    %8071 = vmatmul.mubr.f32.gmra.mxu0 %v7817
    %v8072 = vpop.f32.mrf.mxu0
    %v8073 = vadd.f32 0.0, %v8072
    %v8074 = vpop.f32.mrf.mxu0
    %v8075 = vadd.f32 0.0, %v8074
    %8076 = vmatprep.mubr.f32.mxu0 0.0
    %8077 = vmatmul.mubr.f32.gmra.mxu0 %v7820
    %v8078 = vpop.f32.mrf.mxu0
    %v8079 = vadd.f32 0.0, %v8078
    %v8080 = vpop.f32.mrf.mxu0
    %v8081 = vadd.f32 0.0, %v8080
    %8082 = vmatprep.mubr.f32.mxu0 0.0
    %8083 = vmatmul.mubr.f32.gmra.mxu0 %v7823
    %v8084 = vpop.f32.mrf.mxu0
    %v8085 = vadd.f32 0.0, %v8084
    %v8086 = vpop.f32.mrf.mxu0
    %v8087 = vadd.f32 0.0, %v8086
    %8088 = vmatprep.mubr.f32.mxu0 0.0
    %8089 = vmatmul.mubr.f32.gmra.mxu0 %v7826
    %v8090 = vpop.f32.mrf.mxu0
    %v8091 = vadd.f32 0.0, %v8090
    %v8092 = vpop.f32.mrf.mxu0
    %v8093 = vadd.f32 0.0, %v8092
    %8094 = vdwg.mxu0
    %8095 = vmatprep.subr.mxu0 0.0
    %8096 = vmatpush1.msra.mxu0 0.0
    %8097 = vmatprep.subr.mxu0 0.0
    %8098 = vmatpush1.msra.mxu0 0.0
    %8099 = vmatprep.subr.mxu0 0.0
    %8100 = vmatpush1.msra.mxu0 0.0
    %8101 = vmatprep.subr.mxu0 0.0
    %8102 = vmatpush1.msra.mxu0 0.0
    %8103 = vmatprep.subr.mxu0 0.0
    %8104 = vmatpush1.msra.mxu0 0.0
    %8105 = vmatprep.subr.mxu0 0.0
    %8106 = vmatpush1.msra.mxu0 0.0
    %8107 = vmatprep.subr.mxu0 0.0
    %8108 = vmatpush1.msra.mxu0 0.0
    %8109 = vmatprep.subr.mxu0 0.0
    %8110 = vmatpush1.msra.mxu0 0.0
    %8111 = vmatprep.subr.mxu0 0.0
    %8112 = vmatpush1.msra.mxu0 0.0
    %8113 = vmatprep.subr.mxu0 0.0
    %8114 = vmatpush1.msra.mxu0 0.0
    %8115 = vmatprep.subr.mxu0 0.0
    %8116 = vmatpush1.msra.mxu0 0.0
    %8117 = vmatprep.subr.mxu0 0.0
    %8118 = vmatpush1.msra.mxu0 0.0
    %8119 = vmatprep.subr.mxu0 0.0
    %8120 = vmatpush1.msra.mxu0 0.0
    %8121 = vmatprep.subr.mxu0 0.0
    %8122 = vmatpush1.msra.mxu0 0.0
    %8123 = vmatprep.subr.mxu0 0.0
    %8124 = vmatpush1.msra.mxu0 0.0
    %8125 = vmatprep.subr.mxu0 %v1162
    %8126 = vmatpush1.msra.mxu0 %v1160
    %8127 = vmatprep.subr.mxu0 0.0
    %8128 = vmatpush2.msra.mxu0 0.0
    %8129 = vmatprep.subr.mxu0 0.0
    %8130 = vmatpush2.msra.mxu0 0.0
    %8131 = vmatprep.subr.mxu0 0.0
    %8132 = vmatpush2.msra.mxu0 0.0
    %8133 = vmatprep.subr.mxu0 0.0
    %8134 = vmatpush2.msra.mxu0 0.0
    %8135 = vmatprep.subr.mxu0 0.0
    %8136 = vmatpush2.msra.mxu0 0.0
    %8137 = vmatprep.subr.mxu0 0.0
    %8138 = vmatpush2.msra.mxu0 0.0
    %8139 = vmatprep.subr.mxu0 0.0
    %8140 = vmatpush2.msra.mxu0 0.0
    %8141 = vmatprep.subr.mxu0 0.0
    %8142 = vmatpush2.msra.mxu0 0.0
    %8143 = vmatprep.subr.mxu0 0.0
    %8144 = vmatpush2.msra.mxu0 0.0
    %8145 = vmatprep.subr.mxu0 0.0
    %8146 = vmatpush2.msra.mxu0 0.0
    %8147 = vmatprep.subr.mxu0 0.0
    %8148 = vmatpush2.msra.mxu0 0.0
    %8149 = vmatprep.subr.mxu0 0.0
    %8150 = vmatpush2.msra.mxu0 0.0
    %8151 = vmatprep.subr.mxu0 0.0
    %8152 = vmatpush2.msra.mxu0 0.0
    %8153 = vmatprep.subr.mxu0 0.0
    %8154 = vmatpush2.msra.mxu0 0.0
    %8155 = vmatprep.subr.mxu0 0.0
    %8156 = vmatpush2.msra.mxu0 0.0
    %8157 = vmatprep.subr.mxu0 0.0
    %8158 = vmatpush2.msra.mxu0 0.0
    %8159 = vmatprep.mubr.f32.mxu0 0.0
    %8160 = vmatmul.mubr.f32.gmra.mxu0 %v7817
    %v8161 = vpop.f32.mrf.mxu0
    %v8162 = vadd.f32 0.0, %v8161
    %v8163 = vpop.f32.mrf.mxu0
    %v8164 = vadd.f32 0.0, %v8163
    %8165 = vmatprep.mubr.f32.mxu0 0.0
    %8166 = vmatmul.mubr.f32.gmra.mxu0 %v7820
    %v8167 = vpop.f32.mrf.mxu0
    %v8168 = vadd.f32 0.0, %v8167
    %v8169 = vpop.f32.mrf.mxu0
    %v8170 = vadd.f32 0.0, %v8169
    %8171 = vmatprep.mubr.f32.mxu0 0.0
    %8172 = vmatmul.mubr.f32.gmra.mxu0 %v7823
    %v8173 = vpop.f32.mrf.mxu0
    %v8174 = vadd.f32 0.0, %v8173
    %v8175 = vpop.f32.mrf.mxu0
    %v8176 = vadd.f32 0.0, %v8175
    %8177 = vmatprep.mubr.f32.mxu0 0.0
    %8178 = vmatmul.mubr.f32.gmra.mxu0 %v7826
    %v8179 = vpop.f32.mrf.mxu0
    %v8180 = vadd.f32 0.0, %v8179
    %v8181 = vpop.f32.mrf.mxu0
    %v8182 = vadd.f32 0.0, %v8181
    %8183 = vdwg.mxu0
    %v8184 = vsel %vm1520, %v7783, 0.0
    %v8185 = vrot.slane %v8184, 4
    %v8186 = vadd.f32 %v8184, %v8185
    %v8187 = vrot.slane %v8186, 2
    %v8188 = vadd.f32 %v8186, %v8187
    %v8189 = vrot.slane %v8188, 1
    %v8190 = vadd.f32 %v8188, %v8189
    %v8191 = vsel %vm886, %v7775, 0
    %8193 = vmatprep.subr.mxu0 0.0
    %8194 = vmatpush1.msra.mxu0 0.0
    %8195 = vmatprep.subr.mxu0 0.0
    %8196 = vmatpush1.msra.mxu0 0.0
    %8197 = vmatprep.subr.mxu0 0.0
    %8198 = vmatpush1.msra.mxu0 0.0
    %8199 = vmatprep.subr.mxu0 0.0
    %8200 = vmatpush1.msra.mxu0 0.0
    %8201 = vmatprep.subr.mxu0 0.0
    %8202 = vmatpush1.msra.mxu0 0.0
    %8203 = vmatprep.subr.mxu0 0.0
    %8204 = vmatpush1.msra.mxu0 0.0
    %8205 = vmatprep.subr.mxu0 0.0
    %8206 = vmatpush1.msra.mxu0 0.0
    %8207 = vmatprep.subr.mxu0 0.0
    %8208 = vmatpush1.msra.mxu0 0.0
    %8209 = vmatprep.subr.mxu0 0.0
    %8210 = vmatpush1.msra.mxu0 0.0
    %8211 = vmatprep.subr.mxu0 0.0
    %8212 = vmatpush1.msra.mxu0 0.0
    %8213 = vmatprep.subr.mxu0 0.0
    %8214 = vmatpush1.msra.mxu0 0.0
    %8215 = vmatprep.subr.mxu0 0.0
    %8216 = vmatpush1.msra.mxu0 0.0
    %8217 = vmatprep.subr.mxu0 0.0
    %8218 = vmatpush1.msra.mxu0 0.0
    %8219 = vmatprep.subr.mxu0 0.0
    %8220 = vmatpush1.msra.mxu0 0.0
    %8221 = vmatprep.subr.mxu0 0.0
    %8222 = vmatpush1.msra.mxu0 0.0
    %8223 = vmatprep.subr.mxu0 0.0
    %8224 = vmatpush1.msra.mxu0 %v8191
    %8225 = vmatprep.subr.mxu0 0.0
    %8226 = vmatpush2.msra.mxu0 0.0
    %8227 = vmatprep.subr.mxu0 0.0
    %8228 = vmatpush2.msra.mxu0 0.0
    %8229 = vmatprep.subr.mxu0 0.0
    %8230 = vmatpush2.msra.mxu0 0.0
    %8231 = vmatprep.subr.mxu0 0.0
    %8232 = vmatpush2.msra.mxu0 0.0
    %8233 = vmatprep.subr.mxu0 0.0
    %8234 = vmatpush2.msra.mxu0 0.0
    %8235 = vmatprep.subr.mxu0 0.0
    %8236 = vmatpush2.msra.mxu0 0.0
    %8237 = vmatprep.subr.mxu0 0.0
    %8238 = vmatpush2.msra.mxu0 0.0
    %8239 = vmatprep.subr.mxu0 0.0
    %8240 = vmatpush2.msra.mxu0 0.0
    %8241 = vmatprep.subr.mxu0 0.0
    %8242 = vmatpush2.msra.mxu0 0.0
    %8243 = vmatprep.subr.mxu0 0.0
    %8244 = vmatpush2.msra.mxu0 0.0
    %8245 = vmatprep.subr.mxu0 0.0
    %8246 = vmatpush2.msra.mxu0 0.0
    %8247 = vmatprep.subr.mxu0 0.0
    %8248 = vmatpush2.msra.mxu0 0.0
    %8249 = vmatprep.subr.mxu0 0.0
    %8250 = vmatpush2.msra.mxu0 0.0
    %8251 = vmatprep.subr.mxu0 0.0
    %8252 = vmatpush2.msra.mxu0 0.0
    %8253 = vmatprep.subr.mxu0 0.0
    %8254 = vmatpush2.msra.mxu0 0.0
    %8255 = vmatprep.subr.mxu0 0.0
    %8256 = vmatpush2.msra.mxu0 0.0
    %8257 = vmatprep.mubr.f32.mxu0 0.0
    %8258 = vmatmul.mubr.f32.gmra.mxu0 %v1561
    %v8259 = vpop.f32.mrf.mxu0
    %v8260 = vadd.f32 0.0, %v8259
    %v8261 = vpop.f32.mrf.mxu0
    %8262 = vmatprep.mubr.f32.mxu0 0.0
    %8263 = vmatmul.mubr.f32.gmra.mxu0 %v1564
    %v8264 = vpop.f32.mrf.mxu0
    %v8265 = vadd.f32 0.0, %v8264
    %v8266 = vpop.f32.mrf.mxu0
    %8267 = vmatprep.mubr.f32.mxu0 0.0
    %8268 = vmatmul.mubr.f32.gmra.mxu0 %v1567
    %v8269 = vpop.f32.mrf.mxu0
    %v8270 = vadd.f32 0.0, %v8269
    %v8271 = vpop.f32.mrf.mxu0
    %8272 = vmatprep.mubr.f32.mxu0 0.0
    %8273 = vmatmul.mubr.f32.gmra.mxu0 %v1570
    %v8274 = vpop.f32.mrf.mxu0
    %v8275 = vadd.f32 0.0, %v8274
    %v8276 = vpop.f32.mrf.mxu0
    %8277 = vmatprep.mubr.f32.mxu0 0.0
    %8278 = vmatmul.mubr.f32.gmra.mxu0 %v1573
    %v8279 = vpop.f32.mrf.mxu0
    %v8280 = vadd.f32 0.0, %v8279
    %v8281 = vpop.f32.mrf.mxu0
    %8282 = vmatprep.mubr.f32.mxu0 0.0
    %8283 = vmatmul.mubr.f32.gmra.mxu0 %v1576
    %v8284 = vpop.f32.mrf.mxu0
    %v8285 = vadd.f32 0.0, %v8284
    %v8286 = vpop.f32.mrf.mxu0
    %8287 = vmatprep.mubr.f32.mxu0 0.0
    %8288 = vmatmul.mubr.f32.gmra.mxu0 %v1579
    %v8289 = vpop.f32.mrf.mxu0
    %v8290 = vadd.f32 0.0, %v8289
    %v8291 = vpop.f32.mrf.mxu0
    %8292 = vmatprep.mubr.f32.mxu0 0.0
    %8293 = vmatmul.mubr.f32.gmra.mxu0 %v1582
    %v8294 = vpop.f32.mrf.mxu0
    %v8295 = vadd.f32 0.0, %v8294
    %v8296 = vpop.f32.mrf.mxu0
    %8297 = vdwg.mxu0
    %vm8298 = vcmp.gt.f32.partialorder %v7011, 0.0
    %vm8299 = vcmp.gt.f32.partialorder %v7016, 0.0
    %vm8300 = vcmp.gt.f32.partialorder %v7021, 0.0
    %vm8301 = vcmp.gt.f32.partialorder %v7026, 0.0
    %vm8302 = vcmp.gt.f32.partialorder %v7031, 0.0
    %vm8303 = vcmp.gt.f32.partialorder %v7036, 0.0
    %vm8304 = vcmp.gt.f32.partialorder %v7041, 0.0
    %vm8305 = vcmp.gt.f32.partialorder %v7046, 0.0
    %v8306 = vsel %vm8298, %v8260, 0.0
    %v8307 = vsel %vm8299, %v8265, 0.0
    %v8308 = vsel %vm8300, %v8270, 0.0
    %v8309 = vsel %vm8301, %v8275, 0.0
    %v8310 = vsel %vm8302, %v8280, 0.0
    %v8311 = vsel %vm8303, %v8285, 0.0
    %v8312 = vsel %vm8304, %v8290, 0.0
    %v8313 = vsel %vm8305, %v8295, 0.0
    %8314 = vmatprep.subr.mxu0 0.0
    %8315 = vmatpush1.msra.mxu0 0.0
    %8316 = vmatprep.subr.mxu0 0.0
    %8317 = vmatpush1.msra.mxu0 0.0
    %8318 = vmatprep.subr.mxu0 0.0
    %8319 = vmatpush1.msra.mxu0 0.0
    %8320 = vmatprep.subr.mxu0 0.0
    %8321 = vmatpush1.msra.mxu0 0.0
    %8322 = vmatprep.subr.mxu0 0.0
    %8323 = vmatpush1.msra.mxu0 0.0
    %8324 = vmatprep.subr.mxu0 0.0
    %8325 = vmatpush1.msra.mxu0 0.0
    %8326 = vmatprep.subr.mxu0 0.0
    %8327 = vmatpush1.msra.mxu0 0.0
    %8328 = vmatprep.subr.mxu0 0.0
    %8329 = vmatpush1.msra.mxu0 0.0
    %8330 = vmatprep.subr.mxu0 0.0
    %8331 = vmatpush1.msra.mxu0 %v8313
    %8332 = vmatprep.subr.mxu0 0.0
    %8333 = vmatpush1.msra.mxu0 %v8312
    %8334 = vmatprep.subr.mxu0 0.0
    %8335 = vmatpush1.msra.mxu0 %v8311
    %8336 = vmatprep.subr.mxu0 0.0
    %8337 = vmatpush1.msra.mxu0 %v8310
    %8338 = vmatprep.subr.mxu0 0.0
    %8339 = vmatpush1.msra.mxu0 %v8309
    %8340 = vmatprep.subr.mxu0 0.0
    %8341 = vmatpush1.msra.mxu0 %v8308
    %8342 = vmatprep.subr.mxu0 0.0
    %8343 = vmatpush1.msra.mxu0 %v8307
    %8344 = vmatprep.subr.mxu0 0.0
    %8345 = vmatpush1.msra.mxu0 %v8306
    %8346 = vmatprep.subr.mxu0 0.0
    %8347 = vmatpush2.msra.mxu0 0.0
    %8348 = vmatprep.subr.mxu0 0.0
    %8349 = vmatpush2.msra.mxu0 0.0
    %8350 = vmatprep.subr.mxu0 0.0
    %8351 = vmatpush2.msra.mxu0 0.0
    %8352 = vmatprep.subr.mxu0 0.0
    %8353 = vmatpush2.msra.mxu0 0.0
    %8354 = vmatprep.subr.mxu0 0.0
    %8355 = vmatpush2.msra.mxu0 0.0
    %8356 = vmatprep.subr.mxu0 0.0
    %8357 = vmatpush2.msra.mxu0 0.0
    %8358 = vmatprep.subr.mxu0 0.0
    %8359 = vmatpush2.msra.mxu0 0.0
    %8360 = vmatprep.subr.mxu0 0.0
    %8361 = vmatpush2.msra.mxu0 0.0
    %8362 = vmatprep.subr.mxu0 0.0
    %8363 = vmatpush2.msra.mxu0 0.0
    %8364 = vmatprep.subr.mxu0 0.0
    %8365 = vmatpush2.msra.mxu0 0.0
    %8366 = vmatprep.subr.mxu0 0.0
    %8367 = vmatpush2.msra.mxu0 0.0
    %8368 = vmatprep.subr.mxu0 0.0
    %8369 = vmatpush2.msra.mxu0 0.0
    %8370 = vmatprep.subr.mxu0 0.0
    %8371 = vmatpush2.msra.mxu0 0.0
    %8372 = vmatprep.subr.mxu0 0.0
    %8373 = vmatpush2.msra.mxu0 0.0
    %8374 = vmatprep.subr.mxu0 0.0
    %8375 = vmatpush2.msra.mxu0 0.0
    %8376 = vmatprep.subr.mxu0 0.0
    %8377 = vmatpush2.msra.mxu0 0.0
    %8378 = vmatprep.mubr.f32.mxu0 0.0
    %8379 = vmatmul.mubr.f32.gmra.mxu0 %v1740
    %v8380 = vpop.f32.mrf.mxu0
    %v8381 = vadd.f32 0.0, %v8380
    %v8382 = vpop.f32.mrf.mxu0
    %8383 = vdwg.mxu0
    %v8384 = vsel %vm51, %v8306, 0.0
    %v8385 = vsel %vm51, %v8307, 0.0
    %v8386 = vadd.f32 %v8384, %v8385
    %v8387 = vsel %vm51, %v8308, 0.0
    %v8388 = vadd.f32 %v8386, %v8387
    %v8389 = vsel %vm51, %v8309, 0.0
    %v8390 = vadd.f32 %v8388, %v8389
    %v8391 = vsel %vm51, %v8310, 0.0
    %v8392 = vadd.f32 %v8390, %v8391
    %v8393 = vsel %vm51, %v8311, 0.0
    %v8394 = vadd.f32 %v8392, %v8393
    %v8395 = vsel %vm51, %v8312, 0.0
    %v8396 = vadd.f32 %v8394, %v8395
    %v8397 = vsel %vm51, %v8313, 0.0
    %v8398 = vadd.f32 %v8396, %v8397
    %v8399 = vrot.slane %v8398, 4
    %v8400 = vadd.f32 %v8398, %v8399
    %v8401 = vrot.slane %v8400, 2
    %v8402 = vadd.f32 %v8400, %v8401
    %v8403 = vrot.slane %v8402, 1
    %v8404 = vadd.f32 %v8402, %v8403
    %v8405 = vmul.f32 %v8381, 0.001
    %v8406 = vsub.f32 %v6894, %v8405
    %8407 = vst.msk [vmem:[#allocation2] sm:$0xff] %vm51, %v8406
    %v8408 = vmul.f32 %v8404, 0.001
    %v8409 = vsub.f32 %v6895, %v8408
    %8410 = vst.msk [vmem:[#allocation3] sm:$0x1] %vm54, %v8409
    %v8411 = vmul.f32 %v7895, 0.001
    %v8412 = vmul.f32 %v7897, 0.001
    %v8413 = vmul.f32 %v7984, 0.001
    %v8414 = vmul.f32 %v7986, 0.001
    %v8415 = vmul.f32 %v8073, 0.001
    %v8416 = vmul.f32 %v8075, 0.001
    %v8417 = vmul.f32 %v8162, 0.001
    %v8418 = vmul.f32 %v8164, 0.001
    %v8419 = vmul.f32 %v7901, 0.001
    %v8420 = vmul.f32 %v7903, 0.001
    %v8421 = vmul.f32 %v7990, 0.001
    %v8422 = vmul.f32 %v7992, 0.001
    %v8423 = vmul.f32 %v8079, 0.001
    %v8424 = vmul.f32 %v8081, 0.001
    %v8425 = vmul.f32 %v8168, 0.001
    %v8426 = vmul.f32 %v8170, 0.001
    %v8427 = vmul.f32 %v7907, 0.001
    %v8428 = vmul.f32 %v7909, 0.001
    %v8429 = vmul.f32 %v7996, 0.001
    %v8430 = vmul.f32 %v7998, 0.001
    %v8431 = vmul.f32 %v8085, 0.001
    %v8432 = vmul.f32 %v8087, 0.001
    %v8433 = vmul.f32 %v8174, 0.001
    %v8434 = vmul.f32 %v8176, 0.001
    %v8435 = vmul.f32 %v7913, 0.001
    %v8436 = vmul.f32 %v7915, 0.001
    %v8437 = vmul.f32 %v8002, 0.001
    %v8438 = vmul.f32 %v8004, 0.001
    %v8439 = vmul.f32 %v8091, 0.001
    %v8440 = vmul.f32 %v8093, 0.001
    %v8441 = vmul.f32 %v8180, 0.001
    %v8442 = vmul.f32 %v8182, 0.001
    %v8443 = vsub.f32 %v6896, %v8411
    %v8444 = vsub.f32 %v6897, %v8412
    %v8445 = vsub.f32 %v6898, %v8413
    %v8446 = vsub.f32 %v6899, %v8414
    %v8447 = vsub.f32 %v6900, %v8415
    %v8448 = vsub.f32 %v6901, %v8416
    %v8449 = vsub.f32 %v6902, %v8417
    %v8450 = vsub.f32 %v6903, %v8418
    %v8451 = vsub.f32 %v6904, %v8419
    %v8452 = vsub.f32 %v6905, %v8420
    %v8453 = vsub.f32 %v6906, %v8421
    %v8454 = vsub.f32 %v6907, %v8422
    %v8455 = vsub.f32 %v6908, %v8423
    %v8456 = vsub.f32 %v6909, %v8424
    %v8457 = vsub.f32 %v6910, %v8425
    %v8458 = vsub.f32 %v6911, %v8426
    %v8459 = vsub.f32 %v6912, %v8427
    %v8460 = vsub.f32 %v6913, %v8428
    %v8461 = vsub.f32 %v6914, %v8429
    %v8462 = vsub.f32 %v6915, %v8430
    %v8463 = vsub.f32 %v6916, %v8431
    %v8464 = vsub.f32 %v6917, %v8432
    %v8465 = vsub.f32 %v6918, %v8433
    %v8466 = vsub.f32 %v6919, %v8434
    %v8467 = vsub.f32 %v6920, %v8435
    %v8468 = vsub.f32 %v6921, %v8436
    %v8469 = vsub.f32 %v6922, %v8437
    %v8470 = vsub.f32 %v6923, %v8438
    %v8471 = vsub.f32 %v6924, %v8439
    %v8472 = vsub.f32 %v6925, %v8440
    %v8473 = vsub.f32 %v6926, %v8441
    %v8474 = vsub.f32 %v6927, %v8442
    %8475 = vst [vmem:[#allocation4] sm:$0xff] %v8443
    %8476 = vst [vmem:[#allocation4 + $0x8] sm:$0xff] %v8444
    %8477 = vst [vmem:[#allocation4 + $0x10] sm:$0xff] %v8445
    %8478 = vst [vmem:[#allocation4 + $0x18] sm:$0xff] %v8446
    %8479 = vst [vmem:[#allocation4 + $0x20] sm:$0xff] %v8447
    %8480 = vst [vmem:[#allocation4 + $0x28] sm:$0xff] %v8448
    %8481 = vst [vmem:[#allocation4 + $0x30] sm:$0xff] %v8449
    %8482 = vst [vmem:[#allocation4 + $0x38] sm:$0xff] %v8450
    %8483 = vst [vmem:[#allocation4 + $0x40] sm:$0xff] %v8451
    %8484 = vst [vmem:[#allocation4 + $0x48] sm:$0xff] %v8452
    %8485 = vst [vmem:[#allocation4 + $0x50] sm:$0xff] %v8453
    %8486 = vst [vmem:[#allocation4 + $0x58] sm:$0xff] %v8454
    %8487 = vst [vmem:[#allocation4 + $0x60] sm:$0xff] %v8455
    %8488 = vst [vmem:[#allocation4 + $0x68] sm:$0xff] %v8456
    %8489 = vst [vmem:[#allocation4 + $0x70] sm:$0xff] %v8457
    %8490 = vst [vmem:[#allocation4 + $0x78] sm:$0xff] %v8458
    %8491 = vst [vmem:[#allocation4 + $0x80] sm:$0xff] %v8459
    %8492 = vst [vmem:[#allocation4 + $0x88] sm:$0xff] %v8460
    %8493 = vst [vmem:[#allocation4 + $0x90] sm:$0xff] %v8461
    %8494 = vst [vmem:[#allocation4 + $0x98] sm:$0xff] %v8462
    %8495 = vst [vmem:[#allocation4 + $0xa0] sm:$0xff] %v8463
    %8496 = vst [vmem:[#allocation4 + $0xa8] sm:$0xff] %v8464
    %8497 = vst [vmem:[#allocation4 + $0xb0] sm:$0xff] %v8465
    %8498 = vst [vmem:[#allocation4 + $0xb8] sm:$0xff] %v8466
    %8499 = vst [vmem:[#allocation4 + $0xc0] sm:$0xff] %v8467
    %8500 = vst [vmem:[#allocation4 + $0xc8] sm:$0xff] %v8468
    %8501 = vst [vmem:[#allocation4 + $0xd0] sm:$0xff] %v8469
    %8502 = vst [vmem:[#allocation4 + $0xd8] sm:$0xff] %v8470
    %8503 = vst [vmem:[#allocation4 + $0xe0] sm:$0xff] %v8471
    %8504 = vst [vmem:[#allocation4 + $0xe8] sm:$0xff] %v8472
    %8505 = vst [vmem:[#allocation4 + $0xf0] sm:$0xff] %v8473
    %8506 = vst [vmem:[#allocation4 + $0xf8] sm:$0xff] %v8474
    %v8507 = vmul.f32 %v8190, 0.001
    %v8508 = vsub.f32 %v6928, %v8507
    %8509 = vst.msk [vmem:[#allocation5] sm:$0x1] %vm54, %v8508
    %v8510 = vmul.f32 %v7637, 0.001
    %v8511 = vmul.f32 %v7642, 0.001
    %v8512 = vmul.f32 %v7647, 0.001
    %v8513 = vmul.f32 %v7652, 0.001
    %v8514 = vmul.f32 %v7657, 0.001
    %v8515 = vmul.f32 %v7662, 0.001
    %v8516 = vmul.f32 %v7667, 0.001
    %v8517 = vmul.f32 %v7672, 0.001
    %v8518 = vsub.f32 %v6929, %v8510
    %v8519 = vsub.f32 %v6930, %v8511
    %v8520 = vsub.f32 %v6931, %v8512
    %v8521 = vsub.f32 %v6932, %v8513
    %v8522 = vsub.f32 %v6933, %v8514
    %v8523 = vsub.f32 %v6934, %v8515
    %v8524 = vsub.f32 %v6935, %v8516
    %v8525 = vsub.f32 %v6936, %v8517
    %8526 = vst.msk [vmem:[#allocation6] sm:$0xff] %vm130, %v8518
    %8527 = vst.msk [vmem:[#allocation6 + $0x8] sm:$0xff] %vm130, %v8519
    %8528 = vst.msk [vmem:[#allocation6 + $0x10] sm:$0xff] %vm130, %v8520
    %8529 = vst.msk [vmem:[#allocation6 + $0x18] sm:$0xff] %vm130, %v8521
    %8530 = vst.msk [vmem:[#allocation6 + $0x20] sm:$0xff] %vm130, %v8522
    %8531 = vst.msk [vmem:[#allocation6 + $0x28] sm:$0xff] %vm130, %v8523
    %8532 = vst.msk [vmem:[#allocation6 + $0x30] sm:$0xff] %vm130, %v8524
    %8533 = vst.msk [vmem:[#allocation6 + $0x38] sm:$0xff] %vm130, %v8525
    %v8534 = vmul.f32 %v7681, 0.001
    %v8535 = vsub.f32 %v6937, %v8534
    %8536 = vst.msk [vmem:[#allocation7] sm:$0x1] %vm140, %v8535
    %v8537 = vld [vmem:[#allocation2] sm:$0xff]
    %v8538 = vld [vmem:[#allocation3] sm:$0x1]
    %v8539 = vld [vmem:[#allocation4] sm:$0xff]
    %v8540 = vld [vmem:[#allocation4 + $0x8] sm:$0xff]
    %v8541 = vld [vmem:[#allocation4 + $0x10] sm:$0xff]
    %v8542 = vld [vmem:[#allocation4 + $0x18] sm:$0xff]
    %v8543 = vld [vmem:[#allocation4 + $0x20] sm:$0xff]
    %v8544 = vld [vmem:[#allocation4 + $0x28] sm:$0xff]
    %v8545 = vld [vmem:[#allocation4 + $0x30] sm:$0xff]
    %v8546 = vld [vmem:[#allocation4 + $0x38] sm:$0xff]
    %v8547 = vld [vmem:[#allocation4 + $0x40] sm:$0xff]
    %v8548 = vld [vmem:[#allocation4 + $0x48] sm:$0xff]
    %v8549 = vld [vmem:[#allocation4 + $0x50] sm:$0xff]
    %v8550 = vld [vmem:[#allocation4 + $0x58] sm:$0xff]
    %v8551 = vld [vmem:[#allocation4 + $0x60] sm:$0xff]
    %v8552 = vld [vmem:[#allocation4 + $0x68] sm:$0xff]
    %v8553 = vld [vmem:[#allocation4 + $0x70] sm:$0xff]
    %v8554 = vld [vmem:[#allocation4 + $0x78] sm:$0xff]
    %v8555 = vld [vmem:[#allocation4 + $0x80] sm:$0xff]
    %v8556 = vld [vmem:[#allocation4 + $0x88] sm:$0xff]
    %v8557 = vld [vmem:[#allocation4 + $0x90] sm:$0xff]
    %v8558 = vld [vmem:[#allocation4 + $0x98] sm:$0xff]
    %v8559 = vld [vmem:[#allocation4 + $0xa0] sm:$0xff]
    %v8560 = vld [vmem:[#allocation4 + $0xa8] sm:$0xff]
    %v8561 = vld [vmem:[#allocation4 + $0xb0] sm:$0xff]
    %v8562 = vld [vmem:[#allocation4 + $0xb8] sm:$0xff]
    %v8563 = vld [vmem:[#allocation4 + $0xc0] sm:$0xff]
    %v8564 = vld [vmem:[#allocation4 + $0xc8] sm:$0xff]
    %v8565 = vld [vmem:[#allocation4 + $0xd0] sm:$0xff]
    %v8566 = vld [vmem:[#allocation4 + $0xd8] sm:$0xff]
    %v8567 = vld [vmem:[#allocation4 + $0xe0] sm:$0xff]
    %v8568 = vld [vmem:[#allocation4 + $0xe8] sm:$0xff]
    %v8569 = vld [vmem:[#allocation4 + $0xf0] sm:$0xff]
    %v8570 = vld [vmem:[#allocation4 + $0xf8] sm:$0xff]
    %v8571 = vld [vmem:[#allocation5] sm:$0x1]
    %v8572 = vld [vmem:[#allocation6] sm:$0xff]
    %v8573 = vld [vmem:[#allocation6 + $0x8] sm:$0xff]
    %v8574 = vld [vmem:[#allocation6 + $0x10] sm:$0xff]
    %v8575 = vld [vmem:[#allocation6 + $0x18] sm:$0xff]
    %v8576 = vld [vmem:[#allocation6 + $0x20] sm:$0xff]
    %v8577 = vld [vmem:[#allocation6 + $0x28] sm:$0xff]
    %v8578 = vld [vmem:[#allocation6 + $0x30] sm:$0xff]
    %v8579 = vld [vmem:[#allocation6 + $0x38] sm:$0xff]
    %v8580 = vld [vmem:[#allocation7] sm:$0x1]
    %v8582 = vlaneseq
    %v8583 = vshrl.u32 %v8582, 7
    %v8584 = vsub.s32 0, %v8583
    %v8585 = vrot.slane %v8538, %v8584
    %v8588 = vsel %vm220, %v156, 0
    %v8591 = vsel %vm220, %v157, 0
    %v8594 = vsel %vm220, %v158, 0
    %v8597 = vsel %vm220, %v159, 0
    %v8600 = vsel %vm220, %v160, 0
    %v8603 = vsel %vm220, %v161, 0
    %v8606 = vsel %vm220, %v162, 0
    %v8609 = vsel %vm220, %v163, 0
    %8611 = vmatprep.subr.mxu0 0.0
    %8612 = vmatpush1.msra.mxu0 0.0
    %8613 = vmatprep.subr.mxu0 0.0
    %8614 = vmatpush1.msra.mxu0 0.0
    %8615 = vmatprep.subr.mxu0 0.0
    %8616 = vmatpush1.msra.mxu0 0.0
    %8617 = vmatprep.subr.mxu0 0.0
    %8618 = vmatpush1.msra.mxu0 0.0
    %8619 = vmatprep.subr.mxu0 0.0
    %8620 = vmatpush1.msra.mxu0 0.0
    %8621 = vmatprep.subr.mxu0 0.0
    %8622 = vmatpush1.msra.mxu0 0.0
    %8623 = vmatprep.subr.mxu0 0.0
    %8624 = vmatpush1.msra.mxu0 0.0
    %8625 = vmatprep.subr.mxu0 0.0
    %8626 = vmatpush1.msra.mxu0 0.0
    %8627 = vmatprep.subr.mxu0 0.0
    %8628 = vmatpush1.msra.mxu0 0.0
    %8629 = vmatprep.subr.mxu0 0.0
    %8630 = vmatpush1.msra.mxu0 0.0
    %8631 = vmatprep.subr.mxu0 0.0
    %8632 = vmatpush1.msra.mxu0 0.0
    %8633 = vmatprep.subr.mxu0 0.0
    %8634 = vmatpush1.msra.mxu0 0.0
    %8635 = vmatprep.subr.mxu0 0.0
    %8636 = vmatpush1.msra.mxu0 0.0
    %8637 = vmatprep.subr.mxu0 0.0
    %8638 = vmatpush1.msra.mxu0 0.0
    %8639 = vmatprep.subr.mxu0 0.0
    %8640 = vmatpush1.msra.mxu0 0.0
    %8641 = vmatprep.subr.mxu0 0.0
    %8642 = vmatpush1.msra.mxu0 %v8537
    %8643 = vmatprep.subr.mxu0 0.0
    %8644 = vmatpush2.msra.mxu0 0.0
    %8645 = vmatprep.subr.mxu0 0.0
    %8646 = vmatpush2.msra.mxu0 0.0
    %8647 = vmatprep.subr.mxu0 0.0
    %8648 = vmatpush2.msra.mxu0 0.0
    %8649 = vmatprep.subr.mxu0 0.0
    %8650 = vmatpush2.msra.mxu0 0.0
    %8651 = vmatprep.subr.mxu0 0.0
    %8652 = vmatpush2.msra.mxu0 0.0
    %8653 = vmatprep.subr.mxu0 0.0
    %8654 = vmatpush2.msra.mxu0 0.0
    %8655 = vmatprep.subr.mxu0 0.0
    %8656 = vmatpush2.msra.mxu0 0.0
    %8657 = vmatprep.subr.mxu0 0.0
    %8658 = vmatpush2.msra.mxu0 0.0
    %8659 = vmatprep.subr.mxu0 0.0
    %8660 = vmatpush2.msra.mxu0 0.0
    %8661 = vmatprep.subr.mxu0 0.0
    %8662 = vmatpush2.msra.mxu0 0.0
    %8663 = vmatprep.subr.mxu0 0.0
    %8664 = vmatpush2.msra.mxu0 0.0
    %8665 = vmatprep.subr.mxu0 0.0
    %8666 = vmatpush2.msra.mxu0 0.0
    %8667 = vmatprep.subr.mxu0 0.0
    %8668 = vmatpush2.msra.mxu0 0.0
    %8669 = vmatprep.subr.mxu0 0.0
    %8670 = vmatpush2.msra.mxu0 0.0
    %8671 = vmatprep.subr.mxu0 0.0
    %8672 = vmatpush2.msra.mxu0 0.0
    %8673 = vmatprep.subr.mxu0 0.0
    %8674 = vmatpush2.msra.mxu0 0.0
    %8675 = vmatprep.mubr.f32.mxu0 0.0
    %8676 = vmatmul.mubr.f32.gmra.mxu0 %v8588
    %v8677 = vpop.f32.mrf.mxu0
    %v8678 = vadd.f32 %v8585, %v8677
    %v8679 = vpop.f32.mrf.mxu0
    %8680 = vmatprep.mubr.f32.mxu0 0.0
    %8681 = vmatmul.mubr.f32.gmra.mxu0 %v8591
    %v8682 = vpop.f32.mrf.mxu0
    %v8683 = vadd.f32 %v8585, %v8682
    %v8684 = vpop.f32.mrf.mxu0
    %8685 = vmatprep.mubr.f32.mxu0 0.0
    %8686 = vmatmul.mubr.f32.gmra.mxu0 %v8594
    %v8687 = vpop.f32.mrf.mxu0
    %v8688 = vadd.f32 %v8585, %v8687
    %v8689 = vpop.f32.mrf.mxu0
    %8690 = vmatprep.mubr.f32.mxu0 0.0
    %8691 = vmatmul.mubr.f32.gmra.mxu0 %v8597
    %v8692 = vpop.f32.mrf.mxu0
    %v8693 = vadd.f32 %v8585, %v8692
    %v8694 = vpop.f32.mrf.mxu0
    %8695 = vmatprep.mubr.f32.mxu0 0.0
    %8696 = vmatmul.mubr.f32.gmra.mxu0 %v8600
    %v8697 = vpop.f32.mrf.mxu0
    %v8698 = vadd.f32 %v8585, %v8697
    %v8699 = vpop.f32.mrf.mxu0
    %8700 = vmatprep.mubr.f32.mxu0 0.0
    %8701 = vmatmul.mubr.f32.gmra.mxu0 %v8603
    %v8702 = vpop.f32.mrf.mxu0
    %v8703 = vadd.f32 %v8585, %v8702
    %v8704 = vpop.f32.mrf.mxu0
    %8705 = vmatprep.mubr.f32.mxu0 0.0
    %8706 = vmatmul.mubr.f32.gmra.mxu0 %v8606
    %v8707 = vpop.f32.mrf.mxu0
    %v8708 = vadd.f32 %v8585, %v8707
    %v8709 = vpop.f32.mrf.mxu0
    %8710 = vmatprep.mubr.f32.mxu0 0.0
    %8711 = vmatmul.mubr.f32.gmra.mxu0 %v8609
    %v8712 = vpop.f32.mrf.mxu0
    %v8713 = vadd.f32 %v8585, %v8712
    %v8714 = vpop.f32.mrf.mxu0
    %8715 = vdwg.mxu0
    %v8716 = vmax.f32 %v8678, 0.0
    %v8717 = vmax.f32 %v8683, 0.0
    %v8718 = vmax.f32 %v8688, 0.0
    %v8719 = vmax.f32 %v8693, 0.0
    %v8720 = vmax.f32 %v8698, 0.0
    %v8721 = vmax.f32 %v8703, 0.0
    %v8722 = vmax.f32 %v8708, 0.0
    %v8723 = vmax.f32 %v8713, 0.0
    %v8725 = vsel %vm358, %v164, 0
    %8727 = vmatprep.subr.mxu0 0.0
    %8728 = vmatpush1.msra.mxu0 0.0
    %8729 = vmatprep.subr.mxu0 0.0
    %8730 = vmatpush1.msra.mxu0 0.0
    %8731 = vmatprep.subr.mxu0 0.0
    %8732 = vmatpush1.msra.mxu0 0.0
    %8733 = vmatprep.subr.mxu0 0.0
    %8734 = vmatpush1.msra.mxu0 0.0
    %8735 = vmatprep.subr.mxu0 0.0
    %8736 = vmatpush1.msra.mxu0 0.0
    %8737 = vmatprep.subr.mxu0 0.0
    %8738 = vmatpush1.msra.mxu0 0.0
    %8739 = vmatprep.subr.mxu0 0.0
    %8740 = vmatpush1.msra.mxu0 0.0
    %8741 = vmatprep.subr.mxu0 0.0
    %8742 = vmatpush1.msra.mxu0 0.0
    %8743 = vmatprep.subr.mxu0 0.0
    %8744 = vmatpush1.msra.mxu0 %v8723
    %8745 = vmatprep.subr.mxu0 0.0
    %8746 = vmatpush1.msra.mxu0 %v8722
    %8747 = vmatprep.subr.mxu0 0.0
    %8748 = vmatpush1.msra.mxu0 %v8721
    %8749 = vmatprep.subr.mxu0 0.0
    %8750 = vmatpush1.msra.mxu0 %v8720
    %8751 = vmatprep.subr.mxu0 0.0
    %8752 = vmatpush1.msra.mxu0 %v8719
    %8753 = vmatprep.subr.mxu0 0.0
    %8754 = vmatpush1.msra.mxu0 %v8718
    %8755 = vmatprep.subr.mxu0 0.0
    %8756 = vmatpush1.msra.mxu0 %v8717
    %8757 = vmatprep.subr.mxu0 0.0
    %8758 = vmatpush1.msra.mxu0 %v8716
    %8759 = vmatprep.subr.mxu0 0.0
    %8760 = vmatpush2.msra.mxu0 0.0
    %8761 = vmatprep.subr.mxu0 0.0
    %8762 = vmatpush2.msra.mxu0 0.0
    %8763 = vmatprep.subr.mxu0 0.0
    %8764 = vmatpush2.msra.mxu0 0.0
    %8765 = vmatprep.subr.mxu0 0.0
    %8766 = vmatpush2.msra.mxu0 0.0
    %8767 = vmatprep.subr.mxu0 0.0
    %8768 = vmatpush2.msra.mxu0 0.0
    %8769 = vmatprep.subr.mxu0 0.0
    %8770 = vmatpush2.msra.mxu0 0.0
    %8771 = vmatprep.subr.mxu0 0.0
    %8772 = vmatpush2.msra.mxu0 0.0
    %8773 = vmatprep.subr.mxu0 0.0
    %8774 = vmatpush2.msra.mxu0 0.0
    %8775 = vmatprep.subr.mxu0 0.0
    %8776 = vmatpush2.msra.mxu0 0.0
    %8777 = vmatprep.subr.mxu0 0.0
    %8778 = vmatpush2.msra.mxu0 0.0
    %8779 = vmatprep.subr.mxu0 0.0
    %8780 = vmatpush2.msra.mxu0 0.0
    %8781 = vmatprep.subr.mxu0 0.0
    %8782 = vmatpush2.msra.mxu0 0.0
    %8783 = vmatprep.subr.mxu0 0.0
    %8784 = vmatpush2.msra.mxu0 0.0
    %8785 = vmatprep.subr.mxu0 0.0
    %8786 = vmatpush2.msra.mxu0 0.0
    %8787 = vmatprep.subr.mxu0 0.0
    %8788 = vmatpush2.msra.mxu0 0.0
    %8789 = vmatprep.subr.mxu0 0.0
    %8790 = vmatpush2.msra.mxu0 0.0
    %8791 = vmatprep.mubr.f32.mxu0 0.0
    %8792 = vmatmul.mubr.f32.gmra.mxu0 %v8725
    %v8793 = vpop.f32.mrf.mxu0
    %v8794 = vadd.f32 0.0, %v8793
    %v8795 = vpop.f32.mrf.mxu0
    %8796 = vdwg.mxu0
    %v8798 = vlaneseq
    %v8799 = vshrl.u32 %v8798, 7
    %v8800 = vsub.s32 0, %v8799
    %v8801 = vrot.slane %v8571, %v8800
    %v8807 = vcombine.high %v165, %v165
    %v8808 = vcombine.high %v166, %v166
    %v8809 = vcombine.high %v167, %v167
    %v8810 = vcombine.high %v168, %v168
    %8815 = vmatprep.subr.mxu0 0.0
    %8816 = vmatpush1.xpose.msra.mxu0 0.0
    %8817 = vmatprep.subr.mxu0 0.0
    %8818 = vmatpush1.xpose.msra.mxu0 0.0
    %8819 = vmatprep.subr.mxu0 0.0
    %8820 = vmatpush1.xpose.msra.mxu0 0.0
    %8821 = vmatprep.subr.mxu0 0.0
    %8822 = vmatpush1.xpose.msra.mxu0 0.0
    %8823 = vmatprep.subr.mxu0 0.0
    %8824 = vmatpush1.xpose.msra.mxu0 0.0
    %8825 = vmatprep.subr.mxu0 0.0
    %8826 = vmatpush1.xpose.msra.mxu0 0.0
    %8827 = vmatprep.subr.mxu0 0.0
    %8828 = vmatpush1.xpose.msra.mxu0 0.0
    %8829 = vmatprep.subr.mxu0 0.0
    %8830 = vmatpush1.xpose.msra.mxu0 0.0
    %8831 = vmatprep.subr.mxu0 0.0
    %8832 = vmatpush1.xpose.msra.mxu0 0.0
    %8833 = vmatprep.subr.mxu0 0.0
    %8834 = vmatpush1.xpose.msra.mxu0 0.0
    %8835 = vmatprep.subr.mxu0 0.0
    %8836 = vmatpush1.xpose.msra.mxu0 0.0
    %8837 = vmatprep.subr.mxu0 0.0
    %8838 = vmatpush1.xpose.msra.mxu0 0.0
    %8839 = vmatprep.subr.mxu0 %v8564
    %8840 = vmatpush1.xpose.msra.mxu0 %v8563
    %8841 = vmatprep.subr.mxu0 %v8556
    %8842 = vmatpush1.xpose.msra.mxu0 %v8555
    %8843 = vmatprep.subr.mxu0 %v8548
    %8844 = vmatpush1.xpose.msra.mxu0 %v8547
    %8845 = vmatprep.subr.mxu0 %v8540
    %8846 = vmatpush1.xpose.msra.mxu0 %v8539
    %8847 = vmatprep.subr.mxu0 0.0
    %8848 = vmatpush2.xpose.msra.mxu0 0.0
    %8849 = vmatprep.subr.mxu0 0.0
    %8850 = vmatpush2.xpose.msra.mxu0 0.0
    %8851 = vmatprep.subr.mxu0 0.0
    %8852 = vmatpush2.xpose.msra.mxu0 0.0
    %8853 = vmatprep.subr.mxu0 0.0
    %8854 = vmatpush2.xpose.msra.mxu0 0.0
    %8855 = vmatprep.subr.mxu0 0.0
    %8856 = vmatpush2.xpose.msra.mxu0 0.0
    %8857 = vmatprep.subr.mxu0 0.0
    %8858 = vmatpush2.xpose.msra.mxu0 0.0
    %8859 = vmatprep.subr.mxu0 0.0
    %8860 = vmatpush2.xpose.msra.mxu0 0.0
    %8861 = vmatprep.subr.mxu0 0.0
    %8862 = vmatpush2.xpose.msra.mxu0 0.0
    %8863 = vmatprep.subr.mxu0 0.0
    %8864 = vmatpush2.xpose.msra.mxu0 0.0
    %8865 = vmatprep.subr.mxu0 0.0
    %8866 = vmatpush2.xpose.msra.mxu0 0.0
    %8867 = vmatprep.subr.mxu0 0.0
    %8868 = vmatpush2.xpose.msra.mxu0 0.0
    %8869 = vmatprep.subr.mxu0 0.0
    %8870 = vmatpush2.xpose.msra.mxu0 0.0
    %8871 = vmatprep.subr.mxu0 0.0
    %8872 = vmatpush2.xpose.msra.mxu0 0.0
    %8873 = vmatprep.subr.mxu0 0.0
    %8874 = vmatpush2.xpose.msra.mxu0 0.0
    %8875 = vmatprep.subr.mxu0 0.0
    %8876 = vmatpush2.xpose.msra.mxu0 0.0
    %8877 = vmatprep.subr.mxu0 0.0
    %8878 = vmatpush2.xpose.msra.mxu0 0.0
    %8879 = vmatprep.mubr.f32.mxu0 %v8807
    %8880 = vmatmul.mubr.f32.gmra.mxu0 %v165
    %v8881 = vpop.f32.mrf.mxu0
    %v8882 = vadd.f32 %v8801, %v8881
    %v8883 = vpop.f32.mrf.mxu0
    %8884 = vdwg.mxu0
    %8885 = vmatprep.subr.mxu0 0.0
    %8886 = vmatpush1.xpose.msra.mxu0 0.0
    %8887 = vmatprep.subr.mxu0 0.0
    %8888 = vmatpush1.xpose.msra.mxu0 0.0
    %8889 = vmatprep.subr.mxu0 0.0
    %8890 = vmatpush1.xpose.msra.mxu0 0.0
    %8891 = vmatprep.subr.mxu0 0.0
    %8892 = vmatpush1.xpose.msra.mxu0 0.0
    %8893 = vmatprep.subr.mxu0 0.0
    %8894 = vmatpush1.xpose.msra.mxu0 0.0
    %8895 = vmatprep.subr.mxu0 0.0
    %8896 = vmatpush1.xpose.msra.mxu0 0.0
    %8897 = vmatprep.subr.mxu0 0.0
    %8898 = vmatpush1.xpose.msra.mxu0 0.0
    %8899 = vmatprep.subr.mxu0 0.0
    %8900 = vmatpush1.xpose.msra.mxu0 0.0
    %8901 = vmatprep.subr.mxu0 0.0
    %8902 = vmatpush1.xpose.msra.mxu0 0.0
    %8903 = vmatprep.subr.mxu0 0.0
    %8904 = vmatpush1.xpose.msra.mxu0 0.0
    %8905 = vmatprep.subr.mxu0 0.0
    %8906 = vmatpush1.xpose.msra.mxu0 0.0
    %8907 = vmatprep.subr.mxu0 0.0
    %8908 = vmatpush1.xpose.msra.mxu0 0.0
    %8909 = vmatprep.subr.mxu0 %v8566
    %8910 = vmatpush1.xpose.msra.mxu0 %v8565
    %8911 = vmatprep.subr.mxu0 %v8558
    %8912 = vmatpush1.xpose.msra.mxu0 %v8557
    %8913 = vmatprep.subr.mxu0 %v8550
    %8914 = vmatpush1.xpose.msra.mxu0 %v8549
    %8915 = vmatprep.subr.mxu0 %v8542
    %8916 = vmatpush1.xpose.msra.mxu0 %v8541
    %8917 = vmatprep.subr.mxu0 0.0
    %8918 = vmatpush2.xpose.msra.mxu0 0.0
    %8919 = vmatprep.subr.mxu0 0.0
    %8920 = vmatpush2.xpose.msra.mxu0 0.0
    %8921 = vmatprep.subr.mxu0 0.0
    %8922 = vmatpush2.xpose.msra.mxu0 0.0
    %8923 = vmatprep.subr.mxu0 0.0
    %8924 = vmatpush2.xpose.msra.mxu0 0.0
    %8925 = vmatprep.subr.mxu0 0.0
    %8926 = vmatpush2.xpose.msra.mxu0 0.0
    %8927 = vmatprep.subr.mxu0 0.0
    %8928 = vmatpush2.xpose.msra.mxu0 0.0
    %8929 = vmatprep.subr.mxu0 0.0
    %8930 = vmatpush2.xpose.msra.mxu0 0.0
    %8931 = vmatprep.subr.mxu0 0.0
    %8932 = vmatpush2.xpose.msra.mxu0 0.0
    %8933 = vmatprep.subr.mxu0 0.0
    %8934 = vmatpush2.xpose.msra.mxu0 0.0
    %8935 = vmatprep.subr.mxu0 0.0
    %8936 = vmatpush2.xpose.msra.mxu0 0.0
    %8937 = vmatprep.subr.mxu0 0.0
    %8938 = vmatpush2.xpose.msra.mxu0 0.0
    %8939 = vmatprep.subr.mxu0 0.0
    %8940 = vmatpush2.xpose.msra.mxu0 0.0
    %8941 = vmatprep.subr.mxu0 0.0
    %8942 = vmatpush2.xpose.msra.mxu0 0.0
    %8943 = vmatprep.subr.mxu0 0.0
    %8944 = vmatpush2.xpose.msra.mxu0 0.0
    %8945 = vmatprep.subr.mxu0 0.0
    %8946 = vmatpush2.xpose.msra.mxu0 0.0
    %8947 = vmatprep.subr.mxu0 0.0
    %8948 = vmatpush2.xpose.msra.mxu0 0.0
    %8949 = vmatprep.mubr.f32.mxu0 %v8808
    %8950 = vmatmul.mubr.f32.gmra.mxu0 %v166
    %v8951 = vpop.f32.mrf.mxu0
    %v8952 = vadd.f32 %v8882, %v8951
    %v8953 = vpop.f32.mrf.mxu0
    %8954 = vdwg.mxu0
    %8955 = vmatprep.subr.mxu0 0.0
    %8956 = vmatpush1.xpose.msra.mxu0 0.0
    %8957 = vmatprep.subr.mxu0 0.0
    %8958 = vmatpush1.xpose.msra.mxu0 0.0
    %8959 = vmatprep.subr.mxu0 0.0
    %8960 = vmatpush1.xpose.msra.mxu0 0.0
    %8961 = vmatprep.subr.mxu0 0.0
    %8962 = vmatpush1.xpose.msra.mxu0 0.0
    %8963 = vmatprep.subr.mxu0 0.0
    %8964 = vmatpush1.xpose.msra.mxu0 0.0
    %8965 = vmatprep.subr.mxu0 0.0
    %8966 = vmatpush1.xpose.msra.mxu0 0.0
    %8967 = vmatprep.subr.mxu0 0.0
    %8968 = vmatpush1.xpose.msra.mxu0 0.0
    %8969 = vmatprep.subr.mxu0 0.0
    %8970 = vmatpush1.xpose.msra.mxu0 0.0
    %8971 = vmatprep.subr.mxu0 0.0
    %8972 = vmatpush1.xpose.msra.mxu0 0.0
    %8973 = vmatprep.subr.mxu0 0.0
    %8974 = vmatpush1.xpose.msra.mxu0 0.0
    %8975 = vmatprep.subr.mxu0 0.0
    %8976 = vmatpush1.xpose.msra.mxu0 0.0
    %8977 = vmatprep.subr.mxu0 0.0
    %8978 = vmatpush1.xpose.msra.mxu0 0.0
    %8979 = vmatprep.subr.mxu0 %v8568
    %8980 = vmatpush1.xpose.msra.mxu0 %v8567
    %8981 = vmatprep.subr.mxu0 %v8560
    %8982 = vmatpush1.xpose.msra.mxu0 %v8559
    %8983 = vmatprep.subr.mxu0 %v8552
    %8984 = vmatpush1.xpose.msra.mxu0 %v8551
    %8985 = vmatprep.subr.mxu0 %v8544
    %8986 = vmatpush1.xpose.msra.mxu0 %v8543
    %8987 = vmatprep.subr.mxu0 0.0
    %8988 = vmatpush2.xpose.msra.mxu0 0.0
    %8989 = vmatprep.subr.mxu0 0.0
    %8990 = vmatpush2.xpose.msra.mxu0 0.0
    %8991 = vmatprep.subr.mxu0 0.0
    %8992 = vmatpush2.xpose.msra.mxu0 0.0
    %8993 = vmatprep.subr.mxu0 0.0
    %8994 = vmatpush2.xpose.msra.mxu0 0.0
    %8995 = vmatprep.subr.mxu0 0.0
    %8996 = vmatpush2.xpose.msra.mxu0 0.0
    %8997 = vmatprep.subr.mxu0 0.0
    %8998 = vmatpush2.xpose.msra.mxu0 0.0
    %8999 = vmatprep.subr.mxu0 0.0
    %9000 = vmatpush2.xpose.msra.mxu0 0.0
    %9001 = vmatprep.subr.mxu0 0.0
    %9002 = vmatpush2.xpose.msra.mxu0 0.0
    %9003 = vmatprep.subr.mxu0 0.0
    %9004 = vmatpush2.xpose.msra.mxu0 0.0
    %9005 = vmatprep.subr.mxu0 0.0
    %9006 = vmatpush2.xpose.msra.mxu0 0.0
    %9007 = vmatprep.subr.mxu0 0.0
    %9008 = vmatpush2.xpose.msra.mxu0 0.0
    %9009 = vmatprep.subr.mxu0 0.0
    %9010 = vmatpush2.xpose.msra.mxu0 0.0
    %9011 = vmatprep.subr.mxu0 0.0
    %9012 = vmatpush2.xpose.msra.mxu0 0.0
    %9013 = vmatprep.subr.mxu0 0.0
    %9014 = vmatpush2.xpose.msra.mxu0 0.0
    %9015 = vmatprep.subr.mxu0 0.0
    %9016 = vmatpush2.xpose.msra.mxu0 0.0
    %9017 = vmatprep.subr.mxu0 0.0
    %9018 = vmatpush2.xpose.msra.mxu0 0.0
    %9019 = vmatprep.mubr.f32.mxu0 %v8809
    %9020 = vmatmul.mubr.f32.gmra.mxu0 %v167
    %v9021 = vpop.f32.mrf.mxu0
    %v9022 = vadd.f32 %v8952, %v9021
    %v9023 = vpop.f32.mrf.mxu0
    %9024 = vdwg.mxu0
    %9025 = vmatprep.subr.mxu0 0.0
    %9026 = vmatpush1.xpose.msra.mxu0 0.0
    %9027 = vmatprep.subr.mxu0 0.0
    %9028 = vmatpush1.xpose.msra.mxu0 0.0
    %9029 = vmatprep.subr.mxu0 0.0
    %9030 = vmatpush1.xpose.msra.mxu0 0.0
    %9031 = vmatprep.subr.mxu0 0.0
    %9032 = vmatpush1.xpose.msra.mxu0 0.0
    %9033 = vmatprep.subr.mxu0 0.0
    %9034 = vmatpush1.xpose.msra.mxu0 0.0
    %9035 = vmatprep.subr.mxu0 0.0
    %9036 = vmatpush1.xpose.msra.mxu0 0.0
    %9037 = vmatprep.subr.mxu0 0.0
    %9038 = vmatpush1.xpose.msra.mxu0 0.0
    %9039 = vmatprep.subr.mxu0 0.0
    %9040 = vmatpush1.xpose.msra.mxu0 0.0
    %9041 = vmatprep.subr.mxu0 0.0
    %9042 = vmatpush1.xpose.msra.mxu0 0.0
    %9043 = vmatprep.subr.mxu0 0.0
    %9044 = vmatpush1.xpose.msra.mxu0 0.0
    %9045 = vmatprep.subr.mxu0 0.0
    %9046 = vmatpush1.xpose.msra.mxu0 0.0
    %9047 = vmatprep.subr.mxu0 0.0
    %9048 = vmatpush1.xpose.msra.mxu0 0.0
    %9049 = vmatprep.subr.mxu0 %v8570
    %9050 = vmatpush1.xpose.msra.mxu0 %v8569
    %9051 = vmatprep.subr.mxu0 %v8562
    %9052 = vmatpush1.xpose.msra.mxu0 %v8561
    %9053 = vmatprep.subr.mxu0 %v8554
    %9054 = vmatpush1.xpose.msra.mxu0 %v8553
    %9055 = vmatprep.subr.mxu0 %v8546
    %9056 = vmatpush1.xpose.msra.mxu0 %v8545
    %9057 = vmatprep.subr.mxu0 0.0
    %9058 = vmatpush2.xpose.msra.mxu0 0.0
    %9059 = vmatprep.subr.mxu0 0.0
    %9060 = vmatpush2.xpose.msra.mxu0 0.0
    %9061 = vmatprep.subr.mxu0 0.0
    %9062 = vmatpush2.xpose.msra.mxu0 0.0
    %9063 = vmatprep.subr.mxu0 0.0
    %9064 = vmatpush2.xpose.msra.mxu0 0.0
    %9065 = vmatprep.subr.mxu0 0.0
    %9066 = vmatpush2.xpose.msra.mxu0 0.0
    %9067 = vmatprep.subr.mxu0 0.0
    %9068 = vmatpush2.xpose.msra.mxu0 0.0
    %9069 = vmatprep.subr.mxu0 0.0
    %9070 = vmatpush2.xpose.msra.mxu0 0.0
    %9071 = vmatprep.subr.mxu0 0.0
    %9072 = vmatpush2.xpose.msra.mxu0 0.0
    %9073 = vmatprep.subr.mxu0 0.0
    %9074 = vmatpush2.xpose.msra.mxu0 0.0
    %9075 = vmatprep.subr.mxu0 0.0
    %9076 = vmatpush2.xpose.msra.mxu0 0.0
    %9077 = vmatprep.subr.mxu0 0.0
    %9078 = vmatpush2.xpose.msra.mxu0 0.0
    %9079 = vmatprep.subr.mxu0 0.0
    %9080 = vmatpush2.xpose.msra.mxu0 0.0
    %9081 = vmatprep.subr.mxu0 0.0
    %9082 = vmatpush2.xpose.msra.mxu0 0.0
    %9083 = vmatprep.subr.mxu0 0.0
    %9084 = vmatpush2.xpose.msra.mxu0 0.0
    %9085 = vmatprep.subr.mxu0 0.0
    %9086 = vmatpush2.xpose.msra.mxu0 0.0
    %9087 = vmatprep.subr.mxu0 0.0
    %9088 = vmatpush2.xpose.msra.mxu0 0.0
    %9089 = vmatprep.mubr.f32.mxu0 %v8810
    %9090 = vmatmul.mubr.f32.gmra.mxu0 %v168
    %v9091 = vpop.f32.mrf.mxu0
    %v9092 = vadd.f32 %v9022, %v9091
    %v9093 = vpop.f32.mrf.mxu0
    %9094 = vdwg.mxu0
    %v9095 = vmax.f32 %v9092, 0.0
    %9097 = vrot.lane.b32.xlu0 %v9095, 32
    %v9098 = vpop.permute.xlu0 %9097
    %v9100 = vsel %vm51, %v8794, %v9098
    %v9102 = vlaneseq
    %v9103 = vshrl.u32 %v9102, 7
    %v9104 = vsub.s32 0, %v9103
    %v9105 = vrot.slane %v8580, %v9104
    %v9108 = vsel %vm358, %v9100, 0
    %9110 = vmatprep.subr.mxu0 0.0
    %9111 = vmatpush1.msra.mxu0 0.0
    %9112 = vmatprep.subr.mxu0 0.0
    %9113 = vmatpush1.msra.mxu0 0.0
    %9114 = vmatprep.subr.mxu0 0.0
    %9115 = vmatpush1.msra.mxu0 0.0
    %9116 = vmatprep.subr.mxu0 0.0
    %9117 = vmatpush1.msra.mxu0 0.0
    %9118 = vmatprep.subr.mxu0 0.0
    %9119 = vmatpush1.msra.mxu0 0.0
    %9120 = vmatprep.subr.mxu0 0.0
    %9121 = vmatpush1.msra.mxu0 0.0
    %9122 = vmatprep.subr.mxu0 0.0
    %9123 = vmatpush1.msra.mxu0 0.0
    %9124 = vmatprep.subr.mxu0 0.0
    %9125 = vmatpush1.msra.mxu0 0.0
    %9126 = vmatprep.subr.mxu0 0.0
    %9127 = vmatpush1.msra.mxu0 %v8579
    %9128 = vmatprep.subr.mxu0 0.0
    %9129 = vmatpush1.msra.mxu0 %v8578
    %9130 = vmatprep.subr.mxu0 0.0
    %9131 = vmatpush1.msra.mxu0 %v8577
    %9132 = vmatprep.subr.mxu0 0.0
    %9133 = vmatpush1.msra.mxu0 %v8576
    %9134 = vmatprep.subr.mxu0 0.0
    %9135 = vmatpush1.msra.mxu0 %v8575
    %9136 = vmatprep.subr.mxu0 0.0
    %9137 = vmatpush1.msra.mxu0 %v8574
    %9138 = vmatprep.subr.mxu0 0.0
    %9139 = vmatpush1.msra.mxu0 %v8573
    %9140 = vmatprep.subr.mxu0 0.0
    %9141 = vmatpush1.msra.mxu0 %v8572
    %9142 = vmatprep.subr.mxu0 0.0
    %9143 = vmatpush2.msra.mxu0 0.0
    %9144 = vmatprep.subr.mxu0 0.0
    %9145 = vmatpush2.msra.mxu0 0.0
    %9146 = vmatprep.subr.mxu0 0.0
    %9147 = vmatpush2.msra.mxu0 0.0
    %9148 = vmatprep.subr.mxu0 0.0
    %9149 = vmatpush2.msra.mxu0 0.0
    %9150 = vmatprep.subr.mxu0 0.0
    %9151 = vmatpush2.msra.mxu0 0.0
    %9152 = vmatprep.subr.mxu0 0.0
    %9153 = vmatpush2.msra.mxu0 0.0
    %9154 = vmatprep.subr.mxu0 0.0
    %9155 = vmatpush2.msra.mxu0 0.0
    %9156 = vmatprep.subr.mxu0 0.0
    %9157 = vmatpush2.msra.mxu0 0.0
    %9158 = vmatprep.subr.mxu0 0.0
    %9159 = vmatpush2.msra.mxu0 0.0
    %9160 = vmatprep.subr.mxu0 0.0
    %9161 = vmatpush2.msra.mxu0 0.0
    %9162 = vmatprep.subr.mxu0 0.0
    %9163 = vmatpush2.msra.mxu0 0.0
    %9164 = vmatprep.subr.mxu0 0.0
    %9165 = vmatpush2.msra.mxu0 0.0
    %9166 = vmatprep.subr.mxu0 0.0
    %9167 = vmatpush2.msra.mxu0 0.0
    %9168 = vmatprep.subr.mxu0 0.0
    %9169 = vmatpush2.msra.mxu0 0.0
    %9170 = vmatprep.subr.mxu0 0.0
    %9171 = vmatpush2.msra.mxu0 0.0
    %9172 = vmatprep.subr.mxu0 0.0
    %9173 = vmatpush2.msra.mxu0 0.0
    %9174 = vmatprep.mubr.f32.mxu0 0.0
    %9175 = vmatmul.mubr.f32.gmra.mxu0 %v9108
    %v9176 = vpop.f32.mrf.mxu0
    %v9177 = vadd.f32 %v9105, %v9176
    %v9178 = vpop.f32.mrf.mxu0
    %9179 = vdwg.mxu0
    %v9180 = vsel %vm815, %v9177, -inf
    %9181 = vmax.xlane.f32.xlu0 %v9180
    %v9182 = vpop.xlane.xlu0 %9181
    %v9183 = vsub.f32 %v9177, %v9182
    %v9184 = vmul.f32 %v9183, 1.442695
    %v9185 = vpow.pop %v9184
    %v9186 = vsel %vm815, %v9185, 0.0
    %9187 = vadd.xlane.f32.xlu0 %v9186
    %v9188 = vpop.xlane.xlu0 %9187
    %v9189 = vrcp.pop %v9188
    %v9190 = vmul.f32 %v9185, %v9189
    %v9191 = vlog2.pop %v9188
    %v9192 = vmul.f32 %v9191, 0.6931472
    %v9193 = vsub.f32 %v9183, %v9192
    %v9194 = vmul.f32 %v169, %v9193
    %v9195 = vsel %vm815, %v9194, 0.0
    %9196 = vadd.xlane.f32.xlu0 %v9195
    %v9197 = vpop.xlane.xlu0 %9196
    %v9198 = vmul.f32 %v9197, -0.25
    %v9199 = vsel %vm886, %v9198, 0.0
    %v9200 = vrot.slane %v9199, 4
    %v9201 = vadd.f32 %v9199, %v9200
    %v9202 = vrot.slane %v9201, 2
    %v9203 = vadd.f32 %v9201, %v9202
    %v9204 = vrot.slane %v9203, 1
    %v9205 = vadd.f32 %v9203, %v9204
    %v9206 = vsub.f32 %v9190, %v169
    %v9207 = vmul.f32 %v9206, 0.25
    %9208 = vxpose.xlu0.b32.start [1/16] %v9100, 128
    %9209 = vxpose.xlu0.b32.cont [2/16] 0.0, 128
    %9210 = vxpose.xlu0.b32.cont [3/16] 0.0, 128
    %9211 = vxpose.xlu0.b32.cont [4/16] 0.0, 128
    %9212 = vxpose.xlu0.b32.cont [5/16] 0.0, 128
    %9213 = vxpose.xlu0.b32.cont [6/16] 0.0, 128
    %9214 = vxpose.xlu0.b32.cont [7/16] 0.0, 128
    %9215 = vxpose.xlu0.b32.cont [8/16] 0.0, 128
    %9216 = vxpose.xlu0.b32.cont [9/16] 0.0, 128
    %9217 = vxpose.xlu0.b32.cont [10/16] 0.0, 128
    %9218 = vxpose.xlu0.b32.cont [11/16] 0.0, 128
    %9219 = vxpose.xlu0.b32.cont [12/16] 0.0, 128
    %9220 = vxpose.xlu0.b32.cont [13/16] 0.0, 128
    %9221 = vxpose.xlu0.b32.cont [14/16] 0.0, 128
    %9222 = vxpose.xlu0.b32.cont [15/16] 0.0, 128
    %9223 = vxpose.xlu0.b32.end [16/16] 0.0, 128
    %v9224 = vpop.trf.xlu0
    %v9225 = vpop.trf.xlu0
    %v9226 = vpop.trf.xlu0
    %v9227 = vpop.trf.xlu0
    %v9228 = vpop.trf.xlu0
    %v9229 = vpop.trf.xlu0
    %v9230 = vpop.trf.xlu0
    %v9231 = vpop.trf.xlu0
    %v9232 = vpop.trf.xlu0
    %v9233 = vpop.trf.xlu0
    %v9234 = vpop.trf.xlu0
    %v9235 = vpop.trf.xlu0
    %v9236 = vpop.trf.xlu0
    %v9237 = vpop.trf.xlu0
    %v9238 = vpop.trf.xlu0
    %v9239 = vpop.trf.xlu0
    %v9241 = vsel %vm861, %v9224, 0
    %v9244 = vsel %vm861, %v9225, 0
    %v9247 = vsel %vm861, %v9226, 0
    %v9250 = vsel %vm861, %v9227, 0
    %v9253 = vsel %vm861, %v9228, 0
    %v9256 = vsel %vm861, %v9229, 0
    %v9259 = vsel %vm861, %v9230, 0
    %v9262 = vsel %vm861, %v9231, 0
    %v9265 = vsel %vm886, %v9207, 0
    %9267 = vmatprep.subr.mxu0 0.0
    %9268 = vmatpush1.msra.mxu0 0.0
    %9269 = vmatprep.subr.mxu0 0.0
    %9270 = vmatpush1.msra.mxu0 0.0
    %9271 = vmatprep.subr.mxu0 0.0
    %9272 = vmatpush1.msra.mxu0 0.0
    %9273 = vmatprep.subr.mxu0 0.0
    %9274 = vmatpush1.msra.mxu0 0.0
    %9275 = vmatprep.subr.mxu0 0.0
    %9276 = vmatpush1.msra.mxu0 0.0
    %9277 = vmatprep.subr.mxu0 0.0
    %9278 = vmatpush1.msra.mxu0 0.0
    %9279 = vmatprep.subr.mxu0 0.0
    %9280 = vmatpush1.msra.mxu0 0.0
    %9281 = vmatprep.subr.mxu0 0.0
    %9282 = vmatpush1.msra.mxu0 0.0
    %9283 = vmatprep.subr.mxu0 0.0
    %9284 = vmatpush1.msra.mxu0 0.0
    %9285 = vmatprep.subr.mxu0 0.0
    %9286 = vmatpush1.msra.mxu0 0.0
    %9287 = vmatprep.subr.mxu0 0.0
    %9288 = vmatpush1.msra.mxu0 0.0
    %9289 = vmatprep.subr.mxu0 0.0
    %9290 = vmatpush1.msra.mxu0 0.0
    %9291 = vmatprep.subr.mxu0 0.0
    %9292 = vmatpush1.msra.mxu0 0.0
    %9293 = vmatprep.subr.mxu0 0.0
    %9294 = vmatpush1.msra.mxu0 0.0
    %9295 = vmatprep.subr.mxu0 0.0
    %9296 = vmatpush1.msra.mxu0 0.0
    %9297 = vmatprep.subr.mxu0 0.0
    %9298 = vmatpush1.msra.mxu0 %v9265
    %9299 = vmatprep.subr.mxu0 0.0
    %9300 = vmatpush2.msra.mxu0 0.0
    %9301 = vmatprep.subr.mxu0 0.0
    %9302 = vmatpush2.msra.mxu0 0.0
    %9303 = vmatprep.subr.mxu0 0.0
    %9304 = vmatpush2.msra.mxu0 0.0
    %9305 = vmatprep.subr.mxu0 0.0
    %9306 = vmatpush2.msra.mxu0 0.0
    %9307 = vmatprep.subr.mxu0 0.0
    %9308 = vmatpush2.msra.mxu0 0.0
    %9309 = vmatprep.subr.mxu0 0.0
    %9310 = vmatpush2.msra.mxu0 0.0
    %9311 = vmatprep.subr.mxu0 0.0
    %9312 = vmatpush2.msra.mxu0 0.0
    %9313 = vmatprep.subr.mxu0 0.0
    %9314 = vmatpush2.msra.mxu0 0.0
    %9315 = vmatprep.subr.mxu0 0.0
    %9316 = vmatpush2.msra.mxu0 0.0
    %9317 = vmatprep.subr.mxu0 0.0
    %9318 = vmatpush2.msra.mxu0 0.0
    %9319 = vmatprep.subr.mxu0 0.0
    %9320 = vmatpush2.msra.mxu0 0.0
    %9321 = vmatprep.subr.mxu0 0.0
    %9322 = vmatpush2.msra.mxu0 0.0
    %9323 = vmatprep.subr.mxu0 0.0
    %9324 = vmatpush2.msra.mxu0 0.0
    %9325 = vmatprep.subr.mxu0 0.0
    %9326 = vmatpush2.msra.mxu0 0.0
    %9327 = vmatprep.subr.mxu0 0.0
    %9328 = vmatpush2.msra.mxu0 0.0
    %9329 = vmatprep.subr.mxu0 0.0
    %9330 = vmatpush2.msra.mxu0 0.0
    %9331 = vmatprep.mubr.f32.mxu0 0.0
    %9332 = vmatmul.mubr.f32.gmra.mxu0 %v9241
    %v9333 = vpop.f32.mrf.mxu0
    %v9334 = vadd.f32 0.0, %v9333
    %v9335 = vpop.f32.mrf.mxu0
    %9336 = vmatprep.mubr.f32.mxu0 0.0
    %9337 = vmatmul.mubr.f32.gmra.mxu0 %v9244
    %v9338 = vpop.f32.mrf.mxu0
    %v9339 = vadd.f32 0.0, %v9338
    %v9340 = vpop.f32.mrf.mxu0
    %9341 = vmatprep.mubr.f32.mxu0 0.0
    %9342 = vmatmul.mubr.f32.gmra.mxu0 %v9247
    %v9343 = vpop.f32.mrf.mxu0
    %v9344 = vadd.f32 0.0, %v9343
    %v9345 = vpop.f32.mrf.mxu0
    %9346 = vmatprep.mubr.f32.mxu0 0.0
    %9347 = vmatmul.mubr.f32.gmra.mxu0 %v9250
    %v9348 = vpop.f32.mrf.mxu0
    %v9349 = vadd.f32 0.0, %v9348
    %v9350 = vpop.f32.mrf.mxu0
    %9351 = vmatprep.mubr.f32.mxu0 0.0
    %9352 = vmatmul.mubr.f32.gmra.mxu0 %v9253
    %v9353 = vpop.f32.mrf.mxu0
    %v9354 = vadd.f32 0.0, %v9353
    %v9355 = vpop.f32.mrf.mxu0
    %9356 = vmatprep.mubr.f32.mxu0 0.0
    %9357 = vmatmul.mubr.f32.gmra.mxu0 %v9256
    %v9358 = vpop.f32.mrf.mxu0
    %v9359 = vadd.f32 0.0, %v9358
    %v9360 = vpop.f32.mrf.mxu0
    %9361 = vmatprep.mubr.f32.mxu0 0.0
    %9362 = vmatmul.mubr.f32.gmra.mxu0 %v9259
    %v9363 = vpop.f32.mrf.mxu0
    %v9364 = vadd.f32 0.0, %v9363
    %v9365 = vpop.f32.mrf.mxu0
    %9366 = vmatprep.mubr.f32.mxu0 0.0
    %9367 = vmatmul.mubr.f32.gmra.mxu0 %v9262
    %v9368 = vpop.f32.mrf.mxu0
    %v9369 = vadd.f32 0.0, %v9368
    %v9370 = vpop.f32.mrf.mxu0
    %9371 = vdwg.mxu0
    %v9372 = vsel %vm815, %v9207, 0.0
    %v9373 = vrot.slane %v9372, 4
    %v9374 = vadd.f32 %v9372, %v9373
    %v9375 = vrot.slane %v9374, 2
    %v9376 = vadd.f32 %v9374, %v9375
    %v9377 = vrot.slane %v9376, 1
    %v9378 = vadd.f32 %v9376, %v9377
    %v9379 = vsel %vm130, %v9207, 0
    %v9382 = vsel %vm130, %v8572, 0
    %v9385 = vsel %vm130, %v8573, 0
    %v9388 = vsel %vm130, %v8574, 0
    %v9391 = vsel %vm130, %v8575, 0
    %v9394 = vsel %vm130, %v8576, 0
    %v9397 = vsel %vm130, %v8577, 0
    %v9400 = vsel %vm130, %v8578, 0
    %v9403 = vsel %vm130, %v8579, 0
    %9405 = vmatprep.subr.mxu0 0.0
    %9406 = vmatpush1.xpose.msra.mxu0 0.0
    %9407 = vmatprep.subr.mxu0 0.0
    %9408 = vmatpush1.xpose.msra.mxu0 0.0
    %9409 = vmatprep.subr.mxu0 0.0
    %9410 = vmatpush1.xpose.msra.mxu0 0.0
    %9411 = vmatprep.subr.mxu0 0.0
    %9412 = vmatpush1.xpose.msra.mxu0 0.0
    %9413 = vmatprep.subr.mxu0 0.0
    %9414 = vmatpush1.xpose.msra.mxu0 0.0
    %9415 = vmatprep.subr.mxu0 0.0
    %9416 = vmatpush1.xpose.msra.mxu0 0.0
    %9417 = vmatprep.subr.mxu0 0.0
    %9418 = vmatpush1.xpose.msra.mxu0 0.0
    %9419 = vmatprep.subr.mxu0 0.0
    %9420 = vmatpush1.xpose.msra.mxu0 0.0
    %9421 = vmatprep.subr.mxu0 0.0
    %9422 = vmatpush1.xpose.msra.mxu0 %v9403
    %9423 = vmatprep.subr.mxu0 0.0
    %9424 = vmatpush1.xpose.msra.mxu0 %v9400
    %9425 = vmatprep.subr.mxu0 0.0
    %9426 = vmatpush1.xpose.msra.mxu0 %v9397
    %9427 = vmatprep.subr.mxu0 0.0
    %9428 = vmatpush1.xpose.msra.mxu0 %v9394
    %9429 = vmatprep.subr.mxu0 0.0
    %9430 = vmatpush1.xpose.msra.mxu0 %v9391
    %9431 = vmatprep.subr.mxu0 0.0
    %9432 = vmatpush1.xpose.msra.mxu0 %v9388
    %9433 = vmatprep.subr.mxu0 0.0
    %9434 = vmatpush1.xpose.msra.mxu0 %v9385
    %9435 = vmatprep.subr.mxu0 0.0
    %9436 = vmatpush1.xpose.msra.mxu0 %v9382
    %9437 = vmatprep.subr.mxu0 0.0
    %9438 = vmatpush2.xpose.msra.mxu0 0.0
    %9439 = vmatprep.subr.mxu0 0.0
    %9440 = vmatpush2.xpose.msra.mxu0 0.0
    %9441 = vmatprep.subr.mxu0 0.0
    %9442 = vmatpush2.xpose.msra.mxu0 0.0
    %9443 = vmatprep.subr.mxu0 0.0
    %9444 = vmatpush2.xpose.msra.mxu0 0.0
    %9445 = vmatprep.subr.mxu0 0.0
    %9446 = vmatpush2.xpose.msra.mxu0 0.0
    %9447 = vmatprep.subr.mxu0 0.0
    %9448 = vmatpush2.xpose.msra.mxu0 0.0
    %9449 = vmatprep.subr.mxu0 0.0
    %9450 = vmatpush2.xpose.msra.mxu0 0.0
    %9451 = vmatprep.subr.mxu0 0.0
    %9452 = vmatpush2.xpose.msra.mxu0 0.0
    %9453 = vmatprep.subr.mxu0 0.0
    %9454 = vmatpush2.xpose.msra.mxu0 0.0
    %9455 = vmatprep.subr.mxu0 0.0
    %9456 = vmatpush2.xpose.msra.mxu0 0.0
    %9457 = vmatprep.subr.mxu0 0.0
    %9458 = vmatpush2.xpose.msra.mxu0 0.0
    %9459 = vmatprep.subr.mxu0 0.0
    %9460 = vmatpush2.xpose.msra.mxu0 0.0
    %9461 = vmatprep.subr.mxu0 0.0
    %9462 = vmatpush2.xpose.msra.mxu0 0.0
    %9463 = vmatprep.subr.mxu0 0.0
    %9464 = vmatpush2.xpose.msra.mxu0 0.0
    %9465 = vmatprep.subr.mxu0 0.0
    %9466 = vmatpush2.xpose.msra.mxu0 0.0
    %9467 = vmatprep.subr.mxu0 0.0
    %9468 = vmatpush2.xpose.msra.mxu0 0.0
    %9469 = vmatprep.mubr.f32.mxu0 0.0
    %9470 = vmatmul.mubr.f32.gmra.mxu0 %v9379
    %v9471 = vpop.f32.mrf.mxu0
    %v9472 = vadd.f32 0.0, %v9471
    %v9473 = vpop.f32.mrf.mxu0
    %9474 = vdwg.mxu0
    %vm9475 = vcmp.gt.f32.partialorder %v9092, 0.0
    %9477 = vrot.lane.b32.xlu0 %v9472, 96
    %v9478 = vpop.permute.xlu0 %9477
    %v9480 = vsel %vm9475, %v9478, 0.0
    %9481 = vxpose.xlu0.b32.start [1/16] %v9480, 128
    %9482 = vxpose.xlu0.b32.cont [2/16] 0.0, 128
    %9483 = vxpose.xlu0.b32.cont [3/16] 0.0, 128
    %9484 = vxpose.xlu0.b32.cont [4/16] 0.0, 128
    %9485 = vxpose.xlu0.b32.cont [5/16] 0.0, 128
    %9486 = vxpose.xlu0.b32.cont [6/16] 0.0, 128
    %9487 = vxpose.xlu0.b32.cont [7/16] 0.0, 128
    %9488 = vxpose.xlu0.b32.cont [8/16] 0.0, 128
    %9489 = vxpose.xlu0.b32.cont [9/16] 0.0, 128
    %9490 = vxpose.xlu0.b32.cont [10/16] 0.0, 128
    %9491 = vxpose.xlu0.b32.cont [11/16] 0.0, 128
    %9492 = vxpose.xlu0.b32.cont [12/16] 0.0, 128
    %9493 = vxpose.xlu0.b32.cont [13/16] 0.0, 128
    %9494 = vxpose.xlu0.b32.cont [14/16] 0.0, 128
    %9495 = vxpose.xlu0.b32.cont [15/16] 0.0, 128
    %9496 = vxpose.xlu0.b32.end [16/16] 0.0, 128
    %v9497 = vpop.trf.xlu0
    %v9498 = vpop.trf.xlu0
    %v9499 = vpop.trf.xlu0
    %v9500 = vpop.trf.xlu0
    %v9501 = vpop.trf.xlu0
    %v9502 = vpop.trf.xlu0
    %v9503 = vpop.trf.xlu0
    %v9504 = vpop.trf.xlu0
    %v9505 = vpop.trf.xlu0
    %v9506 = vpop.trf.xlu0
    %v9507 = vpop.trf.xlu0
    %v9508 = vpop.trf.xlu0
    %v9509 = vpop.trf.xlu0
    %v9510 = vpop.trf.xlu0
    %v9511 = vpop.trf.xlu0
    %v9512 = vpop.trf.xlu0
    %v9514 = vsel %vm861, %v9497, 0
    %v9517 = vsel %vm861, %v9498, 0
    %v9520 = vsel %vm861, %v9499, 0
    %v9523 = vsel %vm861, %v9500, 0
    %v9525 = vsel %vm886, %v165, 0
    %v9527 = vsel %vm886, %v8807, 0
    %v9529 = vsel %vm886, %v166, 0
    %v9531 = vsel %vm886, %v8808, 0
    %v9533 = vsel %vm886, %v167, 0
    %v9535 = vsel %vm886, %v8809, 0
    %v9537 = vsel %vm886, %v168, 0
    %v9539 = vsel %vm886, %v8810, 0
    %9541 = vmatprep.subr.mxu0 0.0
    %9542 = vmatpush1.msra.mxu0 0.0
    %9543 = vmatprep.subr.mxu0 0.0
    %9544 = vmatpush1.msra.mxu0 0.0
    %9545 = vmatprep.subr.mxu0 0.0
    %9546 = vmatpush1.msra.mxu0 0.0
    %9547 = vmatprep.subr.mxu0 0.0
    %9548 = vmatpush1.msra.mxu0 0.0
    %9549 = vmatprep.subr.mxu0 0.0
    %9550 = vmatpush1.msra.mxu0 0.0
    %9551 = vmatprep.subr.mxu0 0.0
    %9552 = vmatpush1.msra.mxu0 0.0
    %9553 = vmatprep.subr.mxu0 0.0
    %9554 = vmatpush1.msra.mxu0 0.0
    %9555 = vmatprep.subr.mxu0 0.0
    %9556 = vmatpush1.msra.mxu0 0.0
    %9557 = vmatprep.subr.mxu0 0.0
    %9558 = vmatpush1.msra.mxu0 0.0
    %9559 = vmatprep.subr.mxu0 0.0
    %9560 = vmatpush1.msra.mxu0 0.0
    %9561 = vmatprep.subr.mxu0 0.0
    %9562 = vmatpush1.msra.mxu0 0.0
    %9563 = vmatprep.subr.mxu0 0.0
    %9564 = vmatpush1.msra.mxu0 0.0
    %9565 = vmatprep.subr.mxu0 0.0
    %9566 = vmatpush1.msra.mxu0 0.0
    %9567 = vmatprep.subr.mxu0 0.0
    %9568 = vmatpush1.msra.mxu0 0.0
    %9569 = vmatprep.subr.mxu0 0.0
    %9570 = vmatpush1.msra.mxu0 0.0
    %9571 = vmatprep.subr.mxu0 %v9527
    %9572 = vmatpush1.msra.mxu0 %v9525
    %9573 = vmatprep.subr.mxu0 0.0
    %9574 = vmatpush2.msra.mxu0 0.0
    %9575 = vmatprep.subr.mxu0 0.0
    %9576 = vmatpush2.msra.mxu0 0.0
    %9577 = vmatprep.subr.mxu0 0.0
    %9578 = vmatpush2.msra.mxu0 0.0
    %9579 = vmatprep.subr.mxu0 0.0
    %9580 = vmatpush2.msra.mxu0 0.0
    %9581 = vmatprep.subr.mxu0 0.0
    %9582 = vmatpush2.msra.mxu0 0.0
    %9583 = vmatprep.subr.mxu0 0.0
    %9584 = vmatpush2.msra.mxu0 0.0
    %9585 = vmatprep.subr.mxu0 0.0
    %9586 = vmatpush2.msra.mxu0 0.0
    %9587 = vmatprep.subr.mxu0 0.0
    %9588 = vmatpush2.msra.mxu0 0.0
    %9589 = vmatprep.subr.mxu0 0.0
    %9590 = vmatpush2.msra.mxu0 0.0
    %9591 = vmatprep.subr.mxu0 0.0
    %9592 = vmatpush2.msra.mxu0 0.0
    %9593 = vmatprep.subr.mxu0 0.0
    %9594 = vmatpush2.msra.mxu0 0.0
    %9595 = vmatprep.subr.mxu0 0.0
    %9596 = vmatpush2.msra.mxu0 0.0
    %9597 = vmatprep.subr.mxu0 0.0
    %9598 = vmatpush2.msra.mxu0 0.0
    %9599 = vmatprep.subr.mxu0 0.0
    %9600 = vmatpush2.msra.mxu0 0.0
    %9601 = vmatprep.subr.mxu0 0.0
    %9602 = vmatpush2.msra.mxu0 0.0
    %9603 = vmatprep.subr.mxu0 0.0
    %9604 = vmatpush2.msra.mxu0 0.0
    %9605 = vmatprep.mubr.f32.mxu0 0.0
    %9606 = vmatmul.mubr.f32.gmra.mxu0 %v9514
    %v9607 = vpop.f32.mrf.mxu0
    %v9608 = vadd.f32 0.0, %v9607
    %v9609 = vpop.f32.mrf.mxu0
    %v9610 = vadd.f32 0.0, %v9609
    %9611 = vmatprep.mubr.f32.mxu0 0.0
    %9612 = vmatmul.mubr.f32.gmra.mxu0 %v9517
    %v9613 = vpop.f32.mrf.mxu0
    %v9614 = vadd.f32 0.0, %v9613
    %v9615 = vpop.f32.mrf.mxu0
    %v9616 = vadd.f32 0.0, %v9615
    %9617 = vmatprep.mubr.f32.mxu0 0.0
    %9618 = vmatmul.mubr.f32.gmra.mxu0 %v9520
    %v9619 = vpop.f32.mrf.mxu0
    %v9620 = vadd.f32 0.0, %v9619
    %v9621 = vpop.f32.mrf.mxu0
    %v9622 = vadd.f32 0.0, %v9621
    %9623 = vmatprep.mubr.f32.mxu0 0.0
    %9624 = vmatmul.mubr.f32.gmra.mxu0 %v9523
    %v9625 = vpop.f32.mrf.mxu0
    %v9626 = vadd.f32 0.0, %v9625
    %v9627 = vpop.f32.mrf.mxu0
    %v9628 = vadd.f32 0.0, %v9627
    %9629 = vdwg.mxu0
    %9630 = vmatprep.subr.mxu0 0.0
    %9631 = vmatpush1.msra.mxu0 0.0
    %9632 = vmatprep.subr.mxu0 0.0
    %9633 = vmatpush1.msra.mxu0 0.0
    %9634 = vmatprep.subr.mxu0 0.0
    %9635 = vmatpush1.msra.mxu0 0.0
    %9636 = vmatprep.subr.mxu0 0.0
    %9637 = vmatpush1.msra.mxu0 0.0
    %9638 = vmatprep.subr.mxu0 0.0
    %9639 = vmatpush1.msra.mxu0 0.0
    %9640 = vmatprep.subr.mxu0 0.0
    %9641 = vmatpush1.msra.mxu0 0.0
    %9642 = vmatprep.subr.mxu0 0.0
    %9643 = vmatpush1.msra.mxu0 0.0
    %9644 = vmatprep.subr.mxu0 0.0
    %9645 = vmatpush1.msra.mxu0 0.0
    %9646 = vmatprep.subr.mxu0 0.0
    %9647 = vmatpush1.msra.mxu0 0.0
    %9648 = vmatprep.subr.mxu0 0.0
    %9649 = vmatpush1.msra.mxu0 0.0
    %9650 = vmatprep.subr.mxu0 0.0
    %9651 = vmatpush1.msra.mxu0 0.0
    %9652 = vmatprep.subr.mxu0 0.0
    %9653 = vmatpush1.msra.mxu0 0.0
    %9654 = vmatprep.subr.mxu0 0.0
    %9655 = vmatpush1.msra.mxu0 0.0
    %9656 = vmatprep.subr.mxu0 0.0
    %9657 = vmatpush1.msra.mxu0 0.0
    %9658 = vmatprep.subr.mxu0 0.0
    %9659 = vmatpush1.msra.mxu0 0.0
    %9660 = vmatprep.subr.mxu0 %v9531
    %9661 = vmatpush1.msra.mxu0 %v9529
    %9662 = vmatprep.subr.mxu0 0.0
    %9663 = vmatpush2.msra.mxu0 0.0
    %9664 = vmatprep.subr.mxu0 0.0
    %9665 = vmatpush2.msra.mxu0 0.0
    %9666 = vmatprep.subr.mxu0 0.0
    %9667 = vmatpush2.msra.mxu0 0.0
    %9668 = vmatprep.subr.mxu0 0.0
    %9669 = vmatpush2.msra.mxu0 0.0
    %9670 = vmatprep.subr.mxu0 0.0
    %9671 = vmatpush2.msra.mxu0 0.0
    %9672 = vmatprep.subr.mxu0 0.0
    %9673 = vmatpush2.msra.mxu0 0.0
    %9674 = vmatprep.subr.mxu0 0.0
    %9675 = vmatpush2.msra.mxu0 0.0
    %9676 = vmatprep.subr.mxu0 0.0
    %9677 = vmatpush2.msra.mxu0 0.0
    %9678 = vmatprep.subr.mxu0 0.0
    %9679 = vmatpush2.msra.mxu0 0.0
    %9680 = vmatprep.subr.mxu0 0.0
    %9681 = vmatpush2.msra.mxu0 0.0
    %9682 = vmatprep.subr.mxu0 0.0
    %9683 = vmatpush2.msra.mxu0 0.0
    %9684 = vmatprep.subr.mxu0 0.0
    %9685 = vmatpush2.msra.mxu0 0.0
    %9686 = vmatprep.subr.mxu0 0.0
    %9687 = vmatpush2.msra.mxu0 0.0
    %9688 = vmatprep.subr.mxu0 0.0
    %9689 = vmatpush2.msra.mxu0 0.0
    %9690 = vmatprep.subr.mxu0 0.0
    %9691 = vmatpush2.msra.mxu0 0.0
    %9692 = vmatprep.subr.mxu0 0.0
    %9693 = vmatpush2.msra.mxu0 0.0
    %9694 = vmatprep.mubr.f32.mxu0 0.0
    %9695 = vmatmul.mubr.f32.gmra.mxu0 %v9514
    %v9696 = vpop.f32.mrf.mxu0
    %v9697 = vadd.f32 0.0, %v9696
    %v9698 = vpop.f32.mrf.mxu0
    %v9699 = vadd.f32 0.0, %v9698
    %9700 = vmatprep.mubr.f32.mxu0 0.0
    %9701 = vmatmul.mubr.f32.gmra.mxu0 %v9517
    %v9702 = vpop.f32.mrf.mxu0
    %v9703 = vadd.f32 0.0, %v9702
    %v9704 = vpop.f32.mrf.mxu0
    %v9705 = vadd.f32 0.0, %v9704
    %9706 = vmatprep.mubr.f32.mxu0 0.0
    %9707 = vmatmul.mubr.f32.gmra.mxu0 %v9520
    %v9708 = vpop.f32.mrf.mxu0
    %v9709 = vadd.f32 0.0, %v9708
    %v9710 = vpop.f32.mrf.mxu0
    %v9711 = vadd.f32 0.0, %v9710
    %9712 = vmatprep.mubr.f32.mxu0 0.0
    %9713 = vmatmul.mubr.f32.gmra.mxu0 %v9523
    %v9714 = vpop.f32.mrf.mxu0
    %v9715 = vadd.f32 0.0, %v9714
    %v9716 = vpop.f32.mrf.mxu0
    %v9717 = vadd.f32 0.0, %v9716
    %9718 = vdwg.mxu0
    %9719 = vmatprep.subr.mxu0 0.0
    %9720 = vmatpush1.msra.mxu0 0.0
    %9721 = vmatprep.subr.mxu0 0.0
    %9722 = vmatpush1.msra.mxu0 0.0
    %9723 = vmatprep.subr.mxu0 0.0
    %9724 = vmatpush1.msra.mxu0 0.0
    %9725 = vmatprep.subr.mxu0 0.0
    %9726 = vmatpush1.msra.mxu0 0.0
    %9727 = vmatprep.subr.mxu0 0.0
    %9728 = vmatpush1.msra.mxu0 0.0
    %9729 = vmatprep.subr.mxu0 0.0
    %9730 = vmatpush1.msra.mxu0 0.0
    %9731 = vmatprep.subr.mxu0 0.0
    %9732 = vmatpush1.msra.mxu0 0.0
    %9733 = vmatprep.subr.mxu0 0.0
    %9734 = vmatpush1.msra.mxu0 0.0
    %9735 = vmatprep.subr.mxu0 0.0
    %9736 = vmatpush1.msra.mxu0 0.0
    %9737 = vmatprep.subr.mxu0 0.0
    %9738 = vmatpush1.msra.mxu0 0.0
    %9739 = vmatprep.subr.mxu0 0.0
    %9740 = vmatpush1.msra.mxu0 0.0
    %9741 = vmatprep.subr.mxu0 0.0
    %9742 = vmatpush1.msra.mxu0 0.0
    %9743 = vmatprep.subr.mxu0 0.0
    %9744 = vmatpush1.msra.mxu0 0.0
    %9745 = vmatprep.subr.mxu0 0.0
    %9746 = vmatpush1.msra.mxu0 0.0
    %9747 = vmatprep.subr.mxu0 0.0
    %9748 = vmatpush1.msra.mxu0 0.0
    %9749 = vmatprep.subr.mxu0 %v9535
    %9750 = vmatpush1.msra.mxu0 %v9533
    %9751 = vmatprep.subr.mxu0 0.0
    %9752 = vmatpush2.msra.mxu0 0.0
    %9753 = vmatprep.subr.mxu0 0.0
    %9754 = vmatpush2.msra.mxu0 0.0
    %9755 = vmatprep.subr.mxu0 0.0
    %9756 = vmatpush2.msra.mxu0 0.0
    %9757 = vmatprep.subr.mxu0 0.0
    %9758 = vmatpush2.msra.mxu0 0.0
    %9759 = vmatprep.subr.mxu0 0.0
    %9760 = vmatpush2.msra.mxu0 0.0
    %9761 = vmatprep.subr.mxu0 0.0
    %9762 = vmatpush2.msra.mxu0 0.0
    %9763 = vmatprep.subr.mxu0 0.0
    %9764 = vmatpush2.msra.mxu0 0.0
    %9765 = vmatprep.subr.mxu0 0.0
    %9766 = vmatpush2.msra.mxu0 0.0
    %9767 = vmatprep.subr.mxu0 0.0
    %9768 = vmatpush2.msra.mxu0 0.0
    %9769 = vmatprep.subr.mxu0 0.0
    %9770 = vmatpush2.msra.mxu0 0.0
    %9771 = vmatprep.subr.mxu0 0.0
    %9772 = vmatpush2.msra.mxu0 0.0
    %9773 = vmatprep.subr.mxu0 0.0
    %9774 = vmatpush2.msra.mxu0 0.0
    %9775 = vmatprep.subr.mxu0 0.0
    %9776 = vmatpush2.msra.mxu0 0.0
    %9777 = vmatprep.subr.mxu0 0.0
    %9778 = vmatpush2.msra.mxu0 0.0
    %9779 = vmatprep.subr.mxu0 0.0
    %9780 = vmatpush2.msra.mxu0 0.0
    %9781 = vmatprep.subr.mxu0 0.0
    %9782 = vmatpush2.msra.mxu0 0.0
    %9783 = vmatprep.mubr.f32.mxu0 0.0
    %9784 = vmatmul.mubr.f32.gmra.mxu0 %v9514
    %v9785 = vpop.f32.mrf.mxu0
    %v9786 = vadd.f32 0.0, %v9785
    %v9787 = vpop.f32.mrf.mxu0
    %v9788 = vadd.f32 0.0, %v9787
    %9789 = vmatprep.mubr.f32.mxu0 0.0
    %9790 = vmatmul.mubr.f32.gmra.mxu0 %v9517
    %v9791 = vpop.f32.mrf.mxu0
    %v9792 = vadd.f32 0.0, %v9791
    %v9793 = vpop.f32.mrf.mxu0
    %v9794 = vadd.f32 0.0, %v9793
    %9795 = vmatprep.mubr.f32.mxu0 0.0
    %9796 = vmatmul.mubr.f32.gmra.mxu0 %v9520
    %v9797 = vpop.f32.mrf.mxu0
    %v9798 = vadd.f32 0.0, %v9797
    %v9799 = vpop.f32.mrf.mxu0
    %v9800 = vadd.f32 0.0, %v9799
    %9801 = vmatprep.mubr.f32.mxu0 0.0
    %9802 = vmatmul.mubr.f32.gmra.mxu0 %v9523
    %v9803 = vpop.f32.mrf.mxu0
    %v9804 = vadd.f32 0.0, %v9803
    %v9805 = vpop.f32.mrf.mxu0
    %v9806 = vadd.f32 0.0, %v9805
    %9807 = vdwg.mxu0
    %9808 = vmatprep.subr.mxu0 0.0
    %9809 = vmatpush1.msra.mxu0 0.0
    %9810 = vmatprep.subr.mxu0 0.0
    %9811 = vmatpush1.msra.mxu0 0.0
    %9812 = vmatprep.subr.mxu0 0.0
    %9813 = vmatpush1.msra.mxu0 0.0
    %9814 = vmatprep.subr.mxu0 0.0
    %9815 = vmatpush1.msra.mxu0 0.0
    %9816 = vmatprep.subr.mxu0 0.0
    %9817 = vmatpush1.msra.mxu0 0.0
    %9818 = vmatprep.subr.mxu0 0.0
    %9819 = vmatpush1.msra.mxu0 0.0
    %9820 = vmatprep.subr.mxu0 0.0
    %9821 = vmatpush1.msra.mxu0 0.0
    %9822 = vmatprep.subr.mxu0 0.0
    %9823 = vmatpush1.msra.mxu0 0.0
    %9824 = vmatprep.subr.mxu0 0.0
    %9825 = vmatpush1.msra.mxu0 0.0
    %9826 = vmatprep.subr.mxu0 0.0
    %9827 = vmatpush1.msra.mxu0 0.0
    %9828 = vmatprep.subr.mxu0 0.0
    %9829 = vmatpush1.msra.mxu0 0.0
    %9830 = vmatprep.subr.mxu0 0.0
    %9831 = vmatpush1.msra.mxu0 0.0
    %9832 = vmatprep.subr.mxu0 0.0
    %9833 = vmatpush1.msra.mxu0 0.0
    %9834 = vmatprep.subr.mxu0 0.0
    %9835 = vmatpush1.msra.mxu0 0.0
    %9836 = vmatprep.subr.mxu0 0.0
    %9837 = vmatpush1.msra.mxu0 0.0
    %9838 = vmatprep.subr.mxu0 %v9539
    %9839 = vmatpush1.msra.mxu0 %v9537
    %9840 = vmatprep.subr.mxu0 0.0
    %9841 = vmatpush2.msra.mxu0 0.0
    %9842 = vmatprep.subr.mxu0 0.0
    %9843 = vmatpush2.msra.mxu0 0.0
    %9844 = vmatprep.subr.mxu0 0.0
    %9845 = vmatpush2.msra.mxu0 0.0
    %9846 = vmatprep.subr.mxu0 0.0
    %9847 = vmatpush2.msra.mxu0 0.0
    %9848 = vmatprep.subr.mxu0 0.0
    %9849 = vmatpush2.msra.mxu0 0.0
    %9850 = vmatprep.subr.mxu0 0.0
    %9851 = vmatpush2.msra.mxu0 0.0
    %9852 = vmatprep.subr.mxu0 0.0
    %9853 = vmatpush2.msra.mxu0 0.0
    %9854 = vmatprep.subr.mxu0 0.0
    %9855 = vmatpush2.msra.mxu0 0.0
    %9856 = vmatprep.subr.mxu0 0.0
    %9857 = vmatpush2.msra.mxu0 0.0
    %9858 = vmatprep.subr.mxu0 0.0
    %9859 = vmatpush2.msra.mxu0 0.0
    %9860 = vmatprep.subr.mxu0 0.0
    %9861 = vmatpush2.msra.mxu0 0.0
    %9862 = vmatprep.subr.mxu0 0.0
    %9863 = vmatpush2.msra.mxu0 0.0
    %9864 = vmatprep.subr.mxu0 0.0
    %9865 = vmatpush2.msra.mxu0 0.0
    %9866 = vmatprep.subr.mxu0 0.0
    %9867 = vmatpush2.msra.mxu0 0.0
    %9868 = vmatprep.subr.mxu0 0.0
    %9869 = vmatpush2.msra.mxu0 0.0
    %9870 = vmatprep.subr.mxu0 0.0
    %9871 = vmatpush2.msra.mxu0 0.0
    %9872 = vmatprep.mubr.f32.mxu0 0.0
    %9873 = vmatmul.mubr.f32.gmra.mxu0 %v9514
    %v9874 = vpop.f32.mrf.mxu0
    %v9875 = vadd.f32 0.0, %v9874
    %v9876 = vpop.f32.mrf.mxu0
    %v9877 = vadd.f32 0.0, %v9876
    %9878 = vmatprep.mubr.f32.mxu0 0.0
    %9879 = vmatmul.mubr.f32.gmra.mxu0 %v9517
    %v9880 = vpop.f32.mrf.mxu0
    %v9881 = vadd.f32 0.0, %v9880
    %v9882 = vpop.f32.mrf.mxu0
    %v9883 = vadd.f32 0.0, %v9882
    %9884 = vmatprep.mubr.f32.mxu0 0.0
    %9885 = vmatmul.mubr.f32.gmra.mxu0 %v9520
    %v9886 = vpop.f32.mrf.mxu0
    %v9887 = vadd.f32 0.0, %v9886
    %v9888 = vpop.f32.mrf.mxu0
    %v9889 = vadd.f32 0.0, %v9888
    %9890 = vmatprep.mubr.f32.mxu0 0.0
    %9891 = vmatmul.mubr.f32.gmra.mxu0 %v9523
    %v9892 = vpop.f32.mrf.mxu0
    %v9893 = vadd.f32 0.0, %v9892
    %v9894 = vpop.f32.mrf.mxu0
    %v9895 = vadd.f32 0.0, %v9894
    %9896 = vdwg.mxu0
    %v9897 = vsel %vm1520, %v9480, 0.0
    %v9898 = vrot.slane %v9897, 4
    %v9899 = vadd.f32 %v9897, %v9898
    %v9900 = vrot.slane %v9899, 2
    %v9901 = vadd.f32 %v9899, %v9900
    %v9902 = vrot.slane %v9901, 1
    %v9903 = vadd.f32 %v9901, %v9902
    %9904 = vxpose.xlu0.b32.start [1/16] %v164, 128
    %9905 = vxpose.xlu0.b32.cont [2/16] 0.0, 128
    %9906 = vxpose.xlu0.b32.cont [3/16] 0.0, 128
    %9907 = vxpose.xlu0.b32.cont [4/16] 0.0, 128
    %9908 = vxpose.xlu0.b32.cont [5/16] 0.0, 128
    %9909 = vxpose.xlu0.b32.cont [6/16] 0.0, 128
    %9910 = vxpose.xlu0.b32.cont [7/16] 0.0, 128
    %9911 = vxpose.xlu0.b32.cont [8/16] 0.0, 128
    %9912 = vxpose.xlu0.b32.cont [9/16] 0.0, 128
    %9913 = vxpose.xlu0.b32.cont [10/16] 0.0, 128
    %9914 = vxpose.xlu0.b32.cont [11/16] 0.0, 128
    %9915 = vxpose.xlu0.b32.cont [12/16] 0.0, 128
    %9916 = vxpose.xlu0.b32.cont [13/16] 0.0, 128
    %9917 = vxpose.xlu0.b32.cont [14/16] 0.0, 128
    %9918 = vxpose.xlu0.b32.cont [15/16] 0.0, 128
    %9919 = vxpose.xlu0.b32.end [16/16] 0.0, 128
    %v9920 = vpop.trf.xlu0
    %v9921 = vpop.trf.xlu0
    %v9922 = vpop.trf.xlu0
    %v9923 = vpop.trf.xlu0
    %v9924 = vpop.trf.xlu0
    %v9925 = vpop.trf.xlu0
    %v9926 = vpop.trf.xlu0
    %v9927 = vpop.trf.xlu0
    %v9928 = vpop.trf.xlu0
    %v9929 = vpop.trf.xlu0
    %v9930 = vpop.trf.xlu0
    %v9931 = vpop.trf.xlu0
    %v9932 = vpop.trf.xlu0
    %v9933 = vpop.trf.xlu0
    %v9934 = vpop.trf.xlu0
    %v9935 = vpop.trf.xlu0
    %v9937 = vsel %vm861, %v9920, 0
    %v9940 = vsel %vm861, %v9921, 0
    %v9943 = vsel %vm861, %v9922, 0
    %v9946 = vsel %vm861, %v9923, 0
    %v9949 = vsel %vm861, %v9924, 0
    %v9952 = vsel %vm861, %v9925, 0
    %v9955 = vsel %vm861, %v9926, 0
    %v9958 = vsel %vm861, %v9927, 0
    %v9960 = vsel %vm886, %v9472, 0
    %9962 = vmatprep.subr.mxu0 0.0
    %9963 = vmatpush1.msra.mxu0 0.0
    %9964 = vmatprep.subr.mxu0 0.0
    %9965 = vmatpush1.msra.mxu0 0.0
    %9966 = vmatprep.subr.mxu0 0.0
    %9967 = vmatpush1.msra.mxu0 0.0
    %9968 = vmatprep.subr.mxu0 0.0
    %9969 = vmatpush1.msra.mxu0 0.0
    %9970 = vmatprep.subr.mxu0 0.0
    %9971 = vmatpush1.msra.mxu0 0.0
    %9972 = vmatprep.subr.mxu0 0.0
    %9973 = vmatpush1.msra.mxu0 0.0
    %9974 = vmatprep.subr.mxu0 0.0
    %9975 = vmatpush1.msra.mxu0 0.0
    %9976 = vmatprep.subr.mxu0 0.0
    %9977 = vmatpush1.msra.mxu0 0.0
    %9978 = vmatprep.subr.mxu0 0.0
    %9979 = vmatpush1.msra.mxu0 0.0
    %9980 = vmatprep.subr.mxu0 0.0
    %9981 = vmatpush1.msra.mxu0 0.0
    %9982 = vmatprep.subr.mxu0 0.0
    %9983 = vmatpush1.msra.mxu0 0.0
    %9984 = vmatprep.subr.mxu0 0.0
    %9985 = vmatpush1.msra.mxu0 0.0
    %9986 = vmatprep.subr.mxu0 0.0
    %9987 = vmatpush1.msra.mxu0 0.0
    %9988 = vmatprep.subr.mxu0 0.0
    %9989 = vmatpush1.msra.mxu0 0.0
    %9990 = vmatprep.subr.mxu0 0.0
    %9991 = vmatpush1.msra.mxu0 0.0
    %9992 = vmatprep.subr.mxu0 0.0
    %9993 = vmatpush1.msra.mxu0 %v9960
    %9994 = vmatprep.subr.mxu0 0.0
    %9995 = vmatpush2.msra.mxu0 0.0
    %9996 = vmatprep.subr.mxu0 0.0
    %9997 = vmatpush2.msra.mxu0 0.0
    %9998 = vmatprep.subr.mxu0 0.0
    %9999 = vmatpush2.msra.mxu0 0.0
    %10000 = vmatprep.subr.mxu0 0.0
    %10001 = vmatpush2.msra.mxu0 0.0
    %10002 = vmatprep.subr.mxu0 0.0
    %10003 = vmatpush2.msra.mxu0 0.0
    %10004 = vmatprep.subr.mxu0 0.0
    %10005 = vmatpush2.msra.mxu0 0.0
    %10006 = vmatprep.subr.mxu0 0.0
    %10007 = vmatpush2.msra.mxu0 0.0
    %10008 = vmatprep.subr.mxu0 0.0
    %10009 = vmatpush2.msra.mxu0 0.0
    %10010 = vmatprep.subr.mxu0 0.0
    %10011 = vmatpush2.msra.mxu0 0.0
    %10012 = vmatprep.subr.mxu0 0.0
    %10013 = vmatpush2.msra.mxu0 0.0
    %10014 = vmatprep.subr.mxu0 0.0
    %10015 = vmatpush2.msra.mxu0 0.0
    %10016 = vmatprep.subr.mxu0 0.0
    %10017 = vmatpush2.msra.mxu0 0.0
    %10018 = vmatprep.subr.mxu0 0.0
    %10019 = vmatpush2.msra.mxu0 0.0
    %10020 = vmatprep.subr.mxu0 0.0
    %10021 = vmatpush2.msra.mxu0 0.0
    %10022 = vmatprep.subr.mxu0 0.0
    %10023 = vmatpush2.msra.mxu0 0.0
    %10024 = vmatprep.subr.mxu0 0.0
    %10025 = vmatpush2.msra.mxu0 0.0
    %10026 = vmatprep.mubr.f32.mxu0 0.0
    %10027 = vmatmul.mubr.f32.gmra.mxu0 %v9937
    %v10028 = vpop.f32.mrf.mxu0
    %v10029 = vadd.f32 0.0, %v10028
    %v10030 = vpop.f32.mrf.mxu0
    %10031 = vmatprep.mubr.f32.mxu0 0.0
    %10032 = vmatmul.mubr.f32.gmra.mxu0 %v9940
    %v10033 = vpop.f32.mrf.mxu0
    %v10034 = vadd.f32 0.0, %v10033
    %v10035 = vpop.f32.mrf.mxu0
    %10036 = vmatprep.mubr.f32.mxu0 0.0
    %10037 = vmatmul.mubr.f32.gmra.mxu0 %v9943
    %v10038 = vpop.f32.mrf.mxu0
    %v10039 = vadd.f32 0.0, %v10038
    %v10040 = vpop.f32.mrf.mxu0
    %10041 = vmatprep.mubr.f32.mxu0 0.0
    %10042 = vmatmul.mubr.f32.gmra.mxu0 %v9946
    %v10043 = vpop.f32.mrf.mxu0
    %v10044 = vadd.f32 0.0, %v10043
    %v10045 = vpop.f32.mrf.mxu0
    %10046 = vmatprep.mubr.f32.mxu0 0.0
    %10047 = vmatmul.mubr.f32.gmra.mxu0 %v9949
    %v10048 = vpop.f32.mrf.mxu0
    %v10049 = vadd.f32 0.0, %v10048
    %v10050 = vpop.f32.mrf.mxu0
    %10051 = vmatprep.mubr.f32.mxu0 0.0
    %10052 = vmatmul.mubr.f32.gmra.mxu0 %v9952
    %v10053 = vpop.f32.mrf.mxu0
    %v10054 = vadd.f32 0.0, %v10053
    %v10055 = vpop.f32.mrf.mxu0
    %10056 = vmatprep.mubr.f32.mxu0 0.0
    %10057 = vmatmul.mubr.f32.gmra.mxu0 %v9955
    %v10058 = vpop.f32.mrf.mxu0
    %v10059 = vadd.f32 0.0, %v10058
    %v10060 = vpop.f32.mrf.mxu0
    %10061 = vmatprep.mubr.f32.mxu0 0.0
    %10062 = vmatmul.mubr.f32.gmra.mxu0 %v9958
    %v10063 = vpop.f32.mrf.mxu0
    %v10064 = vadd.f32 0.0, %v10063
    %v10065 = vpop.f32.mrf.mxu0
    %10066 = vdwg.mxu0
    %vm10067 = vcmp.gt.f32.partialorder %v8678, 0.0
    %vm10068 = vcmp.gt.f32.partialorder %v8683, 0.0
    %vm10069 = vcmp.gt.f32.partialorder %v8688, 0.0
    %vm10070 = vcmp.gt.f32.partialorder %v8693, 0.0
    %vm10071 = vcmp.gt.f32.partialorder %v8698, 0.0
    %vm10072 = vcmp.gt.f32.partialorder %v8703, 0.0
    %vm10073 = vcmp.gt.f32.partialorder %v8708, 0.0
    %vm10074 = vcmp.gt.f32.partialorder %v8713, 0.0
    %v10075 = vsel %vm10067, %v10029, 0.0
    %v10076 = vsel %vm10068, %v10034, 0.0
    %v10077 = vsel %vm10069, %v10039, 0.0
    %v10078 = vsel %vm10070, %v10044, 0.0
    %v10079 = vsel %vm10071, %v10049, 0.0
    %v10080 = vsel %vm10072, %v10054, 0.0
    %v10081 = vsel %vm10073, %v10059, 0.0
    %v10082 = vsel %vm10074, %v10064, 0.0
    %10083 = vxpose.xlu0.b32.start [1/16] %v156, 128
    %10084 = vxpose.xlu0.b32.cont [2/16] %v157, 128
    %10085 = vxpose.xlu0.b32.cont [3/16] %v158, 128
    %10086 = vxpose.xlu0.b32.cont [4/16] %v159, 128
    %10087 = vxpose.xlu0.b32.cont [5/16] %v160, 128
    %10088 = vxpose.xlu0.b32.cont [6/16] %v161, 128
    %10089 = vxpose.xlu0.b32.cont [7/16] %v162, 128
    %10090 = vxpose.xlu0.b32.cont [8/16] %v163, 128
    %10091 = vxpose.xlu0.b32.cont [9/16] 0.0, 128
    %10092 = vxpose.xlu0.b32.cont [10/16] 0.0, 128
    %10093 = vxpose.xlu0.b32.cont [11/16] 0.0, 128
    %10094 = vxpose.xlu0.b32.cont [12/16] 0.0, 128
    %10095 = vxpose.xlu0.b32.cont [13/16] 0.0, 128
    %10096 = vxpose.xlu0.b32.cont [14/16] 0.0, 128
    %10097 = vxpose.xlu0.b32.cont [15/16] 0.0, 128
    %10098 = vxpose.xlu0.b32.end [16/16] 0.0, 128
    %v10099 = vpop.trf.xlu0
    %v10100 = vpop.trf.xlu0
    %v10101 = vpop.trf.xlu0
    %v10102 = vpop.trf.xlu0
    %v10103 = vpop.trf.xlu0
    %v10104 = vpop.trf.xlu0
    %v10105 = vpop.trf.xlu0
    %v10106 = vpop.trf.xlu0
    %v10107 = vpop.trf.xlu0
    %v10108 = vpop.trf.xlu0
    %v10109 = vpop.trf.xlu0
    %v10110 = vpop.trf.xlu0
    %v10111 = vpop.trf.xlu0
    %v10112 = vpop.trf.xlu0
    %v10113 = vpop.trf.xlu0
    %v10114 = vpop.trf.xlu0
    %v10116 = vsel %vm358, %v10099, 0
    %10118 = vmatprep.subr.mxu0 0.0
    %10119 = vmatpush1.msra.mxu0 0.0
    %10120 = vmatprep.subr.mxu0 0.0
    %10121 = vmatpush1.msra.mxu0 0.0
    %10122 = vmatprep.subr.mxu0 0.0
    %10123 = vmatpush1.msra.mxu0 0.0
    %10124 = vmatprep.subr.mxu0 0.0
    %10125 = vmatpush1.msra.mxu0 0.0
    %10126 = vmatprep.subr.mxu0 0.0
    %10127 = vmatpush1.msra.mxu0 0.0
    %10128 = vmatprep.subr.mxu0 0.0
    %10129 = vmatpush1.msra.mxu0 0.0
    %10130 = vmatprep.subr.mxu0 0.0
    %10131 = vmatpush1.msra.mxu0 0.0
    %10132 = vmatprep.subr.mxu0 0.0
    %10133 = vmatpush1.msra.mxu0 0.0
    %10134 = vmatprep.subr.mxu0 0.0
    %10135 = vmatpush1.msra.mxu0 %v10082
    %10136 = vmatprep.subr.mxu0 0.0
    %10137 = vmatpush1.msra.mxu0 %v10081
    %10138 = vmatprep.subr.mxu0 0.0
    %10139 = vmatpush1.msra.mxu0 %v10080
    %10140 = vmatprep.subr.mxu0 0.0
    %10141 = vmatpush1.msra.mxu0 %v10079
    %10142 = vmatprep.subr.mxu0 0.0
    %10143 = vmatpush1.msra.mxu0 %v10078
    %10144 = vmatprep.subr.mxu0 0.0
    %10145 = vmatpush1.msra.mxu0 %v10077
    %10146 = vmatprep.subr.mxu0 0.0
    %10147 = vmatpush1.msra.mxu0 %v10076
    %10148 = vmatprep.subr.mxu0 0.0
    %10149 = vmatpush1.msra.mxu0 %v10075
    %10150 = vmatprep.subr.mxu0 0.0
    %10151 = vmatpush2.msra.mxu0 0.0
    %10152 = vmatprep.subr.mxu0 0.0
    %10153 = vmatpush2.msra.mxu0 0.0
    %10154 = vmatprep.subr.mxu0 0.0
    %10155 = vmatpush2.msra.mxu0 0.0
    %10156 = vmatprep.subr.mxu0 0.0
    %10157 = vmatpush2.msra.mxu0 0.0
    %10158 = vmatprep.subr.mxu0 0.0
    %10159 = vmatpush2.msra.mxu0 0.0
    %10160 = vmatprep.subr.mxu0 0.0
    %10161 = vmatpush2.msra.mxu0 0.0
    %10162 = vmatprep.subr.mxu0 0.0
    %10163 = vmatpush2.msra.mxu0 0.0
    %10164 = vmatprep.subr.mxu0 0.0
    %10165 = vmatpush2.msra.mxu0 0.0
    %10166 = vmatprep.subr.mxu0 0.0
    %10167 = vmatpush2.msra.mxu0 0.0
    %10168 = vmatprep.subr.mxu0 0.0
    %10169 = vmatpush2.msra.mxu0 0.0
    %10170 = vmatprep.subr.mxu0 0.0
    %10171 = vmatpush2.msra.mxu0 0.0
    %10172 = vmatprep.subr.mxu0 0.0
    %10173 = vmatpush2.msra.mxu0 0.0
    %10174 = vmatprep.subr.mxu0 0.0
    %10175 = vmatpush2.msra.mxu0 0.0
    %10176 = vmatprep.subr.mxu0 0.0
    %10177 = vmatpush2.msra.mxu0 0.0
    %10178 = vmatprep.subr.mxu0 0.0
    %10179 = vmatpush2.msra.mxu0 0.0
    %10180 = vmatprep.subr.mxu0 0.0
    %10181 = vmatpush2.msra.mxu0 0.0
    %10182 = vmatprep.mubr.f32.mxu0 0.0
    %10183 = vmatmul.mubr.f32.gmra.mxu0 %v10116
    %v10184 = vpop.f32.mrf.mxu0
    %v10185 = vadd.f32 0.0, %v10184
    %v10186 = vpop.f32.mrf.mxu0
    %10187 = vdwg.mxu0
    %v10188 = vsel %vm51, %v10075, 0.0
    %v10189 = vsel %vm51, %v10076, 0.0
    %v10190 = vadd.f32 %v10188, %v10189
    %v10191 = vsel %vm51, %v10077, 0.0
    %v10192 = vadd.f32 %v10190, %v10191
    %v10193 = vsel %vm51, %v10078, 0.0
    %v10194 = vadd.f32 %v10192, %v10193
    %v10195 = vsel %vm51, %v10079, 0.0
    %v10196 = vadd.f32 %v10194, %v10195
    %v10197 = vsel %vm51, %v10080, 0.0
    %v10198 = vadd.f32 %v10196, %v10197
    %v10199 = vsel %vm51, %v10081, 0.0
    %v10200 = vadd.f32 %v10198, %v10199
    %v10201 = vsel %vm51, %v10082, 0.0
    %v10202 = vadd.f32 %v10200, %v10201
    %v10203 = vrot.slane %v10202, 4
    %v10204 = vadd.f32 %v10202, %v10203
    %v10205 = vrot.slane %v10204, 2
    %v10206 = vadd.f32 %v10204, %v10205
    %v10207 = vrot.slane %v10206, 1
    %v10208 = vadd.f32 %v10206, %v10207
    %10209 = vst [vmem:[%s14] sm:$0xff] 0.0
    %10210 = vst [vmem:[%s14 + $0x8] sm:$0xff] 0.0
    %10211 = vst [vmem:[%s14 + $0x10] sm:$0xff] 0.0
    %10212 = vst [vmem:[%s14 + $0x18] sm:$0xff] 0.0
    %10213 = vst [vmem:[%s14 + $0x20] sm:$0xff] 0.0
    %10214 = vst [vmem:[%s14 + $0x28] sm:$0xff] 0.0
    %10215 = vst [vmem:[%s14 + $0x30] sm:$0xff] 0.0
    %10216 = vst [vmem:[%s14 + $0x38] sm:$0xff] 0.0
    %10217 = vst [vmem:[%s14 + $0x40] sm:$0xff] 0.0
    %10218 = vst [vmem:[%s14 + $0x48] sm:$0xff] 0.0
    %10219 = vst.msk [vmem:[%s14] sm:$0xff] %vm51, %v10185
    %10220 = vst.msk [vmem:[%s14 + $0x8] sm:$0x1] %vm54, %v10208
    %10221 = vst.msk [vmem:[%s14 + $0x9] sm:$0x1] %vm54, %v9903
    %10222 = vst.msk [vmem:[%s14 + $0xa] sm:$0x1] %vm140, %v9378
    %vm10223 = vcmask 0
    %10224 = vst.msk [vmem:[%s14 + $0xb] sm:$0x1] %vm10223, %v9205
    %10226 = vrot.lane.b32.xlu0 %v9190, 127
    %v10227 = vpop.permute.xlu0 %10226
    %vm10229 = vcmask 3072
    %10230 = vst.msk [vmem:[%s14 + $0xc] sm:$0xf] %vm10229, %v10227
    %10231 = vst.msk [vmem:[%s14 + $0x10] sm:$0xff] %vm130, %v9334
    %10232 = vst.msk [vmem:[%s14 + $0x18] sm:$0xff] %vm130, %v9339
    %10233 = vst.msk [vmem:[%s14 + $0x20] sm:$0xff] %vm130, %v9344
    %10234 = vst.msk [vmem:[%s14 + $0x28] sm:$0xff] %vm130, %v9349
    %10235 = vst.msk [vmem:[%s14 + $0x30] sm:$0xff] %vm130, %v9354
    %10236 = vst.msk [vmem:[%s14 + $0x38] sm:$0xff] %vm130, %v9359
    %10237 = vst.msk [vmem:[%s14 + $0x40] sm:$0xff] %vm130, %v9364
    %10238 = vst.msk [vmem:[%s14 + $0x48] sm:$0xff] %vm130, %v9369
    %10239 = vst [vmem:[#allocation8] sm:$0xff] %v9608
    %10240 = vst [vmem:[#allocation8 + $0x8] sm:$0xff] %v9610
    %10241 = vst [vmem:[#allocation8 + $0x10] sm:$0xff] %v9697
    %10242 = vst [vmem:[#allocation8 + $0x18] sm:$0xff] %v9699
    %10243 = vst [vmem:[#allocation8 + $0x20] sm:$0xff] %v9786
    %10244 = vst [vmem:[#allocation8 + $0x28] sm:$0xff] %v9788
    %10245 = vst [vmem:[#allocation8 + $0x30] sm:$0xff] %v9875
    %10246 = vst [vmem:[#allocation8 + $0x38] sm:$0xff] %v9877
    %10247 = vst [vmem:[#allocation8 + $0x40] sm:$0xff] %v9614
    %10248 = vst [vmem:[#allocation8 + $0x48] sm:$0xff] %v9616
    %10249 = vst [vmem:[#allocation8 + $0x50] sm:$0xff] %v9703
    %10250 = vst [vmem:[#allocation8 + $0x58] sm:$0xff] %v9705
    %10251 = vst [vmem:[#allocation8 + $0x60] sm:$0xff] %v9792
    %10252 = vst [vmem:[#allocation8 + $0x68] sm:$0xff] %v9794
    %10253 = vst [vmem:[#allocation8 + $0x70] sm:$0xff] %v9881
    %10254 = vst [vmem:[#allocation8 + $0x78] sm:$0xff] %v9883
    %10255 = vst [vmem:[#allocation8 + $0x80] sm:$0xff] %v9620
    %10256 = vst [vmem:[#allocation8 + $0x88] sm:$0xff] %v9622
    %10257 = vst [vmem:[#allocation8 + $0x90] sm:$0xff] %v9709
    %10258 = vst [vmem:[#allocation8 + $0x98] sm:$0xff] %v9711
    %10259 = vst [vmem:[#allocation8 + $0xa0] sm:$0xff] %v9798
    %10260 = vst [vmem:[#allocation8 + $0xa8] sm:$0xff] %v9800
    %10261 = vst [vmem:[#allocation8 + $0xb0] sm:$0xff] %v9887
    %10262 = vst [vmem:[#allocation8 + $0xb8] sm:$0xff] %v9889
    %10263 = vst [vmem:[#allocation8 + $0xc0] sm:$0xff] %v9626
    %10264 = vst [vmem:[#allocation8 + $0xc8] sm:$0xff] %v9628
    %10265 = vst [vmem:[#allocation8 + $0xd0] sm:$0xff] %v9715
    %10266 = vst [vmem:[#allocation8 + $0xd8] sm:$0xff] %v9717
    %10267 = vst [vmem:[#allocation8 + $0xe0] sm:$0xff] %v9804
    %10268 = vst [vmem:[#allocation8 + $0xe8] sm:$0xff] %v9806
    %10269 = vst [vmem:[#allocation8 + $0xf0] sm:$0xff] %v9893
    %10270 = vst [vmem:[#allocation8 + $0xf8] sm:$0xff] %v9895
    // Predicated region
    $region58: #{_episodes.1} parent=1 // pred_check
      _
    $region59: #{_episodes.1} parent=1 // pred_check_branch
      %10272 = sbr.rel (0) target = $region61
    $region60: #{_episodes.1} parent=1 // pred_region
      _
    $region61: #{_episodes.1} parent=1 // pred_fallthru
      _
    // Predicated region
    $region62: #{_episodes.1} parent=1 // pred_check
      _
    $region63: #{_episodes.1} parent=1 // pred_check_branch
      %10274 = sbr.rel (0) target = $region65
    $region64: #{_episodes.1} parent=1 // pred_region
      %s10276 = ssub.s32 4096, 4096
      %10277 = vsyncadd [#allocation9], %s10276
      %s10278 = sshll.u32 [#allocation8], 4
      %s10279 = int_to_ptr.vmem [resolvable:$true] %s10278
      %10284 = dma.vmem_to_hbm [thread:$0]  %s10279, 4096, %s15, [#allocation9], 1024, 1024, 64
    $region65: #{_episodes.1} parent=1 // pred_fallthru
      _
    // Predicated region
    $region66: #{_episodes.1} parent=1 // pred_check
      _
    $region67: #{_episodes.1} parent=1 // pred_check_branch
      %10286 = sbr.rel (0) target = $region69
    $region68: #{_episodes.1} parent=1 // pred_region
      _
    $region69: #{_episodes.1} parent=1 // pred_fallthru
      _
    // Predicated region
    $region70: #{_episodes.1} parent=1 // pred_check
      _
    $region71: #{_episodes.1} parent=1 // pred_check_branch
      %10288 = sbr.rel (0) target = $region73
    $region72: #{_episodes.1} parent=1 // pred_region
      %10289 = dma.done [#allocation9], 4096
    $region73: #{_episodes.1} parent=1 // pred_fallthru
      _
    %10290 = vsyncpa [#allocation9], 1

</llo_original>
